<compile_context>
chip_gen: v7x
topology: tpu7x:2x2x1
jax: 0.10.0
libtpu: 0.0.40
codegen_flags: <defaults>
</compile_context>

<pallas_src>
import functools
import itertools
import math

import jax
import jax.numpy as jnp
from jax import lax
from jax.experimental import pallas as pl
from jax.experimental.pallas import tpu as pltpu


# ------------------------------ fused kernel -------------------------------

def _forward_kernel(src_ref, trg_ref, slab_ref, out_ref, *,
                    meta, offsets, num_heads, dh):
    Hdh = num_heads * dh
    scale = 1.0 / math.sqrt(dh)

    def get(name):
        # Lazy load from the packed parameter slab (static slice -> view+load).
        off, r, c = offsets[name]
        return slab_ref[off:off + r, 0:c]

    def ff(layer_names, x):
        n = len(layer_names)
        for i, (wn, bn) in enumerate(layer_names):
            x = jnp.dot(x, get(wn), preferred_element_type=jnp.float32) + get(bn)
            if i < n - 1:
                x = jnp.maximum(x, 0.0)
        return x

    def add_layernorm(x, res, gn, bn):
        # fused residual + layernorm
        x = x + res
        mu = jnp.mean(x, axis=-1, keepdims=True)
        var = jnp.mean(jnp.square(x - mu), axis=-1, keepdims=True)
        return (x - mu) * lax.rsqrt(var + 1e-5) * get(gn) + get(bn)

    def mha(q, kv, wo_name, bo_name, bias_names):
        # q: (Nq, H*dh); kv: (Nk, 2*H*dh) laid out [k heads | v heads].
        ctxs = []
        for h in range(num_heads):
            qh = q[:, h * dh:(h + 1) * dh]
            kh = kv[:, h * dh:(h + 1) * dh]
            vh = kv[:, Hdh + h * dh:Hdh + (h + 1) * dh]
            # contract last dims directly -> no in-kernel transpose of kh
            s = lax.dot_general(qh, kh, (((1,), (1,)), ((), ())),
                                preferred_element_type=jnp.float32) * scale
            if bias_names is not None:
                s = s + get(bias_names[h])
            m = jnp.max(s, axis=-1, keepdims=True)
            p = jnp.exp(s - m)
            p = p * pl.reciprocal(jnp.sum(p, axis=-1, keepdims=True), approx=True)
            ctxs.append(jnp.dot(p, vh, preferred_element_type=jnp.float32))
        ctx = jnp.concatenate(ctxs, axis=-1)            # (Nq, H*dh)
        return (jnp.dot(ctx, get(wo_name), preferred_element_type=jnp.float32)
                + get(bo_name))

    src = src_ref[0]     # (Bp*S_src, d_source)
    trg = trg_ref[0]     # (Bp*S_dec, d_target + num_flags)

    src = ff(meta["src_emb"], src)
    trg = ff(meta["tgt_emb"], trg)

    for enc in meta["enc"]:
        qkv = (jnp.dot(src, get(enc["wqkv"]), preferred_element_type=jnp.float32)
               + get(enc["bqkv"]))
        a = mha(qkv[:, :Hdh], qkv[:, Hdh:], enc["wo"], enc["bo"], enc["bias"])
        src = add_layernorm(src, a, *enc["ln1"])
        f = ff(enc["ffn"], src)
        src = add_layernorm(src, f, *enc["ln2"])

    for dec in meta["dec"]:
        qkv = (jnp.dot(trg, get(dec["wqkv"]), preferred_element_type=jnp.float32)
               + get(dec["bqkv"]))
        a = mha(qkv[:, :Hdh], qkv[:, Hdh:], dec["wo"], dec["bo"], dec["bias"])
        trg = add_layernorm(trg, a, *dec["ln1"])
        xq = (jnp.dot(trg, get(dec["xwq"]), preferred_element_type=jnp.float32)
              + get(dec["xbq"]))
        xkv = (jnp.dot(src, get(dec["xwkv"]), preferred_element_type=jnp.float32)
               + get(dec["xbkv"]))
        a2 = mha(xq, xkv, dec["xwo"], dec["xbo"], dec["xbias"])
        trg = add_layernorm(trg, a2, *dec["ln2"])
        f = ff(dec["ffn"], trg)
        trg = add_layernorm(trg, f, *dec["ln3"])

    # Block-diagonally packed prediction heads -> lane-placed PDW|Action slab.
    out_ref[0] = ff(meta["pred"], trg).astype(out_ref.dtype)


# ------------------------- host-side param packing --------------------------

class _SlabBuilder:
    """Packs many small 2-D params into one sublane-aligned (rows, 128) slab."""

    def __init__(self, width=128):
        self.width = width
        self.blocks = []
        self.offsets = {}
        self.cur = 0

    def add(self, name, arr):
        arr = jnp.asarray(arr, jnp.float32)
        if arr.ndim == 1:
            arr = arr.reshape(1, -1)
        r, c = arr.shape
        assert c <= self.width, (name, arr.shape)
        r_pad = ((r + 7) // 8) * 8
        block = jnp.zeros((r_pad, self.width), jnp.float32).at[:r, :c].set(arr)
        self.blocks.append(block)
        self.offsets[name] = (self.cur, r, c)
        self.cur += r_pad
        return name

    def build(self):
        return jnp.concatenate(self.blocks, axis=0), self.offsets


def _block_diag(*mats):
    rows = sum(m.shape[0] for m in mats)
    cols = sum(m.shape[1] for m in mats)
    out = jnp.zeros((rows, cols), jnp.float32)
    r = c = 0
    for m in mats:
        out = out.at[r:r + m.shape[0], c:c + m.shape[1]].set(m)
        r += m.shape[0]
        c += m.shape[1]
    return out


def _rel_bias(table, Sq, Sk, clip):
    i = jnp.arange(Sq)[:, None]
    j = jnp.arange(Sk)[None, :]
    rel = jnp.clip(j - i, -clip, clip) + clip
    return table[:, rel]            # (H, Sq, Sk)


def _batched(block, Bp, fill=-1e9):
    """Block-diagonal replication of a (Sq, Sk) attention bias over Bp stacked
    batch elements (cross-batch attention masked with `fill`)."""
    if Bp == 1:
        return block
    Sq, Sk = block.shape
    out = jnp.full((Bp * Sq, Bp * Sk), fill, jnp.float32)
    for b in range(Bp):
        out = out.at[b * Sq:(b + 1) * Sq, b * Sk:(b + 1) * Sk].set(block)
    return out


def pack_params(params, cfg, Bp, S_src, S_dec):
    H = cfg["num_heads"]
    sb = _SlabBuilder()
    counter = itertools.count()

    def add(tag, arr):
        return sb.add(f"{tag}{next(counter)}", arr)

    def ff_names(tag, layers):
        return [(add(tag + "w", w), add(tag + "b", b.reshape(1, -1)))
                for (w, b) in layers]

    def fused_qkv(a):
        w = jnp.concatenate([a["Wq"], a["Wk"], a["Wv"]], axis=1)   # (d_in, 3*H*dh)
        b = jnp.concatenate([a["bq"], a["bk"], a["bv"]]).reshape(1, -1)
        return w, b

    meta = {
        "src_emb": ff_names("se", params["SourceEmbedding"]),
        "tgt_emb": ff_names("te", params["TargetEmbedding"]),
    }

    # ---- encoders ----
    enc_mask_names = None
    enc_meta = []
    for enc in params["Encoders"]:
        a = enc["attn"]
        wqkv, bqkv = fused_qkv(a)
        d = {
            "wqkv": add("ewqkv", wqkv), "bqkv": add("ebqkv", bqkv),
            "wo": add("ewo", a["Wo"]), "bo": add("ebo", a["bo"].reshape(1, -1)),
            "ln1": (add("eg", enc["ln1"]["gamma"].reshape(1, -1)),
                    add("eb", enc["ln1"]["beta"].reshape(1, -1))),
            "ffn": ff_names("effn", enc["ffn"]),
            "ln2": (add("eg", enc["ln2"]["gamma"].reshape(1, -1)),
                    add("eb", enc["ln2"]["beta"].reshape(1, -1))),
        }
        if enc["rel"] is not None:
            rb = _rel_bias(enc["rel"], S_src, S_src, cfg["RPR_enc"])
            d["bias"] = [add("ebias", _batched(rb[h], Bp)) for h in range(H)]
        elif Bp > 1:
            if enc_mask_names is None:
                n = add("emask", _batched(jnp.zeros((S_src, S_src), jnp.float32), Bp))
                enc_mask_names = [n] * H
            d["bias"] = enc_mask_names
        else:
            d["bias"] = None
        enc_meta.append(d)
    meta["enc"] = enc_meta

    # ---- decoders ----
    idx = jnp.arange(S_dec)
    causal = jnp.where(idx[None, :] > idx[:, None], -1e9, 0.0).astype(jnp.float32)
    xmask_names = None
    if Bp > 1:
        n = add("xmask", _batched(jnp.zeros((S_dec, S_src), jnp.float32), Bp))
        xmask_names = [n] * H

    dec_meta = []
    for dec in params["Decoders"]:
        sa, ca = dec["self_attn"], dec["cross_attn"]
        wqkv, bqkv = fused_qkv(sa)
        rb = _rel_bias(dec["rel"], S_dec, S_dec, cfg["RPR_dec"])
        d = {
            "wqkv": add("dwqkv", wqkv), "bqkv": add("dbqkv", bqkv),
            "wo": add("dwo", sa["Wo"]), "bo": add("dbo", sa["bo"].reshape(1, -1)),
            "bias": [add("dbias", _batched(rb[h] + causal, Bp)) for h in range(H)],
            "ln1": (add("dg", dec["ln1"]["gamma"].reshape(1, -1)),
                    add("db", dec["ln1"]["beta"].reshape(1, -1))),
            "xwq": add("xwq", ca["Wq"]), "xbq": add("xbq", ca["bq"].reshape(1, -1)),
            "xwkv": add("xwkv", jnp.concatenate([ca["Wk"], ca["Wv"]], axis=1)),
            "xbkv": add("xbkv", jnp.concatenate([ca["bk"], ca["bv"]]).reshape(1, -1)),
            "xwo": add("xwo", ca["Wo"]), "xbo": add("xbo", ca["bo"].reshape(1, -1)),
            "xbias": xmask_names,
            "ln2": (add("dg", dec["ln2"]["gamma"].reshape(1, -1)),
                    add("db", dec["ln2"]["beta"].reshape(1, -1))),
            "ffn": ff_names("dffn", dec["ffn"]),
            "ln3": (add("dg", dec["ln3"]["gamma"].reshape(1, -1)),
                    add("db", dec["ln3"]["beta"].reshape(1, -1))),
        }
        dec_meta.append(d)
    meta["dec"] = dec_meta

    # ---- prediction heads: block-diagonal packed into one chain ----
    def pad_with_identity(layers, depth):
        # Insert identity layers just before the final layer; the extra ReLU
        # there is a no-op because the preceding hidden layer is already ReLU'd.
        layers = list(layers)
        while len(layers) < depth:
            d_mid = layers[-1][0].shape[0]
            layers = layers[:-1] + [(jnp.eye(d_mid, dtype=jnp.float32),
                                     jnp.zeros((d_mid,), jnp.float32)),
                                    layers[-1]]
        return layers

    heads = [params["PhysicalPrediction"], params["FlagsPrediction"],
             params["ActionPrediction"]]
    depth = max(len(h) for h in heads)
    heads = [pad_with_identity(h, depth) for h in heads]
    pred = []
    for i in range(depth):
        ws = [h[i][0] for h in heads]
        bs = [h[i][1] for h in heads]
        w = jnp.concatenate(ws, axis=1) if i == 0 else _block_diag(*ws)
        b = jnp.concatenate(bs).reshape(1, -1)
        pred.append((add("pw", w), add("pb", b)))
    meta["pred"] = pred

    slab, offsets = sb.build()
    return slab, offsets, meta


# ------------------------------ forward wrapper -----------------------------

def transformer_forward(params, cfg, source, target, num_programs=2):
    B, tgt_len, d_raw = target.shape
    assert d_raw == cfg["d_target"] + cfg["num_flags"]
    if cfg["target_len"] - tgt_len < 0:
        raise ValueError("max len in the target reached")

    # trg = cat(targetStart, target); pad to target_len+1 rows, then up to a
    # multiple of 8 sublanes (causal mask keeps pad rows inert; sliced off).
    start = jnp.broadcast_to(params["targetStart"][None, :, :], (B, 1, d_raw))
    trg_in = jnp.concatenate([start, target], axis=1)
    S_out = cfg["target_len"] + 1
    S_dec = ((S_out + 7) // 8) * 8
    trg_in = jnp.pad(trg_in, ((0, 0), (0, S_dec - trg_in.shape[1]), (0, 0)))

    S_src, d_src = source.shape[1], source.shape[2]
    d_out_total = cfg["d_target"] + cfg["num_flags"] + 1

    # G programs (=2 keeps both v7x TensorCores busy); each program processes
    # B/G batch elements stacked along the sublane axis.  Use num_programs=1
    # on single-TC v5e/v6e for maximum sublane fill.
    G = num_programs if (num_programs > 0 and B % num_programs == 0) else 1
    Bp = B // G

    slab, offsets, meta = pack_params(params, cfg, Bp, S_src, S_dec)

    src_in = source.reshape(G, Bp * S_src, d_src)
    trg_stacked = trg_in.reshape(G, Bp * S_dec, d_raw)

    H = cfg["num_heads"]
    dh = cfg["d_att"] // H
    kernel = functools.partial(_forward_kernel, meta=meta, offsets=offsets,
                               num_heads=H, dh=dh)

    out = pl.pallas_call(
        kernel,
        out_shape=jax.ShapeDtypeStruct((G, Bp * S_dec, d_out_total), jnp.float32),
        grid=(G,),
        in_specs=[
            pl.BlockSpec((1, Bp * S_src, d_src), lambda g: (g, 0, 0)),
            pl.BlockSpec((1, Bp * S_dec, d_raw), lambda g: (g, 0, 0)),
            pl.BlockSpec(slab.shape, lambda g: (0, 0)),   # constant -> fetched once
        ],
        out_specs=pl.BlockSpec((1, Bp * S_dec, d_out_total), lambda g: (g, 0, 0)),
        compiler_params=pltpu.CompilerParams(
            dimension_semantics=("parallel",),
            vmem_limit_bytes=32 * 1024 * 1024),
    )(src_in, trg_stacked, slab)

    out = out.reshape(B, S_dec, d_out_total)[:, :S_out]
    split = cfg["d_target"] + cfg["num_flags"]
    PDW = out[..., :split]
    Action = out[..., split:]
    return PDW, Action


# ------------------------------ parameter init ------------------------------

class KeyGen:
    def __init__(self, key):
        self.key = key

    def __call__(self):
        self.key, sub = jax.random.split(self.key)
        return sub


def init_ff(kg, dims):
    layers = []
    for d_in, d_out in zip(dims[:-1], dims[1:]):
        w = 0.1 * jax.random.normal(kg(), (d_in, d_out), jnp.float32)
        b = 0.1 * jax.random.normal(kg(), (d_out,), jnp.float32)
        layers.append((w, b))
    return layers


def init_attn(kg, d_model_q, d_model_kv, d_att):
    return {
        "Wq": 0.1 * jax.random.normal(kg(), (d_model_q, d_att), jnp.float32),
        "bq": jnp.zeros((d_att,), jnp.float32),
        "Wk": 0.1 * jax.random.normal(kg(), (d_model_kv, d_att), jnp.float32),
        "bk": jnp.zeros((d_att,), jnp.float32),
        "Wv": 0.1 * jax.random.normal(kg(), (d_model_kv, d_att), jnp.float32),
        "bv": jnp.zeros((d_att,), jnp.float32),
        "Wo": 0.1 * jax.random.normal(kg(), (d_att, d_model_q), jnp.float32),
        "bo": jnp.zeros((d_model_q,), jnp.float32),
    }


def init_ln(d):
    return {"gamma": jnp.ones((d,), jnp.float32), "beta": jnp.zeros((d,), jnp.float32)}


def init_model(key, cfg):
    kg = KeyGen(key)
    d_enc, d_dec, d_att = cfg["d_input_Enc"], cfg["d_input_Dec"], cfg["d_att"]
    H = cfg["num_heads"]
    params = {}
    params["targetStart"] = jax.random.normal(
        kg(), (1, cfg["d_target"] + cfg["num_flags"]), jnp.float32)
    params["SourceEmbedding"] = init_ff(kg, [cfg["d_source"], 16, d_enc])
    params["TargetEmbedding"] = init_ff(kg, [cfg["d_target"] + cfg["num_flags"], 16, d_dec])
    params["PhysicalPrediction"] = init_ff(kg, [d_dec, 16, 32, 16, cfg["d_target"]])
    params["FlagsPrediction"] = init_ff(kg, [d_dec, 32, 8, cfg["num_flags"]])
    params["ActionPrediction"] = init_ff(kg, [d_dec, 32, 8, 1])

    encoders = []
    for li in range(cfg["num_encoders"]):
        encoders.append({
            "attn": init_attn(kg, d_enc, d_enc, d_att),
            "ln1": init_ln(d_enc),
            "ffn": init_ff(kg, [d_enc, 2 * d_enc, d_enc]),
            "ln2": init_ln(d_enc),
            "rel": (0.1 * jax.random.normal(kg(), (H, 2 * cfg["RPR_enc"] + 1), jnp.float32)
                    if li == 0 else None),
        })
    params["Encoders"] = encoders

    decoders = []
    for _ in range(cfg["num_decoders"]):
        decoders.append({
            "self_attn": init_attn(kg, d_dec, d_dec, d_att),
            "rel": 0.1 * jax.random.normal(kg(), (H, 2 * cfg["RPR_dec"] + 1), jnp.float32),
            "ln1": init_ln(d_dec),
            "cross_attn": init_attn(kg, d_dec, d_enc, d_att),
            "ln2": init_ln(d_dec),
            "ffn": init_ff(kg, [d_dec, 2 * d_dec, d_dec]),
            "ln3": init_ln(d_dec),
        })
    params["Decoders"] = decoders
    return params


# ----------------------------------- main -----------------------------------

if __name__ == "__main__":
    cfg = dict(
        d_source=6, d_target=5, num_flags=4,
        d_input_Enc=8, d_input_Dec=8, d_att=8, num_heads=2,
        num_encoders=2, num_decoders=2,
        target_len=15, RPR_enc=8, RPR_dec=4,   # target_len+1 = 16 (sublane aligned)
    )
    key = jax.random.PRNGKey(0)
    pkey, skey, tkey = jax.random.split(key, 3)
    params = init_model(pkey, cfg)

    B, S_src = 2, 8
    source = jax.random.normal(skey, (B, S_src, cfg["d_source"]), jnp.float32)
    target = jax.random.normal(
        tkey, (B, cfg["target_len"], cfg["d_target"] + cfg["num_flags"]), jnp.float32)

    fwd = jax.jit(lambda p, s, t: transformer_forward(p, cfg, s, t))
    PDW, Action = fwd(params, source, target)
    jax.block_until_ready((PDW, Action))

    assert PDW.shape == (B, cfg["target_len"] + 1, cfg["d_target"] + cfg["num_flags"])
    assert Action.shape == (B, cfg["target_len"] + 1, 1)
    assert bool(jnp.all(jnp.isfinite(PDW))) and bool(jnp.all(jnp.isfinite(Action)))
    print("KERNEL_OK")
</pallas_src>

<mosaic_0001>
module attributes {stable_mosaic.version = 11 : i64} {
  func.func @_forward_kernel(%arg0: i32, %arg1: memref<1x8x6xf32, #tpu.memory_space<vmem>>, %arg2: memref<1x16x9xf32, #tpu.memory_space<vmem>>, %arg3: memref<912x128xf32, #tpu.memory_space<vmem>>, %arg4: memref<1x16x10xf32, #tpu.memory_space<vmem>>) attributes {dimension_semantics = [#tpu.dimension_semantics<parallel>], iteration_bounds = array<i64: 2>, scalar_prefetch = 0 : i64, scratch_operands = 0 : i64, tpu.core_type = #tpu.core_type<tc>, window_params = [{transform_indices = @transform_0, window_bounds = array<i64: 1, 8, 6>}, {transform_indices = @transform_1, window_bounds = array<i64: 1, 16, 9>}, {pipeline_mode = #tpu.pipeline_mode<synchronous>, transform_indices = @transform_2, window_bounds = array<i64: 912, 128>}, {transform_indices = @transform_3, window_bounds = array<i64: 1, 16, 10>}]} {
    %c0 = arith.constant 0 : index
    %c0_0 = arith.constant 0 : index
    %c0_1 = arith.constant 0 : index
    %0 = vector.load %arg1[%c0, %c0_0, %c0_1] : memref<1x8x6xf32, #tpu.memory_space<vmem>>, vector<1x8x6xf32>
    %1 = vector.shape_cast %0 : vector<1x8x6xf32> to vector<8x6xf32>
    %c0_2 = arith.constant 0 : index
    %c0_3 = arith.constant 0 : index
    %c0_4 = arith.constant 0 : index
    %2 = vector.load %arg2[%c0_2, %c0_3, %c0_4] : memref<1x16x9xf32, #tpu.memory_space<vmem>>, vector<1x16x9xf32>
    %3 = vector.shape_cast %2 : vector<1x16x9xf32> to vector<16x9xf32>
    %c0_5 = arith.constant 0 : index
    %c0_6 = arith.constant 0 : index
    %4 = vector.load %arg3[%c0_5, %c0_6] : memref<912x128xf32, #tpu.memory_space<vmem>>, vector<6x16xf32>
    %cst = arith.constant dense<0.000000e+00> : vector<8x16xf32>
    %5 = tpu.matmul %1, %4, %cst {dimension_numbers = #tpu.dot_dimension_numbers<[1], [0], [0], [1], [0, 0, 1, 1], [], []>} : vector<8x6xf32>, vector<6x16xf32>, vector<8x16xf32> -> vector<8x16xf32>
    %c8 = arith.constant 8 : index
    %c0_7 = arith.constant 0 : index
    %6 = vector.load %arg3[%c8, %c0_7] : memref<912x128xf32, #tpu.memory_space<vmem>>, vector<1x16xf32>
    %7 = vector.broadcast %6 : vector<1x16xf32> to vector<8x16xf32>
    %8 = arith.addf %5, %7 : vector<8x16xf32>
    %cst_8 = arith.constant 0.000000e+00 : f32
    %9 = vector.broadcast %cst_8 : f32 to vector<8x16xf32>
    %10 = arith.maximumf %8, %9 : vector<8x16xf32>
    %c16 = arith.constant 16 : index
    %c0_9 = arith.constant 0 : index
    %11 = vector.load %arg3[%c16, %c0_9] : memref<912x128xf32, #tpu.memory_space<vmem>>, vector<16x8xf32>
    %cst_10 = arith.constant dense<0.000000e+00> : vector<8x8xf32>
    %12 = tpu.matmul %10, %11, %cst_10 {dimension_numbers = #tpu.dot_dimension_numbers<[1], [0], [0], [1], [0, 0, 1, 1], [], []>} : vector<8x16xf32>, vector<16x8xf32>, vector<8x8xf32> -> vector<8x8xf32>
    %c32 = arith.constant 32 : index
    %c0_11 = arith.constant 0 : index
    %13 = vector.load %arg3[%c32, %c0_11] : memref<912x128xf32, #tpu.memory_space<vmem>>, vector<1x8xf32>
    %14 = vector.broadcast %13 : vector<1x8xf32> to vector<8x8xf32>
    %15 = arith.addf %12, %14 : vector<8x8xf32>
    %c40 = arith.constant 40 : index
    %c0_12 = arith.constant 0 : index
    %16 = vector.load %arg3[%c40, %c0_12] : memref<912x128xf32, #tpu.memory_space<vmem>>, vector<9x16xf32>
    %cst_13 = arith.constant dense<0.000000e+00> : vector<16x16xf32>
    %17 = tpu.matmul %3, %16, %cst_13 {dimension_numbers = #tpu.dot_dimension_numbers<[1], [0], [0], [1], [0, 0, 1, 1], [], []>} : vector<16x9xf32>, vector<9x16xf32>, vector<16x16xf32> -> vector<16x16xf32>
    %c56 = arith.constant 56 : index
    %c0_14 = arith.constant 0 : index
    %18 = vector.load %arg3[%c56, %c0_14] : memref<912x128xf32, #tpu.memory_space<vmem>>, vector<1x16xf32>
    %19 = vector.broadcast %18 : vector<1x16xf32> to vector<16x16xf32>
    %20 = arith.addf %17, %19 : vector<16x16xf32>
    %cst_15 = arith.constant 0.000000e+00 : f32
    %21 = vector.broadcast %cst_15 : f32 to vector<16x16xf32>
    %22 = arith.maximumf %20, %21 : vector<16x16xf32>
    %c64 = arith.constant 64 : index
    %c0_16 = arith.constant 0 : index
    %23 = vector.load %arg3[%c64, %c0_16] : memref<912x128xf32, #tpu.memory_space<vmem>>, vector<16x8xf32>
    %cst_17 = arith.constant dense<0.000000e+00> : vector<16x8xf32>
    %24 = tpu.matmul %22, %23, %cst_17 {dimension_numbers = #tpu.dot_dimension_numbers<[1], [0], [0], [1], [0, 0, 1, 1], [], []>} : vector<16x16xf32>, vector<16x8xf32>, vector<16x8xf32> -> vector<16x8xf32>
    %c80 = arith.constant 80 : index
    %c0_18 = arith.constant 0 : index
    %25 = vector.load %arg3[%c80, %c0_18] : memref<912x128xf32, #tpu.memory_space<vmem>>, vector<1x8xf32>
    %26 = vector.broadcast %25 : vector<1x8xf32> to vector<16x8xf32>
    %27 = arith.addf %24, %26 : vector<16x8xf32>
    %c88 = arith.constant 88 : index
    %c0_19 = arith.constant 0 : index
    %28 = vector.load %arg3[%c88, %c0_19] : memref<912x128xf32, #tpu.memory_space<vmem>>, vector<8x24xf32>
    %cst_20 = arith.constant dense<0.000000e+00> : vector<8x24xf32>
    %29 = tpu.matmul %15, %28, %cst_20 {dimension_numbers = #tpu.dot_dimension_numbers<[1], [0], [0], [1], [0, 0, 1, 1], [], []>} : vector<8x8xf32>, vector<8x24xf32>, vector<8x24xf32> -> vector<8x24xf32>
    %c96 = arith.constant 96 : index
    %c0_21 = arith.constant 0 : index
    %30 = vector.load %arg3[%c96, %c0_21] : memref<912x128xf32, #tpu.memory_space<vmem>>, vector<1x24xf32>
    %31 = vector.broadcast %30 : vector<1x24xf32> to vector<8x24xf32>
    %32 = arith.addf %29, %31 : vector<8x24xf32>
    %33 = vector.extract_strided_slice %32 {offsets = [0, 0], sizes = [8, 8], strides = [1, 1]} : vector<8x24xf32> to vector<8x8xf32>
    %34 = vector.extract_strided_slice %32 {offsets = [0, 8], sizes = [8, 16], strides = [1, 1]} : vector<8x24xf32> to vector<8x16xf32>
    %35 = vector.extract_strided_slice %33 {offsets = [0, 0], sizes = [8, 4], strides = [1, 1]} : vector<8x8xf32> to vector<8x4xf32>
    %36 = vector.extract_strided_slice %34 {offsets = [0, 0], sizes = [8, 4], strides = [1, 1]} : vector<8x16xf32> to vector<8x4xf32>
    %37 = vector.extract_strided_slice %34 {offsets = [0, 8], sizes = [8, 4], strides = [1, 1]} : vector<8x16xf32> to vector<8x4xf32>
    %cst_22 = arith.constant dense<0.000000e+00> : vector<8x8xf32>
    %38 = tpu.matmul %35, %36, %cst_22 {dimension_numbers = #tpu.dot_dimension_numbers<[1], [1], [0], [0], [0, 0, 1, 0], [], []>} : vector<8x4xf32>, vector<8x4xf32>, vector<8x8xf32> -> vector<8x8xf32>
    %cst_23 = arith.constant 5.000000e-01 : f32
    %39 = vector.broadcast %cst_23 : f32 to vector<8x8xf32>
    %40 = arith.mulf %38, %39 : vector<8x8xf32>
    %c192 = arith.constant 192 : index
    %c0_24 = arith.constant 0 : index
    %41 = vector.load %arg3[%c192, %c0_24] : memref<912x128xf32, #tpu.memory_space<vmem>>, vector<8x8xf32>
    %42 = arith.addf %40, %41 : vector<8x8xf32>
    %cst_25 = arith.constant dense<0xFF800000> : vector<8xf32>
    %43 = vector.multi_reduction <maximumf>, %42, %cst_25 [1] : vector<8x8xf32> to vector<8xf32>
    %44 = vector.shape_cast %43 : vector<8xf32> to vector<8x1xf32>
    %45 = vector.broadcast %44 : vector<8x1xf32> to vector<8x8xf32>
    %46 = arith.subf %42, %45 : vector<8x8xf32>
    %47 = math.exp %46 : vector<8x8xf32>
    %cst_26 = arith.constant dense<0.000000e+00> : vector<8xf32>
    %48 = vector.multi_reduction <add>, %47, %cst_26 [1] : vector<8x8xf32> to vector<8xf32>
    %49 = vector.shape_cast %48 : vector<8xf32> to vector<8x1xf32>
    %50 = tpu.reciprocal %49 {approx = true} : vector<8x1xf32> -> vector<8x1xf32>
    %51 = vector.broadcast %50 : vector<8x1xf32> to vector<8x8xf32>
    %52 = arith.mulf %47, %51 : vector<8x8xf32>
    %cst_27 = arith.constant dense<0.000000e+00> : vector<8x4xf32>
    %53 = tpu.matmul %52, %37, %cst_27 {dimension_numbers = #tpu.dot_dimension_numbers<[1], [0], [0], [1], [0, 0, 1, 1], [], []>} : vector<8x8xf32>, vector<8x4xf32>, vector<8x4xf32> -> vector<8x4xf32>
    %54 = vector.extract_strided_slice %33 {offsets = [0, 4], sizes = [8, 4], strides = [1, 1]} : vector<8x8xf32> to vector<8x4xf32>
    %55 = vector.extract_strided_slice %34 {offsets = [0, 4], sizes = [8, 4], strides = [1, 1]} : vector<8x16xf32> to vector<8x4xf32>
    %56 = vector.extract_strided_slice %34 {offsets = [0, 12], sizes = [8, 4], strides = [1, 1]} : vector<8x16xf32> to vector<8x4xf32>
    %cst_28 = arith.constant dense<0.000000e+00> : vector<8x8xf32>
    %57 = tpu.matmul %54, %55, %cst_28 {dimension_numbers = #tpu.dot_dimension_numbers<[1], [1], [0], [0], [0, 0, 1, 0], [], []>} : vector<8x4xf32>, vector<8x4xf32>, vector<8x8xf32> -> vector<8x8xf32>
    %cst_29 = arith.constant 5.000000e-01 : f32
    %58 = vector.broadcast %cst_29 : f32 to vector<8x8xf32>
    %59 = arith.mulf %57, %58 : vector<8x8xf32>
    %c200 = arith.constant 200 : index
    %c0_30 = arith.constant 0 : index
    %60 = vector.load %arg3[%c200, %c0_30] : memref<912x128xf32, #tpu.memory_space<vmem>>, vector<8x8xf32>
    %61 = arith.addf %59, %60 : vector<8x8xf32>
    %cst_31 = arith.constant dense<0xFF800000> : vector<8xf32>
    %62 = vector.multi_reduction <maximumf>, %61, %cst_31 [1] : vector<8x8xf32> to vector<8xf32>
    %63 = vector.shape_cast %62 : vector<8xf32> to vector<8x1xf32>
    %64 = vector.broadcast %63 : vector<8x1xf32> to vector<8x8xf32>
    %65 = arith.subf %61, %64 : vector<8x8xf32>
    %66 = math.exp %65 : vector<8x8xf32>
    %cst_32 = arith.constant dense<0.000000e+00> : vector<8xf32>
    %67 = vector.multi_reduction <add>, %66, %cst_32 [1] : vector<8x8xf32> to vector<8xf32>
    %68 = vector.shape_cast %67 : vector<8xf32> to vector<8x1xf32>
    %69 = tpu.reciprocal %68 {approx = true} : vector<8x1xf32> -> vector<8x1xf32>
    %70 = vector.broadcast %69 : vector<8x1xf32> to vector<8x8xf32>
    %71 = arith.mulf %66, %70 : vector<8x8xf32>
    %cst_33 = arith.constant dense<0.000000e+00> : vector<8x4xf32>
    %72 = tpu.matmul %71, %56, %cst_33 {dimension_numbers = #tpu.dot_dimension_numbers<[1], [0], [0], [1], [0, 0, 1, 1], [], []>} : vector<8x8xf32>, vector<8x4xf32>, vector<8x4xf32> -> vector<8x4xf32>
    %73 = tpu.concatenate %53, %72 in 1 : vector<8x4xf32>, vector<8x4xf32> -> vector<8x8xf32>
    %c104 = arith.constant 104 : index
    %c0_34 = arith.constant 0 : index
    %74 = vector.load %arg3[%c104, %c0_34] : memref<912x128xf32, #tpu.memory_space<vmem>>, vector<8x8xf32>
    %cst_35 = arith.constant dense<0.000000e+00> : vector<8x8xf32>
    %75 = tpu.matmul %73, %74, %cst_35 {dimension_numbers = #tpu.dot_dimension_numbers<[1], [0], [0], [1], [0, 0, 1, 1], [], []>} : vector<8x8xf32>, vector<8x8xf32>, vector<8x8xf32> -> vector<8x8xf32>
    %c112 = arith.constant 112 : index
    %c0_36 = arith.constant 0 : index
    %76 = vector.load %arg3[%c112, %c0_36] : memref<912x128xf32, #tpu.memory_space<vmem>>, vector<1x8xf32>
    %77 = vector.broadcast %76 : vector<1x8xf32> to vector<8x8xf32>
    %78 = arith.addf %75, %77 : vector<8x8xf32>
    %79 = arith.addf %15, %78 : vector<8x8xf32>
    %cst_37 = arith.constant dense<0.000000e+00> : vector<8xf32>
    %80 = vector.multi_reduction <add>, %79, %cst_37 [1] : vector<8x8xf32> to vector<8xf32>
    %81 = vector.shape_cast %80 : vector<8xf32> to vector<8x1xf32>
    %cst_38 = arith.constant 8.000000e+00 : f32
    %82 = vector.broadcast %cst_38 : f32 to vector<8x1xf32>
    %83 = arith.divf %81, %82 : vector<8x1xf32>
    %84 = vector.broadcast %83 : vector<8x1xf32> to vector<8x8xf32>
    %85 = arith.subf %79, %84 : vector<8x8xf32>
    %86 = arith.mulf %85, %85 : vector<8x8xf32>
    %cst_39 = arith.constant dense<0.000000e+00> : vector<8xf32>
    %87 = vector.multi_reduction <add>, %86, %cst_39 [1] : vector<8x8xf32> to vector<8xf32>
    %88 = vector.shape_cast %87 : vector<8xf32> to vector<8x1xf32>
    %cst_40 = arith.constant 8.000000e+00 : f32
    %89 = vector.broadcast %cst_40 : f32 to vector<8x1xf32>
    %90 = arith.divf %88, %89 : vector<8x1xf32>
    %91 = vector.broadcast %83 : vector<8x1xf32> to vector<8x8xf32>
    %92 = arith.subf %79, %91 : vector<8x8xf32>
    %cst_41 = arith.constant 9.99999974E-6 : f32
    %93 = vector.broadcast %cst_41 : f32 to vector<8x1xf32>
    %94 = arith.addf %90, %93 : vector<8x1xf32>
    %95 = math.rsqrt %94 : vector<8x1xf32>
    %96 = vector.broadcast %95 : vector<8x1xf32> to vector<8x8xf32>
    %97 = arith.mulf %92, %96 : vector<8x8xf32>
    %c120 = arith.constant 120 : index
    %c0_42 = arith.constant 0 : index
    %98 = vector.load %arg3[%c120, %c0_42] : memref<912x128xf32, #tpu.memory_space<vmem>>, vector<1x8xf32>
    %99 = vector.broadcast %98 : vector<1x8xf32> to vector<8x8xf32>
    %100 = arith.mulf %97, %99 : vector<8x8xf32>
    %c128 = arith.constant 128 : index
    %c0_43 = arith.constant 0 : index
    %101 = vector.load %arg3[%c128, %c0_43] : memref<912x128xf32, #tpu.memory_space<vmem>>, vector<1x8xf32>
    %102 = vector.broadcast %101 : vector<1x8xf32> to vector<8x8xf32>
    %103 = arith.addf %100, %102 : vector<8x8xf32>
    %c136 = arith.constant 136 : index
    %c0_44 = arith.constant 0 : index
    %104 = vector.load %arg3[%c136, %c0_44] : memref<912x128xf32, #tpu.memory_space<vmem>>, vector<8x16xf32>
    %cst_45 = arith.constant dense<0.000000e+00> : vector<8x16xf32>
    %105 = tpu.matmul %103, %104, %cst_45 {dimension_numbers = #tpu.dot_dimension_numbers<[1], [0], [0], [1], [0, 0, 1, 1], [], []>} : vector<8x8xf32>, vector<8x16xf32>, vector<8x16xf32> -> vector<8x16xf32>
    %c144 = arith.constant 144 : index
    %c0_46 = arith.constant 0 : index
    %106 = vector.load %arg3[%c144, %c0_46] : memref<912x128xf32, #tpu.memory_space<vmem>>, vector<1x16xf32>
    %107 = vector.broadcast %106 : vector<1x16xf32> to vector<8x16xf32>
    %108 = arith.addf %105, %107 : vector<8x16xf32>
    %cst_47 = arith.constant 0.000000e+00 : f32
    %109 = vector.broadcast %cst_47 : f32 to vector<8x16xf32>
    %110 = arith.maximumf %108, %109 : vector<8x16xf32>
    %c152 = arith.constant 152 : index
    %c0_48 = arith.constant 0 : index
    %111 = vector.load %arg3[%c152, %c0_48] : memref<912x128xf32, #tpu.memory_space<vmem>>, vector<16x8xf32>
    %cst_49 = arith.constant dense<0.000000e+00> : vector<8x8xf32>
    %112 = tpu.matmul %110, %111, %cst_49 {dimension_numbers = #tpu.dot_dimension_numbers<[1], [0], [0], [1], [0, 0, 1, 1], [], []>} : vector<8x16xf32>, vector<16x8xf32>, vector<8x8xf32> -> vector<8x8xf32>
    %c168 = arith.constant 168 : index
    %c0_50 = arith.constant 0 : index
    %113 = vector.load %arg3[%c168, %c0_50] : memref<912x128xf32, #tpu.memory_space<vmem>>, vector<1x8xf32>
    %114 = vector.broadcast %113 : vector<1x8xf32> to vector<8x8xf32>
    %115 = arith.addf %112, %114 : vector<8x8xf32>
    %116 = arith.addf %103, %115 : vector<8x8xf32>
    %cst_51 = arith.constant dense<0.000000e+00> : vector<8xf32>
    %117 = vector.multi_reduction <add>, %116, %cst_51 [1] : vector<8x8xf32> to vector<8xf32>
    %118 = vector.shape_cast %117 : vector<8xf32> to vector<8x1xf32>
    %cst_52 = arith.constant 8.000000e+00 : f32
    %119 = vector.broadcast %cst_52 : f32 to vector<8x1xf32>
    %120 = arith.divf %118, %119 : vector<8x1xf32>
    %121 = vector.broadcast %120 : vector<8x1xf32> to vector<8x8xf32>
    %122 = arith.subf %116, %121 : vector<8x8xf32>
    %123 = arith.mulf %122, %122 : vector<8x8xf32>
    %cst_53 = arith.constant dense<0.000000e+00> : vector<8xf32>
    %124 = vector.multi_reduction <add>, %123, %cst_53 [1] : vector<8x8xf32> to vector<8xf32>
    %125 = vector.shape_cast %124 : vector<8xf32> to vector<8x1xf32>
    %cst_54 = arith.constant 8.000000e+00 : f32
    %126 = vector.broadcast %cst_54 : f32 to vector<8x1xf32>
    %127 = arith.divf %125, %126 : vector<8x1xf32>
    %128 = vector.broadcast %120 : vector<8x1xf32> to vector<8x8xf32>
    %129 = arith.subf %116, %128 : vector<8x8xf32>
    %cst_55 = arith.constant 9.99999974E-6 : f32
    %130 = vector.broadcast %cst_55 : f32 to vector<8x1xf32>
    %131 = arith.addf %127, %130 : vector<8x1xf32>
    %132 = math.rsqrt %131 : vector<8x1xf32>
    %133 = vector.broadcast %132 : vector<8x1xf32> to vector<8x8xf32>
    %134 = arith.mulf %129, %133 : vector<8x8xf32>
    %c176 = arith.constant 176 : index
    %c0_56 = arith.constant 0 : index
    %135 = vector.load %arg3[%c176, %c0_56] : memref<912x128xf32, #tpu.memory_space<vmem>>, vector<1x8xf32>
    %136 = vector.broadcast %135 : vector<1x8xf32> to vector<8x8xf32>
    %137 = arith.mulf %134, %136 : vector<8x8xf32>
    %c184 = arith.constant 184 : index
    %c0_57 = arith.constant 0 : index
    %138 = vector.load %arg3[%c184, %c0_57] : memref<912x128xf32, #tpu.memory_space<vmem>>, vector<1x8xf32>
    %139 = vector.broadcast %138 : vector<1x8xf32> to vector<8x8xf32>
    %140 = arith.addf %137, %139 : vector<8x8xf32>
    %c208 = arith.constant 208 : index
    %c0_58 = arith.constant 0 : index
    %141 = vector.load %arg3[%c208, %c0_58] : memref<912x128xf32, #tpu.memory_space<vmem>>, vector<8x24xf32>
    %cst_59 = arith.constant dense<0.000000e+00> : vector<8x24xf32>
    %142 = tpu.matmul %140, %141, %cst_59 {dimension_numbers = #tpu.dot_dimension_numbers<[1], [0], [0], [1], [0, 0, 1, 1], [], []>} : vector<8x8xf32>, vector<8x24xf32>, vector<8x24xf32> -> vector<8x24xf32>
    %c216 = arith.constant 216 : index
    %c0_60 = arith.constant 0 : index
    %143 = vector.load %arg3[%c216, %c0_60] : memref<912x128xf32, #tpu.memory_space<vmem>>, vector<1x24xf32>
    %144 = vector.broadcast %143 : vector<1x24xf32> to vector<8x24xf32>
    %145 = arith.addf %142, %144 : vector<8x24xf32>
    %146 = vector.extract_strided_slice %145 {offsets = [0, 0], sizes = [8, 8], strides = [1, 1]} : vector<8x24xf32> to vector<8x8xf32>
    %147 = vector.extract_strided_slice %145 {offsets = [0, 8], sizes = [8, 16], strides = [1, 1]} : vector<8x24xf32> to vector<8x16xf32>
    %148 = vector.extract_strided_slice %146 {offsets = [0, 0], sizes = [8, 4], strides = [1, 1]} : vector<8x8xf32> to vector<8x4xf32>
    %149 = vector.extract_strided_slice %147 {offsets = [0, 0], sizes = [8, 4], strides = [1, 1]} : vector<8x16xf32> to vector<8x4xf32>
    %150 = vector.extract_strided_slice %147 {offsets = [0, 8], sizes = [8, 4], strides = [1, 1]} : vector<8x16xf32> to vector<8x4xf32>
    %cst_61 = arith.constant dense<0.000000e+00> : vector<8x8xf32>
    %151 = tpu.matmul %148, %149, %cst_61 {dimension_numbers = #tpu.dot_dimension_numbers<[1], [1], [0], [0], [0, 0, 1, 0], [], []>} : vector<8x4xf32>, vector<8x4xf32>, vector<8x8xf32> -> vector<8x8xf32>
    %cst_62 = arith.constant 5.000000e-01 : f32
    %152 = vector.broadcast %cst_62 : f32 to vector<8x8xf32>
    %153 = arith.mulf %151, %152 : vector<8x8xf32>
    %cst_63 = arith.constant dense<0xFF800000> : vector<8xf32>
    %154 = vector.multi_reduction <maximumf>, %153, %cst_63 [1] : vector<8x8xf32> to vector<8xf32>
    %155 = vector.shape_cast %154 : vector<8xf32> to vector<8x1xf32>
    %156 = vector.broadcast %155 : vector<8x1xf32> to vector<8x8xf32>
    %157 = arith.subf %153, %156 : vector<8x8xf32>
    %158 = math.exp %157 : vector<8x8xf32>
    %cst_64 = arith.constant dense<0.000000e+00> : vector<8xf32>
    %159 = vector.multi_reduction <add>, %158, %cst_64 [1] : vector<8x8xf32> to vector<8xf32>
    %160 = vector.shape_cast %159 : vector<8xf32> to vector<8x1xf32>
    %161 = tpu.reciprocal %160 {approx = true} : vector<8x1xf32> -> vector<8x1xf32>
    %162 = vector.broadcast %161 : vector<8x1xf32> to vector<8x8xf32>
    %163 = arith.mulf %158, %162 : vector<8x8xf32>
    %cst_65 = arith.constant dense<0.000000e+00> : vector<8x4xf32>
    %164 = tpu.matmul %163, %150, %cst_65 {dimension_numbers = #tpu.dot_dimension_numbers<[1], [0], [0], [1], [0, 0, 1, 1], [], []>} : vector<8x8xf32>, vector<8x4xf32>, vector<8x4xf32> -> vector<8x4xf32>
    %165 = vector.extract_strided_slice %146 {offsets = [0, 4], sizes = [8, 4], strides = [1, 1]} : vector<8x8xf32> to vector<8x4xf32>
    %166 = vector.extract_strided_slice %147 {offsets = [0, 4], sizes = [8, 4], strides = [1, 1]} : vector<8x16xf32> to vector<8x4xf32>
    %167 = vector.extract_strided_slice %147 {offsets = [0, 12], sizes = [8, 4], strides = [1, 1]} : vector<8x16xf32> to vector<8x4xf32>
    %cst_66 = arith.constant dense<0.000000e+00> : vector<8x8xf32>
    %168 = tpu.matmul %165, %166, %cst_66 {dimension_numbers = #tpu.dot_dimension_numbers<[1], [1], [0], [0], [0, 0, 1, 0], [], []>} : vector<8x4xf32>, vector<8x4xf32>, vector<8x8xf32> -> vector<8x8xf32>
    %cst_67 = arith.constant 5.000000e-01 : f32
    %169 = vector.broadcast %cst_67 : f32 to vector<8x8xf32>
    %170 = arith.mulf %168, %169 : vector<8x8xf32>
    %cst_68 = arith.constant dense<0xFF800000> : vector<8xf32>
    %171 = vector.multi_reduction <maximumf>, %170, %cst_68 [1] : vector<8x8xf32> to vector<8xf32>
    %172 = vector.shape_cast %171 : vector<8xf32> to vector<8x1xf32>
    %173 = vector.broadcast %172 : vector<8x1xf32> to vector<8x8xf32>
    %174 = arith.subf %170, %173 : vector<8x8xf32>
    %175 = math.exp %174 : vector<8x8xf32>
    %cst_69 = arith.constant dense<0.000000e+00> : vector<8xf32>
    %176 = vector.multi_reduction <add>, %175, %cst_69 [1] : vector<8x8xf32> to vector<8xf32>
    %177 = vector.shape_cast %176 : vector<8xf32> to vector<8x1xf32>
    %178 = tpu.reciprocal %177 {approx = true} : vector<8x1xf32> -> vector<8x1xf32>
    %179 = vector.broadcast %178 : vector<8x1xf32> to vector<8x8xf32>
    %180 = arith.mulf %175, %179 : vector<8x8xf32>
    %cst_70 = arith.constant dense<0.000000e+00> : vector<8x4xf32>
    %181 = tpu.matmul %180, %167, %cst_70 {dimension_numbers = #tpu.dot_dimension_numbers<[1], [0], [0], [1], [0, 0, 1, 1], [], []>} : vector<8x8xf32>, vector<8x4xf32>, vector<8x4xf32> -> vector<8x4xf32>
    %182 = tpu.concatenate %164, %181 in 1 : vector<8x4xf32>, vector<8x4xf32> -> vector<8x8xf32>
    %c224 = arith.constant 224 : index
    %c0_71 = arith.constant 0 : index
    %183 = vector.load %arg3[%c224, %c0_71] : memref<912x128xf32, #tpu.memory_space<vmem>>, vector<8x8xf32>
    %cst_72 = arith.constant dense<0.000000e+00> : vector<8x8xf32>
    %184 = tpu.matmul %182, %183, %cst_72 {dimension_numbers = #tpu.dot_dimension_numbers<[1], [0], [0], [1], [0, 0, 1, 1], [], []>} : vector<8x8xf32>, vector<8x8xf32>, vector<8x8xf32> -> vector<8x8xf32>
    %c232 = arith.constant 232 : index
    %c0_73 = arith.constant 0 : index
    %185 = vector.load %arg3[%c232, %c0_73] : memref<912x128xf32, #tpu.memory_space<vmem>>, vector<1x8xf32>
    %186 = vector.broadcast %185 : vector<1x8xf32> to vector<8x8xf32>
    %187 = arith.addf %184, %186 : vector<8x8xf32>
    %188 = arith.addf %140, %187 : vector<8x8xf32>
    %cst_74 = arith.constant dense<0.000000e+00> : vector<8xf32>
    %189 = vector.multi_reduction <add>, %188, %cst_74 [1] : vector<8x8xf32> to vector<8xf32>
    %190 = vector.shape_cast %189 : vector<8xf32> to vector<8x1xf32>
    %cst_75 = arith.constant 8.000000e+00 : f32
    %191 = vector.broadcast %cst_75 : f32 to vector<8x1xf32>
    %192 = arith.divf %190, %191 : vector<8x1xf32>
    %193 = vector.broadcast %192 : vector<8x1xf32> to vector<8x8xf32>
    %194 = arith.subf %188, %193 : vector<8x8xf32>
    %195 = arith.mulf %194, %194 : vector<8x8xf32>
    %cst_76 = arith.constant dense<0.000000e+00> : vector<8xf32>
    %196 = vector.multi_reduction <add>, %195, %cst_76 [1] : vector<8x8xf32> to vector<8xf32>
    %197 = vector.shape_cast %196 : vector<8xf32> to vector<8x1xf32>
    %cst_77 = arith.constant 8.000000e+00 : f32
    %198 = vector.broadcast %cst_77 : f32 to vector<8x1xf32>
    %199 = arith.divf %197, %198 : vector<8x1xf32>
    %200 = vector.broadcast %192 : vector<8x1xf32> to vector<8x8xf32>
    %201 = arith.subf %188, %200 : vector<8x8xf32>
    %cst_78 = arith.constant 9.99999974E-6 : f32
    %202 = vector.broadcast %cst_78 : f32 to vector<8x1xf32>
    %203 = arith.addf %199, %202 : vector<8x1xf32>
    %204 = math.rsqrt %203 : vector<8x1xf32>
    %205 = vector.broadcast %204 : vector<8x1xf32> to vector<8x8xf32>
    %206 = arith.mulf %201, %205 : vector<8x8xf32>
    %c240 = arith.constant 240 : index
    %c0_79 = arith.constant 0 : index
    %207 = vector.load %arg3[%c240, %c0_79] : memref<912x128xf32, #tpu.memory_space<vmem>>, vector<1x8xf32>
    %208 = vector.broadcast %207 : vector<1x8xf32> to vector<8x8xf32>
    %209 = arith.mulf %206, %208 : vector<8x8xf32>
    %c248 = arith.constant 248 : index
    %c0_80 = arith.constant 0 : index
    %210 = vector.load %arg3[%c248, %c0_80] : memref<912x128xf32, #tpu.memory_space<vmem>>, vector<1x8xf32>
    %211 = vector.broadcast %210 : vector<1x8xf32> to vector<8x8xf32>
    %212 = arith.addf %209, %211 : vector<8x8xf32>
    %c256 = arith.constant 256 : index
    %c0_81 = arith.constant 0 : index
    %213 = vector.load %arg3[%c256, %c0_81] : memref<912x128xf32, #tpu.memory_space<vmem>>, vector<8x16xf32>
    %cst_82 = arith.constant dense<0.000000e+00> : vector<8x16xf32>
    %214 = tpu.matmul %212, %213, %cst_82 {dimension_numbers = #tpu.dot_dimension_numbers<[1], [0], [0], [1], [0, 0, 1, 1], [], []>} : vector<8x8xf32>, vector<8x16xf32>, vector<8x16xf32> -> vector<8x16xf32>
    %c264 = arith.constant 264 : index
    %c0_83 = arith.constant 0 : index
    %215 = vector.load %arg3[%c264, %c0_83] : memref<912x128xf32, #tpu.memory_space<vmem>>, vector<1x16xf32>
    %216 = vector.broadcast %215 : vector<1x16xf32> to vector<8x16xf32>
    %217 = arith.addf %214, %216 : vector<8x16xf32>
    %cst_84 = arith.constant 0.000000e+00 : f32
    %218 = vector.broadcast %cst_84 : f32 to vector<8x16xf32>
    %219 = arith.maximumf %217, %218 : vector<8x16xf32>
    %c272 = arith.constant 272 : index
    %c0_85 = arith.constant 0 : index
    %220 = vector.load %arg3[%c272, %c0_85] : memref<912x128xf32, #tpu.memory_space<vmem>>, vector<16x8xf32>
    %cst_86 = arith.constant dense<0.000000e+00> : vector<8x8xf32>
    %221 = tpu.matmul %219, %220, %cst_86 {dimension_numbers = #tpu.dot_dimension_numbers<[1], [0], [0], [1], [0, 0, 1, 1], [], []>} : vector<8x16xf32>, vector<16x8xf32>, vector<8x8xf32> -> vector<8x8xf32>
    %c288 = arith.constant 288 : index
    %c0_87 = arith.constant 0 : index
    %222 = vector.load %arg3[%c288, %c0_87] : memref<912x128xf32, #tpu.memory_space<vmem>>, vector<1x8xf32>
    %223 = vector.broadcast %222 : vector<1x8xf32> to vector<8x8xf32>
    %224 = arith.addf %221, %223 : vector<8x8xf32>
    %225 = arith.addf %212, %224 : vector<8x8xf32>
    %cst_88 = arith.constant dense<0.000000e+00> : vector<8xf32>
    %226 = vector.multi_reduction <add>, %225, %cst_88 [1] : vector<8x8xf32> to vector<8xf32>
    %227 = vector.shape_cast %226 : vector<8xf32> to vector<8x1xf32>
    %cst_89 = arith.constant 8.000000e+00 : f32
    %228 = vector.broadcast %cst_89 : f32 to vector<8x1xf32>
    %229 = arith.divf %227, %228 : vector<8x1xf32>
    %230 = vector.broadcast %229 : vector<8x1xf32> to vector<8x8xf32>
    %231 = arith.subf %225, %230 : vector<8x8xf32>
    %232 = arith.mulf %231, %231 : vector<8x8xf32>
    %cst_90 = arith.constant dense<0.000000e+00> : vector<8xf32>
    %233 = vector.multi_reduction <add>, %232, %cst_90 [1] : vector<8x8xf32> to vector<8xf32>
    %234 = vector.shape_cast %233 : vector<8xf32> to vector<8x1xf32>
    %cst_91 = arith.constant 8.000000e+00 : f32
    %235 = vector.broadcast %cst_91 : f32 to vector<8x1xf32>
    %236 = arith.divf %234, %235 : vector<8x1xf32>
    %237 = vector.broadcast %229 : vector<8x1xf32> to vector<8x8xf32>
    %238 = arith.subf %225, %237 : vector<8x8xf32>
    %cst_92 = arith.constant 9.99999974E-6 : f32
    %239 = vector.broadcast %cst_92 : f32 to vector<8x1xf32>
    %240 = arith.addf %236, %239 : vector<8x1xf32>
    %241 = math.rsqrt %240 : vector<8x1xf32>
    %242 = vector.broadcast %241 : vector<8x1xf32> to vector<8x8xf32>
    %243 = arith.mulf %238, %242 : vector<8x8xf32>
    %c296 = arith.constant 296 : index
    %c0_93 = arith.constant 0 : index
    %244 = vector.load %arg3[%c296, %c0_93] : memref<912x128xf32, #tpu.memory_space<vmem>>, vector<1x8xf32>
    %245 = vector.broadcast %244 : vector<1x8xf32> to vector<8x8xf32>
    %246 = arith.mulf %243, %245 : vector<8x8xf32>
    %c304 = arith.constant 304 : index
    %c0_94 = arith.constant 0 : index
    %247 = vector.load %arg3[%c304, %c0_94] : memref<912x128xf32, #tpu.memory_space<vmem>>, vector<1x8xf32>
    %248 = vector.broadcast %247 : vector<1x8xf32> to vector<8x8xf32>
    %249 = arith.addf %246, %248 : vector<8x8xf32>
    %c312 = arith.constant 312 : index
    %c0_95 = arith.constant 0 : index
    %250 = vector.load %arg3[%c312, %c0_95] : memref<912x128xf32, #tpu.memory_space<vmem>>, vector<8x24xf32>
    %cst_96 = arith.constant dense<0.000000e+00> : vector<16x24xf32>
    %251 = tpu.matmul %27, %250, %cst_96 {dimension_numbers = #tpu.dot_dimension_numbers<[1], [0], [0], [1], [0, 0, 1, 1], [], []>} : vector<16x8xf32>, vector<8x24xf32>, vector<16x24xf32> -> vector<16x24xf32>
    %c320 = arith.constant 320 : index
    %c0_97 = arith.constant 0 : index
    %252 = vector.load %arg3[%c320, %c0_97] : memref<912x128xf32, #tpu.memory_space<vmem>>, vector<1x24xf32>
    %253 = vector.broadcast %252 : vector<1x24xf32> to vector<16x24xf32>
    %254 = arith.addf %251, %253 : vector<16x24xf32>
    %255 = vector.extract_strided_slice %254 {offsets = [0, 0], sizes = [16, 8], strides = [1, 1]} : vector<16x24xf32> to vector<16x8xf32>
    %256 = vector.extract_strided_slice %254 {offsets = [0, 8], sizes = [16, 16], strides = [1, 1]} : vector<16x24xf32> to vector<16x16xf32>
    %257 = vector.extract_strided_slice %255 {offsets = [0, 0], sizes = [16, 4], strides = [1, 1]} : vector<16x8xf32> to vector<16x4xf32>
    %258 = vector.extract_strided_slice %256 {offsets = [0, 0], sizes = [16, 4], strides = [1, 1]} : vector<16x16xf32> to vector<16x4xf32>
    %259 = vector.extract_strided_slice %256 {offsets = [0, 8], sizes = [16, 4], strides = [1, 1]} : vector<16x16xf32> to vector<16x4xf32>
    %cst_98 = arith.constant dense<0.000000e+00> : vector<16x16xf32>
    %260 = tpu.matmul %257, %258, %cst_98 {dimension_numbers = #tpu.dot_dimension_numbers<[1], [1], [0], [0], [0, 0, 1, 0], [], []>} : vector<16x4xf32>, vector<16x4xf32>, vector<16x16xf32> -> vector<16x16xf32>
    %cst_99 = arith.constant 5.000000e-01 : f32
    %261 = vector.broadcast %cst_99 : f32 to vector<16x16xf32>
    %262 = arith.mulf %260, %261 : vector<16x16xf32>
    %c344 = arith.constant 344 : index
    %c0_100 = arith.constant 0 : index
    %263 = vector.load %arg3[%c344, %c0_100] : memref<912x128xf32, #tpu.memory_space<vmem>>, vector<16x16xf32>
    %264 = arith.addf %262, %263 : vector<16x16xf32>
    %cst_101 = arith.constant dense<0xFF800000> : vector<16xf32>
    %265 = vector.multi_reduction <maximumf>, %264, %cst_101 [1] : vector<16x16xf32> to vector<16xf32>
    %266 = vector.shape_cast %265 : vector<16xf32> to vector<16x1xf32>
    %267 = vector.broadcast %266 : vector<16x1xf32> to vector<16x16xf32>
    %268 = arith.subf %264, %267 : vector<16x16xf32>
    %269 = math.exp %268 : vector<16x16xf32>
    %cst_102 = arith.constant dense<0.000000e+00> : vector<16xf32>
    %270 = vector.multi_reduction <add>, %269, %cst_102 [1] : vector<16x16xf32> to vector<16xf32>
    %271 = vector.shape_cast %270 : vector<16xf32> to vector<16x1xf32>
    %272 = tpu.reciprocal %271 {approx = true} : vector<16x1xf32> -> vector<16x1xf32>
    %273 = vector.broadcast %272 : vector<16x1xf32> to vector<16x16xf32>
    %274 = arith.mulf %269, %273 : vector<16x16xf32>
    %cst_103 = arith.constant dense<0.000000e+00> : vector<16x4xf32>
    %275 = tpu.matmul %274, %259, %cst_103 {dimension_numbers = #tpu.dot_dimension_numbers<[1], [0], [0], [1], [0, 0, 1, 1], [], []>} : vector<16x16xf32>, vector<16x4xf32>, vector<16x4xf32> -> vector<16x4xf32>
    %276 = vector.extract_strided_slice %255 {offsets = [0, 4], sizes = [16, 4], strides = [1, 1]} : vector<16x8xf32> to vector<16x4xf32>
    %277 = vector.extract_strided_slice %256 {offsets = [0, 4], sizes = [16, 4], strides = [1, 1]} : vector<16x16xf32> to vector<16x4xf32>
    %278 = vector.extract_strided_slice %256 {offsets = [0, 12], sizes = [16, 4], strides = [1, 1]} : vector<16x16xf32> to vector<16x4xf32>
    %cst_104 = arith.constant dense<0.000000e+00> : vector<16x16xf32>
    %279 = tpu.matmul %276, %277, %cst_104 {dimension_numbers = #tpu.dot_dimension_numbers<[1], [1], [0], [0], [0, 0, 1, 0], [], []>} : vector<16x4xf32>, vector<16x4xf32>, vector<16x16xf32> -> vector<16x16xf32>
    %cst_105 = arith.constant 5.000000e-01 : f32
    %280 = vector.broadcast %cst_105 : f32 to vector<16x16xf32>
    %281 = arith.mulf %279, %280 : vector<16x16xf32>
    %c360 = arith.constant 360 : index
    %c0_106 = arith.constant 0 : index
    %282 = vector.load %arg3[%c360, %c0_106] : memref<912x128xf32, #tpu.memory_space<vmem>>, vector<16x16xf32>
    %283 = arith.addf %281, %282 : vector<16x16xf32>
    %cst_107 = arith.constant dense<0xFF800000> : vector<16xf32>
    %284 = vector.multi_reduction <maximumf>, %283, %cst_107 [1] : vector<16x16xf32> to vector<16xf32>
    %285 = vector.shape_cast %284 : vector<16xf32> to vector<16x1xf32>
    %286 = vector.broadcast %285 : vector<16x1xf32> to vector<16x16xf32>
    %287 = arith.subf %283, %286 : vector<16x16xf32>
    %288 = math.exp %287 : vector<16x16xf32>
    %cst_108 = arith.constant dense<0.000000e+00> : vector<16xf32>
    %289 = vector.multi_reduction <add>, %288, %cst_108 [1] : vector<16x16xf32> to vector<16xf32>
    %290 = vector.shape_cast %289 : vector<16xf32> to vector<16x1xf32>
    %291 = tpu.reciprocal %290 {approx = true} : vector<16x1xf32> -> vector<16x1xf32>
    %292 = vector.broadcast %291 : vector<16x1xf32> to vector<16x16xf32>
    %293 = arith.mulf %288, %292 : vector<16x16xf32>
    %cst_109 = arith.constant dense<0.000000e+00> : vector<16x4xf32>
    %294 = tpu.matmul %293, %278, %cst_109 {dimension_numbers = #tpu.dot_dimension_numbers<[1], [0], [0], [1], [0, 0, 1, 1], [], []>} : vector<16x16xf32>, vector<16x4xf32>, vector<16x4xf32> -> vector<16x4xf32>
    %295 = tpu.concatenate %275, %294 in 1 : vector<16x4xf32>, vector<16x4xf32> -> vector<16x8xf32>
    %c328 = arith.constant 328 : index
    %c0_110 = arith.constant 0 : index
    %296 = vector.load %arg3[%c328, %c0_110] : memref<912x128xf32, #tpu.memory_space<vmem>>, vector<8x8xf32>
    %cst_111 = arith.constant dense<0.000000e+00> : vector<16x8xf32>
    %297 = tpu.matmul %295, %296, %cst_111 {dimension_numbers = #tpu.dot_dimension_numbers<[1], [0], [0], [1], [0, 0, 1, 1], [], []>} : vector<16x8xf32>, vector<8x8xf32>, vector<16x8xf32> -> vector<16x8xf32>
    %c336 = arith.constant 336 : index
    %c0_112 = arith.constant 0 : index
    %298 = vector.load %arg3[%c336, %c0_112] : memref<912x128xf32, #tpu.memory_space<vmem>>, vector<1x8xf32>
    %299 = vector.broadcast %298 : vector<1x8xf32> to vector<16x8xf32>
    %300 = arith.addf %297, %299 : vector<16x8xf32>
    %301 = arith.addf %27, %300 : vector<16x8xf32>
    %cst_113 = arith.constant dense<0.000000e+00> : vector<16xf32>
    %302 = vector.multi_reduction <add>, %301, %cst_113 [1] : vector<16x8xf32> to vector<16xf32>
    %303 = vector.shape_cast %302 : vector<16xf32> to vector<16x1xf32>
    %cst_114 = arith.constant 8.000000e+00 : f32
    %304 = vector.broadcast %cst_114 : f32 to vector<16x1xf32>
    %305 = arith.divf %303, %304 : vector<16x1xf32>
    %306 = vector.broadcast %305 : vector<16x1xf32> to vector<16x8xf32>
    %307 = arith.subf %301, %306 : vector<16x8xf32>
    %308 = arith.mulf %307, %307 : vector<16x8xf32>
    %cst_115 = arith.constant dense<0.000000e+00> : vector<16xf32>
    %309 = vector.multi_reduction <add>, %308, %cst_115 [1] : vector<16x8xf32> to vector<16xf32>
    %310 = vector.shape_cast %309 : vector<16xf32> to vector<16x1xf32>
    %cst_116 = arith.constant 8.000000e+00 : f32
    %311 = vector.broadcast %cst_116 : f32 to vector<16x1xf32>
    %312 = arith.divf %310, %311 : vector<16x1xf32>
    %313 = vector.broadcast %305 : vector<16x1xf32> to vector<16x8xf32>
    %314 = arith.subf %301, %313 : vector<16x8xf32>
    %cst_117 = arith.constant 9.99999974E-6 : f32
    %315 = vector.broadcast %cst_117 : f32 to vector<16x1xf32>
    %316 = arith.addf %312, %315 : vector<16x1xf32>
    %317 = math.rsqrt %316 : vector<16x1xf32>
    %318 = vector.broadcast %317 : vector<16x1xf32> to vector<16x8xf32>
    %319 = arith.mulf %314, %318 : vector<16x8xf32>
    %c376 = arith.constant 376 : index
    %c0_118 = arith.constant 0 : index
    %320 = vector.load %arg3[%c376, %c0_118] : memref<912x128xf32, #tpu.memory_space<vmem>>, vector<1x8xf32>
    %321 = vector.broadcast %320 : vector<1x8xf32> to vector<16x8xf32>
    %322 = arith.mulf %319, %321 : vector<16x8xf32>
    %c384 = arith.constant 384 : index
    %c0_119 = arith.constant 0 : index
    %323 = vector.load %arg3[%c384, %c0_119] : memref<912x128xf32, #tpu.memory_space<vmem>>, vector<1x8xf32>
    %324 = vector.broadcast %323 : vector<1x8xf32> to vector<16x8xf32>
    %325 = arith.addf %322, %324 : vector<16x8xf32>
    %c392 = arith.constant 392 : index
    %c0_120 = arith.constant 0 : index
    %326 = vector.load %arg3[%c392, %c0_120] : memref<912x128xf32, #tpu.memory_space<vmem>>, vector<8x8xf32>
    %cst_121 = arith.constant dense<0.000000e+00> : vector<16x8xf32>
    %327 = tpu.matmul %325, %326, %cst_121 {dimension_numbers = #tpu.dot_dimension_numbers<[1], [0], [0], [1], [0, 0, 1, 1], [], []>} : vector<16x8xf32>, vector<8x8xf32>, vector<16x8xf32> -> vector<16x8xf32>
    %c400 = arith.constant 400 : index
    %c0_122 = arith.constant 0 : index
    %328 = vector.load %arg3[%c400, %c0_122] : memref<912x128xf32, #tpu.memory_space<vmem>>, vector<1x8xf32>
    %329 = vector.broadcast %328 : vector<1x8xf32> to vector<16x8xf32>
    %330 = arith.addf %327, %329 : vector<16x8xf32>
    %c408 = arith.constant 408 : index
    %c0_123 = arith.constant 0 : index
    %331 = vector.load %arg3[%c408, %c0_123] : memref<912x128xf32, #tpu.memory_space<vmem>>, vector<8x16xf32>
    %cst_124 = arith.constant dense<0.000000e+00> : vector<8x16xf32>
    %332 = tpu.matmul %249, %331, %cst_124 {dimension_numbers = #tpu.dot_dimension_numbers<[1], [0], [0], [1], [0, 0, 1, 1], [], []>} : vector<8x8xf32>, vector<8x16xf32>, vector<8x16xf32> -> vector<8x16xf32>
    %c416 = arith.constant 416 : index
    %c0_125 = arith.constant 0 : index
    %333 = vector.load %arg3[%c416, %c0_125] : memref<912x128xf32, #tpu.memory_space<vmem>>, vector<1x16xf32>
    %334 = vector.broadcast %333 : vector<1x16xf32> to vector<8x16xf32>
    %335 = arith.addf %332, %334 : vector<8x16xf32>
    %336 = vector.extract_strided_slice %330 {offsets = [0, 0], sizes = [16, 4], strides = [1, 1]} : vector<16x8xf32> to vector<16x4xf32>
    %337 = vector.extract_strided_slice %335 {offsets = [0, 0], sizes = [8, 4], strides = [1, 1]} : vector<8x16xf32> to vector<8x4xf32>
    %338 = vector.extract_strided_slice %335 {offsets = [0, 8], sizes = [8, 4], strides = [1, 1]} : vector<8x16xf32> to vector<8x4xf32>
    %cst_126 = arith.constant dense<0.000000e+00> : vector<16x8xf32>
    %339 = tpu.matmul %336, %337, %cst_126 {dimension_numbers = #tpu.dot_dimension_numbers<[1], [1], [0], [0], [0, 0, 1, 0], [], []>} : vector<16x4xf32>, vector<8x4xf32>, vector<16x8xf32> -> vector<16x8xf32>
    %cst_127 = arith.constant 5.000000e-01 : f32
    %340 = vector.broadcast %cst_127 : f32 to vector<16x8xf32>
    %341 = arith.mulf %339, %340 : vector<16x8xf32>
    %cst_128 = arith.constant dense<0xFF800000> : vector<16xf32>
    %342 = vector.multi_reduction <maximumf>, %341, %cst_128 [1] : vector<16x8xf32> to vector<16xf32>
    %343 = vector.shape_cast %342 : vector<16xf32> to vector<16x1xf32>
    %344 = vector.broadcast %343 : vector<16x1xf32> to vector<16x8xf32>
    %345 = arith.subf %341, %344 : vector<16x8xf32>
    %346 = math.exp %345 : vector<16x8xf32>
    %cst_129 = arith.constant dense<0.000000e+00> : vector<16xf32>
    %347 = vector.multi_reduction <add>, %346, %cst_129 [1] : vector<16x8xf32> to vector<16xf32>
    %348 = vector.shape_cast %347 : vector<16xf32> to vector<16x1xf32>
    %349 = tpu.reciprocal %348 {approx = true} : vector<16x1xf32> -> vector<16x1xf32>
    %350 = vector.broadcast %349 : vector<16x1xf32> to vector<16x8xf32>
    %351 = arith.mulf %346, %350 : vector<16x8xf32>
    %cst_130 = arith.constant dense<0.000000e+00> : vector<16x4xf32>
    %352 = tpu.matmul %351, %338, %cst_130 {dimension_numbers = #tpu.dot_dimension_numbers<[1], [0], [0], [1], [0, 0, 1, 1], [], []>} : vector<16x8xf32>, vector<8x4xf32>, vector<16x4xf32> -> vector<16x4xf32>
    %353 = vector.extract_strided_slice %330 {offsets = [0, 4], sizes = [16, 4], strides = [1, 1]} : vector<16x8xf32> to vector<16x4xf32>
    %354 = vector.extract_strided_slice %335 {offsets = [0, 4], sizes = [8, 4], strides = [1, 1]} : vector<8x16xf32> to vector<8x4xf32>
    %355 = vector.extract_strided_slice %335 {offsets = [0, 12], sizes = [8, 4], strides = [1, 1]} : vector<8x16xf32> to vector<8x4xf32>
    %cst_131 = arith.constant dense<0.000000e+00> : vector<16x8xf32>
    %356 = tpu.matmul %353, %354, %cst_131 {dimension_numbers = #tpu.dot_dimension_numbers<[1], [1], [0], [0], [0, 0, 1, 0], [], []>} : vector<16x4xf32>, vector<8x4xf32>, vector<16x8xf32> -> vector<16x8xf32>
    %cst_132 = arith.constant 5.000000e-01 : f32
    %357 = vector.broadcast %cst_132 : f32 to vector<16x8xf32>
    %358 = arith.mulf %356, %357 : vector<16x8xf32>
    %cst_133 = arith.constant dense<0xFF800000> : vector<16xf32>
    %359 = vector.multi_reduction <maximumf>, %358, %cst_133 [1] : vector<16x8xf32> to vector<16xf32>
    %360 = vector.shape_cast %359 : vector<16xf32> to vector<16x1xf32>
    %361 = vector.broadcast %360 : vector<16x1xf32> to vector<16x8xf32>
    %362 = arith.subf %358, %361 : vector<16x8xf32>
    %363 = math.exp %362 : vector<16x8xf32>
    %cst_134 = arith.constant dense<0.000000e+00> : vector<16xf32>
    %364 = vector.multi_reduction <add>, %363, %cst_134 [1] : vector<16x8xf32> to vector<16xf32>
    %365 = vector.shape_cast %364 : vector<16xf32> to vector<16x1xf32>
    %366 = tpu.reciprocal %365 {approx = true} : vector<16x1xf32> -> vector<16x1xf32>
    %367 = vector.broadcast %366 : vector<16x1xf32> to vector<16x8xf32>
    %368 = arith.mulf %363, %367 : vector<16x8xf32>
    %cst_135 = arith.constant dense<0.000000e+00> : vector<16x4xf32>
    %369 = tpu.matmul %368, %355, %cst_135 {dimension_numbers = #tpu.dot_dimension_numbers<[1], [0], [0], [1], [0, 0, 1, 1], [], []>} : vector<16x8xf32>, vector<8x4xf32>, vector<16x4xf32> -> vector<16x4xf32>
    %370 = tpu.concatenate %352, %369 in 1 : vector<16x4xf32>, vector<16x4xf32> -> vector<16x8xf32>
    %c424 = arith.constant 424 : index
    %c0_136 = arith.constant 0 : index
    %371 = vector.load %arg3[%c424, %c0_136] : memref<912x128xf32, #tpu.memory_space<vmem>>, vector<8x8xf32>
    %cst_137 = arith.constant dense<0.000000e+00> : vector<16x8xf32>
    %372 = tpu.matmul %370, %371, %cst_137 {dimension_numbers = #tpu.dot_dimension_numbers<[1], [0], [0], [1], [0, 0, 1, 1], [], []>} : vector<16x8xf32>, vector<8x8xf32>, vector<16x8xf32> -> vector<16x8xf32>
    %c432 = arith.constant 432 : index
    %c0_138 = arith.constant 0 : index
    %373 = vector.load %arg3[%c432, %c0_138] : memref<912x128xf32, #tpu.memory_space<vmem>>, vector<1x8xf32>
    %374 = vector.broadcast %373 : vector<1x8xf32> to vector<16x8xf32>
    %375 = arith.addf %372, %374 : vector<16x8xf32>
    %376 = arith.addf %325, %375 : vector<16x8xf32>
    %cst_139 = arith.constant dense<0.000000e+00> : vector<16xf32>
    %377 = vector.multi_reduction <add>, %376, %cst_139 [1] : vector<16x8xf32> to vector<16xf32>
    %378 = vector.shape_cast %377 : vector<16xf32> to vector<16x1xf32>
    %cst_140 = arith.constant 8.000000e+00 : f32
    %379 = vector.broadcast %cst_140 : f32 to vector<16x1xf32>
    %380 = arith.divf %378, %379 : vector<16x1xf32>
    %381 = vector.broadcast %380 : vector<16x1xf32> to vector<16x8xf32>
    %382 = arith.subf %376, %381 : vector<16x8xf32>
    %383 = arith.mulf %382, %382 : vector<16x8xf32>
    %cst_141 = arith.constant dense<0.000000e+00> : vector<16xf32>
    %384 = vector.multi_reduction <add>, %383, %cst_141 [1] : vector<16x8xf32> to vector<16xf32>
    %385 = vector.shape_cast %384 : vector<16xf32> to vector<16x1xf32>
    %cst_142 = arith.constant 8.000000e+00 : f32
    %386 = vector.broadcast %cst_142 : f32 to vector<16x1xf32>
    %387 = arith.divf %385, %386 : vector<16x1xf32>
    %388 = vector.broadcast %380 : vector<16x1xf32> to vector<16x8xf32>
    %389 = arith.subf %376, %388 : vector<16x8xf32>
    %cst_143 = arith.constant 9.99999974E-6 : f32
    %390 = vector.broadcast %cst_143 : f32 to vector<16x1xf32>
    %391 = arith.addf %387, %390 : vector<16x1xf32>
    %392 = math.rsqrt %391 : vector<16x1xf32>
    %393 = vector.broadcast %392 : vector<16x1xf32> to vector<16x8xf32>
    %394 = arith.mulf %389, %393 : vector<16x8xf32>
    %c440 = arith.constant 440 : index
    %c0_144 = arith.constant 0 : index
    %395 = vector.load %arg3[%c440, %c0_144] : memref<912x128xf32, #tpu.memory_space<vmem>>, vector<1x8xf32>
    %396 = vector.broadcast %395 : vector<1x8xf32> to vector<16x8xf32>
    %397 = arith.mulf %394, %396 : vector<16x8xf32>
    %c448 = arith.constant 448 : index
    %c0_145 = arith.constant 0 : index
    %398 = vector.load %arg3[%c448, %c0_145] : memref<912x128xf32, #tpu.memory_space<vmem>>, vector<1x8xf32>
    %399 = vector.broadcast %398 : vector<1x8xf32> to vector<16x8xf32>
    %400 = arith.addf %397, %399 : vector<16x8xf32>
    %c456 = arith.constant 456 : index
    %c0_146 = arith.constant 0 : index
    %401 = vector.load %arg3[%c456, %c0_146] : memref<912x128xf32, #tpu.memory_space<vmem>>, vector<8x16xf32>
    %cst_147 = arith.constant dense<0.000000e+00> : vector<16x16xf32>
    %402 = tpu.matmul %400, %401, %cst_147 {dimension_numbers = #tpu.dot_dimension_numbers<[1], [0], [0], [1], [0, 0, 1, 1], [], []>} : vector<16x8xf32>, vector<8x16xf32>, vector<16x16xf32> -> vector<16x16xf32>
    %c464 = arith.constant 464 : index
    %c0_148 = arith.constant 0 : index
    %403 = vector.load %arg3[%c464, %c0_148] : memref<912x128xf32, #tpu.memory_space<vmem>>, vector<1x16xf32>
    %404 = vector.broadcast %403 : vector<1x16xf32> to vector<16x16xf32>
    %405 = arith.addf %402, %404 : vector<16x16xf32>
    %cst_149 = arith.constant 0.000000e+00 : f32
    %406 = vector.broadcast %cst_149 : f32 to vector<16x16xf32>
    %407 = arith.maximumf %405, %406 : vector<16x16xf32>
    %c472 = arith.constant 472 : index
    %c0_150 = arith.constant 0 : index
    %408 = vector.load %arg3[%c472, %c0_150] : memref<912x128xf32, #tpu.memory_space<vmem>>, vector<16x8xf32>
    %cst_151 = arith.constant dense<0.000000e+00> : vector<16x8xf32>
    %409 = tpu.matmul %407, %408, %cst_151 {dimension_numbers = #tpu.dot_dimension_numbers<[1], [0], [0], [1], [0, 0, 1, 1], [], []>} : vector<16x16xf32>, vector<16x8xf32>, vector<16x8xf32> -> vector<16x8xf32>
    %c488 = arith.constant 488 : index
    %c0_152 = arith.constant 0 : index
    %410 = vector.load %arg3[%c488, %c0_152] : memref<912x128xf32, #tpu.memory_space<vmem>>, vector<1x8xf32>
    %411 = vector.broadcast %410 : vector<1x8xf32> to vector<16x8xf32>
    %412 = arith.addf %409, %411 : vector<16x8xf32>
    %413 = arith.addf %400, %412 : vector<16x8xf32>
    %cst_153 = arith.constant dense<0.000000e+00> : vector<16xf32>
    %414 = vector.multi_reduction <add>, %413, %cst_153 [1] : vector<16x8xf32> to vector<16xf32>
    %415 = vector.shape_cast %414 : vector<16xf32> to vector<16x1xf32>
    %cst_154 = arith.constant 8.000000e+00 : f32
    %416 = vector.broadcast %cst_154 : f32 to vector<16x1xf32>
    %417 = arith.divf %415, %416 : vector<16x1xf32>
    %418 = vector.broadcast %417 : vector<16x1xf32> to vector<16x8xf32>
    %419 = arith.subf %413, %418 : vector<16x8xf32>
    %420 = arith.mulf %419, %419 : vector<16x8xf32>
    %cst_155 = arith.constant dense<0.000000e+00> : vector<16xf32>
    %421 = vector.multi_reduction <add>, %420, %cst_155 [1] : vector<16x8xf32> to vector<16xf32>
    %422 = vector.shape_cast %421 : vector<16xf32> to vector<16x1xf32>
    %cst_156 = arith.constant 8.000000e+00 : f32
    %423 = vector.broadcast %cst_156 : f32 to vector<16x1xf32>
    %424 = arith.divf %422, %423 : vector<16x1xf32>
    %425 = vector.broadcast %417 : vector<16x1xf32> to vector<16x8xf32>
    %426 = arith.subf %413, %425 : vector<16x8xf32>
    %cst_157 = arith.constant 9.99999974E-6 : f32
    %427 = vector.broadcast %cst_157 : f32 to vector<16x1xf32>
    %428 = arith.addf %424, %427 : vector<16x1xf32>
    %429 = math.rsqrt %428 : vector<16x1xf32>
    %430 = vector.broadcast %429 : vector<16x1xf32> to vector<16x8xf32>
    %431 = arith.mulf %426, %430 : vector<16x8xf32>
    %c496 = arith.constant 496 : index
    %c0_158 = arith.constant 0 : index
    %432 = vector.load %arg3[%c496, %c0_158] : memref<912x128xf32, #tpu.memory_space<vmem>>, vector<1x8xf32>
    %433 = vector.broadcast %432 : vector<1x8xf32> to vector<16x8xf32>
    %434 = arith.mulf %431, %433 : vector<16x8xf32>
    %c504 = arith.constant 504 : index
    %c0_159 = arith.constant 0 : index
    %435 = vector.load %arg3[%c504, %c0_159] : memref<912x128xf32, #tpu.memory_space<vmem>>, vector<1x8xf32>
    %436 = vector.broadcast %435 : vector<1x8xf32> to vector<16x8xf32>
    %437 = arith.addf %434, %436 : vector<16x8xf32>
    %c512 = arith.constant 512 : index
    %c0_160 = arith.constant 0 : index
    %438 = vector.load %arg3[%c512, %c0_160] : memref<912x128xf32, #tpu.memory_space<vmem>>, vector<8x24xf32>
    %cst_161 = arith.constant dense<0.000000e+00> : vector<16x24xf32>
    %439 = tpu.matmul %437, %438, %cst_161 {dimension_numbers = #tpu.dot_dimension_numbers<[1], [0], [0], [1], [0, 0, 1, 1], [], []>} : vector<16x8xf32>, vector<8x24xf32>, vector<16x24xf32> -> vector<16x24xf32>
    %c520 = arith.constant 520 : index
    %c0_162 = arith.constant 0 : index
    %440 = vector.load %arg3[%c520, %c0_162] : memref<912x128xf32, #tpu.memory_space<vmem>>, vector<1x24xf32>
    %441 = vector.broadcast %440 : vector<1x24xf32> to vector<16x24xf32>
    %442 = arith.addf %439, %441 : vector<16x24xf32>
    %443 = vector.extract_strided_slice %442 {offsets = [0, 0], sizes = [16, 8], strides = [1, 1]} : vector<16x24xf32> to vector<16x8xf32>
    %444 = vector.extract_strided_slice %442 {offsets = [0, 8], sizes = [16, 16], strides = [1, 1]} : vector<16x24xf32> to vector<16x16xf32>
    %445 = vector.extract_strided_slice %443 {offsets = [0, 0], sizes = [16, 4], strides = [1, 1]} : vector<16x8xf32> to vector<16x4xf32>
    %446 = vector.extract_strided_slice %444 {offsets = [0, 0], sizes = [16, 4], strides = [1, 1]} : vector<16x16xf32> to vector<16x4xf32>
    %447 = vector.extract_strided_slice %444 {offsets = [0, 8], sizes = [16, 4], strides = [1, 1]} : vector<16x16xf32> to vector<16x4xf32>
    %cst_163 = arith.constant dense<0.000000e+00> : vector<16x16xf32>
    %448 = tpu.matmul %445, %446, %cst_163 {dimension_numbers = #tpu.dot_dimension_numbers<[1], [1], [0], [0], [0, 0, 1, 0], [], []>} : vector<16x4xf32>, vector<16x4xf32>, vector<16x16xf32> -> vector<16x16xf32>
    %cst_164 = arith.constant 5.000000e-01 : f32
    %449 = vector.broadcast %cst_164 : f32 to vector<16x16xf32>
    %450 = arith.mulf %448, %449 : vector<16x16xf32>
    %c544 = arith.constant 544 : index
    %c0_165 = arith.constant 0 : index
    %451 = vector.load %arg3[%c544, %c0_165] : memref<912x128xf32, #tpu.memory_space<vmem>>, vector<16x16xf32>
    %452 = arith.addf %450, %451 : vector<16x16xf32>
    %cst_166 = arith.constant dense<0xFF800000> : vector<16xf32>
    %453 = vector.multi_reduction <maximumf>, %452, %cst_166 [1] : vector<16x16xf32> to vector<16xf32>
    %454 = vector.shape_cast %453 : vector<16xf32> to vector<16x1xf32>
    %455 = vector.broadcast %454 : vector<16x1xf32> to vector<16x16xf32>
    %456 = arith.subf %452, %455 : vector<16x16xf32>
    %457 = math.exp %456 : vector<16x16xf32>
    %cst_167 = arith.constant dense<0.000000e+00> : vector<16xf32>
    %458 = vector.multi_reduction <add>, %457, %cst_167 [1] : vector<16x16xf32> to vector<16xf32>
    %459 = vector.shape_cast %458 : vector<16xf32> to vector<16x1xf32>
    %460 = tpu.reciprocal %459 {approx = true} : vector<16x1xf32> -> vector<16x1xf32>
    %461 = vector.broadcast %460 : vector<16x1xf32> to vector<16x16xf32>
    %462 = arith.mulf %457, %461 : vector<16x16xf32>
    %cst_168 = arith.constant dense<0.000000e+00> : vector<16x4xf32>
    %463 = tpu.matmul %462, %447, %cst_168 {dimension_numbers = #tpu.dot_dimension_numbers<[1], [0], [0], [1], [0, 0, 1, 1], [], []>} : vector<16x16xf32>, vector<16x4xf32>, vector<16x4xf32> -> vector<16x4xf32>
    %464 = vector.extract_strided_slice %443 {offsets = [0, 4], sizes = [16, 4], strides = [1, 1]} : vector<16x8xf32> to vector<16x4xf32>
    %465 = vector.extract_strided_slice %444 {offsets = [0, 4], sizes = [16, 4], strides = [1, 1]} : vector<16x16xf32> to vector<16x4xf32>
    %466 = vector.extract_strided_slice %444 {offsets = [0, 12], sizes = [16, 4], strides = [1, 1]} : vector<16x16xf32> to vector<16x4xf32>
    %cst_169 = arith.constant dense<0.000000e+00> : vector<16x16xf32>
    %467 = tpu.matmul %464, %465, %cst_169 {dimension_numbers = #tpu.dot_dimension_numbers<[1], [1], [0], [0], [0, 0, 1, 0], [], []>} : vector<16x4xf32>, vector<16x4xf32>, vector<16x16xf32> -> vector<16x16xf32>
    %cst_170 = arith.constant 5.000000e-01 : f32
    %468 = vector.broadcast %cst_170 : f32 to vector<16x16xf32>
    %469 = arith.mulf %467, %468 : vector<16x16xf32>
    %c560 = arith.constant 560 : index
    %c0_171 = arith.constant 0 : index
    %470 = vector.load %arg3[%c560, %c0_171] : memref<912x128xf32, #tpu.memory_space<vmem>>, vector<16x16xf32>
    %471 = arith.addf %469, %470 : vector<16x16xf32>
    %cst_172 = arith.constant dense<0xFF800000> : vector<16xf32>
    %472 = vector.multi_reduction <maximumf>, %471, %cst_172 [1] : vector<16x16xf32> to vector<16xf32>
    %473 = vector.shape_cast %472 : vector<16xf32> to vector<16x1xf32>
    %474 = vector.broadcast %473 : vector<16x1xf32> to vector<16x16xf32>
    %475 = arith.subf %471, %474 : vector<16x16xf32>
    %476 = math.exp %475 : vector<16x16xf32>
    %cst_173 = arith.constant dense<0.000000e+00> : vector<16xf32>
    %477 = vector.multi_reduction <add>, %476, %cst_173 [1] : vector<16x16xf32> to vector<16xf32>
    %478 = vector.shape_cast %477 : vector<16xf32> to vector<16x1xf32>
    %479 = tpu.reciprocal %478 {approx = true} : vector<16x1xf32> -> vector<16x1xf32>
    %480 = vector.broadcast %479 : vector<16x1xf32> to vector<16x16xf32>
    %481 = arith.mulf %476, %480 : vector<16x16xf32>
    %cst_174 = arith.constant dense<0.000000e+00> : vector<16x4xf32>
    %482 = tpu.matmul %481, %466, %cst_174 {dimension_numbers = #tpu.dot_dimension_numbers<[1], [0], [0], [1], [0, 0, 1, 1], [], []>} : vector<16x16xf32>, vector<16x4xf32>, vector<16x4xf32> -> vector<16x4xf32>
    %483 = tpu.concatenate %463, %482 in 1 : vector<16x4xf32>, vector<16x4xf32> -> vector<16x8xf32>
    %c528 = arith.constant 528 : index
    %c0_175 = arith.constant 0 : index
    %484 = vector.load %arg3[%c528, %c0_175] : memref<912x128xf32, #tpu.memory_space<vmem>>, vector<8x8xf32>
    %cst_176 = arith.constant dense<0.000000e+00> : vector<16x8xf32>
    %485 = tpu.matmul %483, %484, %cst_176 {dimension_numbers = #tpu.dot_dimension_numbers<[1], [0], [0], [1], [0, 0, 1, 1], [], []>} : vector<16x8xf32>, vector<8x8xf32>, vector<16x8xf32> -> vector<16x8xf32>
    %c536 = arith.constant 536 : index
    %c0_177 = arith.constant 0 : index
    %486 = vector.load %arg3[%c536, %c0_177] : memref<912x128xf32, #tpu.memory_space<vmem>>, vector<1x8xf32>
    %487 = vector.broadcast %486 : vector<1x8xf32> to vector<16x8xf32>
    %488 = arith.addf %485, %487 : vector<16x8xf32>
    %489 = arith.addf %437, %488 : vector<16x8xf32>
    %cst_178 = arith.constant dense<0.000000e+00> : vector<16xf32>
    %490 = vector.multi_reduction <add>, %489, %cst_178 [1] : vector<16x8xf32> to vector<16xf32>
    %491 = vector.shape_cast %490 : vector<16xf32> to vector<16x1xf32>
    %cst_179 = arith.constant 8.000000e+00 : f32
    %492 = vector.broadcast %cst_179 : f32 to vector<16x1xf32>
    %493 = arith.divf %491, %492 : vector<16x1xf32>
    %494 = vector.broadcast %493 : vector<16x1xf32> to vector<16x8xf32>
    %495 = arith.subf %489, %494 : vector<16x8xf32>
    %496 = arith.mulf %495, %495 : vector<16x8xf32>
    %cst_180 = arith.constant dense<0.000000e+00> : vector<16xf32>
    %497 = vector.multi_reduction <add>, %496, %cst_180 [1] : vector<16x8xf32> to vector<16xf32>
    %498 = vector.shape_cast %497 : vector<16xf32> to vector<16x1xf32>
    %cst_181 = arith.constant 8.000000e+00 : f32
    %499 = vector.broadcast %cst_181 : f32 to vector<16x1xf32>
    %500 = arith.divf %498, %499 : vector<16x1xf32>
    %501 = vector.broadcast %493 : vector<16x1xf32> to vector<16x8xf32>
    %502 = arith.subf %489, %501 : vector<16x8xf32>
    %cst_182 = arith.constant 9.99999974E-6 : f32
    %503 = vector.broadcast %cst_182 : f32 to vector<16x1xf32>
    %504 = arith.addf %500, %503 : vector<16x1xf32>
    %505 = math.rsqrt %504 : vector<16x1xf32>
    %506 = vector.broadcast %505 : vector<16x1xf32> to vector<16x8xf32>
    %507 = arith.mulf %502, %506 : vector<16x8xf32>
    %c576 = arith.constant 576 : index
    %c0_183 = arith.constant 0 : index
    %508 = vector.load %arg3[%c576, %c0_183] : memref<912x128xf32, #tpu.memory_space<vmem>>, vector<1x8xf32>
    %509 = vector.broadcast %508 : vector<1x8xf32> to vector<16x8xf32>
    %510 = arith.mulf %507, %509 : vector<16x8xf32>
    %c584 = arith.constant 584 : index
    %c0_184 = arith.constant 0 : index
    %511 = vector.load %arg3[%c584, %c0_184] : memref<912x128xf32, #tpu.memory_space<vmem>>, vector<1x8xf32>
    %512 = vector.broadcast %511 : vector<1x8xf32> to vector<16x8xf32>
    %513 = arith.addf %510, %512 : vector<16x8xf32>
    %c592 = arith.constant 592 : index
    %c0_185 = arith.constant 0 : index
    %514 = vector.load %arg3[%c592, %c0_185] : memref<912x128xf32, #tpu.memory_space<vmem>>, vector<8x8xf32>
    %cst_186 = arith.constant dense<0.000000e+00> : vector<16x8xf32>
    %515 = tpu.matmul %513, %514, %cst_186 {dimension_numbers = #tpu.dot_dimension_numbers<[1], [0], [0], [1], [0, 0, 1, 1], [], []>} : vector<16x8xf32>, vector<8x8xf32>, vector<16x8xf32> -> vector<16x8xf32>
    %c600 = arith.constant 600 : index
    %c0_187 = arith.constant 0 : index
    %516 = vector.load %arg3[%c600, %c0_187] : memref<912x128xf32, #tpu.memory_space<vmem>>, vector<1x8xf32>
    %517 = vector.broadcast %516 : vector<1x8xf32> to vector<16x8xf32>
    %518 = arith.addf %515, %517 : vector<16x8xf32>
    %c608 = arith.constant 608 : index
    %c0_188 = arith.constant 0 : index
    %519 = vector.load %arg3[%c608, %c0_188] : memref<912x128xf32, #tpu.memory_space<vmem>>, vector<8x16xf32>
    %cst_189 = arith.constant dense<0.000000e+00> : vector<8x16xf32>
    %520 = tpu.matmul %249, %519, %cst_189 {dimension_numbers = #tpu.dot_dimension_numbers<[1], [0], [0], [1], [0, 0, 1, 1], [], []>} : vector<8x8xf32>, vector<8x16xf32>, vector<8x16xf32> -> vector<8x16xf32>
    %c616 = arith.constant 616 : index
    %c0_190 = arith.constant 0 : index
    %521 = vector.load %arg3[%c616, %c0_190] : memref<912x128xf32, #tpu.memory_space<vmem>>, vector<1x16xf32>
    %522 = vector.broadcast %521 : vector<1x16xf32> to vector<8x16xf32>
    %523 = arith.addf %520, %522 : vector<8x16xf32>
    %524 = vector.extract_strided_slice %518 {offsets = [0, 0], sizes = [16, 4], strides = [1, 1]} : vector<16x8xf32> to vector<16x4xf32>
    %525 = vector.extract_strided_slice %523 {offsets = [0, 0], sizes = [8, 4], strides = [1, 1]} : vector<8x16xf32> to vector<8x4xf32>
    %526 = vector.extract_strided_slice %523 {offsets = [0, 8], sizes = [8, 4], strides = [1, 1]} : vector<8x16xf32> to vector<8x4xf32>
    %cst_191 = arith.constant dense<0.000000e+00> : vector<16x8xf32>
    %527 = tpu.matmul %524, %525, %cst_191 {dimension_numbers = #tpu.dot_dimension_numbers<[1], [1], [0], [0], [0, 0, 1, 0], [], []>} : vector<16x4xf32>, vector<8x4xf32>, vector<16x8xf32> -> vector<16x8xf32>
    %cst_192 = arith.constant 5.000000e-01 : f32
    %528 = vector.broadcast %cst_192 : f32 to vector<16x8xf32>
    %529 = arith.mulf %527, %528 : vector<16x8xf32>
    %cst_193 = arith.constant dense<0xFF800000> : vector<16xf32>
    %530 = vector.multi_reduction <maximumf>, %529, %cst_193 [1] : vector<16x8xf32> to vector<16xf32>
    %531 = vector.shape_cast %530 : vector<16xf32> to vector<16x1xf32>
    %532 = vector.broadcast %531 : vector<16x1xf32> to vector<16x8xf32>
    %533 = arith.subf %529, %532 : vector<16x8xf32>
    %534 = math.exp %533 : vector<16x8xf32>
    %cst_194 = arith.constant dense<0.000000e+00> : vector<16xf32>
    %535 = vector.multi_reduction <add>, %534, %cst_194 [1] : vector<16x8xf32> to vector<16xf32>
    %536 = vector.shape_cast %535 : vector<16xf32> to vector<16x1xf32>
    %537 = tpu.reciprocal %536 {approx = true} : vector<16x1xf32> -> vector<16x1xf32>
    %538 = vector.broadcast %537 : vector<16x1xf32> to vector<16x8xf32>
    %539 = arith.mulf %534, %538 : vector<16x8xf32>
    %cst_195 = arith.constant dense<0.000000e+00> : vector<16x4xf32>
    %540 = tpu.matmul %539, %526, %cst_195 {dimension_numbers = #tpu.dot_dimension_numbers<[1], [0], [0], [1], [0, 0, 1, 1], [], []>} : vector<16x8xf32>, vector<8x4xf32>, vector<16x4xf32> -> vector<16x4xf32>
    %541 = vector.extract_strided_slice %518 {offsets = [0, 4], sizes = [16, 4], strides = [1, 1]} : vector<16x8xf32> to vector<16x4xf32>
    %542 = vector.extract_strided_slice %523 {offsets = [0, 4], sizes = [8, 4], strides = [1, 1]} : vector<8x16xf32> to vector<8x4xf32>
    %543 = vector.extract_strided_slice %523 {offsets = [0, 12], sizes = [8, 4], strides = [1, 1]} : vector<8x16xf32> to vector<8x4xf32>
    %cst_196 = arith.constant dense<0.000000e+00> : vector<16x8xf32>
    %544 = tpu.matmul %541, %542, %cst_196 {dimension_numbers = #tpu.dot_dimension_numbers<[1], [1], [0], [0], [0, 0, 1, 0], [], []>} : vector<16x4xf32>, vector<8x4xf32>, vector<16x8xf32> -> vector<16x8xf32>
    %cst_197 = arith.constant 5.000000e-01 : f32
    %545 = vector.broadcast %cst_197 : f32 to vector<16x8xf32>
    %546 = arith.mulf %544, %545 : vector<16x8xf32>
    %cst_198 = arith.constant dense<0xFF800000> : vector<16xf32>
    %547 = vector.multi_reduction <maximumf>, %546, %cst_198 [1] : vector<16x8xf32> to vector<16xf32>
    %548 = vector.shape_cast %547 : vector<16xf32> to vector<16x1xf32>
    %549 = vector.broadcast %548 : vector<16x1xf32> to vector<16x8xf32>
    %550 = arith.subf %546, %549 : vector<16x8xf32>
    %551 = math.exp %550 : vector<16x8xf32>
    %cst_199 = arith.constant dense<0.000000e+00> : vector<16xf32>
    %552 = vector.multi_reduction <add>, %551, %cst_199 [1] : vector<16x8xf32> to vector<16xf32>
    %553 = vector.shape_cast %552 : vector<16xf32> to vector<16x1xf32>
    %554 = tpu.reciprocal %553 {approx = true} : vector<16x1xf32> -> vector<16x1xf32>
    %555 = vector.broadcast %554 : vector<16x1xf32> to vector<16x8xf32>
    %556 = arith.mulf %551, %555 : vector<16x8xf32>
    %cst_200 = arith.constant dense<0.000000e+00> : vector<16x4xf32>
    %557 = tpu.matmul %556, %543, %cst_200 {dimension_numbers = #tpu.dot_dimension_numbers<[1], [0], [0], [1], [0, 0, 1, 1], [], []>} : vector<16x8xf32>, vector<8x4xf32>, vector<16x4xf32> -> vector<16x4xf32>
    %558 = tpu.concatenate %540, %557 in 1 : vector<16x4xf32>, vector<16x4xf32> -> vector<16x8xf32>
    %c624 = arith.constant 624 : index
    %c0_201 = arith.constant 0 : index
    %559 = vector.load %arg3[%c624, %c0_201] : memref<912x128xf32, #tpu.memory_space<vmem>>, vector<8x8xf32>
    %cst_202 = arith.constant dense<0.000000e+00> : vector<16x8xf32>
    %560 = tpu.matmul %558, %559, %cst_202 {dimension_numbers = #tpu.dot_dimension_numbers<[1], [0], [0], [1], [0, 0, 1, 1], [], []>} : vector<16x8xf32>, vector<8x8xf32>, vector<16x8xf32> -> vector<16x8xf32>
    %c632 = arith.constant 632 : index
    %c0_203 = arith.constant 0 : index
    %561 = vector.load %arg3[%c632, %c0_203] : memref<912x128xf32, #tpu.memory_space<vmem>>, vector<1x8xf32>
    %562 = vector.broadcast %561 : vector<1x8xf32> to vector<16x8xf32>
    %563 = arith.addf %560, %562 : vector<16x8xf32>
    %564 = arith.addf %513, %563 : vector<16x8xf32>
    %cst_204 = arith.constant dense<0.000000e+00> : vector<16xf32>
    %565 = vector.multi_reduction <add>, %564, %cst_204 [1] : vector<16x8xf32> to vector<16xf32>
    %566 = vector.shape_cast %565 : vector<16xf32> to vector<16x1xf32>
    %cst_205 = arith.constant 8.000000e+00 : f32
    %567 = vector.broadcast %cst_205 : f32 to vector<16x1xf32>
    %568 = arith.divf %566, %567 : vector<16x1xf32>
    %569 = vector.broadcast %568 : vector<16x1xf32> to vector<16x8xf32>
    %570 = arith.subf %564, %569 : vector<16x8xf32>
    %571 = arith.mulf %570, %570 : vector<16x8xf32>
    %cst_206 = arith.constant dense<0.000000e+00> : vector<16xf32>
    %572 = vector.multi_reduction <add>, %571, %cst_206 [1] : vector<16x8xf32> to vector<16xf32>
    %573 = vector.shape_cast %572 : vector<16xf32> to vector<16x1xf32>
    %cst_207 = arith.constant 8.000000e+00 : f32
    %574 = vector.broadcast %cst_207 : f32 to vector<16x1xf32>
    %575 = arith.divf %573, %574 : vector<16x1xf32>
    %576 = vector.broadcast %568 : vector<16x1xf32> to vector<16x8xf32>
    %577 = arith.subf %564, %576 : vector<16x8xf32>
    %cst_208 = arith.constant 9.99999974E-6 : f32
    %578 = vector.broadcast %cst_208 : f32 to vector<16x1xf32>
    %579 = arith.addf %575, %578 : vector<16x1xf32>
    %580 = math.rsqrt %579 : vector<16x1xf32>
    %581 = vector.broadcast %580 : vector<16x1xf32> to vector<16x8xf32>
    %582 = arith.mulf %577, %581 : vector<16x8xf32>
    %c640 = arith.constant 640 : index
    %c0_209 = arith.constant 0 : index
    %583 = vector.load %arg3[%c640, %c0_209] : memref<912x128xf32, #tpu.memory_space<vmem>>, vector<1x8xf32>
    %584 = vector.broadcast %583 : vector<1x8xf32> to vector<16x8xf32>
    %585 = arith.mulf %582, %584 : vector<16x8xf32>
    %c648 = arith.constant 648 : index
    %c0_210 = arith.constant 0 : index
    %586 = vector.load %arg3[%c648, %c0_210] : memref<912x128xf32, #tpu.memory_space<vmem>>, vector<1x8xf32>
    %587 = vector.broadcast %586 : vector<1x8xf32> to vector<16x8xf32>
    %588 = arith.addf %585, %587 : vector<16x8xf32>
    %c656 = arith.constant 656 : index
    %c0_211 = arith.constant 0 : index
    %589 = vector.load %arg3[%c656, %c0_211] : memref<912x128xf32, #tpu.memory_space<vmem>>, vector<8x16xf32>
    %cst_212 = arith.constant dense<0.000000e+00> : vector<16x16xf32>
    %590 = tpu.matmul %588, %589, %cst_212 {dimension_numbers = #tpu.dot_dimension_numbers<[1], [0], [0], [1], [0, 0, 1, 1], [], []>} : vector<16x8xf32>, vector<8x16xf32>, vector<16x16xf32> -> vector<16x16xf32>
    %c664 = arith.constant 664 : index
    %c0_213 = arith.constant 0 : index
    %591 = vector.load %arg3[%c664, %c0_213] : memref<912x128xf32, #tpu.memory_space<vmem>>, vector<1x16xf32>
    %592 = vector.broadcast %591 : vector<1x16xf32> to vector<16x16xf32>
    %593 = arith.addf %590, %592 : vector<16x16xf32>
    %cst_214 = arith.constant 0.000000e+00 : f32
    %594 = vector.broadcast %cst_214 : f32 to vector<16x16xf32>
    %595 = arith.maximumf %593, %594 : vector<16x16xf32>
    %c672 = arith.constant 672 : index
    %c0_215 = arith.constant 0 : index
    %596 = vector.load %arg3[%c672, %c0_215] : memref<912x128xf32, #tpu.memory_space<vmem>>, vector<16x8xf32>
    %cst_216 = arith.constant dense<0.000000e+00> : vector<16x8xf32>
    %597 = tpu.matmul %595, %596, %cst_216 {dimension_numbers = #tpu.dot_dimension_numbers<[1], [0], [0], [1], [0, 0, 1, 1], [], []>} : vector<16x16xf32>, vector<16x8xf32>, vector<16x8xf32> -> vector<16x8xf32>
    %c688 = arith.constant 688 : index
    %c0_217 = arith.constant 0 : index
    %598 = vector.load %arg3[%c688, %c0_217] : memref<912x128xf32, #tpu.memory_space<vmem>>, vector<1x8xf32>
    %599 = vector.broadcast %598 : vector<1x8xf32> to vector<16x8xf32>
    %600 = arith.addf %597, %599 : vector<16x8xf32>
    %601 = arith.addf %588, %600 : vector<16x8xf32>
    %cst_218 = arith.constant dense<0.000000e+00> : vector<16xf32>
    %602 = vector.multi_reduction <add>, %601, %cst_218 [1] : vector<16x8xf32> to vector<16xf32>
    %603 = vector.shape_cast %602 : vector<16xf32> to vector<16x1xf32>
    %cst_219 = arith.constant 8.000000e+00 : f32
    %604 = vector.broadcast %cst_219 : f32 to vector<16x1xf32>
    %605 = arith.divf %603, %604 : vector<16x1xf32>
    %606 = vector.broadcast %605 : vector<16x1xf32> to vector<16x8xf32>
    %607 = arith.subf %601, %606 : vector<16x8xf32>
    %608 = arith.mulf %607, %607 : vector<16x8xf32>
    %cst_220 = arith.constant dense<0.000000e+00> : vector<16xf32>
    %609 = vector.multi_reduction <add>, %608, %cst_220 [1] : vector<16x8xf32> to vector<16xf32>
    %610 = vector.shape_cast %609 : vector<16xf32> to vector<16x1xf32>
    %cst_221 = arith.constant 8.000000e+00 : f32
    %611 = vector.broadcast %cst_221 : f32 to vector<16x1xf32>
    %612 = arith.divf %610, %611 : vector<16x1xf32>
    %613 = vector.broadcast %605 : vector<16x1xf32> to vector<16x8xf32>
    %614 = arith.subf %601, %613 : vector<16x8xf32>
    %cst_222 = arith.constant 9.99999974E-6 : f32
    %615 = vector.broadcast %cst_222 : f32 to vector<16x1xf32>
    %616 = arith.addf %612, %615 : vector<16x1xf32>
    %617 = math.rsqrt %616 : vector<16x1xf32>
    %618 = vector.broadcast %617 : vector<16x1xf32> to vector<16x8xf32>
    %619 = arith.mulf %614, %618 : vector<16x8xf32>
    %c696 = arith.constant 696 : index
    %c0_223 = arith.constant 0 : index
    %620 = vector.load %arg3[%c696, %c0_223] : memref<912x128xf32, #tpu.memory_space<vmem>>, vector<1x8xf32>
    %621 = vector.broadcast %620 : vector<1x8xf32> to vector<16x8xf32>
    %622 = arith.mulf %619, %621 : vector<16x8xf32>
    %c704 = arith.constant 704 : index
    %c0_224 = arith.constant 0 : index
    %623 = vector.load %arg3[%c704, %c0_224] : memref<912x128xf32, #tpu.memory_space<vmem>>, vector<1x8xf32>
    %624 = vector.broadcast %623 : vector<1x8xf32> to vector<16x8xf32>
    %625 = arith.addf %622, %624 : vector<16x8xf32>
    %c712 = arith.constant 712 : index
    %c0_225 = arith.constant 0 : index
    %626 = vector.load %arg3[%c712, %c0_225] : memref<912x128xf32, #tpu.memory_space<vmem>>, vector<8x80xf32>
    %cst_226 = arith.constant dense<0.000000e+00> : vector<16x80xf32>
    %627 = tpu.matmul %625, %626, %cst_226 {dimension_numbers = #tpu.dot_dimension_numbers<[1], [0], [0], [1], [0, 0, 1, 1], [], []>} : vector<16x8xf32>, vector<8x80xf32>, vector<16x80xf32> -> vector<16x80xf32>
    %c720 = arith.constant 720 : index
    %c0_227 = arith.constant 0 : index
    %628 = vector.load %arg3[%c720, %c0_227] : memref<912x128xf32, #tpu.memory_space<vmem>>, vector<1x80xf32>
    %629 = vector.broadcast %628 : vector<1x80xf32> to vector<16x80xf32>
    %630 = arith.addf %627, %629 : vector<16x80xf32>
    %cst_228 = arith.constant 0.000000e+00 : f32
    %631 = vector.broadcast %cst_228 : f32 to vector<16x80xf32>
    %632 = arith.maximumf %630, %631 : vector<16x80xf32>
    %c728 = arith.constant 728 : index
    %c0_229 = arith.constant 0 : index
    %633 = vector.load %arg3[%c728, %c0_229] : memref<912x128xf32, #tpu.memory_space<vmem>>, vector<80x48xf32>
    %cst_230 = arith.constant dense<0.000000e+00> : vector<16x48xf32>
    %634 = tpu.matmul %632, %633, %cst_230 {dimension_numbers = #tpu.dot_dimension_numbers<[1], [0], [0], [1], [0, 0, 1, 1], [], []>} : vector<16x80xf32>, vector<80x48xf32>, vector<16x48xf32> -> vector<16x48xf32>
    %c808 = arith.constant 808 : index
    %c0_231 = arith.constant 0 : index
    %635 = vector.load %arg3[%c808, %c0_231] : memref<912x128xf32, #tpu.memory_space<vmem>>, vector<1x48xf32>
    %636 = vector.broadcast %635 : vector<1x48xf32> to vector<16x48xf32>
    %637 = arith.addf %634, %636 : vector<16x48xf32>
    %cst_232 = arith.constant 0.000000e+00 : f32
    %638 = vector.broadcast %cst_232 : f32 to vector<16x48xf32>
    %639 = arith.maximumf %637, %638 : vector<16x48xf32>
    %c816 = arith.constant 816 : index
    %c0_233 = arith.constant 0 : index
    %640 = vector.load %arg3[%c816, %c0_233] : memref<912x128xf32, #tpu.memory_space<vmem>>, vector<48x32xf32>
    %cst_234 = arith.constant dense<0.000000e+00> : vector<16x32xf32>
    %641 = tpu.matmul %639, %640, %cst_234 {dimension_numbers = #tpu.dot_dimension_numbers<[1], [0], [0], [1], [0, 0, 1, 1], [], []>} : vector<16x48xf32>, vector<48x32xf32>, vector<16x32xf32> -> vector<16x32xf32>
    %c864 = arith.constant 864 : index
    %c0_235 = arith.constant 0 : index
    %642 = vector.load %arg3[%c864, %c0_235] : memref<912x128xf32, #tpu.memory_space<vmem>>, vector<1x32xf32>
    %643 = vector.broadcast %642 : vector<1x32xf32> to vector<16x32xf32>
    %644 = arith.addf %641, %643 : vector<16x32xf32>
    %cst_236 = arith.constant 0.000000e+00 : f32
    %645 = vector.broadcast %cst_236 : f32 to vector<16x32xf32>
    %646 = arith.maximumf %644, %645 : vector<16x32xf32>
    %c872 = arith.constant 872 : index
    %c0_237 = arith.constant 0 : index
    %647 = vector.load %arg3[%c872, %c0_237] : memref<912x128xf32, #tpu.memory_space<vmem>>, vector<32x10xf32>
    %cst_238 = arith.constant dense<0.000000e+00> : vector<16x10xf32>
    %648 = tpu.matmul %646, %647, %cst_238 {dimension_numbers = #tpu.dot_dimension_numbers<[1], [0], [0], [1], [0, 0, 1, 1], [], []>} : vector<16x32xf32>, vector<32x10xf32>, vector<16x10xf32> -> vector<16x10xf32>
    %c904 = arith.constant 904 : index
    %c0_239 = arith.constant 0 : index
    %649 = vector.load %arg3[%c904, %c0_239] : memref<912x128xf32, #tpu.memory_space<vmem>>, vector<1x10xf32>
    %650 = vector.broadcast %649 : vector<1x10xf32> to vector<16x10xf32>
    %651 = arith.addf %648, %650 : vector<16x10xf32>
    %c0_240 = arith.constant 0 : index
    %c0_241 = arith.constant 0 : index
    %c0_242 = arith.constant 0 : index
    %652 = vector.load %arg4[%c0_240, %c0_241, %c0_242] : memref<1x16x10xf32, #tpu.memory_space<vmem>>, vector<1x16x10xf32>
    %653 = vector.shape_cast %652 : vector<1x16x10xf32> to vector<16x10xf32>
    %654 = vector.shape_cast %651 : vector<16x10xf32> to vector<1x16x10xf32>
    tpu.vector_store %arg4[%c0_240, %c0_241, %c0_242], %654 {strides = array<i32>} : memref<1x16x10xf32, #tpu.memory_space<vmem>>, vector<1x16x10xf32>,
    return
  }
  func.func @transform_0(%arg0: i32) -> (i32, i32, i32) {
    %c0_i32 = arith.constant 0 : i32
    %c0_i32_0 = arith.constant 0 : i32
    %c0_i32_1 = arith.constant 0 : i32
    return %arg0, %c0_i32, %c0_i32_0 : i32, i32, i32
  }
  func.func @transform_1(%arg0: i32) -> (i32, i32, i32) {
    %c0_i32 = arith.constant 0 : i32
    %c0_i32_0 = arith.constant 0 : i32
    %c0_i32_1 = arith.constant 0 : i32
    return %arg0, %c0_i32, %c0_i32_0 : i32, i32, i32
  }
  func.func @transform_2(%arg0: i32) -> (i32, i32) {
    %c0_i32 = arith.constant 0 : i32
    %c0_i32_0 = arith.constant 0 : i32
    %c0_i32_1 = arith.constant 0 : i32
    return %c0_i32, %c0_i32_0 : i32, i32
  }
  func.func @transform_3(%arg0: i32) -> (i32, i32, i32) {
    %c0_i32 = arith.constant 0 : i32
    %c0_i32_0 = arith.constant 0 : i32
    %c0_i32_1 = arith.constant 0 : i32
    return %arg0, %c0_i32, %c0_i32_0 : i32, i32, i32
  }
}

</mosaic_0001>

<llo_original>
// kernel: _lambda_.1
$region0: #{_lambda_.1}
  #allocation0 [shape = 'u32[]', space=smem, size = 0x4, offset = 0x4, fixed_abs, tag = 'smem constant byte address 0x4 - core index']
  #allocation1 [shape = 'u32[144,128]{1,0:T(1,128)}', space=vmem, size = 0x12000, scoped, tag = 'internal scratch']
  %s0 = inlined_call_operand.vmem [shape: f32[2,8,6], index: 0, kind: input, shape index: {}]
  %s1 = inlined_call_operand.vmem [shape: f32[2,16,9], index: 1, kind: input, shape index: {}]
  %s2 = inlined_call_operand.vmem [shape: f32[912,128], index: 2, kind: input, shape index: {}]
  %s3 = inlined_call_operand.vmem [shape: f32[2,16,10], index: 3, kind: output, shape index: {}]
  %s4 = sld [smem:[#allocation0]]
  $region45: #{_lambda_.1} parent=0
    _
  %s6 = ssub.s32 1, %s4
  %s7 = scalar_select 0, %s6, %s4
  loop: start=0, step=1, limit=4
  $region2: #{_lambda_.1} parent=0 // loop_pre_header
    _
  $region3: #{_lambda_.1} parent=0 // loop_header
    %s9 = sphi 0, %s13
    %p10 = scmp.ge.s32.totalorder %s9, 4
    %s19 = sphi 0, %s21
    %s22 = sphi 0, %s19
    %s23 = sphi 0, %s22
    %s39 = sphi 0, %s23
    %s45 = sphi 0, %s47
    %s48 = sphi 0, %s45
    %s49 = sphi 0, %s48
    %s65 = sphi 0, %s49
    %s69 = sphi 0, %s69
    %s71 = sphi 0, %s69
    %s72 = sphi 0, %s71
    %s86 = sphi 0, %s72
    %s92 = sphi 0, %s94
    %s95 = sphi 0, %s92
    %s96 = sphi 0, %s95
    %s112 = sphi 0, %s96
  $region4: #{_lambda_.1} parent=0 // loop_header_branch
    %12 = sbr.rel (%p10) target = $region8
  $region5: #{_lambda_.1} parent=0 // loop_body
    %s14 = ssub.s32 %s9, 1
    %s15 = ssub.s32 %s9, 2
    %s16 = sadd.s32 %s9, 1
    %s17 = ssub.s32 %s9, %s16
    %p18 = scmp.eq.s32.totalorder %s17, 0
    %s20 = sadd.s32 %s19, 1
    %s21 = scalar_select %p18, %s19, %s20
    %p24 = pneg %p18
    %p25 = scmp.eq.s32.totalorder %s9, 1
    %p26 = por %p24, %p25
    %p27 = scmp.ne.s32.totalorder %s19, %s22
    %p28 = scmp.eq.s32.totalorder %s9, 0
    %p29 = por %p27, %p28
    %p30 = scmp.ne.s32.totalorder %s19, %s22
    %p31 = scmp.eq.s32.totalorder %s14, 1
    %p32 = por %p30, %p31
    %p33 = scmp.ne.s32.totalorder %s22, %s23
    %p34 = scmp.eq.s32.totalorder %s14, 0
    %p35 = por %p33, %p34
    %p36 = scmp.ne.s32.totalorder %s22, %s23
    %p37 = scmp.eq.s32.totalorder %s15, 1
    %p38 = por %p36, %p37
    %p40 = scmp.ne.s32.totalorder %s23, %s39
    %p41 = scmp.eq.s32.totalorder %s15, 0
    %p42 = por %p40, %p41
    %s43 = ssub.s32 %s9, %s16
    %p44 = scmp.eq.s32.totalorder %s43, 0
    %s46 = sadd.s32 %s45, 1
    %s47 = scalar_select %p44, %s45, %s46
    %p50 = pneg %p44
    %p51 = scmp.eq.s32.totalorder %s9, 1
    %p52 = por %p50, %p51
    %p53 = scmp.ne.s32.totalorder %s45, %s48
    %p54 = scmp.eq.s32.totalorder %s9, 0
    %p55 = por %p53, %p54
    %p56 = scmp.ne.s32.totalorder %s45, %s48
    %p57 = scmp.eq.s32.totalorder %s14, 1
    %p58 = por %p56, %p57
    %p59 = scmp.ne.s32.totalorder %s48, %s49
    %p60 = scmp.eq.s32.totalorder %s14, 0
    %p61 = por %p59, %p60
    %p62 = scmp.ne.s32.totalorder %s48, %s49
    %p63 = scmp.eq.s32.totalorder %s15, 1
    %p64 = por %p62, %p63
    %p66 = scmp.ne.s32.totalorder %s49, %s65
    %p67 = scmp.eq.s32.totalorder %s15, 0
    %p68 = por %p66, %p67
    %s70 = sadd.s32 %s69, 1
    %p73 = scmp.eq.s32.totalorder %s9, 1
    %p74 = scmp.ne.s32.totalorder %s69, %s71
    %p75 = scmp.eq.s32.totalorder %s9, 0
    %p76 = por %p74, %p75
    %p77 = scmp.ne.s32.totalorder %s69, %s71
    %p78 = scmp.eq.s32.totalorder %s14, 1
    %p79 = por %p77, %p78
    %p80 = scmp.ne.s32.totalorder %s71, %s72
    %p81 = scmp.eq.s32.totalorder %s14, 0
    %p82 = por %p80, %p81
    %p83 = scmp.ne.s32.totalorder %s71, %s72
    %p84 = scmp.eq.s32.totalorder %s15, 1
    %p85 = por %p83, %p84
    %p87 = scmp.ne.s32.totalorder %s72, %s86
    %p88 = scmp.eq.s32.totalorder %s15, 0
    %p89 = por %p87, %p88
    %s90 = ssub.s32 %s9, %s16
    %p91 = scmp.eq.s32.totalorder %s90, 0
    %s93 = sadd.s32 %s92, 1
    %s94 = scalar_select %p91, %s92, %s93
    %p97 = pneg %p91
    %p98 = scmp.eq.s32.totalorder %s9, 1
    %p99 = por %p97, %p98
    %p100 = scmp.ne.s32.totalorder %s92, %s95
    %p101 = scmp.eq.s32.totalorder %s9, 0
    %p102 = por %p100, %p101
    %p103 = scmp.ne.s32.totalorder %s92, %s95
    %p104 = scmp.eq.s32.totalorder %s14, 1
    %p105 = por %p103, %p104
    %p106 = scmp.ne.s32.totalorder %s95, %s96
    %p107 = scmp.eq.s32.totalorder %s14, 0
    %p108 = por %p106, %p107
    %p109 = scmp.ne.s32.totalorder %s95, %s96
    %p110 = scmp.eq.s32.totalorder %s15, 1
    %p111 = por %p109, %p110
    %p113 = scmp.ne.s32.totalorder %s96, %s112
    %p114 = scmp.eq.s32.totalorder %s15, 0
    %p115 = por %p113, %p114
    %p116 = scmp.le.s32.totalorder 1, %s9
    %p117 = scmp.lt.s32.totalorder %s9, 3
    %p118 = pnand %p116, %p117
    %p119 = pneg %p118
    // Predicated region
    $region9: #{_lambda_.1} parent=5 // pred_check
      _
    $region10: #{_lambda_.1} parent=5 // pred_check_branch
      %121 = sbr.rel (%p118) target = $region12
    $region11: #{_lambda_.1} parent=5 // pred_region
      %s122 = ssub.s32 %s9, 1
      // Predicated region
      $region13: #{_lambda_.1} parent=11 // pred_check
        %p123 = pneg %p82
      $region14: #{_lambda_.1} parent=11 // pred_check_branch
        %125 = sbr.rel (%p123) target = $region16
      $region15: #{_lambda_.1} parent=11 // pred_region
        _
      $region16: #{_lambda_.1} parent=11 // pred_fallthru
        _
    $region12: #{_lambda_.1} parent=5 // pred_fallthru
      _
    %p126 = scmp.lt.s32.totalorder %s9, 2
    // Predicated region
    $region17: #{_lambda_.1} parent=5 // pred_check
      %p127 = pneg %p126
    $region18: #{_lambda_.1} parent=5 // pred_check_branch
      %129 = sbr.rel (%p127) target = $region20
    $region19: #{_lambda_.1} parent=5 // pred_region
      // Predicated region
      $region21: #{_lambda_.1} parent=19 // pred_check
        %p130 = pneg %p29
      $region22: #{_lambda_.1} parent=19 // pred_check_branch
        %132 = sbr.rel (%p130) target = $region24
      $region23: #{_lambda_.1} parent=19 // pred_region
        %p133 = scmp.lt.s32.totalorder %s9, 1
        %s134 = scalar_select %p133, %s9, 1
        %s135 = smul.addr %s134, 8
        %s136 = scalar_lea.vmem %s0, %s135
      $region24: #{_lambda_.1} parent=19 // pred_fallthru
        _
      // Predicated region
      $region25: #{_lambda_.1} parent=19 // pred_check
        %p137 = pneg %p55
      $region26: #{_lambda_.1} parent=19 // pred_check_branch
        %139 = sbr.rel (%p137) target = $region28
      $region27: #{_lambda_.1} parent=19 // pred_region
        %p140 = scmp.lt.s32.totalorder %s9, 1
        %s141 = scalar_select %p140, %s9, 1
        %s142 = smul.addr %s141, 2
        %s143 = smul.addr %s142, 8
        %s144 = scalar_lea.vmem %s1, %s143
      $region28: #{_lambda_.1} parent=19 // pred_fallthru
        _
    $region20: #{_lambda_.1} parent=5 // pred_fallthru
      _
    %p145 = scmp.le.s32.totalorder 1, %s9
    %p146 = scmp.lt.s32.totalorder %s9, 3
    %p147 = pnand %p145, %p146
    %p148 = pneg %p147
    // Predicated region
    $region29: #{_lambda_.1} parent=5 // pred_check
      _
    $region30: #{_lambda_.1} parent=5 // pred_check_branch
      %150 = sbr.rel (%p147) target = $region32
    $region31: #{_lambda_.1} parent=5 // pred_region
      %s151 = ssub.s32 %s9, 1
      %p152 = scmp.lt.s32.totalorder %s14, 1
      %s153 = scalar_select %p152, %s14, 1
      %s154 = smul.addr %s153, 8
      %s155 = scalar_lea.vmem %s0, %s154
      %p156 = pneg %p35
      %p157 = pneg %p32
      %p158 = scmp.lt.s32.totalorder %s14, 1
      %s159 = scalar_select %p158, %s14, 1
      %s160 = smul.addr %s159, 2
      %s161 = smul.addr %s160, 8
      %s162 = scalar_lea.vmem %s1, %s161
      %p163 = pneg %p61
      %p164 = pneg %p58
      %p165 = pneg %p82
      %p166 = pneg %p79
      %p167 = pneg %p108
      %p168 = pneg %p105
      %p169 = scmp.lt.s32.totalorder %s14, 1
      %s170 = scalar_select %p169, %s14, 1
      %s171 = smul.addr %s170, 2
      %s172 = smul.addr %s171, 8
      %s173 = scalar_lea.vmem %s3, %s172
      %p174 = scmp.lt.s32.totalorder %s14, 1
      %s175 = scalar_select %p174, %s14, 1
      %s176 = smul.addr %s175, 8
      %s177 = scalar_lea.vmem %s0, %s176
      %p178 = scmp.lt.s32.totalorder %s14, 1
      %s179 = scalar_select %p178, %s14, 1
      %s180 = smul.addr %s179, 2
      %s181 = smul.addr %s180, 8
      %s182 = scalar_lea.vmem %s1, %s181
      %p183 = scmp.lt.s32.totalorder %s14, 1
      %s184 = scalar_select %p183, %s14, 1
      %s185 = smul.addr %s184, 2
      %s186 = smul.addr %s185, 8
      %s187 = scalar_lea.vmem %s3, %s186
      %v188 = vld [vmem:[%s177] sm:$0xff]
      %v189 = vld [vmem:[%s182] sm:$0xff]
      %v190 = vld [vmem:[%s182 + $0x8] sm:$0xff]
      %v191 = vld [vmem:[%s2] sm:$0x3f]
      %v192 = vld [vmem:[%s2 + $0x8] sm:$0x1]
      %v193 = vlaneseq
      %v194 = vshrl.u32 %v193, 7
      %v195 = vsub.s32 0, %v194
      %v196 = vrot.slane %v192, %v195
      %vm197 = vcmask 48128
      %v199 = vsel %vm197, %v188, 0
      %vm201 = vcmask 1045504
      %v203 = vsel %vm201, %v191, 0
      %205 = vmatprep.subr.mxu0 0.0
      %206 = vmatpush1.msra.mxu0 %v203
      %207 = vmatprep.subr.mxu0 0.0
      %208 = vmatpush1.msra.mxu0 0.0
      %209 = vmatprep.subr.mxu0 0.0
      %210 = vmatpush1.msra.mxu0 0.0
      %211 = vmatprep.subr.mxu0 0.0
      %212 = vmatpush1.msra.mxu0 0.0
      %213 = vmatprep.subr.mxu0 0.0
      %214 = vmatpush1.msra.mxu0 0.0
      %215 = vmatprep.subr.mxu0 0.0
      %216 = vmatpush1.msra.mxu0 0.0
      %217 = vmatprep.subr.mxu0 0.0
      %218 = vmatpush1.msra.mxu0 0.0
      %219 = vmatprep.subr.mxu0 0.0
      %220 = vmatpush1.msra.mxu0 0.0
      %221 = vmatprep.subr.mxu0 0.0
      %222 = vmatpush1.msra.mxu0 0.0
      %223 = vmatprep.subr.mxu0 0.0
      %224 = vmatpush1.msra.mxu0 0.0
      %225 = vmatprep.subr.mxu0 0.0
      %226 = vmatpush1.msra.mxu0 0.0
      %227 = vmatprep.subr.mxu0 0.0
      %228 = vmatpush1.msra.mxu0 0.0
      %229 = vmatprep.subr.mxu0 0.0
      %230 = vmatpush1.msra.mxu0 0.0
      %231 = vmatprep.subr.mxu0 0.0
      %232 = vmatpush1.msra.mxu0 0.0
      %233 = vmatprep.subr.mxu0 0.0
      %234 = vmatpush1.msra.mxu0 0.0
      %235 = vmatprep.subr.mxu0 0.0
      %236 = vmatpush1.msra.mxu0 0.0
      %237 = vmatprep.subr.mxu0 0.0
      %238 = vmatpush1.msra.mxu0 0.0
      %239 = vmatprep.subr.mxu0 0.0
      %240 = vmatpush1.msra.mxu0 0.0
      %241 = vmatprep.subr.mxu0 0.0
      %242 = vmatpush1.msra.mxu0 0.0
      %243 = vmatprep.subr.mxu0 0.0
      %244 = vmatpush1.msra.mxu0 0.0
      %245 = vmatprep.subr.mxu0 0.0
      %246 = vmatpush1.msra.mxu0 0.0
      %247 = vmatprep.subr.mxu0 0.0
      %248 = vmatpush1.msra.mxu0 0.0
      %249 = vmatprep.subr.mxu0 0.0
      %250 = vmatpush1.msra.mxu0 0.0
      %251 = vmatprep.subr.mxu0 0.0
      %252 = vmatpush1.msra.mxu0 0.0
      %253 = vmatprep.subr.mxu0 0.0
      %254 = vmatpush1.msra.mxu0 0.0
      %255 = vmatprep.subr.mxu0 0.0
      %256 = vmatpush1.msra.mxu0 0.0
      %257 = vmatprep.subr.mxu0 0.0
      %258 = vmatpush1.msra.mxu0 0.0
      %259 = vmatprep.subr.mxu0 0.0
      %260 = vmatpush1.msra.mxu0 0.0
      %261 = vmatprep.subr.mxu0 0.0
      %262 = vmatpush1.msra.mxu0 0.0
      %263 = vmatprep.subr.mxu0 0.0
      %264 = vmatpush1.msra.mxu0 0.0
      %265 = vmatprep.subr.mxu0 0.0
      %266 = vmatpush1.msra.mxu0 0.0
      %267 = vmatprep.subr.mxu0 0.0
      %268 = vmatpush1.msra.mxu0 0.0
      %269 = vmatprep.mubr.f32.mxu0 0.0
      %270 = vmatmul.mubr.f32.gmra.mrb[0].mxu0 %v199
      %v271 = vpop.f32.mrb[0].mxu0
      %v272 = vadd.f32 %v196, %v271
      %v273 = vpop.f32.mrb[0].mxu0
      %274 = vdwg.mxu0
      %v275 = vmax.f32 %v272, 0.0
      %v276 = vld [vmem:[%s2 + $0x10] sm:$0xff]
      %v277 = vld [vmem:[%s2 + $0x18] sm:$0xff]
      %v278 = vld [vmem:[%s2 + $0x20] sm:$0x1]
      %v279 = vlaneseq
      %v280 = vshrl.u32 %v279, 7
      %v281 = vsub.s32 0, %v280
      %v282 = vrot.slane %v278, %v281
      %vm283 = vcmask 130048
      %v285 = vsel %vm283, %v275, 0
      %287 = vmatprep.subr.mxu0 0.0
      %288 = vmatpush1.msra.mxu0 %v276
      %289 = vmatprep.subr.mxu0 0.0
      %290 = vmatpush1.msra.mxu0 %v277
      %291 = vmatprep.subr.mxu0 0.0
      %292 = vmatpush1.msra.mxu0 0.0
      %293 = vmatprep.subr.mxu0 0.0
      %294 = vmatpush1.msra.mxu0 0.0
      %295 = vmatprep.subr.mxu0 0.0
      %296 = vmatpush1.msra.mxu0 0.0
      %297 = vmatprep.subr.mxu0 0.0
      %298 = vmatpush1.msra.mxu0 0.0
      %299 = vmatprep.subr.mxu0 0.0
      %300 = vmatpush1.msra.mxu0 0.0
      %301 = vmatprep.subr.mxu0 0.0
      %302 = vmatpush1.msra.mxu0 0.0
      %303 = vmatprep.subr.mxu0 0.0
      %304 = vmatpush1.msra.mxu0 0.0
      %305 = vmatprep.subr.mxu0 0.0
      %306 = vmatpush1.msra.mxu0 0.0
      %307 = vmatprep.subr.mxu0 0.0
      %308 = vmatpush1.msra.mxu0 0.0
      %309 = vmatprep.subr.mxu0 0.0
      %310 = vmatpush1.msra.mxu0 0.0
      %311 = vmatprep.subr.mxu0 0.0
      %312 = vmatpush1.msra.mxu0 0.0
      %313 = vmatprep.subr.mxu0 0.0
      %314 = vmatpush1.msra.mxu0 0.0
      %315 = vmatprep.subr.mxu0 0.0
      %316 = vmatpush1.msra.mxu0 0.0
      %317 = vmatprep.subr.mxu0 0.0
      %318 = vmatpush1.msra.mxu0 0.0
      %319 = vmatprep.subr.mxu0 0.0
      %320 = vmatpush1.msra.mxu0 0.0
      %321 = vmatprep.subr.mxu0 0.0
      %322 = vmatpush1.msra.mxu0 0.0
      %323 = vmatprep.subr.mxu0 0.0
      %324 = vmatpush1.msra.mxu0 0.0
      %325 = vmatprep.subr.mxu0 0.0
      %326 = vmatpush1.msra.mxu0 0.0
      %327 = vmatprep.subr.mxu0 0.0
      %328 = vmatpush1.msra.mxu0 0.0
      %329 = vmatprep.subr.mxu0 0.0
      %330 = vmatpush1.msra.mxu0 0.0
      %331 = vmatprep.subr.mxu0 0.0
      %332 = vmatpush1.msra.mxu0 0.0
      %333 = vmatprep.subr.mxu0 0.0
      %334 = vmatpush1.msra.mxu0 0.0
      %335 = vmatprep.subr.mxu0 0.0
      %336 = vmatpush1.msra.mxu0 0.0
      %337 = vmatprep.subr.mxu0 0.0
      %338 = vmatpush1.msra.mxu0 0.0
      %339 = vmatprep.subr.mxu0 0.0
      %340 = vmatpush1.msra.mxu0 0.0
      %341 = vmatprep.subr.mxu0 0.0
      %342 = vmatpush1.msra.mxu0 0.0
      %343 = vmatprep.subr.mxu0 0.0
      %344 = vmatpush1.msra.mxu0 0.0
      %345 = vmatprep.subr.mxu0 0.0
      %346 = vmatpush1.msra.mxu0 0.0
      %347 = vmatprep.subr.mxu0 0.0
      %348 = vmatpush1.msra.mxu0 0.0
      %349 = vmatprep.subr.mxu0 0.0
      %350 = vmatpush1.msra.mxu0 0.0
      %351 = vmatprep.mubr.f32.mxu0 0.0
      %352 = vmatmul.mubr.f32.gmra.mrb[0].mxu0 %v285
      %v353 = vpop.f32.mrb[0].mxu0
      %v354 = vadd.f32 %v282, %v353
      %v355 = vpop.f32.mrb[0].mxu0
      %356 = vdwg.mxu0
      %v357 = vld [vmem:[%s2 + $0x28] sm:$0xff]
      %v358 = vld [vmem:[%s2 + $0x30] sm:$0x1]
      %v359 = vld [vmem:[%s2 + $0x38] sm:$0x1]
      %v360 = vlaneseq
      %v361 = vshrl.u32 %v360, 7
      %v362 = vsub.s32 0, %v361
      %v363 = vrot.slane %v359, %v362
      %vm364 = vcmask 72704
      %v366 = vsel %vm364, %v189, 0
      %v369 = vsel %vm364, %v190, 0
      %vm371 = vcmask 1040384
      %v373 = vsel %vm371, %v358, 0
      %375 = vmatprep.subr.mxu0 0.0
      %376 = vmatpush1.msra.mxu0 %v357
      %377 = vmatprep.subr.mxu0 0.0
      %378 = vmatpush1.msra.mxu0 %v373
      %379 = vmatprep.subr.mxu0 0.0
      %380 = vmatpush1.msra.mxu0 0.0
      %381 = vmatprep.subr.mxu0 0.0
      %382 = vmatpush1.msra.mxu0 0.0
      %383 = vmatprep.subr.mxu0 0.0
      %384 = vmatpush1.msra.mxu0 0.0
      %385 = vmatprep.subr.mxu0 0.0
      %386 = vmatpush1.msra.mxu0 0.0
      %387 = vmatprep.subr.mxu0 0.0
      %388 = vmatpush1.msra.mxu0 0.0
      %389 = vmatprep.subr.mxu0 0.0
      %390 = vmatpush1.msra.mxu0 0.0
      %391 = vmatprep.subr.mxu0 0.0
      %392 = vmatpush1.msra.mxu0 0.0
      %393 = vmatprep.subr.mxu0 0.0
      %394 = vmatpush1.msra.mxu0 0.0
      %395 = vmatprep.subr.mxu0 0.0
      %396 = vmatpush1.msra.mxu0 0.0
      %397 = vmatprep.subr.mxu0 0.0
      %398 = vmatpush1.msra.mxu0 0.0
      %399 = vmatprep.subr.mxu0 0.0
      %400 = vmatpush1.msra.mxu0 0.0
      %401 = vmatprep.subr.mxu0 0.0
      %402 = vmatpush1.msra.mxu0 0.0
      %403 = vmatprep.subr.mxu0 0.0
      %404 = vmatpush1.msra.mxu0 0.0
      %405 = vmatprep.subr.mxu0 0.0
      %406 = vmatpush1.msra.mxu0 0.0
      %407 = vmatprep.subr.mxu0 0.0
      %408 = vmatpush1.msra.mxu0 0.0
      %409 = vmatprep.subr.mxu0 0.0
      %410 = vmatpush1.msra.mxu0 0.0
      %411 = vmatprep.subr.mxu0 0.0
      %412 = vmatpush1.msra.mxu0 0.0
      %413 = vmatprep.subr.mxu0 0.0
      %414 = vmatpush1.msra.mxu0 0.0
      %415 = vmatprep.subr.mxu0 0.0
      %416 = vmatpush1.msra.mxu0 0.0
      %417 = vmatprep.subr.mxu0 0.0
      %418 = vmatpush1.msra.mxu0 0.0
      %419 = vmatprep.subr.mxu0 0.0
      %420 = vmatpush1.msra.mxu0 0.0
      %421 = vmatprep.subr.mxu0 0.0
      %422 = vmatpush1.msra.mxu0 0.0
      %423 = vmatprep.subr.mxu0 0.0
      %424 = vmatpush1.msra.mxu0 0.0
      %425 = vmatprep.subr.mxu0 0.0
      %426 = vmatpush1.msra.mxu0 0.0
      %427 = vmatprep.subr.mxu0 0.0
      %428 = vmatpush1.msra.mxu0 0.0
      %429 = vmatprep.subr.mxu0 0.0
      %430 = vmatpush1.msra.mxu0 0.0
      %431 = vmatprep.subr.mxu0 0.0
      %432 = vmatpush1.msra.mxu0 0.0
      %433 = vmatprep.subr.mxu0 0.0
      %434 = vmatpush1.msra.mxu0 0.0
      %435 = vmatprep.subr.mxu0 0.0
      %436 = vmatpush1.msra.mxu0 0.0
      %437 = vmatprep.subr.mxu0 0.0
      %438 = vmatpush1.msra.mxu0 0.0
      %439 = vmatprep.mubr.f32.mxu0 0.0
      %440 = vmatmul.mubr.f32.gmra.mrb[0].mxu0 %v366
      %v441 = vpop.f32.mrb[0].mxu0
      %v442 = vadd.f32 %v363, %v441
      %v443 = vpop.f32.mrb[0].mxu0
      %444 = vmatprep.mubr.f32.mxu0 0.0
      %445 = vmatmul.mubr.f32.gmra.mrb[0].mxu0 %v369
      %v446 = vpop.f32.mrb[0].mxu0
      %v447 = vadd.f32 %v363, %v446
      %v448 = vpop.f32.mrb[0].mxu0
      %449 = vdwg.mxu0
      %v450 = vmax.f32 %v442, 0.0
      %v451 = vmax.f32 %v447, 0.0
      %v452 = vld [vmem:[%s2 + $0x40] sm:$0xff]
      %v453 = vld [vmem:[%s2 + $0x48] sm:$0xff]
      %v454 = vld [vmem:[%s2 + $0x50] sm:$0x1]
      %v455 = vlaneseq
      %v456 = vshrl.u32 %v455, 7
      %v457 = vsub.s32 0, %v456
      %v458 = vrot.slane %v454, %v457
      %v460 = vsel %vm283, %v450, 0
      %v463 = vsel %vm283, %v451, 0
      %465 = vmatprep.subr.mxu0 0.0
      %466 = vmatpush1.msra.mxu0 %v452
      %467 = vmatprep.subr.mxu0 0.0
      %468 = vmatpush1.msra.mxu0 %v453
      %469 = vmatprep.subr.mxu0 0.0
      %470 = vmatpush1.msra.mxu0 0.0
      %471 = vmatprep.subr.mxu0 0.0
      %472 = vmatpush1.msra.mxu0 0.0
      %473 = vmatprep.subr.mxu0 0.0
      %474 = vmatpush1.msra.mxu0 0.0
      %475 = vmatprep.subr.mxu0 0.0
      %476 = vmatpush1.msra.mxu0 0.0
      %477 = vmatprep.subr.mxu0 0.0
      %478 = vmatpush1.msra.mxu0 0.0
      %479 = vmatprep.subr.mxu0 0.0
      %480 = vmatpush1.msra.mxu0 0.0
      %481 = vmatprep.subr.mxu0 0.0
      %482 = vmatpush1.msra.mxu0 0.0
      %483 = vmatprep.subr.mxu0 0.0
      %484 = vmatpush1.msra.mxu0 0.0
      %485 = vmatprep.subr.mxu0 0.0
      %486 = vmatpush1.msra.mxu0 0.0
      %487 = vmatprep.subr.mxu0 0.0
      %488 = vmatpush1.msra.mxu0 0.0
      %489 = vmatprep.subr.mxu0 0.0
      %490 = vmatpush1.msra.mxu0 0.0
      %491 = vmatprep.subr.mxu0 0.0
      %492 = vmatpush1.msra.mxu0 0.0
      %493 = vmatprep.subr.mxu0 0.0
      %494 = vmatpush1.msra.mxu0 0.0
      %495 = vmatprep.subr.mxu0 0.0
      %496 = vmatpush1.msra.mxu0 0.0
      %497 = vmatprep.subr.mxu0 0.0
      %498 = vmatpush1.msra.mxu0 0.0
      %499 = vmatprep.subr.mxu0 0.0
      %500 = vmatpush1.msra.mxu0 0.0
      %501 = vmatprep.subr.mxu0 0.0
      %502 = vmatpush1.msra.mxu0 0.0
      %503 = vmatprep.subr.mxu0 0.0
      %504 = vmatpush1.msra.mxu0 0.0
      %505 = vmatprep.subr.mxu0 0.0
      %506 = vmatpush1.msra.mxu0 0.0
      %507 = vmatprep.subr.mxu0 0.0
      %508 = vmatpush1.msra.mxu0 0.0
      %509 = vmatprep.subr.mxu0 0.0
      %510 = vmatpush1.msra.mxu0 0.0
      %511 = vmatprep.subr.mxu0 0.0
      %512 = vmatpush1.msra.mxu0 0.0
      %513 = vmatprep.subr.mxu0 0.0
      %514 = vmatpush1.msra.mxu0 0.0
      %515 = vmatprep.subr.mxu0 0.0
      %516 = vmatpush1.msra.mxu0 0.0
      %517 = vmatprep.subr.mxu0 0.0
      %518 = vmatpush1.msra.mxu0 0.0
      %519 = vmatprep.subr.mxu0 0.0
      %520 = vmatpush1.msra.mxu0 0.0
      %521 = vmatprep.subr.mxu0 0.0
      %522 = vmatpush1.msra.mxu0 0.0
      %523 = vmatprep.subr.mxu0 0.0
      %524 = vmatpush1.msra.mxu0 0.0
      %525 = vmatprep.subr.mxu0 0.0
      %526 = vmatpush1.msra.mxu0 0.0
      %527 = vmatprep.subr.mxu0 0.0
      %528 = vmatpush1.msra.mxu0 0.0
      %529 = vmatprep.mubr.f32.mxu0 0.0
      %530 = vmatmul.mubr.f32.gmra.mrb[0].mxu0 %v460
      %v531 = vpop.f32.mrb[0].mxu0
      %v532 = vadd.f32 %v458, %v531
      %v533 = vpop.f32.mrb[0].mxu0
      %534 = vmatprep.mubr.f32.mxu0 0.0
      %535 = vmatmul.mubr.f32.gmra.mrb[0].mxu0 %v463
      %v536 = vpop.f32.mrb[0].mxu0
      %v537 = vadd.f32 %v458, %v536
      %v538 = vpop.f32.mrb[0].mxu0
      %539 = vdwg.mxu0
      %v540 = vld [vmem:[%s2 + $0x58] sm:$0xff]
      %v541 = vld [vmem:[%s2 + $0x60] sm:$0x1]
      %v542 = vlaneseq
      %v543 = vshrl.u32 %v542, 7
      %v544 = vsub.s32 0, %v543
      %v545 = vrot.slane %v541, %v544
      %vm546 = vcmask 64512
      %v548 = vsel %vm546, %v354, 0
      %550 = vmatprep.subr.mxu0 0.0
      %551 = vmatpush1.msra.mxu0 %v540
      %552 = vmatprep.subr.mxu0 0.0
      %553 = vmatpush1.msra.mxu0 0.0
      %554 = vmatprep.subr.mxu0 0.0
      %555 = vmatpush1.msra.mxu0 0.0
      %556 = vmatprep.subr.mxu0 0.0
      %557 = vmatpush1.msra.mxu0 0.0
      %558 = vmatprep.subr.mxu0 0.0
      %559 = vmatpush1.msra.mxu0 0.0
      %560 = vmatprep.subr.mxu0 0.0
      %561 = vmatpush1.msra.mxu0 0.0
      %562 = vmatprep.subr.mxu0 0.0
      %563 = vmatpush1.msra.mxu0 0.0
      %564 = vmatprep.subr.mxu0 0.0
      %565 = vmatpush1.msra.mxu0 0.0
      %566 = vmatprep.subr.mxu0 0.0
      %567 = vmatpush1.msra.mxu0 0.0
      %568 = vmatprep.subr.mxu0 0.0
      %569 = vmatpush1.msra.mxu0 0.0
      %570 = vmatprep.subr.mxu0 0.0
      %571 = vmatpush1.msra.mxu0 0.0
      %572 = vmatprep.subr.mxu0 0.0
      %573 = vmatpush1.msra.mxu0 0.0
      %574 = vmatprep.subr.mxu0 0.0
      %575 = vmatpush1.msra.mxu0 0.0
      %576 = vmatprep.subr.mxu0 0.0
      %577 = vmatpush1.msra.mxu0 0.0
      %578 = vmatprep.subr.mxu0 0.0
      %579 = vmatpush1.msra.mxu0 0.0
      %580 = vmatprep.subr.mxu0 0.0
      %581 = vmatpush1.msra.mxu0 0.0
      %582 = vmatprep.subr.mxu0 0.0
      %583 = vmatpush1.msra.mxu0 0.0
      %584 = vmatprep.subr.mxu0 0.0
      %585 = vmatpush1.msra.mxu0 0.0
      %586 = vmatprep.subr.mxu0 0.0
      %587 = vmatpush1.msra.mxu0 0.0
      %588 = vmatprep.subr.mxu0 0.0
      %589 = vmatpush1.msra.mxu0 0.0
      %590 = vmatprep.subr.mxu0 0.0
      %591 = vmatpush1.msra.mxu0 0.0
      %592 = vmatprep.subr.mxu0 0.0
      %593 = vmatpush1.msra.mxu0 0.0
      %594 = vmatprep.subr.mxu0 0.0
      %595 = vmatpush1.msra.mxu0 0.0
      %596 = vmatprep.subr.mxu0 0.0
      %597 = vmatpush1.msra.mxu0 0.0
      %598 = vmatprep.subr.mxu0 0.0
      %599 = vmatpush1.msra.mxu0 0.0
      %600 = vmatprep.subr.mxu0 0.0
      %601 = vmatpush1.msra.mxu0 0.0
      %602 = vmatprep.subr.mxu0 0.0
      %603 = vmatpush1.msra.mxu0 0.0
      %604 = vmatprep.subr.mxu0 0.0
      %605 = vmatpush1.msra.mxu0 0.0
      %606 = vmatprep.subr.mxu0 0.0
      %607 = vmatpush1.msra.mxu0 0.0
      %608 = vmatprep.subr.mxu0 0.0
      %609 = vmatpush1.msra.mxu0 0.0
      %610 = vmatprep.subr.mxu0 0.0
      %611 = vmatpush1.msra.mxu0 0.0
      %612 = vmatprep.subr.mxu0 0.0
      %613 = vmatpush1.msra.mxu0 0.0
      %614 = vmatprep.mubr.f32.mxu0 0.0
      %615 = vmatmul.mubr.f32.gmra.mrb[0].mxu0 %v548
      %v616 = vpop.f32.mrb[0].mxu0
      %v617 = vadd.f32 %v545, %v616
      %v618 = vpop.f32.mrb[0].mxu0
      %619 = vdwg.mxu0
      %621 = vrot.lane.b32.xlu0 %v617, 120
      %v622 = vpop.permute.xlu0 %621
      %vm623 = vcmask 31744
      %v624 = vsel %vm623, %v617, 0
      %v626 = vsel %vm623, %v622, 0
      %628 = vmatprep.subr.mxu0 0.0
      %629 = vmatpush1.xpose.msra.mxu0 %v626
      %630 = vmatprep.subr.mxu0 0.0
      %631 = vmatpush1.xpose.msra.mxu0 0.0
      %632 = vmatprep.subr.mxu0 0.0
      %633 = vmatpush1.xpose.msra.mxu0 0.0
      %634 = vmatprep.subr.mxu0 0.0
      %635 = vmatpush1.xpose.msra.mxu0 0.0
      %636 = vmatprep.subr.mxu0 0.0
      %637 = vmatpush1.xpose.msra.mxu0 0.0
      %638 = vmatprep.subr.mxu0 0.0
      %639 = vmatpush1.xpose.msra.mxu0 0.0
      %640 = vmatprep.subr.mxu0 0.0
      %641 = vmatpush1.xpose.msra.mxu0 0.0
      %642 = vmatprep.subr.mxu0 0.0
      %643 = vmatpush1.xpose.msra.mxu0 0.0
      %644 = vmatprep.subr.mxu0 0.0
      %645 = vmatpush1.xpose.msra.mxu0 0.0
      %646 = vmatprep.subr.mxu0 0.0
      %647 = vmatpush1.xpose.msra.mxu0 0.0
      %648 = vmatprep.subr.mxu0 0.0
      %649 = vmatpush1.xpose.msra.mxu0 0.0
      %650 = vmatprep.subr.mxu0 0.0
      %651 = vmatpush1.xpose.msra.mxu0 0.0
      %652 = vmatprep.subr.mxu0 0.0
      %653 = vmatpush1.xpose.msra.mxu0 0.0
      %654 = vmatprep.subr.mxu0 0.0
      %655 = vmatpush1.xpose.msra.mxu0 0.0
      %656 = vmatprep.subr.mxu0 0.0
      %657 = vmatpush1.xpose.msra.mxu0 0.0
      %658 = vmatprep.subr.mxu0 0.0
      %659 = vmatpush1.xpose.msra.mxu0 0.0
      %660 = vmatprep.subr.mxu0 0.0
      %661 = vmatpush1.xpose.msra.mxu0 0.0
      %662 = vmatprep.subr.mxu0 0.0
      %663 = vmatpush1.xpose.msra.mxu0 0.0
      %664 = vmatprep.subr.mxu0 0.0
      %665 = vmatpush1.xpose.msra.mxu0 0.0
      %666 = vmatprep.subr.mxu0 0.0
      %667 = vmatpush1.xpose.msra.mxu0 0.0
      %668 = vmatprep.subr.mxu0 0.0
      %669 = vmatpush1.xpose.msra.mxu0 0.0
      %670 = vmatprep.subr.mxu0 0.0
      %671 = vmatpush1.xpose.msra.mxu0 0.0
      %672 = vmatprep.subr.mxu0 0.0
      %673 = vmatpush1.xpose.msra.mxu0 0.0
      %674 = vmatprep.subr.mxu0 0.0
      %675 = vmatpush1.xpose.msra.mxu0 0.0
      %676 = vmatprep.subr.mxu0 0.0
      %677 = vmatpush1.xpose.msra.mxu0 0.0
      %678 = vmatprep.subr.mxu0 0.0
      %679 = vmatpush1.xpose.msra.mxu0 0.0
      %680 = vmatprep.subr.mxu0 0.0
      %681 = vmatpush1.xpose.msra.mxu0 0.0
      %682 = vmatprep.subr.mxu0 0.0
      %683 = vmatpush1.xpose.msra.mxu0 0.0
      %684 = vmatprep.subr.mxu0 0.0
      %685 = vmatpush1.xpose.msra.mxu0 0.0
      %686 = vmatprep.subr.mxu0 0.0
      %687 = vmatpush1.xpose.msra.mxu0 0.0
      %688 = vmatprep.subr.mxu0 0.0
      %689 = vmatpush1.xpose.msra.mxu0 0.0
      %690 = vmatprep.subr.mxu0 0.0
      %691 = vmatpush1.xpose.msra.mxu0 0.0
      %692 = vmatprep.mubr.f32.mxu0 0.0
      %693 = vmatmul.mubr.f32.gmra.mrb[0].mxu0 %v624
      %v694 = vpop.f32.mrb[0].mxu0
      %v695 = vadd.f32 0.0, %v694
      %v696 = vpop.f32.mrb[0].mxu0
      %697 = vdwg.mxu0
      %v698 = vmul.f32 %v695, 0.5
      %v699 = vld [vmem:[%s2 + $0xc0] sm:$0xff]
      %v700 = vadd.f32 %v698, %v699
      %v701 = vsel %vm546, %v700, -inf
      %702 = vmax.xlane.f32.xlu0 %v701
      %v703 = vpop.xlane.xlu0 %702
      %v704 = vsub.f32 %v700, %v703
      %v705 = vmul.f32 %v704, 1.442695
      %v706 = vpow.pop %v705
      %v707 = vsel %vm546, %v706, 0.0
      %708 = vadd.xlane.f32.xlu0 %v707
      %v709 = vpop.xlane.xlu0 %708
      %v710 = vrcp.pop %v709
      %v711 = vmul.f32 %v706, %v710
      %712 = vrot.lane.b32.xlu0 %v617, 112
      %v713 = vpop.permute.xlu0 %712
      %v716 = vsel %vm546, %v711, 0
      %718 = vmatprep.subr.mxu0 0.0
      %719 = vmatpush1.msra.mxu0 %v713
      %720 = vmatprep.subr.mxu0 0.0
      %721 = vmatpush1.msra.mxu0 0.0
      %722 = vmatprep.subr.mxu0 0.0
      %723 = vmatpush1.msra.mxu0 0.0
      %724 = vmatprep.subr.mxu0 0.0
      %725 = vmatpush1.msra.mxu0 0.0
      %726 = vmatprep.subr.mxu0 0.0
      %727 = vmatpush1.msra.mxu0 0.0
      %728 = vmatprep.subr.mxu0 0.0
      %729 = vmatpush1.msra.mxu0 0.0
      %730 = vmatprep.subr.mxu0 0.0
      %731 = vmatpush1.msra.mxu0 0.0
      %732 = vmatprep.subr.mxu0 0.0
      %733 = vmatpush1.msra.mxu0 0.0
      %734 = vmatprep.subr.mxu0 0.0
      %735 = vmatpush1.msra.mxu0 0.0
      %736 = vmatprep.subr.mxu0 0.0
      %737 = vmatpush1.msra.mxu0 0.0
      %738 = vmatprep.subr.mxu0 0.0
      %739 = vmatpush1.msra.mxu0 0.0
      %740 = vmatprep.subr.mxu0 0.0
      %741 = vmatpush1.msra.mxu0 0.0
      %742 = vmatprep.subr.mxu0 0.0
      %743 = vmatpush1.msra.mxu0 0.0
      %744 = vmatprep.subr.mxu0 0.0
      %745 = vmatpush1.msra.mxu0 0.0
      %746 = vmatprep.subr.mxu0 0.0
      %747 = vmatpush1.msra.mxu0 0.0
      %748 = vmatprep.subr.mxu0 0.0
      %749 = vmatpush1.msra.mxu0 0.0
      %750 = vmatprep.subr.mxu0 0.0
      %751 = vmatpush1.msra.mxu0 0.0
      %752 = vmatprep.subr.mxu0 0.0
      %753 = vmatpush1.msra.mxu0 0.0
      %754 = vmatprep.subr.mxu0 0.0
      %755 = vmatpush1.msra.mxu0 0.0
      %756 = vmatprep.subr.mxu0 0.0
      %757 = vmatpush1.msra.mxu0 0.0
      %758 = vmatprep.subr.mxu0 0.0
      %759 = vmatpush1.msra.mxu0 0.0
      %760 = vmatprep.subr.mxu0 0.0
      %761 = vmatpush1.msra.mxu0 0.0
      %762 = vmatprep.subr.mxu0 0.0
      %763 = vmatpush1.msra.mxu0 0.0
      %764 = vmatprep.subr.mxu0 0.0
      %765 = vmatpush1.msra.mxu0 0.0
      %766 = vmatprep.subr.mxu0 0.0
      %767 = vmatpush1.msra.mxu0 0.0
      %768 = vmatprep.subr.mxu0 0.0
      %769 = vmatpush1.msra.mxu0 0.0
      %770 = vmatprep.subr.mxu0 0.0
      %771 = vmatpush1.msra.mxu0 0.0
      %772 = vmatprep.subr.mxu0 0.0
      %773 = vmatpush1.msra.mxu0 0.0
      %774 = vmatprep.subr.mxu0 0.0
      %775 = vmatpush1.msra.mxu0 0.0
      %776 = vmatprep.subr.mxu0 0.0
      %777 = vmatpush1.msra.mxu0 0.0
      %778 = vmatprep.subr.mxu0 0.0
      %779 = vmatpush1.msra.mxu0 0.0
      %780 = vmatprep.subr.mxu0 0.0
      %781 = vmatpush1.msra.mxu0 0.0
      %782 = vmatprep.mubr.f32.mxu0 0.0
      %783 = vmatmul.mubr.f32.gmra.mrb[0].mxu0 %v716
      %v784 = vpop.f32.mrb[0].mxu0
      %v785 = vadd.f32 0.0, %v784
      %v786 = vpop.f32.mrb[0].mxu0
      %787 = vdwg.mxu0
      %788 = vrot.lane.b32.xlu0 %v617, 124
      %v789 = vpop.permute.xlu0 %788
      %790 = vrot.lane.b32.xlu0 %v617, 116
      %v791 = vpop.permute.xlu0 %790
      %v792 = vsel %vm623, %v789, 0
      %v794 = vsel %vm623, %v791, 0
      %796 = vmatprep.subr.mxu0 0.0
      %797 = vmatpush1.xpose.msra.mxu0 %v794
      %798 = vmatprep.subr.mxu0 0.0
      %799 = vmatpush1.xpose.msra.mxu0 0.0
      %800 = vmatprep.subr.mxu0 0.0
      %801 = vmatpush1.xpose.msra.mxu0 0.0
      %802 = vmatprep.subr.mxu0 0.0
      %803 = vmatpush1.xpose.msra.mxu0 0.0
      %804 = vmatprep.subr.mxu0 0.0
      %805 = vmatpush1.xpose.msra.mxu0 0.0
      %806 = vmatprep.subr.mxu0 0.0
      %807 = vmatpush1.xpose.msra.mxu0 0.0
      %808 = vmatprep.subr.mxu0 0.0
      %809 = vmatpush1.xpose.msra.mxu0 0.0
      %810 = vmatprep.subr.mxu0 0.0
      %811 = vmatpush1.xpose.msra.mxu0 0.0
      %812 = vmatprep.subr.mxu0 0.0
      %813 = vmatpush1.xpose.msra.mxu0 0.0
      %814 = vmatprep.subr.mxu0 0.0
      %815 = vmatpush1.xpose.msra.mxu0 0.0
      %816 = vmatprep.subr.mxu0 0.0
      %817 = vmatpush1.xpose.msra.mxu0 0.0
      %818 = vmatprep.subr.mxu0 0.0
      %819 = vmatpush1.xpose.msra.mxu0 0.0
      %820 = vmatprep.subr.mxu0 0.0
      %821 = vmatpush1.xpose.msra.mxu0 0.0
      %822 = vmatprep.subr.mxu0 0.0
      %823 = vmatpush1.xpose.msra.mxu0 0.0
      %824 = vmatprep.subr.mxu0 0.0
      %825 = vmatpush1.xpose.msra.mxu0 0.0
      %826 = vmatprep.subr.mxu0 0.0
      %827 = vmatpush1.xpose.msra.mxu0 0.0
      %828 = vmatprep.subr.mxu0 0.0
      %829 = vmatpush1.xpose.msra.mxu0 0.0
      %830 = vmatprep.subr.mxu0 0.0
      %831 = vmatpush1.xpose.msra.mxu0 0.0
      %832 = vmatprep.subr.mxu0 0.0
      %833 = vmatpush1.xpose.msra.mxu0 0.0
      %834 = vmatprep.subr.mxu0 0.0
      %835 = vmatpush1.xpose.msra.mxu0 0.0
      %836 = vmatprep.subr.mxu0 0.0
      %837 = vmatpush1.xpose.msra.mxu0 0.0
      %838 = vmatprep.subr.mxu0 0.0
      %839 = vmatpush1.xpose.msra.mxu0 0.0
      %840 = vmatprep.subr.mxu0 0.0
      %841 = vmatpush1.xpose.msra.mxu0 0.0
      %842 = vmatprep.subr.mxu0 0.0
      %843 = vmatpush1.xpose.msra.mxu0 0.0
      %844 = vmatprep.subr.mxu0 0.0
      %845 = vmatpush1.xpose.msra.mxu0 0.0
      %846 = vmatprep.subr.mxu0 0.0
      %847 = vmatpush1.xpose.msra.mxu0 0.0
      %848 = vmatprep.subr.mxu0 0.0
      %849 = vmatpush1.xpose.msra.mxu0 0.0
      %850 = vmatprep.subr.mxu0 0.0
      %851 = vmatpush1.xpose.msra.mxu0 0.0
      %852 = vmatprep.subr.mxu0 0.0
      %853 = vmatpush1.xpose.msra.mxu0 0.0
      %854 = vmatprep.subr.mxu0 0.0
      %855 = vmatpush1.xpose.msra.mxu0 0.0
      %856 = vmatprep.subr.mxu0 0.0
      %857 = vmatpush1.xpose.msra.mxu0 0.0
      %858 = vmatprep.subr.mxu0 0.0
      %859 = vmatpush1.xpose.msra.mxu0 0.0
      %860 = vmatprep.mubr.f32.mxu0 0.0
      %861 = vmatmul.mubr.f32.gmra.mrb[0].mxu0 %v792
      %v862 = vpop.f32.mrb[0].mxu0
      %v863 = vadd.f32 0.0, %v862
      %v864 = vpop.f32.mrb[0].mxu0
      %865 = vdwg.mxu0
      %v866 = vmul.f32 %v863, 0.5
      %v867 = vld [vmem:[%s2 + $0xc8] sm:$0xff]
      %v868 = vadd.f32 %v866, %v867
      %v869 = vsel %vm546, %v868, -inf
      %870 = vmax.xlane.f32.xlu0 %v869
      %v871 = vpop.xlane.xlu0 %870
      %v872 = vsub.f32 %v868, %v871
      %v873 = vmul.f32 %v872, 1.442695
      %v874 = vpow.pop %v873
      %v875 = vsel %vm546, %v874, 0.0
      %876 = vadd.xlane.f32.xlu0 %v875
      %v877 = vpop.xlane.xlu0 %876
      %v878 = vrcp.pop %v877
      %v879 = vmul.f32 %v874, %v878
      %880 = vrot.lane.b32.xlu0 %v617, 108
      %v881 = vpop.permute.xlu0 %880
      %v884 = vsel %vm546, %v879, 0
      %886 = vmatprep.subr.mxu0 0.0
      %887 = vmatpush1.msra.mxu0 %v881
      %888 = vmatprep.subr.mxu0 0.0
      %889 = vmatpush1.msra.mxu0 0.0
      %890 = vmatprep.subr.mxu0 0.0
      %891 = vmatpush1.msra.mxu0 0.0
      %892 = vmatprep.subr.mxu0 0.0
      %893 = vmatpush1.msra.mxu0 0.0
      %894 = vmatprep.subr.mxu0 0.0
      %895 = vmatpush1.msra.mxu0 0.0
      %896 = vmatprep.subr.mxu0 0.0
      %897 = vmatpush1.msra.mxu0 0.0
      %898 = vmatprep.subr.mxu0 0.0
      %899 = vmatpush1.msra.mxu0 0.0
      %900 = vmatprep.subr.mxu0 0.0
      %901 = vmatpush1.msra.mxu0 0.0
      %902 = vmatprep.subr.mxu0 0.0
      %903 = vmatpush1.msra.mxu0 0.0
      %904 = vmatprep.subr.mxu0 0.0
      %905 = vmatpush1.msra.mxu0 0.0
      %906 = vmatprep.subr.mxu0 0.0
      %907 = vmatpush1.msra.mxu0 0.0
      %908 = vmatprep.subr.mxu0 0.0
      %909 = vmatpush1.msra.mxu0 0.0
      %910 = vmatprep.subr.mxu0 0.0
      %911 = vmatpush1.msra.mxu0 0.0
      %912 = vmatprep.subr.mxu0 0.0
      %913 = vmatpush1.msra.mxu0 0.0
      %914 = vmatprep.subr.mxu0 0.0
      %915 = vmatpush1.msra.mxu0 0.0
      %916 = vmatprep.subr.mxu0 0.0
      %917 = vmatpush1.msra.mxu0 0.0
      %918 = vmatprep.subr.mxu0 0.0
      %919 = vmatpush1.msra.mxu0 0.0
      %920 = vmatprep.subr.mxu0 0.0
      %921 = vmatpush1.msra.mxu0 0.0
      %922 = vmatprep.subr.mxu0 0.0
      %923 = vmatpush1.msra.mxu0 0.0
      %924 = vmatprep.subr.mxu0 0.0
      %925 = vmatpush1.msra.mxu0 0.0
      %926 = vmatprep.subr.mxu0 0.0
      %927 = vmatpush1.msra.mxu0 0.0
      %928 = vmatprep.subr.mxu0 0.0
      %929 = vmatpush1.msra.mxu0 0.0
      %930 = vmatprep.subr.mxu0 0.0
      %931 = vmatpush1.msra.mxu0 0.0
      %932 = vmatprep.subr.mxu0 0.0
      %933 = vmatpush1.msra.mxu0 0.0
      %934 = vmatprep.subr.mxu0 0.0
      %935 = vmatpush1.msra.mxu0 0.0
      %936 = vmatprep.subr.mxu0 0.0
      %937 = vmatpush1.msra.mxu0 0.0
      %938 = vmatprep.subr.mxu0 0.0
      %939 = vmatpush1.msra.mxu0 0.0
      %940 = vmatprep.subr.mxu0 0.0
      %941 = vmatpush1.msra.mxu0 0.0
      %942 = vmatprep.subr.mxu0 0.0
      %943 = vmatpush1.msra.mxu0 0.0
      %944 = vmatprep.subr.mxu0 0.0
      %945 = vmatpush1.msra.mxu0 0.0
      %946 = vmatprep.subr.mxu0 0.0
      %947 = vmatpush1.msra.mxu0 0.0
      %948 = vmatprep.subr.mxu0 0.0
      %949 = vmatpush1.msra.mxu0 0.0
      %950 = vmatprep.mubr.f32.mxu0 0.0
      %951 = vmatmul.mubr.f32.gmra.mrb[0].mxu0 %v884
      %v952 = vpop.f32.mrb[0].mxu0
      %v953 = vadd.f32 0.0, %v952
      %v954 = vpop.f32.mrb[0].mxu0
      %955 = vdwg.mxu0
      %957 = vrot.lane.b32.xlu0 %v953, 4
      %v958 = vpop.permute.xlu0 %957
      %v960 = vsel %vm623, %v785, %v958
      %v961 = vld [vmem:[%s2 + $0x68] sm:$0xff]
      %v962 = vld [vmem:[%s2 + $0x70] sm:$0x1]
      %v963 = vlaneseq
      %v964 = vshrl.u32 %v963, 7
      %v965 = vsub.s32 0, %v964
      %v966 = vrot.slane %v962, %v965
      %v968 = vsel %vm546, %v960, 0
      %970 = vmatprep.subr.mxu0 0.0
      %971 = vmatpush1.msra.mxu0 %v961
      %972 = vmatprep.subr.mxu0 0.0
      %973 = vmatpush1.msra.mxu0 0.0
      %974 = vmatprep.subr.mxu0 0.0
      %975 = vmatpush1.msra.mxu0 0.0
      %976 = vmatprep.subr.mxu0 0.0
      %977 = vmatpush1.msra.mxu0 0.0
      %978 = vmatprep.subr.mxu0 0.0
      %979 = vmatpush1.msra.mxu0 0.0
      %980 = vmatprep.subr.mxu0 0.0
      %981 = vmatpush1.msra.mxu0 0.0
      %982 = vmatprep.subr.mxu0 0.0
      %983 = vmatpush1.msra.mxu0 0.0
      %984 = vmatprep.subr.mxu0 0.0
      %985 = vmatpush1.msra.mxu0 0.0
      %986 = vmatprep.subr.mxu0 0.0
      %987 = vmatpush1.msra.mxu0 0.0
      %988 = vmatprep.subr.mxu0 0.0
      %989 = vmatpush1.msra.mxu0 0.0
      %990 = vmatprep.subr.mxu0 0.0
      %991 = vmatpush1.msra.mxu0 0.0
      %992 = vmatprep.subr.mxu0 0.0
      %993 = vmatpush1.msra.mxu0 0.0
      %994 = vmatprep.subr.mxu0 0.0
      %995 = vmatpush1.msra.mxu0 0.0
      %996 = vmatprep.subr.mxu0 0.0
      %997 = vmatpush1.msra.mxu0 0.0
      %998 = vmatprep.subr.mxu0 0.0
      %999 = vmatpush1.msra.mxu0 0.0
      %1000 = vmatprep.subr.mxu0 0.0
      %1001 = vmatpush1.msra.mxu0 0.0
      %1002 = vmatprep.subr.mxu0 0.0
      %1003 = vmatpush1.msra.mxu0 0.0
      %1004 = vmatprep.subr.mxu0 0.0
      %1005 = vmatpush1.msra.mxu0 0.0
      %1006 = vmatprep.subr.mxu0 0.0
      %1007 = vmatpush1.msra.mxu0 0.0
      %1008 = vmatprep.subr.mxu0 0.0
      %1009 = vmatpush1.msra.mxu0 0.0
      %1010 = vmatprep.subr.mxu0 0.0
      %1011 = vmatpush1.msra.mxu0 0.0
      %1012 = vmatprep.subr.mxu0 0.0
      %1013 = vmatpush1.msra.mxu0 0.0
      %1014 = vmatprep.subr.mxu0 0.0
      %1015 = vmatpush1.msra.mxu0 0.0
      %1016 = vmatprep.subr.mxu0 0.0
      %1017 = vmatpush1.msra.mxu0 0.0
      %1018 = vmatprep.subr.mxu0 0.0
      %1019 = vmatpush1.msra.mxu0 0.0
      %1020 = vmatprep.subr.mxu0 0.0
      %1021 = vmatpush1.msra.mxu0 0.0
      %1022 = vmatprep.subr.mxu0 0.0
      %1023 = vmatpush1.msra.mxu0 0.0
      %1024 = vmatprep.subr.mxu0 0.0
      %1025 = vmatpush1.msra.mxu0 0.0
      %1026 = vmatprep.subr.mxu0 0.0
      %1027 = vmatpush1.msra.mxu0 0.0
      %1028 = vmatprep.subr.mxu0 0.0
      %1029 = vmatpush1.msra.mxu0 0.0
      %1030 = vmatprep.subr.mxu0 0.0
      %1031 = vmatpush1.msra.mxu0 0.0
      %1032 = vmatprep.subr.mxu0 0.0
      %1033 = vmatpush1.msra.mxu0 0.0
      %1034 = vmatprep.mubr.f32.mxu0 0.0
      %1035 = vmatmul.mubr.f32.gmra.mrb[0].mxu0 %v968
      %v1036 = vpop.f32.mrb[0].mxu0
      %v1037 = vadd.f32 %v966, %v1036
      %v1038 = vpop.f32.mrb[0].mxu0
      %1039 = vdwg.mxu0
      %v1040 = vadd.f32 %v354, %v1037
      %v1041 = vsel %vm546, %v1040, 0.0
      %1042 = vadd.xlane.f32.xlu0 %v1041
      %v1043 = vpop.xlane.xlu0 %1042
      %v1044 = vrcp.pop 8.0
      %v1045 = vmul.f32 %v1043, %v1044
      %v1046 = vsub.f32 %v1040, %v1045
      %v1047 = vmul.f32 %v1046, %v1046
      %v1048 = vsel %vm546, %v1047, 0.0
      %1049 = vadd.xlane.f32.xlu0 %v1048
      %v1050 = vpop.xlane.xlu0 %1049
      %v1051 = vmul.f32 %v1050, %v1044
      %v1052 = vadd.f32 %v1051, 1e-05
      %v1053 = vrsqrt.pop %v1052
      %v1054 = vmul.f32 %v1046, %v1053
      %v1055 = vld [vmem:[%s2 + $0x78] sm:$0x1]
      %v1056 = vlaneseq
      %v1057 = vshrl.u32 %v1056, 7
      %v1058 = vsub.s32 0, %v1057
      %v1059 = vrot.slane %v1055, %v1058
      %v1060 = vmul.f32 %v1054, %v1059
      %v1061 = vld [vmem:[%s2 + $0x80] sm:$0x1]
      %v1062 = vlaneseq
      %v1063 = vshrl.u32 %v1062, 7
      %v1064 = vsub.s32 0, %v1063
      %v1065 = vrot.slane %v1061, %v1064
      %v1066 = vadd.f32 %v1060, %v1065
      %v1067 = vld [vmem:[%s2 + $0x88] sm:$0xff]
      %v1068 = vld [vmem:[%s2 + $0x90] sm:$0x1]
      %v1069 = vlaneseq
      %v1070 = vshrl.u32 %v1069, 7
      %v1071 = vsub.s32 0, %v1070
      %v1072 = vrot.slane %v1068, %v1071
      %v1074 = vsel %vm546, %v1066, 0
      %1076 = vmatprep.subr.mxu0 0.0
      %1077 = vmatpush1.msra.mxu0 %v1067
      %1078 = vmatprep.subr.mxu0 0.0
      %1079 = vmatpush1.msra.mxu0 0.0
      %1080 = vmatprep.subr.mxu0 0.0
      %1081 = vmatpush1.msra.mxu0 0.0
      %1082 = vmatprep.subr.mxu0 0.0
      %1083 = vmatpush1.msra.mxu0 0.0
      %1084 = vmatprep.subr.mxu0 0.0
      %1085 = vmatpush1.msra.mxu0 0.0
      %1086 = vmatprep.subr.mxu0 0.0
      %1087 = vmatpush1.msra.mxu0 0.0
      %1088 = vmatprep.subr.mxu0 0.0
      %1089 = vmatpush1.msra.mxu0 0.0
      %1090 = vmatprep.subr.mxu0 0.0
      %1091 = vmatpush1.msra.mxu0 0.0
      %1092 = vmatprep.subr.mxu0 0.0
      %1093 = vmatpush1.msra.mxu0 0.0
      %1094 = vmatprep.subr.mxu0 0.0
      %1095 = vmatpush1.msra.mxu0 0.0
      %1096 = vmatprep.subr.mxu0 0.0
      %1097 = vmatpush1.msra.mxu0 0.0
      %1098 = vmatprep.subr.mxu0 0.0
      %1099 = vmatpush1.msra.mxu0 0.0
      %1100 = vmatprep.subr.mxu0 0.0
      %1101 = vmatpush1.msra.mxu0 0.0
      %1102 = vmatprep.subr.mxu0 0.0
      %1103 = vmatpush1.msra.mxu0 0.0
      %1104 = vmatprep.subr.mxu0 0.0
      %1105 = vmatpush1.msra.mxu0 0.0
      %1106 = vmatprep.subr.mxu0 0.0
      %1107 = vmatpush1.msra.mxu0 0.0
      %1108 = vmatprep.subr.mxu0 0.0
      %1109 = vmatpush1.msra.mxu0 0.0
      %1110 = vmatprep.subr.mxu0 0.0
      %1111 = vmatpush1.msra.mxu0 0.0
      %1112 = vmatprep.subr.mxu0 0.0
      %1113 = vmatpush1.msra.mxu0 0.0
      %1114 = vmatprep.subr.mxu0 0.0
      %1115 = vmatpush1.msra.mxu0 0.0
      %1116 = vmatprep.subr.mxu0 0.0
      %1117 = vmatpush1.msra.mxu0 0.0
      %1118 = vmatprep.subr.mxu0 0.0
      %1119 = vmatpush1.msra.mxu0 0.0
      %1120 = vmatprep.subr.mxu0 0.0
      %1121 = vmatpush1.msra.mxu0 0.0
      %1122 = vmatprep.subr.mxu0 0.0
      %1123 = vmatpush1.msra.mxu0 0.0
      %1124 = vmatprep.subr.mxu0 0.0
      %1125 = vmatpush1.msra.mxu0 0.0
      %1126 = vmatprep.subr.mxu0 0.0
      %1127 = vmatpush1.msra.mxu0 0.0
      %1128 = vmatprep.subr.mxu0 0.0
      %1129 = vmatpush1.msra.mxu0 0.0
      %1130 = vmatprep.subr.mxu0 0.0
      %1131 = vmatpush1.msra.mxu0 0.0
      %1132 = vmatprep.subr.mxu0 0.0
      %1133 = vmatpush1.msra.mxu0 0.0
      %1134 = vmatprep.subr.mxu0 0.0
      %1135 = vmatpush1.msra.mxu0 0.0
      %1136 = vmatprep.subr.mxu0 0.0
      %1137 = vmatpush1.msra.mxu0 0.0
      %1138 = vmatprep.subr.mxu0 0.0
      %1139 = vmatpush1.msra.mxu0 0.0
      %1140 = vmatprep.mubr.f32.mxu0 0.0
      %1141 = vmatmul.mubr.f32.gmra.mrb[0].mxu0 %v1074
      %v1142 = vpop.f32.mrb[0].mxu0
      %v1143 = vadd.f32 %v1072, %v1142
      %v1144 = vpop.f32.mrb[0].mxu0
      %1145 = vdwg.mxu0
      %v1146 = vmax.f32 %v1143, 0.0
      %v1147 = vld [vmem:[%s2 + $0x98] sm:$0xff]
      %v1148 = vld [vmem:[%s2 + $0xa0] sm:$0xff]
      %v1149 = vld [vmem:[%s2 + $0xa8] sm:$0x1]
      %v1150 = vlaneseq
      %v1151 = vshrl.u32 %v1150, 7
      %v1152 = vsub.s32 0, %v1151
      %v1153 = vrot.slane %v1149, %v1152
      %v1155 = vsel %vm283, %v1146, 0
      %1157 = vmatprep.subr.mxu0 0.0
      %1158 = vmatpush1.msra.mxu0 %v1147
      %1159 = vmatprep.subr.mxu0 0.0
      %1160 = vmatpush1.msra.mxu0 %v1148
      %1161 = vmatprep.subr.mxu0 0.0
      %1162 = vmatpush1.msra.mxu0 0.0
      %1163 = vmatprep.subr.mxu0 0.0
      %1164 = vmatpush1.msra.mxu0 0.0
      %1165 = vmatprep.subr.mxu0 0.0
      %1166 = vmatpush1.msra.mxu0 0.0
      %1167 = vmatprep.subr.mxu0 0.0
      %1168 = vmatpush1.msra.mxu0 0.0
      %1169 = vmatprep.subr.mxu0 0.0
      %1170 = vmatpush1.msra.mxu0 0.0
      %1171 = vmatprep.subr.mxu0 0.0
      %1172 = vmatpush1.msra.mxu0 0.0
      %1173 = vmatprep.subr.mxu0 0.0
      %1174 = vmatpush1.msra.mxu0 0.0
      %1175 = vmatprep.subr.mxu0 0.0
      %1176 = vmatpush1.msra.mxu0 0.0
      %1177 = vmatprep.subr.mxu0 0.0
      %1178 = vmatpush1.msra.mxu0 0.0
      %1179 = vmatprep.subr.mxu0 0.0
      %1180 = vmatpush1.msra.mxu0 0.0
      %1181 = vmatprep.subr.mxu0 0.0
      %1182 = vmatpush1.msra.mxu0 0.0
      %1183 = vmatprep.subr.mxu0 0.0
      %1184 = vmatpush1.msra.mxu0 0.0
      %1185 = vmatprep.subr.mxu0 0.0
      %1186 = vmatpush1.msra.mxu0 0.0
      %1187 = vmatprep.subr.mxu0 0.0
      %1188 = vmatpush1.msra.mxu0 0.0
      %1189 = vmatprep.subr.mxu0 0.0
      %1190 = vmatpush1.msra.mxu0 0.0
      %1191 = vmatprep.subr.mxu0 0.0
      %1192 = vmatpush1.msra.mxu0 0.0
      %1193 = vmatprep.subr.mxu0 0.0
      %1194 = vmatpush1.msra.mxu0 0.0
      %1195 = vmatprep.subr.mxu0 0.0
      %1196 = vmatpush1.msra.mxu0 0.0
      %1197 = vmatprep.subr.mxu0 0.0
      %1198 = vmatpush1.msra.mxu0 0.0
      %1199 = vmatprep.subr.mxu0 0.0
      %1200 = vmatpush1.msra.mxu0 0.0
      %1201 = vmatprep.subr.mxu0 0.0
      %1202 = vmatpush1.msra.mxu0 0.0
      %1203 = vmatprep.subr.mxu0 0.0
      %1204 = vmatpush1.msra.mxu0 0.0
      %1205 = vmatprep.subr.mxu0 0.0
      %1206 = vmatpush1.msra.mxu0 0.0
      %1207 = vmatprep.subr.mxu0 0.0
      %1208 = vmatpush1.msra.mxu0 0.0
      %1209 = vmatprep.subr.mxu0 0.0
      %1210 = vmatpush1.msra.mxu0 0.0
      %1211 = vmatprep.subr.mxu0 0.0
      %1212 = vmatpush1.msra.mxu0 0.0
      %1213 = vmatprep.subr.mxu0 0.0
      %1214 = vmatpush1.msra.mxu0 0.0
      %1215 = vmatprep.subr.mxu0 0.0
      %1216 = vmatpush1.msra.mxu0 0.0
      %1217 = vmatprep.subr.mxu0 0.0
      %1218 = vmatpush1.msra.mxu0 0.0
      %1219 = vmatprep.subr.mxu0 0.0
      %1220 = vmatpush1.msra.mxu0 0.0
      %1221 = vmatprep.mubr.f32.mxu0 0.0
      %1222 = vmatmul.mubr.f32.gmra.mrb[0].mxu0 %v1155
      %v1223 = vpop.f32.mrb[0].mxu0
      %v1224 = vadd.f32 %v1153, %v1223
      %v1225 = vpop.f32.mrb[0].mxu0
      %1226 = vdwg.mxu0
      %v1227 = vadd.f32 %v1066, %v1224
      %v1228 = vsel %vm546, %v1227, 0.0
      %1229 = vadd.xlane.f32.xlu0 %v1228
      %v1230 = vpop.xlane.xlu0 %1229
      %v1231 = vmul.f32 %v1230, %v1044
      %v1232 = vsub.f32 %v1227, %v1231
      %v1233 = vmul.f32 %v1232, %v1232
      %v1234 = vsel %vm546, %v1233, 0.0
      %1235 = vadd.xlane.f32.xlu0 %v1234
      %v1236 = vpop.xlane.xlu0 %1235
      %v1237 = vmul.f32 %v1236, %v1044
      %v1238 = vadd.f32 %v1237, 1e-05
      %v1239 = vrsqrt.pop %v1238
      %v1240 = vmul.f32 %v1232, %v1239
      %v1241 = vld [vmem:[%s2 + $0xb0] sm:$0x1]
      %v1242 = vlaneseq
      %v1243 = vshrl.u32 %v1242, 7
      %v1244 = vsub.s32 0, %v1243
      %v1245 = vrot.slane %v1241, %v1244
      %v1246 = vmul.f32 %v1240, %v1245
      %v1247 = vld [vmem:[%s2 + $0xb8] sm:$0x1]
      %v1248 = vlaneseq
      %v1249 = vshrl.u32 %v1248, 7
      %v1250 = vsub.s32 0, %v1249
      %v1251 = vrot.slane %v1247, %v1250
      %v1252 = vadd.f32 %v1246, %v1251
      %v1253 = vld [vmem:[%s2 + $0xd0] sm:$0xff]
      %v1254 = vld [vmem:[%s2 + $0xd8] sm:$0x1]
      %v1255 = vlaneseq
      %v1256 = vshrl.u32 %v1255, 7
      %v1257 = vsub.s32 0, %v1256
      %v1258 = vrot.slane %v1254, %v1257
      %v1260 = vsel %vm546, %v1252, 0
      %1262 = vmatprep.subr.mxu0 0.0
      %1263 = vmatpush1.msra.mxu0 %v1253
      %1264 = vmatprep.subr.mxu0 0.0
      %1265 = vmatpush1.msra.mxu0 0.0
      %1266 = vmatprep.subr.mxu0 0.0
      %1267 = vmatpush1.msra.mxu0 0.0
      %1268 = vmatprep.subr.mxu0 0.0
      %1269 = vmatpush1.msra.mxu0 0.0
      %1270 = vmatprep.subr.mxu0 0.0
      %1271 = vmatpush1.msra.mxu0 0.0
      %1272 = vmatprep.subr.mxu0 0.0
      %1273 = vmatpush1.msra.mxu0 0.0
      %1274 = vmatprep.subr.mxu0 0.0
      %1275 = vmatpush1.msra.mxu0 0.0
      %1276 = vmatprep.subr.mxu0 0.0
      %1277 = vmatpush1.msra.mxu0 0.0
      %1278 = vmatprep.subr.mxu0 0.0
      %1279 = vmatpush1.msra.mxu0 0.0
      %1280 = vmatprep.subr.mxu0 0.0
      %1281 = vmatpush1.msra.mxu0 0.0
      %1282 = vmatprep.subr.mxu0 0.0
      %1283 = vmatpush1.msra.mxu0 0.0
      %1284 = vmatprep.subr.mxu0 0.0
      %1285 = vmatpush1.msra.mxu0 0.0
      %1286 = vmatprep.subr.mxu0 0.0
      %1287 = vmatpush1.msra.mxu0 0.0
      %1288 = vmatprep.subr.mxu0 0.0
      %1289 = vmatpush1.msra.mxu0 0.0
      %1290 = vmatprep.subr.mxu0 0.0
      %1291 = vmatpush1.msra.mxu0 0.0
      %1292 = vmatprep.subr.mxu0 0.0
      %1293 = vmatpush1.msra.mxu0 0.0
      %1294 = vmatprep.subr.mxu0 0.0
      %1295 = vmatpush1.msra.mxu0 0.0
      %1296 = vmatprep.subr.mxu0 0.0
      %1297 = vmatpush1.msra.mxu0 0.0
      %1298 = vmatprep.subr.mxu0 0.0
      %1299 = vmatpush1.msra.mxu0 0.0
      %1300 = vmatprep.subr.mxu0 0.0
      %1301 = vmatpush1.msra.mxu0 0.0
      %1302 = vmatprep.subr.mxu0 0.0
      %1303 = vmatpush1.msra.mxu0 0.0
      %1304 = vmatprep.subr.mxu0 0.0
      %1305 = vmatpush1.msra.mxu0 0.0
      %1306 = vmatprep.subr.mxu0 0.0
      %1307 = vmatpush1.msra.mxu0 0.0
      %1308 = vmatprep.subr.mxu0 0.0
      %1309 = vmatpush1.msra.mxu0 0.0
      %1310 = vmatprep.subr.mxu0 0.0
      %1311 = vmatpush1.msra.mxu0 0.0
      %1312 = vmatprep.subr.mxu0 0.0
      %1313 = vmatpush1.msra.mxu0 0.0
      %1314 = vmatprep.subr.mxu0 0.0
      %1315 = vmatpush1.msra.mxu0 0.0
      %1316 = vmatprep.subr.mxu0 0.0
      %1317 = vmatpush1.msra.mxu0 0.0
      %1318 = vmatprep.subr.mxu0 0.0
      %1319 = vmatpush1.msra.mxu0 0.0
      %1320 = vmatprep.subr.mxu0 0.0
      %1321 = vmatpush1.msra.mxu0 0.0
      %1322 = vmatprep.subr.mxu0 0.0
      %1323 = vmatpush1.msra.mxu0 0.0
      %1324 = vmatprep.subr.mxu0 0.0
      %1325 = vmatpush1.msra.mxu0 0.0
      %1326 = vmatprep.mubr.f32.mxu0 0.0
      %1327 = vmatmul.mubr.f32.gmra.mrb[0].mxu0 %v1260
      %v1328 = vpop.f32.mrb[0].mxu0
      %v1329 = vadd.f32 %v1258, %v1328
      %v1330 = vpop.f32.mrb[0].mxu0
      %1331 = vdwg.mxu0
      %1333 = vrot.lane.b32.xlu0 %v1329, 120
      %v1334 = vpop.permute.xlu0 %1333
      %v1335 = vsel %vm623, %v1329, 0
      %v1337 = vsel %vm623, %v1334, 0
      %1339 = vmatprep.subr.mxu0 0.0
      %1340 = vmatpush1.xpose.msra.mxu0 %v1337
      %1341 = vmatprep.subr.mxu0 0.0
      %1342 = vmatpush1.xpose.msra.mxu0 0.0
      %1343 = vmatprep.subr.mxu0 0.0
      %1344 = vmatpush1.xpose.msra.mxu0 0.0
      %1345 = vmatprep.subr.mxu0 0.0
      %1346 = vmatpush1.xpose.msra.mxu0 0.0
      %1347 = vmatprep.subr.mxu0 0.0
      %1348 = vmatpush1.xpose.msra.mxu0 0.0
      %1349 = vmatprep.subr.mxu0 0.0
      %1350 = vmatpush1.xpose.msra.mxu0 0.0
      %1351 = vmatprep.subr.mxu0 0.0
      %1352 = vmatpush1.xpose.msra.mxu0 0.0
      %1353 = vmatprep.subr.mxu0 0.0
      %1354 = vmatpush1.xpose.msra.mxu0 0.0
      %1355 = vmatprep.subr.mxu0 0.0
      %1356 = vmatpush1.xpose.msra.mxu0 0.0
      %1357 = vmatprep.subr.mxu0 0.0
      %1358 = vmatpush1.xpose.msra.mxu0 0.0
      %1359 = vmatprep.subr.mxu0 0.0
      %1360 = vmatpush1.xpose.msra.mxu0 0.0
      %1361 = vmatprep.subr.mxu0 0.0
      %1362 = vmatpush1.xpose.msra.mxu0 0.0
      %1363 = vmatprep.subr.mxu0 0.0
      %1364 = vmatpush1.xpose.msra.mxu0 0.0
      %1365 = vmatprep.subr.mxu0 0.0
      %1366 = vmatpush1.xpose.msra.mxu0 0.0
      %1367 = vmatprep.subr.mxu0 0.0
      %1368 = vmatpush1.xpose.msra.mxu0 0.0
      %1369 = vmatprep.subr.mxu0 0.0
      %1370 = vmatpush1.xpose.msra.mxu0 0.0
      %1371 = vmatprep.subr.mxu0 0.0
      %1372 = vmatpush1.xpose.msra.mxu0 0.0
      %1373 = vmatprep.subr.mxu0 0.0
      %1374 = vmatpush1.xpose.msra.mxu0 0.0
      %1375 = vmatprep.subr.mxu0 0.0
      %1376 = vmatpush1.xpose.msra.mxu0 0.0
      %1377 = vmatprep.subr.mxu0 0.0
      %1378 = vmatpush1.xpose.msra.mxu0 0.0
      %1379 = vmatprep.subr.mxu0 0.0
      %1380 = vmatpush1.xpose.msra.mxu0 0.0
      %1381 = vmatprep.subr.mxu0 0.0
      %1382 = vmatpush1.xpose.msra.mxu0 0.0
      %1383 = vmatprep.subr.mxu0 0.0
      %1384 = vmatpush1.xpose.msra.mxu0 0.0
      %1385 = vmatprep.subr.mxu0 0.0
      %1386 = vmatpush1.xpose.msra.mxu0 0.0
      %1387 = vmatprep.subr.mxu0 0.0
      %1388 = vmatpush1.xpose.msra.mxu0 0.0
      %1389 = vmatprep.subr.mxu0 0.0
      %1390 = vmatpush1.xpose.msra.mxu0 0.0
      %1391 = vmatprep.subr.mxu0 0.0
      %1392 = vmatpush1.xpose.msra.mxu0 0.0
      %1393 = vmatprep.subr.mxu0 0.0
      %1394 = vmatpush1.xpose.msra.mxu0 0.0
      %1395 = vmatprep.subr.mxu0 0.0
      %1396 = vmatpush1.xpose.msra.mxu0 0.0
      %1397 = vmatprep.subr.mxu0 0.0
      %1398 = vmatpush1.xpose.msra.mxu0 0.0
      %1399 = vmatprep.subr.mxu0 0.0
      %1400 = vmatpush1.xpose.msra.mxu0 0.0
      %1401 = vmatprep.subr.mxu0 0.0
      %1402 = vmatpush1.xpose.msra.mxu0 0.0
      %1403 = vmatprep.mubr.f32.mxu0 0.0
      %1404 = vmatmul.mubr.f32.gmra.mrb[0].mxu0 %v1335
      %v1405 = vpop.f32.mrb[0].mxu0
      %v1406 = vadd.f32 0.0, %v1405
      %v1407 = vpop.f32.mrb[0].mxu0
      %1408 = vdwg.mxu0
      %v1409 = vmul.f32 %v1406, 0.5
      %v1410 = vsel %vm546, %v1409, -inf
      %1411 = vmax.xlane.f32.xlu0 %v1410
      %v1412 = vpop.xlane.xlu0 %1411
      %v1413 = vsub.f32 %v1409, %v1412
      %v1414 = vmul.f32 %v1413, 1.442695
      %v1415 = vpow.pop %v1414
      %v1416 = vsel %vm546, %v1415, 0.0
      %1417 = vadd.xlane.f32.xlu0 %v1416
      %v1418 = vpop.xlane.xlu0 %1417
      %v1419 = vrcp.pop %v1418
      %v1420 = vmul.f32 %v1415, %v1419
      %1421 = vrot.lane.b32.xlu0 %v1329, 112
      %v1422 = vpop.permute.xlu0 %1421
      %v1425 = vsel %vm546, %v1420, 0
      %1427 = vmatprep.subr.mxu0 0.0
      %1428 = vmatpush1.msra.mxu0 %v1422
      %1429 = vmatprep.subr.mxu0 0.0
      %1430 = vmatpush1.msra.mxu0 0.0
      %1431 = vmatprep.subr.mxu0 0.0
      %1432 = vmatpush1.msra.mxu0 0.0
      %1433 = vmatprep.subr.mxu0 0.0
      %1434 = vmatpush1.msra.mxu0 0.0
      %1435 = vmatprep.subr.mxu0 0.0
      %1436 = vmatpush1.msra.mxu0 0.0
      %1437 = vmatprep.subr.mxu0 0.0
      %1438 = vmatpush1.msra.mxu0 0.0
      %1439 = vmatprep.subr.mxu0 0.0
      %1440 = vmatpush1.msra.mxu0 0.0
      %1441 = vmatprep.subr.mxu0 0.0
      %1442 = vmatpush1.msra.mxu0 0.0
      %1443 = vmatprep.subr.mxu0 0.0
      %1444 = vmatpush1.msra.mxu0 0.0
      %1445 = vmatprep.subr.mxu0 0.0
      %1446 = vmatpush1.msra.mxu0 0.0
      %1447 = vmatprep.subr.mxu0 0.0
      %1448 = vmatpush1.msra.mxu0 0.0
      %1449 = vmatprep.subr.mxu0 0.0
      %1450 = vmatpush1.msra.mxu0 0.0
      %1451 = vmatprep.subr.mxu0 0.0
      %1452 = vmatpush1.msra.mxu0 0.0
      %1453 = vmatprep.subr.mxu0 0.0
      %1454 = vmatpush1.msra.mxu0 0.0
      %1455 = vmatprep.subr.mxu0 0.0
      %1456 = vmatpush1.msra.mxu0 0.0
      %1457 = vmatprep.subr.mxu0 0.0
      %1458 = vmatpush1.msra.mxu0 0.0
      %1459 = vmatprep.subr.mxu0 0.0
      %1460 = vmatpush1.msra.mxu0 0.0
      %1461 = vmatprep.subr.mxu0 0.0
      %1462 = vmatpush1.msra.mxu0 0.0
      %1463 = vmatprep.subr.mxu0 0.0
      %1464 = vmatpush1.msra.mxu0 0.0
      %1465 = vmatprep.subr.mxu0 0.0
      %1466 = vmatpush1.msra.mxu0 0.0
      %1467 = vmatprep.subr.mxu0 0.0
      %1468 = vmatpush1.msra.mxu0 0.0
      %1469 = vmatprep.subr.mxu0 0.0
      %1470 = vmatpush1.msra.mxu0 0.0
      %1471 = vmatprep.subr.mxu0 0.0
      %1472 = vmatpush1.msra.mxu0 0.0
      %1473 = vmatprep.subr.mxu0 0.0
      %1474 = vmatpush1.msra.mxu0 0.0
      %1475 = vmatprep.subr.mxu0 0.0
      %1476 = vmatpush1.msra.mxu0 0.0
      %1477 = vmatprep.subr.mxu0 0.0
      %1478 = vmatpush1.msra.mxu0 0.0
      %1479 = vmatprep.subr.mxu0 0.0
      %1480 = vmatpush1.msra.mxu0 0.0
      %1481 = vmatprep.subr.mxu0 0.0
      %1482 = vmatpush1.msra.mxu0 0.0
      %1483 = vmatprep.subr.mxu0 0.0
      %1484 = vmatpush1.msra.mxu0 0.0
      %1485 = vmatprep.subr.mxu0 0.0
      %1486 = vmatpush1.msra.mxu0 0.0
      %1487 = vmatprep.subr.mxu0 0.0
      %1488 = vmatpush1.msra.mxu0 0.0
      %1489 = vmatprep.subr.mxu0 0.0
      %1490 = vmatpush1.msra.mxu0 0.0
      %1491 = vmatprep.mubr.f32.mxu0 0.0
      %1492 = vmatmul.mubr.f32.gmra.mrb[0].mxu0 %v1425
      %v1493 = vpop.f32.mrb[0].mxu0
      %v1494 = vadd.f32 0.0, %v1493
      %v1495 = vpop.f32.mrb[0].mxu0
      %1496 = vdwg.mxu0
      %1497 = vrot.lane.b32.xlu0 %v1329, 124
      %v1498 = vpop.permute.xlu0 %1497
      %1499 = vrot.lane.b32.xlu0 %v1329, 116
      %v1500 = vpop.permute.xlu0 %1499
      %v1501 = vsel %vm623, %v1498, 0
      %v1503 = vsel %vm623, %v1500, 0
      %1505 = vmatprep.subr.mxu0 0.0
      %1506 = vmatpush1.xpose.msra.mxu0 %v1503
      %1507 = vmatprep.subr.mxu0 0.0
      %1508 = vmatpush1.xpose.msra.mxu0 0.0
      %1509 = vmatprep.subr.mxu0 0.0
      %1510 = vmatpush1.xpose.msra.mxu0 0.0
      %1511 = vmatprep.subr.mxu0 0.0
      %1512 = vmatpush1.xpose.msra.mxu0 0.0
      %1513 = vmatprep.subr.mxu0 0.0
      %1514 = vmatpush1.xpose.msra.mxu0 0.0
      %1515 = vmatprep.subr.mxu0 0.0
      %1516 = vmatpush1.xpose.msra.mxu0 0.0
      %1517 = vmatprep.subr.mxu0 0.0
      %1518 = vmatpush1.xpose.msra.mxu0 0.0
      %1519 = vmatprep.subr.mxu0 0.0
      %1520 = vmatpush1.xpose.msra.mxu0 0.0
      %1521 = vmatprep.subr.mxu0 0.0
      %1522 = vmatpush1.xpose.msra.mxu0 0.0
      %1523 = vmatprep.subr.mxu0 0.0
      %1524 = vmatpush1.xpose.msra.mxu0 0.0
      %1525 = vmatprep.subr.mxu0 0.0
      %1526 = vmatpush1.xpose.msra.mxu0 0.0
      %1527 = vmatprep.subr.mxu0 0.0
      %1528 = vmatpush1.xpose.msra.mxu0 0.0
      %1529 = vmatprep.subr.mxu0 0.0
      %1530 = vmatpush1.xpose.msra.mxu0 0.0
      %1531 = vmatprep.subr.mxu0 0.0
      %1532 = vmatpush1.xpose.msra.mxu0 0.0
      %1533 = vmatprep.subr.mxu0 0.0
      %1534 = vmatpush1.xpose.msra.mxu0 0.0
      %1535 = vmatprep.subr.mxu0 0.0
      %1536 = vmatpush1.xpose.msra.mxu0 0.0
      %1537 = vmatprep.subr.mxu0 0.0
      %1538 = vmatpush1.xpose.msra.mxu0 0.0
      %1539 = vmatprep.subr.mxu0 0.0
      %1540 = vmatpush1.xpose.msra.mxu0 0.0
      %1541 = vmatprep.subr.mxu0 0.0
      %1542 = vmatpush1.xpose.msra.mxu0 0.0
      %1543 = vmatprep.subr.mxu0 0.0
      %1544 = vmatpush1.xpose.msra.mxu0 0.0
      %1545 = vmatprep.subr.mxu0 0.0
      %1546 = vmatpush1.xpose.msra.mxu0 0.0
      %1547 = vmatprep.subr.mxu0 0.0
      %1548 = vmatpush1.xpose.msra.mxu0 0.0
      %1549 = vmatprep.subr.mxu0 0.0
      %1550 = vmatpush1.xpose.msra.mxu0 0.0
      %1551 = vmatprep.subr.mxu0 0.0
      %1552 = vmatpush1.xpose.msra.mxu0 0.0
      %1553 = vmatprep.subr.mxu0 0.0
      %1554 = vmatpush1.xpose.msra.mxu0 0.0
      %1555 = vmatprep.subr.mxu0 0.0
      %1556 = vmatpush1.xpose.msra.mxu0 0.0
      %1557 = vmatprep.subr.mxu0 0.0
      %1558 = vmatpush1.xpose.msra.mxu0 0.0
      %1559 = vmatprep.subr.mxu0 0.0
      %1560 = vmatpush1.xpose.msra.mxu0 0.0
      %1561 = vmatprep.subr.mxu0 0.0
      %1562 = vmatpush1.xpose.msra.mxu0 0.0
      %1563 = vmatprep.subr.mxu0 0.0
      %1564 = vmatpush1.xpose.msra.mxu0 0.0
      %1565 = vmatprep.subr.mxu0 0.0
      %1566 = vmatpush1.xpose.msra.mxu0 0.0
      %1567 = vmatprep.subr.mxu0 0.0
      %1568 = vmatpush1.xpose.msra.mxu0 0.0
      %1569 = vmatprep.mubr.f32.mxu0 0.0
      %1570 = vmatmul.mubr.f32.gmra.mrb[0].mxu0 %v1501
      %v1571 = vpop.f32.mrb[0].mxu0
      %v1572 = vadd.f32 0.0, %v1571
      %v1573 = vpop.f32.mrb[0].mxu0
      %1574 = vdwg.mxu0
      %v1575 = vmul.f32 %v1572, 0.5
      %v1576 = vsel %vm546, %v1575, -inf
      %1577 = vmax.xlane.f32.xlu0 %v1576
      %v1578 = vpop.xlane.xlu0 %1577
      %v1579 = vsub.f32 %v1575, %v1578
      %v1580 = vmul.f32 %v1579, 1.442695
      %v1581 = vpow.pop %v1580
      %v1582 = vsel %vm546, %v1581, 0.0
      %1583 = vadd.xlane.f32.xlu0 %v1582
      %v1584 = vpop.xlane.xlu0 %1583
      %v1585 = vrcp.pop %v1584
      %v1586 = vmul.f32 %v1581, %v1585
      %1587 = vrot.lane.b32.xlu0 %v1329, 108
      %v1588 = vpop.permute.xlu0 %1587
      %v1591 = vsel %vm546, %v1586, 0
      %1593 = vmatprep.subr.mxu0 0.0
      %1594 = vmatpush1.msra.mxu0 %v1588
      %1595 = vmatprep.subr.mxu0 0.0
      %1596 = vmatpush1.msra.mxu0 0.0
      %1597 = vmatprep.subr.mxu0 0.0
      %1598 = vmatpush1.msra.mxu0 0.0
      %1599 = vmatprep.subr.mxu0 0.0
      %1600 = vmatpush1.msra.mxu0 0.0
      %1601 = vmatprep.subr.mxu0 0.0
      %1602 = vmatpush1.msra.mxu0 0.0
      %1603 = vmatprep.subr.mxu0 0.0
      %1604 = vmatpush1.msra.mxu0 0.0
      %1605 = vmatprep.subr.mxu0 0.0
      %1606 = vmatpush1.msra.mxu0 0.0
      %1607 = vmatprep.subr.mxu0 0.0
      %1608 = vmatpush1.msra.mxu0 0.0
      %1609 = vmatprep.subr.mxu0 0.0
      %1610 = vmatpush1.msra.mxu0 0.0
      %1611 = vmatprep.subr.mxu0 0.0
      %1612 = vmatpush1.msra.mxu0 0.0
      %1613 = vmatprep.subr.mxu0 0.0
      %1614 = vmatpush1.msra.mxu0 0.0
      %1615 = vmatprep.subr.mxu0 0.0
      %1616 = vmatpush1.msra.mxu0 0.0
      %1617 = vmatprep.subr.mxu0 0.0
      %1618 = vmatpush1.msra.mxu0 0.0
      %1619 = vmatprep.subr.mxu0 0.0
      %1620 = vmatpush1.msra.mxu0 0.0
      %1621 = vmatprep.subr.mxu0 0.0
      %1622 = vmatpush1.msra.mxu0 0.0
      %1623 = vmatprep.subr.mxu0 0.0
      %1624 = vmatpush1.msra.mxu0 0.0
      %1625 = vmatprep.subr.mxu0 0.0
      %1626 = vmatpush1.msra.mxu0 0.0
      %1627 = vmatprep.subr.mxu0 0.0
      %1628 = vmatpush1.msra.mxu0 0.0
      %1629 = vmatprep.subr.mxu0 0.0
      %1630 = vmatpush1.msra.mxu0 0.0
      %1631 = vmatprep.subr.mxu0 0.0
      %1632 = vmatpush1.msra.mxu0 0.0
      %1633 = vmatprep.subr.mxu0 0.0
      %1634 = vmatpush1.msra.mxu0 0.0
      %1635 = vmatprep.subr.mxu0 0.0
      %1636 = vmatpush1.msra.mxu0 0.0
      %1637 = vmatprep.subr.mxu0 0.0
      %1638 = vmatpush1.msra.mxu0 0.0
      %1639 = vmatprep.subr.mxu0 0.0
      %1640 = vmatpush1.msra.mxu0 0.0
      %1641 = vmatprep.subr.mxu0 0.0
      %1642 = vmatpush1.msra.mxu0 0.0
      %1643 = vmatprep.subr.mxu0 0.0
      %1644 = vmatpush1.msra.mxu0 0.0
      %1645 = vmatprep.subr.mxu0 0.0
      %1646 = vmatpush1.msra.mxu0 0.0
      %1647 = vmatprep.subr.mxu0 0.0
      %1648 = vmatpush1.msra.mxu0 0.0
      %1649 = vmatprep.subr.mxu0 0.0
      %1650 = vmatpush1.msra.mxu0 0.0
      %1651 = vmatprep.subr.mxu0 0.0
      %1652 = vmatpush1.msra.mxu0 0.0
      %1653 = vmatprep.subr.mxu0 0.0
      %1654 = vmatpush1.msra.mxu0 0.0
      %1655 = vmatprep.subr.mxu0 0.0
      %1656 = vmatpush1.msra.mxu0 0.0
      %1657 = vmatprep.mubr.f32.mxu0 0.0
      %1658 = vmatmul.mubr.f32.gmra.mrb[0].mxu0 %v1591
      %v1659 = vpop.f32.mrb[0].mxu0
      %v1660 = vadd.f32 0.0, %v1659
      %v1661 = vpop.f32.mrb[0].mxu0
      %1662 = vdwg.mxu0
      %1664 = vrot.lane.b32.xlu0 %v1660, 4
      %v1665 = vpop.permute.xlu0 %1664
      %v1667 = vsel %vm623, %v1494, %v1665
      %v1668 = vld [vmem:[%s2 + $0xe0] sm:$0xff]
      %v1669 = vld [vmem:[%s2 + $0xe8] sm:$0x1]
      %v1670 = vlaneseq
      %v1671 = vshrl.u32 %v1670, 7
      %v1672 = vsub.s32 0, %v1671
      %v1673 = vrot.slane %v1669, %v1672
      %v1675 = vsel %vm546, %v1667, 0
      %1677 = vmatprep.subr.mxu0 0.0
      %1678 = vmatpush1.msra.mxu0 %v1668
      %1679 = vmatprep.subr.mxu0 0.0
      %1680 = vmatpush1.msra.mxu0 0.0
      %1681 = vmatprep.subr.mxu0 0.0
      %1682 = vmatpush1.msra.mxu0 0.0
      %1683 = vmatprep.subr.mxu0 0.0
      %1684 = vmatpush1.msra.mxu0 0.0
      %1685 = vmatprep.subr.mxu0 0.0
      %1686 = vmatpush1.msra.mxu0 0.0
      %1687 = vmatprep.subr.mxu0 0.0
      %1688 = vmatpush1.msra.mxu0 0.0
      %1689 = vmatprep.subr.mxu0 0.0
      %1690 = vmatpush1.msra.mxu0 0.0
      %1691 = vmatprep.subr.mxu0 0.0
      %1692 = vmatpush1.msra.mxu0 0.0
      %1693 = vmatprep.subr.mxu0 0.0
      %1694 = vmatpush1.msra.mxu0 0.0
      %1695 = vmatprep.subr.mxu0 0.0
      %1696 = vmatpush1.msra.mxu0 0.0
      %1697 = vmatprep.subr.mxu0 0.0
      %1698 = vmatpush1.msra.mxu0 0.0
      %1699 = vmatprep.subr.mxu0 0.0
      %1700 = vmatpush1.msra.mxu0 0.0
      %1701 = vmatprep.subr.mxu0 0.0
      %1702 = vmatpush1.msra.mxu0 0.0
      %1703 = vmatprep.subr.mxu0 0.0
      %1704 = vmatpush1.msra.mxu0 0.0
      %1705 = vmatprep.subr.mxu0 0.0
      %1706 = vmatpush1.msra.mxu0 0.0
      %1707 = vmatprep.subr.mxu0 0.0
      %1708 = vmatpush1.msra.mxu0 0.0
      %1709 = vmatprep.subr.mxu0 0.0
      %1710 = vmatpush1.msra.mxu0 0.0
      %1711 = vmatprep.subr.mxu0 0.0
      %1712 = vmatpush1.msra.mxu0 0.0
      %1713 = vmatprep.subr.mxu0 0.0
      %1714 = vmatpush1.msra.mxu0 0.0
      %1715 = vmatprep.subr.mxu0 0.0
      %1716 = vmatpush1.msra.mxu0 0.0
      %1717 = vmatprep.subr.mxu0 0.0
      %1718 = vmatpush1.msra.mxu0 0.0
      %1719 = vmatprep.subr.mxu0 0.0
      %1720 = vmatpush1.msra.mxu0 0.0
      %1721 = vmatprep.subr.mxu0 0.0
      %1722 = vmatpush1.msra.mxu0 0.0
      %1723 = vmatprep.subr.mxu0 0.0
      %1724 = vmatpush1.msra.mxu0 0.0
      %1725 = vmatprep.subr.mxu0 0.0
      %1726 = vmatpush1.msra.mxu0 0.0
      %1727 = vmatprep.subr.mxu0 0.0
      %1728 = vmatpush1.msra.mxu0 0.0
      %1729 = vmatprep.subr.mxu0 0.0
      %1730 = vmatpush1.msra.mxu0 0.0
      %1731 = vmatprep.subr.mxu0 0.0
      %1732 = vmatpush1.msra.mxu0 0.0
      %1733 = vmatprep.subr.mxu0 0.0
      %1734 = vmatpush1.msra.mxu0 0.0
      %1735 = vmatprep.subr.mxu0 0.0
      %1736 = vmatpush1.msra.mxu0 0.0
      %1737 = vmatprep.subr.mxu0 0.0
      %1738 = vmatpush1.msra.mxu0 0.0
      %1739 = vmatprep.subr.mxu0 0.0
      %1740 = vmatpush1.msra.mxu0 0.0
      %1741 = vmatprep.mubr.f32.mxu0 0.0
      %1742 = vmatmul.mubr.f32.gmra.mrb[0].mxu0 %v1675
      %v1743 = vpop.f32.mrb[0].mxu0
      %v1744 = vadd.f32 %v1673, %v1743
      %v1745 = vpop.f32.mrb[0].mxu0
      %1746 = vdwg.mxu0
      %v1747 = vadd.f32 %v1252, %v1744
      %v1748 = vsel %vm546, %v1747, 0.0
      %1749 = vadd.xlane.f32.xlu0 %v1748
      %v1750 = vpop.xlane.xlu0 %1749
      %v1751 = vmul.f32 %v1750, %v1044
      %v1752 = vsub.f32 %v1747, %v1751
      %v1753 = vmul.f32 %v1752, %v1752
      %v1754 = vsel %vm546, %v1753, 0.0
      %1755 = vadd.xlane.f32.xlu0 %v1754
      %v1756 = vpop.xlane.xlu0 %1755
      %v1757 = vmul.f32 %v1756, %v1044
      %v1758 = vadd.f32 %v1757, 1e-05
      %v1759 = vrsqrt.pop %v1758
      %v1760 = vmul.f32 %v1752, %v1759
      %v1761 = vld [vmem:[%s2 + $0xf0] sm:$0x1]
      %v1762 = vlaneseq
      %v1763 = vshrl.u32 %v1762, 7
      %v1764 = vsub.s32 0, %v1763
      %v1765 = vrot.slane %v1761, %v1764
      %v1766 = vmul.f32 %v1760, %v1765
      %v1767 = vld [vmem:[%s2 + $0xf8] sm:$0x1]
      %v1768 = vlaneseq
      %v1769 = vshrl.u32 %v1768, 7
      %v1770 = vsub.s32 0, %v1769
      %v1771 = vrot.slane %v1767, %v1770
      %v1772 = vadd.f32 %v1766, %v1771
      %v1773 = vld [vmem:[%s2 + $0x100] sm:$0xff]
      %v1774 = vld [vmem:[%s2 + $0x108] sm:$0x1]
      %v1775 = vlaneseq
      %v1776 = vshrl.u32 %v1775, 7
      %v1777 = vsub.s32 0, %v1776
      %v1778 = vrot.slane %v1774, %v1777
      %v1780 = vsel %vm546, %v1772, 0
      %1782 = vmatprep.subr.mxu0 0.0
      %1783 = vmatpush1.msra.mxu0 %v1773
      %1784 = vmatprep.subr.mxu0 0.0
      %1785 = vmatpush1.msra.mxu0 0.0
      %1786 = vmatprep.subr.mxu0 0.0
      %1787 = vmatpush1.msra.mxu0 0.0
      %1788 = vmatprep.subr.mxu0 0.0
      %1789 = vmatpush1.msra.mxu0 0.0
      %1790 = vmatprep.subr.mxu0 0.0
      %1791 = vmatpush1.msra.mxu0 0.0
      %1792 = vmatprep.subr.mxu0 0.0
      %1793 = vmatpush1.msra.mxu0 0.0
      %1794 = vmatprep.subr.mxu0 0.0
      %1795 = vmatpush1.msra.mxu0 0.0
      %1796 = vmatprep.subr.mxu0 0.0
      %1797 = vmatpush1.msra.mxu0 0.0
      %1798 = vmatprep.subr.mxu0 0.0
      %1799 = vmatpush1.msra.mxu0 0.0
      %1800 = vmatprep.subr.mxu0 0.0
      %1801 = vmatpush1.msra.mxu0 0.0
      %1802 = vmatprep.subr.mxu0 0.0
      %1803 = vmatpush1.msra.mxu0 0.0
      %1804 = vmatprep.subr.mxu0 0.0
      %1805 = vmatpush1.msra.mxu0 0.0
      %1806 = vmatprep.subr.mxu0 0.0
      %1807 = vmatpush1.msra.mxu0 0.0
      %1808 = vmatprep.subr.mxu0 0.0
      %1809 = vmatpush1.msra.mxu0 0.0
      %1810 = vmatprep.subr.mxu0 0.0
      %1811 = vmatpush1.msra.mxu0 0.0
      %1812 = vmatprep.subr.mxu0 0.0
      %1813 = vmatpush1.msra.mxu0 0.0
      %1814 = vmatprep.subr.mxu0 0.0
      %1815 = vmatpush1.msra.mxu0 0.0
      %1816 = vmatprep.subr.mxu0 0.0
      %1817 = vmatpush1.msra.mxu0 0.0
      %1818 = vmatprep.subr.mxu0 0.0
      %1819 = vmatpush1.msra.mxu0 0.0
      %1820 = vmatprep.subr.mxu0 0.0
      %1821 = vmatpush1.msra.mxu0 0.0
      %1822 = vmatprep.subr.mxu0 0.0
      %1823 = vmatpush1.msra.mxu0 0.0
      %1824 = vmatprep.subr.mxu0 0.0
      %1825 = vmatpush1.msra.mxu0 0.0
      %1826 = vmatprep.subr.mxu0 0.0
      %1827 = vmatpush1.msra.mxu0 0.0
      %1828 = vmatprep.subr.mxu0 0.0
      %1829 = vmatpush1.msra.mxu0 0.0
      %1830 = vmatprep.subr.mxu0 0.0
      %1831 = vmatpush1.msra.mxu0 0.0
      %1832 = vmatprep.subr.mxu0 0.0
      %1833 = vmatpush1.msra.mxu0 0.0
      %1834 = vmatprep.subr.mxu0 0.0
      %1835 = vmatpush1.msra.mxu0 0.0
      %1836 = vmatprep.subr.mxu0 0.0
      %1837 = vmatpush1.msra.mxu0 0.0
      %1838 = vmatprep.subr.mxu0 0.0
      %1839 = vmatpush1.msra.mxu0 0.0
      %1840 = vmatprep.subr.mxu0 0.0
      %1841 = vmatpush1.msra.mxu0 0.0
      %1842 = vmatprep.subr.mxu0 0.0
      %1843 = vmatpush1.msra.mxu0 0.0
      %1844 = vmatprep.subr.mxu0 0.0
      %1845 = vmatpush1.msra.mxu0 0.0
      %1846 = vmatprep.mubr.f32.mxu0 0.0
      %1847 = vmatmul.mubr.f32.gmra.mrb[0].mxu0 %v1780
      %v1848 = vpop.f32.mrb[0].mxu0
      %v1849 = vadd.f32 %v1778, %v1848
      %v1850 = vpop.f32.mrb[0].mxu0
      %1851 = vdwg.mxu0
      %v1852 = vmax.f32 %v1849, 0.0
      %v1853 = vld [vmem:[%s2 + $0x110] sm:$0xff]
      %v1854 = vld [vmem:[%s2 + $0x118] sm:$0xff]
      %v1855 = vld [vmem:[%s2 + $0x120] sm:$0x1]
      %v1856 = vlaneseq
      %v1857 = vshrl.u32 %v1856, 7
      %v1858 = vsub.s32 0, %v1857
      %v1859 = vrot.slane %v1855, %v1858
      %v1861 = vsel %vm283, %v1852, 0
      %1863 = vmatprep.subr.mxu0 0.0
      %1864 = vmatpush1.msra.mxu0 %v1853
      %1865 = vmatprep.subr.mxu0 0.0
      %1866 = vmatpush1.msra.mxu0 %v1854
      %1867 = vmatprep.subr.mxu0 0.0
      %1868 = vmatpush1.msra.mxu0 0.0
      %1869 = vmatprep.subr.mxu0 0.0
      %1870 = vmatpush1.msra.mxu0 0.0
      %1871 = vmatprep.subr.mxu0 0.0
      %1872 = vmatpush1.msra.mxu0 0.0
      %1873 = vmatprep.subr.mxu0 0.0
      %1874 = vmatpush1.msra.mxu0 0.0
      %1875 = vmatprep.subr.mxu0 0.0
      %1876 = vmatpush1.msra.mxu0 0.0
      %1877 = vmatprep.subr.mxu0 0.0
      %1878 = vmatpush1.msra.mxu0 0.0
      %1879 = vmatprep.subr.mxu0 0.0
      %1880 = vmatpush1.msra.mxu0 0.0
      %1881 = vmatprep.subr.mxu0 0.0
      %1882 = vmatpush1.msra.mxu0 0.0
      %1883 = vmatprep.subr.mxu0 0.0
      %1884 = vmatpush1.msra.mxu0 0.0
      %1885 = vmatprep.subr.mxu0 0.0
      %1886 = vmatpush1.msra.mxu0 0.0
      %1887 = vmatprep.subr.mxu0 0.0
      %1888 = vmatpush1.msra.mxu0 0.0
      %1889 = vmatprep.subr.mxu0 0.0
      %1890 = vmatpush1.msra.mxu0 0.0
      %1891 = vmatprep.subr.mxu0 0.0
      %1892 = vmatpush1.msra.mxu0 0.0
      %1893 = vmatprep.subr.mxu0 0.0
      %1894 = vmatpush1.msra.mxu0 0.0
      %1895 = vmatprep.subr.mxu0 0.0
      %1896 = vmatpush1.msra.mxu0 0.0
      %1897 = vmatprep.subr.mxu0 0.0
      %1898 = vmatpush1.msra.mxu0 0.0
      %1899 = vmatprep.subr.mxu0 0.0
      %1900 = vmatpush1.msra.mxu0 0.0
      %1901 = vmatprep.subr.mxu0 0.0
      %1902 = vmatpush1.msra.mxu0 0.0
      %1903 = vmatprep.subr.mxu0 0.0
      %1904 = vmatpush1.msra.mxu0 0.0
      %1905 = vmatprep.subr.mxu0 0.0
      %1906 = vmatpush1.msra.mxu0 0.0
      %1907 = vmatprep.subr.mxu0 0.0
      %1908 = vmatpush1.msra.mxu0 0.0
      %1909 = vmatprep.subr.mxu0 0.0
      %1910 = vmatpush1.msra.mxu0 0.0
      %1911 = vmatprep.subr.mxu0 0.0
      %1912 = vmatpush1.msra.mxu0 0.0
      %1913 = vmatprep.subr.mxu0 0.0
      %1914 = vmatpush1.msra.mxu0 0.0
      %1915 = vmatprep.subr.mxu0 0.0
      %1916 = vmatpush1.msra.mxu0 0.0
      %1917 = vmatprep.subr.mxu0 0.0
      %1918 = vmatpush1.msra.mxu0 0.0
      %1919 = vmatprep.subr.mxu0 0.0
      %1920 = vmatpush1.msra.mxu0 0.0
      %1921 = vmatprep.subr.mxu0 0.0
      %1922 = vmatpush1.msra.mxu0 0.0
      %1923 = vmatprep.subr.mxu0 0.0
      %1924 = vmatpush1.msra.mxu0 0.0
      %1925 = vmatprep.subr.mxu0 0.0
      %1926 = vmatpush1.msra.mxu0 0.0
      %1927 = vmatprep.mubr.f32.mxu0 0.0
      %1928 = vmatmul.mubr.f32.gmra.mrb[0].mxu0 %v1861
      %v1929 = vpop.f32.mrb[0].mxu0
      %v1930 = vadd.f32 %v1859, %v1929
      %v1931 = vpop.f32.mrb[0].mxu0
      %1932 = vdwg.mxu0
      %v1933 = vadd.f32 %v1772, %v1930
      %v1934 = vsel %vm546, %v1933, 0.0
      %1935 = vadd.xlane.f32.xlu0 %v1934
      %v1936 = vpop.xlane.xlu0 %1935
      %v1937 = vmul.f32 %v1936, %v1044
      %v1938 = vsub.f32 %v1933, %v1937
      %v1939 = vmul.f32 %v1938, %v1938
      %v1940 = vsel %vm546, %v1939, 0.0
      %1941 = vadd.xlane.f32.xlu0 %v1940
      %v1942 = vpop.xlane.xlu0 %1941
      %v1943 = vmul.f32 %v1942, %v1044
      %v1944 = vadd.f32 %v1943, 1e-05
      %v1945 = vrsqrt.pop %v1944
      %v1946 = vmul.f32 %v1938, %v1945
      %v1947 = vld [vmem:[%s2 + $0x128] sm:$0x1]
      %v1948 = vlaneseq
      %v1949 = vshrl.u32 %v1948, 7
      %v1950 = vsub.s32 0, %v1949
      %v1951 = vrot.slane %v1947, %v1950
      %v1952 = vmul.f32 %v1946, %v1951
      %v1953 = vld [vmem:[%s2 + $0x130] sm:$0x1]
      %v1954 = vlaneseq
      %v1955 = vshrl.u32 %v1954, 7
      %v1956 = vsub.s32 0, %v1955
      %v1957 = vrot.slane %v1953, %v1956
      %v1958 = vadd.f32 %v1952, %v1957
      %v1959 = vld [vmem:[%s2 + $0x138] sm:$0xff]
      %v1960 = vld [vmem:[%s2 + $0x140] sm:$0x1]
      %v1961 = vlaneseq
      %v1962 = vshrl.u32 %v1961, 7
      %v1963 = vsub.s32 0, %v1962
      %v1964 = vrot.slane %v1960, %v1963
      %v1966 = vsel %vm546, %v532, 0
      %v1969 = vsel %vm546, %v537, 0
      %1971 = vmatprep.subr.mxu0 0.0
      %1972 = vmatpush1.msra.mxu0 %v1959
      %1973 = vmatprep.subr.mxu0 0.0
      %1974 = vmatpush1.msra.mxu0 0.0
      %1975 = vmatprep.subr.mxu0 0.0
      %1976 = vmatpush1.msra.mxu0 0.0
      %1977 = vmatprep.subr.mxu0 0.0
      %1978 = vmatpush1.msra.mxu0 0.0
      %1979 = vmatprep.subr.mxu0 0.0
      %1980 = vmatpush1.msra.mxu0 0.0
      %1981 = vmatprep.subr.mxu0 0.0
      %1982 = vmatpush1.msra.mxu0 0.0
      %1983 = vmatprep.subr.mxu0 0.0
      %1984 = vmatpush1.msra.mxu0 0.0
      %1985 = vmatprep.subr.mxu0 0.0
      %1986 = vmatpush1.msra.mxu0 0.0
      %1987 = vmatprep.subr.mxu0 0.0
      %1988 = vmatpush1.msra.mxu0 0.0
      %1989 = vmatprep.subr.mxu0 0.0
      %1990 = vmatpush1.msra.mxu0 0.0
      %1991 = vmatprep.subr.mxu0 0.0
      %1992 = vmatpush1.msra.mxu0 0.0
      %1993 = vmatprep.subr.mxu0 0.0
      %1994 = vmatpush1.msra.mxu0 0.0
      %1995 = vmatprep.subr.mxu0 0.0
      %1996 = vmatpush1.msra.mxu0 0.0
      %1997 = vmatprep.subr.mxu0 0.0
      %1998 = vmatpush1.msra.mxu0 0.0
      %1999 = vmatprep.subr.mxu0 0.0
      %2000 = vmatpush1.msra.mxu0 0.0
      %2001 = vmatprep.subr.mxu0 0.0
      %2002 = vmatpush1.msra.mxu0 0.0
      %2003 = vmatprep.subr.mxu0 0.0
      %2004 = vmatpush1.msra.mxu0 0.0
      %2005 = vmatprep.subr.mxu0 0.0
      %2006 = vmatpush1.msra.mxu0 0.0
      %2007 = vmatprep.subr.mxu0 0.0
      %2008 = vmatpush1.msra.mxu0 0.0
      %2009 = vmatprep.subr.mxu0 0.0
      %2010 = vmatpush1.msra.mxu0 0.0
      %2011 = vmatprep.subr.mxu0 0.0
      %2012 = vmatpush1.msra.mxu0 0.0
      %2013 = vmatprep.subr.mxu0 0.0
      %2014 = vmatpush1.msra.mxu0 0.0
      %2015 = vmatprep.subr.mxu0 0.0
      %2016 = vmatpush1.msra.mxu0 0.0
      %2017 = vmatprep.subr.mxu0 0.0
      %2018 = vmatpush1.msra.mxu0 0.0
      %2019 = vmatprep.subr.mxu0 0.0
      %2020 = vmatpush1.msra.mxu0 0.0
      %2021 = vmatprep.subr.mxu0 0.0
      %2022 = vmatpush1.msra.mxu0 0.0
      %2023 = vmatprep.subr.mxu0 0.0
      %2024 = vmatpush1.msra.mxu0 0.0
      %2025 = vmatprep.subr.mxu0 0.0
      %2026 = vmatpush1.msra.mxu0 0.0
      %2027 = vmatprep.subr.mxu0 0.0
      %2028 = vmatpush1.msra.mxu0 0.0
      %2029 = vmatprep.subr.mxu0 0.0
      %2030 = vmatpush1.msra.mxu0 0.0
      %2031 = vmatprep.subr.mxu0 0.0
      %2032 = vmatpush1.msra.mxu0 0.0
      %2033 = vmatprep.subr.mxu0 0.0
      %2034 = vmatpush1.msra.mxu0 0.0
      %2035 = vmatprep.mubr.f32.mxu0 0.0
      %2036 = vmatmul.mubr.f32.gmra.mrb[0].mxu0 %v1966
      %v2037 = vpop.f32.mrb[0].mxu0
      %v2038 = vadd.f32 %v1964, %v2037
      %v2039 = vpop.f32.mrb[0].mxu0
      %2040 = vmatprep.mubr.f32.mxu0 0.0
      %2041 = vmatmul.mubr.f32.gmra.mrb[0].mxu0 %v1969
      %v2042 = vpop.f32.mrb[0].mxu0
      %v2043 = vadd.f32 %v1964, %v2042
      %v2044 = vpop.f32.mrb[0].mxu0
      %2045 = vdwg.mxu0
      %2048 = vrot.lane.b32.xlu0 %v2038, 120
      %v2049 = vpop.permute.xlu0 %2048
      %2050 = vrot.lane.b32.xlu0 %v2043, 120
      %v2051 = vpop.permute.xlu0 %2050
      %v2052 = vsel %vm623, %v2038, 0
      %v2054 = vsel %vm623, %v2043, 0
      %v2056 = vsel %vm623, %v2049, 0
      %v2058 = vsel %vm623, %v2051, 0
      %2060 = vmatprep.subr.mxu0 0.0
      %2061 = vmatpush1.xpose.msra.mxu0 %v2056
      %2062 = vmatprep.subr.mxu0 0.0
      %2063 = vmatpush1.xpose.msra.mxu0 %v2058
      %2064 = vmatprep.subr.mxu0 0.0
      %2065 = vmatpush1.xpose.msra.mxu0 0.0
      %2066 = vmatprep.subr.mxu0 0.0
      %2067 = vmatpush1.xpose.msra.mxu0 0.0
      %2068 = vmatprep.subr.mxu0 0.0
      %2069 = vmatpush1.xpose.msra.mxu0 0.0
      %2070 = vmatprep.subr.mxu0 0.0
      %2071 = vmatpush1.xpose.msra.mxu0 0.0
      %2072 = vmatprep.subr.mxu0 0.0
      %2073 = vmatpush1.xpose.msra.mxu0 0.0
      %2074 = vmatprep.subr.mxu0 0.0
      %2075 = vmatpush1.xpose.msra.mxu0 0.0
      %2076 = vmatprep.subr.mxu0 0.0
      %2077 = vmatpush1.xpose.msra.mxu0 0.0
      %2078 = vmatprep.subr.mxu0 0.0
      %2079 = vmatpush1.xpose.msra.mxu0 0.0
      %2080 = vmatprep.subr.mxu0 0.0
      %2081 = vmatpush1.xpose.msra.mxu0 0.0
      %2082 = vmatprep.subr.mxu0 0.0
      %2083 = vmatpush1.xpose.msra.mxu0 0.0
      %2084 = vmatprep.subr.mxu0 0.0
      %2085 = vmatpush1.xpose.msra.mxu0 0.0
      %2086 = vmatprep.subr.mxu0 0.0
      %2087 = vmatpush1.xpose.msra.mxu0 0.0
      %2088 = vmatprep.subr.mxu0 0.0
      %2089 = vmatpush1.xpose.msra.mxu0 0.0
      %2090 = vmatprep.subr.mxu0 0.0
      %2091 = vmatpush1.xpose.msra.mxu0 0.0
      %2092 = vmatprep.subr.mxu0 0.0
      %2093 = vmatpush1.xpose.msra.mxu0 0.0
      %2094 = vmatprep.subr.mxu0 0.0
      %2095 = vmatpush1.xpose.msra.mxu0 0.0
      %2096 = vmatprep.subr.mxu0 0.0
      %2097 = vmatpush1.xpose.msra.mxu0 0.0
      %2098 = vmatprep.subr.mxu0 0.0
      %2099 = vmatpush1.xpose.msra.mxu0 0.0
      %2100 = vmatprep.subr.mxu0 0.0
      %2101 = vmatpush1.xpose.msra.mxu0 0.0
      %2102 = vmatprep.subr.mxu0 0.0
      %2103 = vmatpush1.xpose.msra.mxu0 0.0
      %2104 = vmatprep.subr.mxu0 0.0
      %2105 = vmatpush1.xpose.msra.mxu0 0.0
      %2106 = vmatprep.subr.mxu0 0.0
      %2107 = vmatpush1.xpose.msra.mxu0 0.0
      %2108 = vmatprep.subr.mxu0 0.0
      %2109 = vmatpush1.xpose.msra.mxu0 0.0
      %2110 = vmatprep.subr.mxu0 0.0
      %2111 = vmatpush1.xpose.msra.mxu0 0.0
      %2112 = vmatprep.subr.mxu0 0.0
      %2113 = vmatpush1.xpose.msra.mxu0 0.0
      %2114 = vmatprep.subr.mxu0 0.0
      %2115 = vmatpush1.xpose.msra.mxu0 0.0
      %2116 = vmatprep.subr.mxu0 0.0
      %2117 = vmatpush1.xpose.msra.mxu0 0.0
      %2118 = vmatprep.subr.mxu0 0.0
      %2119 = vmatpush1.xpose.msra.mxu0 0.0
      %2120 = vmatprep.subr.mxu0 0.0
      %2121 = vmatpush1.xpose.msra.mxu0 0.0
      %2122 = vmatprep.subr.mxu0 0.0
      %2123 = vmatpush1.xpose.msra.mxu0 0.0
      %2124 = vmatprep.mubr.f32.mxu0 0.0
      %2125 = vmatmul.mubr.f32.gmra.mrb[0].mxu0 %v2052
      %v2126 = vpop.f32.mrb[0].mxu0
      %v2127 = vadd.f32 0.0, %v2126
      %v2128 = vpop.f32.mrb[0].mxu0
      %2129 = vmatprep.mubr.f32.mxu0 0.0
      %2130 = vmatmul.mubr.f32.gmra.mrb[0].mxu0 %v2054
      %v2131 = vpop.f32.mrb[0].mxu0
      %v2132 = vadd.f32 0.0, %v2131
      %v2133 = vpop.f32.mrb[0].mxu0
      %2134 = vdwg.mxu0
      %v2135 = vmul.f32 %v2127, 0.5
      %v2136 = vmul.f32 %v2132, 0.5
      %v2137 = vld [vmem:[%s2 + $0x158] sm:$0xff]
      %v2138 = vld [vmem:[%s2 + $0x160] sm:$0xff]
      %v2139 = vadd.f32 %v2135, %v2137
      %v2140 = vadd.f32 %v2136, %v2138
      %v2141 = vsel %vm283, %v2139, -inf
      %2142 = vmax.xlane.f32.xlu0 %v2141
      %v2143 = vpop.xlane.xlu0 %2142
      %v2144 = vsel %vm283, %v2140, -inf
      %2145 = vmax.xlane.f32.xlu0 %v2144
      %v2146 = vpop.xlane.xlu0 %2145
      %v2147 = vsub.f32 %v2139, %v2143
      %v2148 = vsub.f32 %v2140, %v2146
      %v2149 = vmul.f32 %v2147, 1.442695
      %v2150 = vpow.pop %v2149
      %v2151 = vmul.f32 %v2148, 1.442695
      %v2152 = vpow.pop %v2151
      %v2153 = vsel %vm283, %v2150, 0.0
      %2154 = vadd.xlane.f32.xlu0 %v2153
      %v2155 = vpop.xlane.xlu0 %2154
      %v2156 = vsel %vm283, %v2152, 0.0
      %2157 = vadd.xlane.f32.xlu0 %v2156
      %v2158 = vpop.xlane.xlu0 %2157
      %v2159 = vrcp.pop %v2155
      %v2160 = vrcp.pop %v2158
      %v2161 = vmul.f32 %v2150, %v2159
      %v2162 = vmul.f32 %v2152, %v2160
      %2163 = vrot.lane.b32.xlu0 %v2038, 112
      %v2164 = vpop.permute.xlu0 %2163
      %2165 = vrot.lane.b32.xlu0 %v2043, 112
      %v2166 = vpop.permute.xlu0 %2165
      %v2170 = vsel %vm283, %v2161, 0
      %v2173 = vsel %vm283, %v2162, 0
      %2175 = vmatprep.subr.mxu0 0.0
      %2176 = vmatpush1.msra.mxu0 %v2164
      %2177 = vmatprep.subr.mxu0 0.0
      %2178 = vmatpush1.msra.mxu0 %v2166
      %2179 = vmatprep.subr.mxu0 0.0
      %2180 = vmatpush1.msra.mxu0 0.0
      %2181 = vmatprep.subr.mxu0 0.0
      %2182 = vmatpush1.msra.mxu0 0.0
      %2183 = vmatprep.subr.mxu0 0.0
      %2184 = vmatpush1.msra.mxu0 0.0
      %2185 = vmatprep.subr.mxu0 0.0
      %2186 = vmatpush1.msra.mxu0 0.0
      %2187 = vmatprep.subr.mxu0 0.0
      %2188 = vmatpush1.msra.mxu0 0.0
      %2189 = vmatprep.subr.mxu0 0.0
      %2190 = vmatpush1.msra.mxu0 0.0
      %2191 = vmatprep.subr.mxu0 0.0
      %2192 = vmatpush1.msra.mxu0 0.0
      %2193 = vmatprep.subr.mxu0 0.0
      %2194 = vmatpush1.msra.mxu0 0.0
      %2195 = vmatprep.subr.mxu0 0.0
      %2196 = vmatpush1.msra.mxu0 0.0
      %2197 = vmatprep.subr.mxu0 0.0
      %2198 = vmatpush1.msra.mxu0 0.0
      %2199 = vmatprep.subr.mxu0 0.0
      %2200 = vmatpush1.msra.mxu0 0.0
      %2201 = vmatprep.subr.mxu0 0.0
      %2202 = vmatpush1.msra.mxu0 0.0
      %2203 = vmatprep.subr.mxu0 0.0
      %2204 = vmatpush1.msra.mxu0 0.0
      %2205 = vmatprep.subr.mxu0 0.0
      %2206 = vmatpush1.msra.mxu0 0.0
      %2207 = vmatprep.subr.mxu0 0.0
      %2208 = vmatpush1.msra.mxu0 0.0
      %2209 = vmatprep.subr.mxu0 0.0
      %2210 = vmatpush1.msra.mxu0 0.0
      %2211 = vmatprep.subr.mxu0 0.0
      %2212 = vmatpush1.msra.mxu0 0.0
      %2213 = vmatprep.subr.mxu0 0.0
      %2214 = vmatpush1.msra.mxu0 0.0
      %2215 = vmatprep.subr.mxu0 0.0
      %2216 = vmatpush1.msra.mxu0 0.0
      %2217 = vmatprep.subr.mxu0 0.0
      %2218 = vmatpush1.msra.mxu0 0.0
      %2219 = vmatprep.subr.mxu0 0.0
      %2220 = vmatpush1.msra.mxu0 0.0
      %2221 = vmatprep.subr.mxu0 0.0
      %2222 = vmatpush1.msra.mxu0 0.0
      %2223 = vmatprep.subr.mxu0 0.0
      %2224 = vmatpush1.msra.mxu0 0.0
      %2225 = vmatprep.subr.mxu0 0.0
      %2226 = vmatpush1.msra.mxu0 0.0
      %2227 = vmatprep.subr.mxu0 0.0
      %2228 = vmatpush1.msra.mxu0 0.0
      %2229 = vmatprep.subr.mxu0 0.0
      %2230 = vmatpush1.msra.mxu0 0.0
      %2231 = vmatprep.subr.mxu0 0.0
      %2232 = vmatpush1.msra.mxu0 0.0
      %2233 = vmatprep.subr.mxu0 0.0
      %2234 = vmatpush1.msra.mxu0 0.0
      %2235 = vmatprep.subr.mxu0 0.0
      %2236 = vmatpush1.msra.mxu0 0.0
      %2237 = vmatprep.subr.mxu0 0.0
      %2238 = vmatpush1.msra.mxu0 0.0
      %2239 = vmatprep.mubr.f32.mxu0 0.0
      %2240 = vmatmul.mubr.f32.gmra.mrb[0].mxu0 %v2170
      %v2241 = vpop.f32.mrb[0].mxu0
      %v2242 = vadd.f32 0.0, %v2241
      %v2243 = vpop.f32.mrb[0].mxu0
      %2244 = vmatprep.mubr.f32.mxu0 0.0
      %2245 = vmatmul.mubr.f32.gmra.mrb[0].mxu0 %v2173
      %v2246 = vpop.f32.mrb[0].mxu0
      %v2247 = vadd.f32 0.0, %v2246
      %v2248 = vpop.f32.mrb[0].mxu0
      %2249 = vdwg.mxu0
      %2250 = vrot.lane.b32.xlu0 %v2038, 124
      %v2251 = vpop.permute.xlu0 %2250
      %2252 = vrot.lane.b32.xlu0 %v2043, 124
      %v2253 = vpop.permute.xlu0 %2252
      %2254 = vrot.lane.b32.xlu0 %v2038, 116
      %v2255 = vpop.permute.xlu0 %2254
      %2256 = vrot.lane.b32.xlu0 %v2043, 116
      %v2257 = vpop.permute.xlu0 %2256
      %v2258 = vsel %vm623, %v2251, 0
      %v2260 = vsel %vm623, %v2253, 0
      %v2262 = vsel %vm623, %v2255, 0
      %v2264 = vsel %vm623, %v2257, 0
      %2266 = vmatprep.subr.mxu0 0.0
      %2267 = vmatpush1.xpose.msra.mxu0 %v2262
      %2268 = vmatprep.subr.mxu0 0.0
      %2269 = vmatpush1.xpose.msra.mxu0 %v2264
      %2270 = vmatprep.subr.mxu0 0.0
      %2271 = vmatpush1.xpose.msra.mxu0 0.0
      %2272 = vmatprep.subr.mxu0 0.0
      %2273 = vmatpush1.xpose.msra.mxu0 0.0
      %2274 = vmatprep.subr.mxu0 0.0
      %2275 = vmatpush1.xpose.msra.mxu0 0.0
      %2276 = vmatprep.subr.mxu0 0.0
      %2277 = vmatpush1.xpose.msra.mxu0 0.0
      %2278 = vmatprep.subr.mxu0 0.0
      %2279 = vmatpush1.xpose.msra.mxu0 0.0
      %2280 = vmatprep.subr.mxu0 0.0
      %2281 = vmatpush1.xpose.msra.mxu0 0.0
      %2282 = vmatprep.subr.mxu0 0.0
      %2283 = vmatpush1.xpose.msra.mxu0 0.0
      %2284 = vmatprep.subr.mxu0 0.0
      %2285 = vmatpush1.xpose.msra.mxu0 0.0
      %2286 = vmatprep.subr.mxu0 0.0
      %2287 = vmatpush1.xpose.msra.mxu0 0.0
      %2288 = vmatprep.subr.mxu0 0.0
      %2289 = vmatpush1.xpose.msra.mxu0 0.0
      %2290 = vmatprep.subr.mxu0 0.0
      %2291 = vmatpush1.xpose.msra.mxu0 0.0
      %2292 = vmatprep.subr.mxu0 0.0
      %2293 = vmatpush1.xpose.msra.mxu0 0.0
      %2294 = vmatprep.subr.mxu0 0.0
      %2295 = vmatpush1.xpose.msra.mxu0 0.0
      %2296 = vmatprep.subr.mxu0 0.0
      %2297 = vmatpush1.xpose.msra.mxu0 0.0
      %2298 = vmatprep.subr.mxu0 0.0
      %2299 = vmatpush1.xpose.msra.mxu0 0.0
      %2300 = vmatprep.subr.mxu0 0.0
      %2301 = vmatpush1.xpose.msra.mxu0 0.0
      %2302 = vmatprep.subr.mxu0 0.0
      %2303 = vmatpush1.xpose.msra.mxu0 0.0
      %2304 = vmatprep.subr.mxu0 0.0
      %2305 = vmatpush1.xpose.msra.mxu0 0.0
      %2306 = vmatprep.subr.mxu0 0.0
      %2307 = vmatpush1.xpose.msra.mxu0 0.0
      %2308 = vmatprep.subr.mxu0 0.0
      %2309 = vmatpush1.xpose.msra.mxu0 0.0
      %2310 = vmatprep.subr.mxu0 0.0
      %2311 = vmatpush1.xpose.msra.mxu0 0.0
      %2312 = vmatprep.subr.mxu0 0.0
      %2313 = vmatpush1.xpose.msra.mxu0 0.0
      %2314 = vmatprep.subr.mxu0 0.0
      %2315 = vmatpush1.xpose.msra.mxu0 0.0
      %2316 = vmatprep.subr.mxu0 0.0
      %2317 = vmatpush1.xpose.msra.mxu0 0.0
      %2318 = vmatprep.subr.mxu0 0.0
      %2319 = vmatpush1.xpose.msra.mxu0 0.0
      %2320 = vmatprep.subr.mxu0 0.0
      %2321 = vmatpush1.xpose.msra.mxu0 0.0
      %2322 = vmatprep.subr.mxu0 0.0
      %2323 = vmatpush1.xpose.msra.mxu0 0.0
      %2324 = vmatprep.subr.mxu0 0.0
      %2325 = vmatpush1.xpose.msra.mxu0 0.0
      %2326 = vmatprep.subr.mxu0 0.0
      %2327 = vmatpush1.xpose.msra.mxu0 0.0
      %2328 = vmatprep.subr.mxu0 0.0
      %2329 = vmatpush1.xpose.msra.mxu0 0.0
      %2330 = vmatprep.mubr.f32.mxu0 0.0
      %2331 = vmatmul.mubr.f32.gmra.mrb[0].mxu0 %v2258
      %v2332 = vpop.f32.mrb[0].mxu0
      %v2333 = vadd.f32 0.0, %v2332
      %v2334 = vpop.f32.mrb[0].mxu0
      %2335 = vmatprep.mubr.f32.mxu0 0.0
      %2336 = vmatmul.mubr.f32.gmra.mrb[0].mxu0 %v2260
      %v2337 = vpop.f32.mrb[0].mxu0
      %v2338 = vadd.f32 0.0, %v2337
      %v2339 = vpop.f32.mrb[0].mxu0
      %2340 = vdwg.mxu0
      %v2341 = vmul.f32 %v2333, 0.5
      %v2342 = vmul.f32 %v2338, 0.5
      %v2343 = vld [vmem:[%s2 + $0x168] sm:$0xff]
      %v2344 = vld [vmem:[%s2 + $0x170] sm:$0xff]
      %v2345 = vadd.f32 %v2341, %v2343
      %v2346 = vadd.f32 %v2342, %v2344
      %v2347 = vsel %vm283, %v2345, -inf
      %2348 = vmax.xlane.f32.xlu0 %v2347
      %v2349 = vpop.xlane.xlu0 %2348
      %v2350 = vsel %vm283, %v2346, -inf
      %2351 = vmax.xlane.f32.xlu0 %v2350
      %v2352 = vpop.xlane.xlu0 %2351
      %v2353 = vsub.f32 %v2345, %v2349
      %v2354 = vsub.f32 %v2346, %v2352
      %v2355 = vmul.f32 %v2353, 1.442695
      %v2356 = vpow.pop %v2355
      %v2357 = vmul.f32 %v2354, 1.442695
      %v2358 = vpow.pop %v2357
      %v2359 = vsel %vm283, %v2356, 0.0
      %2360 = vadd.xlane.f32.xlu0 %v2359
      %v2361 = vpop.xlane.xlu0 %2360
      %v2362 = vsel %vm283, %v2358, 0.0
      %2363 = vadd.xlane.f32.xlu0 %v2362
      %v2364 = vpop.xlane.xlu0 %2363
      %v2365 = vrcp.pop %v2361
      %v2366 = vrcp.pop %v2364
      %v2367 = vmul.f32 %v2356, %v2365
      %v2368 = vmul.f32 %v2358, %v2366
      %2369 = vrot.lane.b32.xlu0 %v2038, 108
      %v2370 = vpop.permute.xlu0 %2369
      %2371 = vrot.lane.b32.xlu0 %v2043, 108
      %v2372 = vpop.permute.xlu0 %2371
      %v2376 = vsel %vm283, %v2367, 0
      %v2379 = vsel %vm283, %v2368, 0
      %2381 = vmatprep.subr.mxu0 0.0
      %2382 = vmatpush1.msra.mxu0 %v2370
      %2383 = vmatprep.subr.mxu0 0.0
      %2384 = vmatpush1.msra.mxu0 %v2372
      %2385 = vmatprep.subr.mxu0 0.0
      %2386 = vmatpush1.msra.mxu0 0.0
      %2387 = vmatprep.subr.mxu0 0.0
      %2388 = vmatpush1.msra.mxu0 0.0
      %2389 = vmatprep.subr.mxu0 0.0
      %2390 = vmatpush1.msra.mxu0 0.0
      %2391 = vmatprep.subr.mxu0 0.0
      %2392 = vmatpush1.msra.mxu0 0.0
      %2393 = vmatprep.subr.mxu0 0.0
      %2394 = vmatpush1.msra.mxu0 0.0
      %2395 = vmatprep.subr.mxu0 0.0
      %2396 = vmatpush1.msra.mxu0 0.0
      %2397 = vmatprep.subr.mxu0 0.0
      %2398 = vmatpush1.msra.mxu0 0.0
      %2399 = vmatprep.subr.mxu0 0.0
      %2400 = vmatpush1.msra.mxu0 0.0
      %2401 = vmatprep.subr.mxu0 0.0
      %2402 = vmatpush1.msra.mxu0 0.0
      %2403 = vmatprep.subr.mxu0 0.0
      %2404 = vmatpush1.msra.mxu0 0.0
      %2405 = vmatprep.subr.mxu0 0.0
      %2406 = vmatpush1.msra.mxu0 0.0
      %2407 = vmatprep.subr.mxu0 0.0
      %2408 = vmatpush1.msra.mxu0 0.0
      %2409 = vmatprep.subr.mxu0 0.0
      %2410 = vmatpush1.msra.mxu0 0.0
      %2411 = vmatprep.subr.mxu0 0.0
      %2412 = vmatpush1.msra.mxu0 0.0
      %2413 = vmatprep.subr.mxu0 0.0
      %2414 = vmatpush1.msra.mxu0 0.0
      %2415 = vmatprep.subr.mxu0 0.0
      %2416 = vmatpush1.msra.mxu0 0.0
      %2417 = vmatprep.subr.mxu0 0.0
      %2418 = vmatpush1.msra.mxu0 0.0
      %2419 = vmatprep.subr.mxu0 0.0
      %2420 = vmatpush1.msra.mxu0 0.0
      %2421 = vmatprep.subr.mxu0 0.0
      %2422 = vmatpush1.msra.mxu0 0.0
      %2423 = vmatprep.subr.mxu0 0.0
      %2424 = vmatpush1.msra.mxu0 0.0
      %2425 = vmatprep.subr.mxu0 0.0
      %2426 = vmatpush1.msra.mxu0 0.0
      %2427 = vmatprep.subr.mxu0 0.0
      %2428 = vmatpush1.msra.mxu0 0.0
      %2429 = vmatprep.subr.mxu0 0.0
      %2430 = vmatpush1.msra.mxu0 0.0
      %2431 = vmatprep.subr.mxu0 0.0
      %2432 = vmatpush1.msra.mxu0 0.0
      %2433 = vmatprep.subr.mxu0 0.0
      %2434 = vmatpush1.msra.mxu0 0.0
      %2435 = vmatprep.subr.mxu0 0.0
      %2436 = vmatpush1.msra.mxu0 0.0
      %2437 = vmatprep.subr.mxu0 0.0
      %2438 = vmatpush1.msra.mxu0 0.0
      %2439 = vmatprep.subr.mxu0 0.0
      %2440 = vmatpush1.msra.mxu0 0.0
      %2441 = vmatprep.subr.mxu0 0.0
      %2442 = vmatpush1.msra.mxu0 0.0
      %2443 = vmatprep.subr.mxu0 0.0
      %2444 = vmatpush1.msra.mxu0 0.0
      %2445 = vmatprep.mubr.f32.mxu0 0.0
      %2446 = vmatmul.mubr.f32.gmra.mrb[0].mxu0 %v2376
      %v2447 = vpop.f32.mrb[0].mxu0
      %v2448 = vadd.f32 0.0, %v2447
      %v2449 = vpop.f32.mrb[0].mxu0
      %2450 = vmatprep.mubr.f32.mxu0 0.0
      %2451 = vmatmul.mubr.f32.gmra.mrb[0].mxu0 %v2379
      %v2452 = vpop.f32.mrb[0].mxu0
      %v2453 = vadd.f32 0.0, %v2452
      %v2454 = vpop.f32.mrb[0].mxu0
      %2455 = vdwg.mxu0
      %2458 = vrot.lane.b32.xlu0 %v2448, 4
      %v2459 = vpop.permute.xlu0 %2458
      %2460 = vrot.lane.b32.xlu0 %v2453, 4
      %v2461 = vpop.permute.xlu0 %2460
      %v2464 = vsel %vm623, %v2242, %v2459
      %v2465 = vsel %vm623, %v2247, %v2461
      %v2466 = vld [vmem:[%s2 + $0x148] sm:$0xff]
      %v2467 = vld [vmem:[%s2 + $0x150] sm:$0x1]
      %v2468 = vlaneseq
      %v2469 = vshrl.u32 %v2468, 7
      %v2470 = vsub.s32 0, %v2469
      %v2471 = vrot.slane %v2467, %v2470
      %v2473 = vsel %vm546, %v2464, 0
      %v2476 = vsel %vm546, %v2465, 0
      %2478 = vmatprep.subr.mxu0 0.0
      %2479 = vmatpush1.msra.mxu0 %v2466
      %2480 = vmatprep.subr.mxu0 0.0
      %2481 = vmatpush1.msra.mxu0 0.0
      %2482 = vmatprep.subr.mxu0 0.0
      %2483 = vmatpush1.msra.mxu0 0.0
      %2484 = vmatprep.subr.mxu0 0.0
      %2485 = vmatpush1.msra.mxu0 0.0
      %2486 = vmatprep.subr.mxu0 0.0
      %2487 = vmatpush1.msra.mxu0 0.0
      %2488 = vmatprep.subr.mxu0 0.0
      %2489 = vmatpush1.msra.mxu0 0.0
      %2490 = vmatprep.subr.mxu0 0.0
      %2491 = vmatpush1.msra.mxu0 0.0
      %2492 = vmatprep.subr.mxu0 0.0
      %2493 = vmatpush1.msra.mxu0 0.0
      %2494 = vmatprep.subr.mxu0 0.0
      %2495 = vmatpush1.msra.mxu0 0.0
      %2496 = vmatprep.subr.mxu0 0.0
      %2497 = vmatpush1.msra.mxu0 0.0
      %2498 = vmatprep.subr.mxu0 0.0
      %2499 = vmatpush1.msra.mxu0 0.0
      %2500 = vmatprep.subr.mxu0 0.0
      %2501 = vmatpush1.msra.mxu0 0.0
      %2502 = vmatprep.subr.mxu0 0.0
      %2503 = vmatpush1.msra.mxu0 0.0
      %2504 = vmatprep.subr.mxu0 0.0
      %2505 = vmatpush1.msra.mxu0 0.0
      %2506 = vmatprep.subr.mxu0 0.0
      %2507 = vmatpush1.msra.mxu0 0.0
      %2508 = vmatprep.subr.mxu0 0.0
      %2509 = vmatpush1.msra.mxu0 0.0
      %2510 = vmatprep.subr.mxu0 0.0
      %2511 = vmatpush1.msra.mxu0 0.0
      %2512 = vmatprep.subr.mxu0 0.0
      %2513 = vmatpush1.msra.mxu0 0.0
      %2514 = vmatprep.subr.mxu0 0.0
      %2515 = vmatpush1.msra.mxu0 0.0
      %2516 = vmatprep.subr.mxu0 0.0
      %2517 = vmatpush1.msra.mxu0 0.0
      %2518 = vmatprep.subr.mxu0 0.0
      %2519 = vmatpush1.msra.mxu0 0.0
      %2520 = vmatprep.subr.mxu0 0.0
      %2521 = vmatpush1.msra.mxu0 0.0
      %2522 = vmatprep.subr.mxu0 0.0
      %2523 = vmatpush1.msra.mxu0 0.0
      %2524 = vmatprep.subr.mxu0 0.0
      %2525 = vmatpush1.msra.mxu0 0.0
      %2526 = vmatprep.subr.mxu0 0.0
      %2527 = vmatpush1.msra.mxu0 0.0
      %2528 = vmatprep.subr.mxu0 0.0
      %2529 = vmatpush1.msra.mxu0 0.0
      %2530 = vmatprep.subr.mxu0 0.0
      %2531 = vmatpush1.msra.mxu0 0.0
      %2532 = vmatprep.subr.mxu0 0.0
      %2533 = vmatpush1.msra.mxu0 0.0
      %2534 = vmatprep.subr.mxu0 0.0
      %2535 = vmatpush1.msra.mxu0 0.0
      %2536 = vmatprep.subr.mxu0 0.0
      %2537 = vmatpush1.msra.mxu0 0.0
      %2538 = vmatprep.subr.mxu0 0.0
      %2539 = vmatpush1.msra.mxu0 0.0
      %2540 = vmatprep.subr.mxu0 0.0
      %2541 = vmatpush1.msra.mxu0 0.0
      %2542 = vmatprep.mubr.f32.mxu0 0.0
      %2543 = vmatmul.mubr.f32.gmra.mrb[0].mxu0 %v2473
      %v2544 = vpop.f32.mrb[0].mxu0
      %v2545 = vadd.f32 %v2471, %v2544
      %v2546 = vpop.f32.mrb[0].mxu0
      %2547 = vmatprep.mubr.f32.mxu0 0.0
      %2548 = vmatmul.mubr.f32.gmra.mrb[0].mxu0 %v2476
      %v2549 = vpop.f32.mrb[0].mxu0
      %v2550 = vadd.f32 %v2471, %v2549
      %v2551 = vpop.f32.mrb[0].mxu0
      %2552 = vdwg.mxu0
      %v2553 = vadd.f32 %v532, %v2545
      %v2554 = vadd.f32 %v537, %v2550
      %v2555 = vsel %vm546, %v2553, 0.0
      %2556 = vadd.xlane.f32.xlu0 %v2555
      %v2557 = vpop.xlane.xlu0 %2556
      %v2558 = vsel %vm546, %v2554, 0.0
      %2559 = vadd.xlane.f32.xlu0 %v2558
      %v2560 = vpop.xlane.xlu0 %2559
      %v2561 = vmul.f32 %v2557, %v1044
      %v2562 = vmul.f32 %v2560, %v1044
      %v2563 = vsub.f32 %v2553, %v2561
      %v2564 = vsub.f32 %v2554, %v2562
      %v2565 = vmul.f32 %v2563, %v2563
      %v2566 = vmul.f32 %v2564, %v2564
      %v2567 = vsel %vm546, %v2565, 0.0
      %2568 = vadd.xlane.f32.xlu0 %v2567
      %v2569 = vpop.xlane.xlu0 %2568
      %v2570 = vsel %vm546, %v2566, 0.0
      %2571 = vadd.xlane.f32.xlu0 %v2570
      %v2572 = vpop.xlane.xlu0 %2571
      %v2573 = vmul.f32 %v2569, %v1044
      %v2574 = vmul.f32 %v2572, %v1044
      %v2575 = vadd.f32 %v2573, 1e-05
      %v2576 = vadd.f32 %v2574, 1e-05
      %v2577 = vrsqrt.pop %v2575
      %v2578 = vrsqrt.pop %v2576
      %v2579 = vmul.f32 %v2563, %v2577
      %v2580 = vmul.f32 %v2564, %v2578
      %v2581 = vld [vmem:[%s2 + $0x178] sm:$0x1]
      %v2582 = vlaneseq
      %v2583 = vshrl.u32 %v2582, 7
      %v2584 = vsub.s32 0, %v2583
      %v2585 = vrot.slane %v2581, %v2584
      %v2586 = vmul.f32 %v2579, %v2585
      %v2587 = vmul.f32 %v2580, %v2585
      %v2588 = vld [vmem:[%s2 + $0x180] sm:$0x1]
      %v2589 = vlaneseq
      %v2590 = vshrl.u32 %v2589, 7
      %v2591 = vsub.s32 0, %v2590
      %v2592 = vrot.slane %v2588, %v2591
      %v2593 = vadd.f32 %v2586, %v2592
      %v2594 = vadd.f32 %v2587, %v2592
      %v2595 = vld [vmem:[%s2 + $0x188] sm:$0xff]
      %v2596 = vld [vmem:[%s2 + $0x190] sm:$0x1]
      %v2597 = vlaneseq
      %v2598 = vshrl.u32 %v2597, 7
      %v2599 = vsub.s32 0, %v2598
      %v2600 = vrot.slane %v2596, %v2599
      %v2602 = vsel %vm546, %v2593, 0
      %v2605 = vsel %vm546, %v2594, 0
      %2607 = vmatprep.subr.mxu0 0.0
      %2608 = vmatpush1.msra.mxu0 %v2595
      %2609 = vmatprep.subr.mxu0 0.0
      %2610 = vmatpush1.msra.mxu0 0.0
      %2611 = vmatprep.subr.mxu0 0.0
      %2612 = vmatpush1.msra.mxu0 0.0
      %2613 = vmatprep.subr.mxu0 0.0
      %2614 = vmatpush1.msra.mxu0 0.0
      %2615 = vmatprep.subr.mxu0 0.0
      %2616 = vmatpush1.msra.mxu0 0.0
      %2617 = vmatprep.subr.mxu0 0.0
      %2618 = vmatpush1.msra.mxu0 0.0
      %2619 = vmatprep.subr.mxu0 0.0
      %2620 = vmatpush1.msra.mxu0 0.0
      %2621 = vmatprep.subr.mxu0 0.0
      %2622 = vmatpush1.msra.mxu0 0.0
      %2623 = vmatprep.subr.mxu0 0.0
      %2624 = vmatpush1.msra.mxu0 0.0
      %2625 = vmatprep.subr.mxu0 0.0
      %2626 = vmatpush1.msra.mxu0 0.0
      %2627 = vmatprep.subr.mxu0 0.0
      %2628 = vmatpush1.msra.mxu0 0.0
      %2629 = vmatprep.subr.mxu0 0.0
      %2630 = vmatpush1.msra.mxu0 0.0
      %2631 = vmatprep.subr.mxu0 0.0
      %2632 = vmatpush1.msra.mxu0 0.0
      %2633 = vmatprep.subr.mxu0 0.0
      %2634 = vmatpush1.msra.mxu0 0.0
      %2635 = vmatprep.subr.mxu0 0.0
      %2636 = vmatpush1.msra.mxu0 0.0
      %2637 = vmatprep.subr.mxu0 0.0
      %2638 = vmatpush1.msra.mxu0 0.0
      %2639 = vmatprep.subr.mxu0 0.0
      %2640 = vmatpush1.msra.mxu0 0.0
      %2641 = vmatprep.subr.mxu0 0.0
      %2642 = vmatpush1.msra.mxu0 0.0
      %2643 = vmatprep.subr.mxu0 0.0
      %2644 = vmatpush1.msra.mxu0 0.0
      %2645 = vmatprep.subr.mxu0 0.0
      %2646 = vmatpush1.msra.mxu0 0.0
      %2647 = vmatprep.subr.mxu0 0.0
      %2648 = vmatpush1.msra.mxu0 0.0
      %2649 = vmatprep.subr.mxu0 0.0
      %2650 = vmatpush1.msra.mxu0 0.0
      %2651 = vmatprep.subr.mxu0 0.0
      %2652 = vmatpush1.msra.mxu0 0.0
      %2653 = vmatprep.subr.mxu0 0.0
      %2654 = vmatpush1.msra.mxu0 0.0
      %2655 = vmatprep.subr.mxu0 0.0
      %2656 = vmatpush1.msra.mxu0 0.0
      %2657 = vmatprep.subr.mxu0 0.0
      %2658 = vmatpush1.msra.mxu0 0.0
      %2659 = vmatprep.subr.mxu0 0.0
      %2660 = vmatpush1.msra.mxu0 0.0
      %2661 = vmatprep.subr.mxu0 0.0
      %2662 = vmatpush1.msra.mxu0 0.0
      %2663 = vmatprep.subr.mxu0 0.0
      %2664 = vmatpush1.msra.mxu0 0.0
      %2665 = vmatprep.subr.mxu0 0.0
      %2666 = vmatpush1.msra.mxu0 0.0
      %2667 = vmatprep.subr.mxu0 0.0
      %2668 = vmatpush1.msra.mxu0 0.0
      %2669 = vmatprep.subr.mxu0 0.0
      %2670 = vmatpush1.msra.mxu0 0.0
      %2671 = vmatprep.mubr.f32.mxu0 0.0
      %2672 = vmatmul.mubr.f32.gmra.mrb[0].mxu0 %v2602
      %v2673 = vpop.f32.mrb[0].mxu0
      %v2674 = vadd.f32 %v2600, %v2673
      %v2675 = vpop.f32.mrb[0].mxu0
      %2676 = vmatprep.mubr.f32.mxu0 0.0
      %2677 = vmatmul.mubr.f32.gmra.mrb[0].mxu0 %v2605
      %v2678 = vpop.f32.mrb[0].mxu0
      %v2679 = vadd.f32 %v2600, %v2678
      %v2680 = vpop.f32.mrb[0].mxu0
      %2681 = vdwg.mxu0
      %v2682 = vld [vmem:[%s2 + $0x198] sm:$0xff]
      %v2683 = vld [vmem:[%s2 + $0x1a0] sm:$0x1]
      %v2684 = vlaneseq
      %v2685 = vshrl.u32 %v2684, 7
      %v2686 = vsub.s32 0, %v2685
      %v2687 = vrot.slane %v2683, %v2686
      %v2689 = vsel %vm546, %v1958, 0
      %2691 = vmatprep.subr.mxu0 0.0
      %2692 = vmatpush1.msra.mxu0 %v2682
      %2693 = vmatprep.subr.mxu0 0.0
      %2694 = vmatpush1.msra.mxu0 0.0
      %2695 = vmatprep.subr.mxu0 0.0
      %2696 = vmatpush1.msra.mxu0 0.0
      %2697 = vmatprep.subr.mxu0 0.0
      %2698 = vmatpush1.msra.mxu0 0.0
      %2699 = vmatprep.subr.mxu0 0.0
      %2700 = vmatpush1.msra.mxu0 0.0
      %2701 = vmatprep.subr.mxu0 0.0
      %2702 = vmatpush1.msra.mxu0 0.0
      %2703 = vmatprep.subr.mxu0 0.0
      %2704 = vmatpush1.msra.mxu0 0.0
      %2705 = vmatprep.subr.mxu0 0.0
      %2706 = vmatpush1.msra.mxu0 0.0
      %2707 = vmatprep.subr.mxu0 0.0
      %2708 = vmatpush1.msra.mxu0 0.0
      %2709 = vmatprep.subr.mxu0 0.0
      %2710 = vmatpush1.msra.mxu0 0.0
      %2711 = vmatprep.subr.mxu0 0.0
      %2712 = vmatpush1.msra.mxu0 0.0
      %2713 = vmatprep.subr.mxu0 0.0
      %2714 = vmatpush1.msra.mxu0 0.0
      %2715 = vmatprep.subr.mxu0 0.0
      %2716 = vmatpush1.msra.mxu0 0.0
      %2717 = vmatprep.subr.mxu0 0.0
      %2718 = vmatpush1.msra.mxu0 0.0
      %2719 = vmatprep.subr.mxu0 0.0
      %2720 = vmatpush1.msra.mxu0 0.0
      %2721 = vmatprep.subr.mxu0 0.0
      %2722 = vmatpush1.msra.mxu0 0.0
      %2723 = vmatprep.subr.mxu0 0.0
      %2724 = vmatpush1.msra.mxu0 0.0
      %2725 = vmatprep.subr.mxu0 0.0
      %2726 = vmatpush1.msra.mxu0 0.0
      %2727 = vmatprep.subr.mxu0 0.0
      %2728 = vmatpush1.msra.mxu0 0.0
      %2729 = vmatprep.subr.mxu0 0.0
      %2730 = vmatpush1.msra.mxu0 0.0
      %2731 = vmatprep.subr.mxu0 0.0
      %2732 = vmatpush1.msra.mxu0 0.0
      %2733 = vmatprep.subr.mxu0 0.0
      %2734 = vmatpush1.msra.mxu0 0.0
      %2735 = vmatprep.subr.mxu0 0.0
      %2736 = vmatpush1.msra.mxu0 0.0
      %2737 = vmatprep.subr.mxu0 0.0
      %2738 = vmatpush1.msra.mxu0 0.0
      %2739 = vmatprep.subr.mxu0 0.0
      %2740 = vmatpush1.msra.mxu0 0.0
      %2741 = vmatprep.subr.mxu0 0.0
      %2742 = vmatpush1.msra.mxu0 0.0
      %2743 = vmatprep.subr.mxu0 0.0
      %2744 = vmatpush1.msra.mxu0 0.0
      %2745 = vmatprep.subr.mxu0 0.0
      %2746 = vmatpush1.msra.mxu0 0.0
      %2747 = vmatprep.subr.mxu0 0.0
      %2748 = vmatpush1.msra.mxu0 0.0
      %2749 = vmatprep.subr.mxu0 0.0
      %2750 = vmatpush1.msra.mxu0 0.0
      %2751 = vmatprep.subr.mxu0 0.0
      %2752 = vmatpush1.msra.mxu0 0.0
      %2753 = vmatprep.subr.mxu0 0.0
      %2754 = vmatpush1.msra.mxu0 0.0
      %2755 = vmatprep.mubr.f32.mxu0 0.0
      %2756 = vmatmul.mubr.f32.gmra.mrb[0].mxu0 %v2689
      %v2757 = vpop.f32.mrb[0].mxu0
      %v2758 = vadd.f32 %v2687, %v2757
      %v2759 = vpop.f32.mrb[0].mxu0
      %2760 = vdwg.mxu0
      %v2762 = vsel %vm623, %v2674, 0
      %v2765 = vsel %vm623, %v2679, 0
      %v2768 = vsel %vm623, %v2758, 0
      %2770 = vmatprep.subr.mxu0 0.0
      %2771 = vmatpush1.xpose.msra.mxu0 %v2768
      %2772 = vmatprep.subr.mxu0 0.0
      %2773 = vmatpush1.xpose.msra.mxu0 0.0
      %2774 = vmatprep.subr.mxu0 0.0
      %2775 = vmatpush1.xpose.msra.mxu0 0.0
      %2776 = vmatprep.subr.mxu0 0.0
      %2777 = vmatpush1.xpose.msra.mxu0 0.0
      %2778 = vmatprep.subr.mxu0 0.0
      %2779 = vmatpush1.xpose.msra.mxu0 0.0
      %2780 = vmatprep.subr.mxu0 0.0
      %2781 = vmatpush1.xpose.msra.mxu0 0.0
      %2782 = vmatprep.subr.mxu0 0.0
      %2783 = vmatpush1.xpose.msra.mxu0 0.0
      %2784 = vmatprep.subr.mxu0 0.0
      %2785 = vmatpush1.xpose.msra.mxu0 0.0
      %2786 = vmatprep.subr.mxu0 0.0
      %2787 = vmatpush1.xpose.msra.mxu0 0.0
      %2788 = vmatprep.subr.mxu0 0.0
      %2789 = vmatpush1.xpose.msra.mxu0 0.0
      %2790 = vmatprep.subr.mxu0 0.0
      %2791 = vmatpush1.xpose.msra.mxu0 0.0
      %2792 = vmatprep.subr.mxu0 0.0
      %2793 = vmatpush1.xpose.msra.mxu0 0.0
      %2794 = vmatprep.subr.mxu0 0.0
      %2795 = vmatpush1.xpose.msra.mxu0 0.0
      %2796 = vmatprep.subr.mxu0 0.0
      %2797 = vmatpush1.xpose.msra.mxu0 0.0
      %2798 = vmatprep.subr.mxu0 0.0
      %2799 = vmatpush1.xpose.msra.mxu0 0.0
      %2800 = vmatprep.subr.mxu0 0.0
      %2801 = vmatpush1.xpose.msra.mxu0 0.0
      %2802 = vmatprep.subr.mxu0 0.0
      %2803 = vmatpush1.xpose.msra.mxu0 0.0
      %2804 = vmatprep.subr.mxu0 0.0
      %2805 = vmatpush1.xpose.msra.mxu0 0.0
      %2806 = vmatprep.subr.mxu0 0.0
      %2807 = vmatpush1.xpose.msra.mxu0 0.0
      %2808 = vmatprep.subr.mxu0 0.0
      %2809 = vmatpush1.xpose.msra.mxu0 0.0
      %2810 = vmatprep.subr.mxu0 0.0
      %2811 = vmatpush1.xpose.msra.mxu0 0.0
      %2812 = vmatprep.subr.mxu0 0.0
      %2813 = vmatpush1.xpose.msra.mxu0 0.0
      %2814 = vmatprep.subr.mxu0 0.0
      %2815 = vmatpush1.xpose.msra.mxu0 0.0
      %2816 = vmatprep.subr.mxu0 0.0
      %2817 = vmatpush1.xpose.msra.mxu0 0.0
      %2818 = vmatprep.subr.mxu0 0.0
      %2819 = vmatpush1.xpose.msra.mxu0 0.0
      %2820 = vmatprep.subr.mxu0 0.0
      %2821 = vmatpush1.xpose.msra.mxu0 0.0
      %2822 = vmatprep.subr.mxu0 0.0
      %2823 = vmatpush1.xpose.msra.mxu0 0.0
      %2824 = vmatprep.subr.mxu0 0.0
      %2825 = vmatpush1.xpose.msra.mxu0 0.0
      %2826 = vmatprep.subr.mxu0 0.0
      %2827 = vmatpush1.xpose.msra.mxu0 0.0
      %2828 = vmatprep.subr.mxu0 0.0
      %2829 = vmatpush1.xpose.msra.mxu0 0.0
      %2830 = vmatprep.subr.mxu0 0.0
      %2831 = vmatpush1.xpose.msra.mxu0 0.0
      %2832 = vmatprep.subr.mxu0 0.0
      %2833 = vmatpush1.xpose.msra.mxu0 0.0
      %2834 = vmatprep.mubr.f32.mxu0 0.0
      %2835 = vmatmul.mubr.f32.gmra.mrb[0].mxu0 %v2762
      %v2836 = vpop.f32.mrb[0].mxu0
      %v2837 = vadd.f32 0.0, %v2836
      %v2838 = vpop.f32.mrb[0].mxu0
      %2839 = vmatprep.mubr.f32.mxu0 0.0
      %2840 = vmatmul.mubr.f32.gmra.mrb[0].mxu0 %v2765
      %v2841 = vpop.f32.mrb[0].mxu0
      %v2842 = vadd.f32 0.0, %v2841
      %v2843 = vpop.f32.mrb[0].mxu0
      %2844 = vdwg.mxu0
      %v2845 = vmul.f32 %v2837, 0.5
      %v2846 = vmul.f32 %v2842, 0.5
      %v2847 = vsel %vm546, %v2845, -inf
      %2848 = vmax.xlane.f32.xlu0 %v2847
      %v2849 = vpop.xlane.xlu0 %2848
      %v2850 = vsel %vm546, %v2846, -inf
      %2851 = vmax.xlane.f32.xlu0 %v2850
      %v2852 = vpop.xlane.xlu0 %2851
      %v2853 = vsub.f32 %v2845, %v2849
      %v2854 = vsub.f32 %v2846, %v2852
      %v2855 = vmul.f32 %v2853, 1.442695
      %v2856 = vpow.pop %v2855
      %v2857 = vmul.f32 %v2854, 1.442695
      %v2858 = vpow.pop %v2857
      %v2859 = vsel %vm546, %v2856, 0.0
      %2860 = vadd.xlane.f32.xlu0 %v2859
      %v2861 = vpop.xlane.xlu0 %2860
      %v2862 = vsel %vm546, %v2858, 0.0
      %2863 = vadd.xlane.f32.xlu0 %v2862
      %v2864 = vpop.xlane.xlu0 %2863
      %v2865 = vrcp.pop %v2861
      %v2866 = vrcp.pop %v2864
      %v2867 = vmul.f32 %v2856, %v2865
      %v2868 = vmul.f32 %v2858, %v2866
      %2869 = vrot.lane.b32.xlu0 %v2758, 120
      %v2870 = vpop.permute.xlu0 %2869
      %v2873 = vsel %vm546, %v2867, 0
      %v2876 = vsel %vm546, %v2868, 0
      %2878 = vmatprep.subr.mxu0 0.0
      %2879 = vmatpush1.msra.mxu0 %v2870
      %2880 = vmatprep.subr.mxu0 0.0
      %2881 = vmatpush1.msra.mxu0 0.0
      %2882 = vmatprep.subr.mxu0 0.0
      %2883 = vmatpush1.msra.mxu0 0.0
      %2884 = vmatprep.subr.mxu0 0.0
      %2885 = vmatpush1.msra.mxu0 0.0
      %2886 = vmatprep.subr.mxu0 0.0
      %2887 = vmatpush1.msra.mxu0 0.0
      %2888 = vmatprep.subr.mxu0 0.0
      %2889 = vmatpush1.msra.mxu0 0.0
      %2890 = vmatprep.subr.mxu0 0.0
      %2891 = vmatpush1.msra.mxu0 0.0
      %2892 = vmatprep.subr.mxu0 0.0
      %2893 = vmatpush1.msra.mxu0 0.0
      %2894 = vmatprep.subr.mxu0 0.0
      %2895 = vmatpush1.msra.mxu0 0.0
      %2896 = vmatprep.subr.mxu0 0.0
      %2897 = vmatpush1.msra.mxu0 0.0
      %2898 = vmatprep.subr.mxu0 0.0
      %2899 = vmatpush1.msra.mxu0 0.0
      %2900 = vmatprep.subr.mxu0 0.0
      %2901 = vmatpush1.msra.mxu0 0.0
      %2902 = vmatprep.subr.mxu0 0.0
      %2903 = vmatpush1.msra.mxu0 0.0
      %2904 = vmatprep.subr.mxu0 0.0
      %2905 = vmatpush1.msra.mxu0 0.0
      %2906 = vmatprep.subr.mxu0 0.0
      %2907 = vmatpush1.msra.mxu0 0.0
      %2908 = vmatprep.subr.mxu0 0.0
      %2909 = vmatpush1.msra.mxu0 0.0
      %2910 = vmatprep.subr.mxu0 0.0
      %2911 = vmatpush1.msra.mxu0 0.0
      %2912 = vmatprep.subr.mxu0 0.0
      %2913 = vmatpush1.msra.mxu0 0.0
      %2914 = vmatprep.subr.mxu0 0.0
      %2915 = vmatpush1.msra.mxu0 0.0
      %2916 = vmatprep.subr.mxu0 0.0
      %2917 = vmatpush1.msra.mxu0 0.0
      %2918 = vmatprep.subr.mxu0 0.0
      %2919 = vmatpush1.msra.mxu0 0.0
      %2920 = vmatprep.subr.mxu0 0.0
      %2921 = vmatpush1.msra.mxu0 0.0
      %2922 = vmatprep.subr.mxu0 0.0
      %2923 = vmatpush1.msra.mxu0 0.0
      %2924 = vmatprep.subr.mxu0 0.0
      %2925 = vmatpush1.msra.mxu0 0.0
      %2926 = vmatprep.subr.mxu0 0.0
      %2927 = vmatpush1.msra.mxu0 0.0
      %2928 = vmatprep.subr.mxu0 0.0
      %2929 = vmatpush1.msra.mxu0 0.0
      %2930 = vmatprep.subr.mxu0 0.0
      %2931 = vmatpush1.msra.mxu0 0.0
      %2932 = vmatprep.subr.mxu0 0.0
      %2933 = vmatpush1.msra.mxu0 0.0
      %2934 = vmatprep.subr.mxu0 0.0
      %2935 = vmatpush1.msra.mxu0 0.0
      %2936 = vmatprep.subr.mxu0 0.0
      %2937 = vmatpush1.msra.mxu0 0.0
      %2938 = vmatprep.subr.mxu0 0.0
      %2939 = vmatpush1.msra.mxu0 0.0
      %2940 = vmatprep.subr.mxu0 0.0
      %2941 = vmatpush1.msra.mxu0 0.0
      %2942 = vmatprep.mubr.f32.mxu0 0.0
      %2943 = vmatmul.mubr.f32.gmra.mrb[0].mxu0 %v2873
      %v2944 = vpop.f32.mrb[0].mxu0
      %v2945 = vadd.f32 0.0, %v2944
      %v2946 = vpop.f32.mrb[0].mxu0
      %2947 = vmatprep.mubr.f32.mxu0 0.0
      %2948 = vmatmul.mubr.f32.gmra.mrb[0].mxu0 %v2876
      %v2949 = vpop.f32.mrb[0].mxu0
      %v2950 = vadd.f32 0.0, %v2949
      %v2951 = vpop.f32.mrb[0].mxu0
      %2952 = vdwg.mxu0
      %2953 = vrot.lane.b32.xlu0 %v2674, 124
      %v2954 = vpop.permute.xlu0 %2953
      %2955 = vrot.lane.b32.xlu0 %v2679, 124
      %v2956 = vpop.permute.xlu0 %2955
      %2957 = vrot.lane.b32.xlu0 %v2758, 124
      %v2958 = vpop.permute.xlu0 %2957
      %v2959 = vsel %vm623, %v2954, 0
      %v2961 = vsel %vm623, %v2956, 0
      %v2963 = vsel %vm623, %v2958, 0
      %2965 = vmatprep.subr.mxu0 0.0
      %2966 = vmatpush1.xpose.msra.mxu0 %v2963
      %2967 = vmatprep.subr.mxu0 0.0
      %2968 = vmatpush1.xpose.msra.mxu0 0.0
      %2969 = vmatprep.subr.mxu0 0.0
      %2970 = vmatpush1.xpose.msra.mxu0 0.0
      %2971 = vmatprep.subr.mxu0 0.0
      %2972 = vmatpush1.xpose.msra.mxu0 0.0
      %2973 = vmatprep.subr.mxu0 0.0
      %2974 = vmatpush1.xpose.msra.mxu0 0.0
      %2975 = vmatprep.subr.mxu0 0.0
      %2976 = vmatpush1.xpose.msra.mxu0 0.0
      %2977 = vmatprep.subr.mxu0 0.0
      %2978 = vmatpush1.xpose.msra.mxu0 0.0
      %2979 = vmatprep.subr.mxu0 0.0
      %2980 = vmatpush1.xpose.msra.mxu0 0.0
      %2981 = vmatprep.subr.mxu0 0.0
      %2982 = vmatpush1.xpose.msra.mxu0 0.0
      %2983 = vmatprep.subr.mxu0 0.0
      %2984 = vmatpush1.xpose.msra.mxu0 0.0
      %2985 = vmatprep.subr.mxu0 0.0
      %2986 = vmatpush1.xpose.msra.mxu0 0.0
      %2987 = vmatprep.subr.mxu0 0.0
      %2988 = vmatpush1.xpose.msra.mxu0 0.0
      %2989 = vmatprep.subr.mxu0 0.0
      %2990 = vmatpush1.xpose.msra.mxu0 0.0
      %2991 = vmatprep.subr.mxu0 0.0
      %2992 = vmatpush1.xpose.msra.mxu0 0.0
      %2993 = vmatprep.subr.mxu0 0.0
      %2994 = vmatpush1.xpose.msra.mxu0 0.0
      %2995 = vmatprep.subr.mxu0 0.0
      %2996 = vmatpush1.xpose.msra.mxu0 0.0
      %2997 = vmatprep.subr.mxu0 0.0
      %2998 = vmatpush1.xpose.msra.mxu0 0.0
      %2999 = vmatprep.subr.mxu0 0.0
      %3000 = vmatpush1.xpose.msra.mxu0 0.0
      %3001 = vmatprep.subr.mxu0 0.0
      %3002 = vmatpush1.xpose.msra.mxu0 0.0
      %3003 = vmatprep.subr.mxu0 0.0
      %3004 = vmatpush1.xpose.msra.mxu0 0.0
      %3005 = vmatprep.subr.mxu0 0.0
      %3006 = vmatpush1.xpose.msra.mxu0 0.0
      %3007 = vmatprep.subr.mxu0 0.0
      %3008 = vmatpush1.xpose.msra.mxu0 0.0
      %3009 = vmatprep.subr.mxu0 0.0
      %3010 = vmatpush1.xpose.msra.mxu0 0.0
      %3011 = vmatprep.subr.mxu0 0.0
      %3012 = vmatpush1.xpose.msra.mxu0 0.0
      %3013 = vmatprep.subr.mxu0 0.0
      %3014 = vmatpush1.xpose.msra.mxu0 0.0
      %3015 = vmatprep.subr.mxu0 0.0
      %3016 = vmatpush1.xpose.msra.mxu0 0.0
      %3017 = vmatprep.subr.mxu0 0.0
      %3018 = vmatpush1.xpose.msra.mxu0 0.0
      %3019 = vmatprep.subr.mxu0 0.0
      %3020 = vmatpush1.xpose.msra.mxu0 0.0
      %3021 = vmatprep.subr.mxu0 0.0
      %3022 = vmatpush1.xpose.msra.mxu0 0.0
      %3023 = vmatprep.subr.mxu0 0.0
      %3024 = vmatpush1.xpose.msra.mxu0 0.0
      %3025 = vmatprep.subr.mxu0 0.0
      %3026 = vmatpush1.xpose.msra.mxu0 0.0
      %3027 = vmatprep.subr.mxu0 0.0
      %3028 = vmatpush1.xpose.msra.mxu0 0.0
      %3029 = vmatprep.mubr.f32.mxu0 0.0
      %3030 = vmatmul.mubr.f32.gmra.mrb[0].mxu0 %v2959
      %v3031 = vpop.f32.mrb[0].mxu0
      %v3032 = vadd.f32 0.0, %v3031
      %v3033 = vpop.f32.mrb[0].mxu0
      %3034 = vmatprep.mubr.f32.mxu0 0.0
      %3035 = vmatmul.mubr.f32.gmra.mrb[0].mxu0 %v2961
      %v3036 = vpop.f32.mrb[0].mxu0
      %v3037 = vadd.f32 0.0, %v3036
      %v3038 = vpop.f32.mrb[0].mxu0
      %3039 = vdwg.mxu0
      %v3040 = vmul.f32 %v3032, 0.5
      %v3041 = vmul.f32 %v3037, 0.5
      %v3042 = vsel %vm546, %v3040, -inf
      %3043 = vmax.xlane.f32.xlu0 %v3042
      %v3044 = vpop.xlane.xlu0 %3043
      %v3045 = vsel %vm546, %v3041, -inf
      %3046 = vmax.xlane.f32.xlu0 %v3045
      %v3047 = vpop.xlane.xlu0 %3046
      %v3048 = vsub.f32 %v3040, %v3044
      %v3049 = vsub.f32 %v3041, %v3047
      %v3050 = vmul.f32 %v3048, 1.442695
      %v3051 = vpow.pop %v3050
      %v3052 = vmul.f32 %v3049, 1.442695
      %v3053 = vpow.pop %v3052
      %v3054 = vsel %vm546, %v3051, 0.0
      %3055 = vadd.xlane.f32.xlu0 %v3054
      %v3056 = vpop.xlane.xlu0 %3055
      %v3057 = vsel %vm546, %v3053, 0.0
      %3058 = vadd.xlane.f32.xlu0 %v3057
      %v3059 = vpop.xlane.xlu0 %3058
      %v3060 = vrcp.pop %v3056
      %v3061 = vrcp.pop %v3059
      %v3062 = vmul.f32 %v3051, %v3060
      %v3063 = vmul.f32 %v3053, %v3061
      %3064 = vrot.lane.b32.xlu0 %v2758, 116
      %v3065 = vpop.permute.xlu0 %3064
      %v3068 = vsel %vm546, %v3062, 0
      %v3071 = vsel %vm546, %v3063, 0
      %3073 = vmatprep.subr.mxu0 0.0
      %3074 = vmatpush1.msra.mxu0 %v3065
      %3075 = vmatprep.subr.mxu0 0.0
      %3076 = vmatpush1.msra.mxu0 0.0
      %3077 = vmatprep.subr.mxu0 0.0
      %3078 = vmatpush1.msra.mxu0 0.0
      %3079 = vmatprep.subr.mxu0 0.0
      %3080 = vmatpush1.msra.mxu0 0.0
      %3081 = vmatprep.subr.mxu0 0.0
      %3082 = vmatpush1.msra.mxu0 0.0
      %3083 = vmatprep.subr.mxu0 0.0
      %3084 = vmatpush1.msra.mxu0 0.0
      %3085 = vmatprep.subr.mxu0 0.0
      %3086 = vmatpush1.msra.mxu0 0.0
      %3087 = vmatprep.subr.mxu0 0.0
      %3088 = vmatpush1.msra.mxu0 0.0
      %3089 = vmatprep.subr.mxu0 0.0
      %3090 = vmatpush1.msra.mxu0 0.0
      %3091 = vmatprep.subr.mxu0 0.0
      %3092 = vmatpush1.msra.mxu0 0.0
      %3093 = vmatprep.subr.mxu0 0.0
      %3094 = vmatpush1.msra.mxu0 0.0
      %3095 = vmatprep.subr.mxu0 0.0
      %3096 = vmatpush1.msra.mxu0 0.0
      %3097 = vmatprep.subr.mxu0 0.0
      %3098 = vmatpush1.msra.mxu0 0.0
      %3099 = vmatprep.subr.mxu0 0.0
      %3100 = vmatpush1.msra.mxu0 0.0
      %3101 = vmatprep.subr.mxu0 0.0
      %3102 = vmatpush1.msra.mxu0 0.0
      %3103 = vmatprep.subr.mxu0 0.0
      %3104 = vmatpush1.msra.mxu0 0.0
      %3105 = vmatprep.subr.mxu0 0.0
      %3106 = vmatpush1.msra.mxu0 0.0
      %3107 = vmatprep.subr.mxu0 0.0
      %3108 = vmatpush1.msra.mxu0 0.0
      %3109 = vmatprep.subr.mxu0 0.0
      %3110 = vmatpush1.msra.mxu0 0.0
      %3111 = vmatprep.subr.mxu0 0.0
      %3112 = vmatpush1.msra.mxu0 0.0
      %3113 = vmatprep.subr.mxu0 0.0
      %3114 = vmatpush1.msra.mxu0 0.0
      %3115 = vmatprep.subr.mxu0 0.0
      %3116 = vmatpush1.msra.mxu0 0.0
      %3117 = vmatprep.subr.mxu0 0.0
      %3118 = vmatpush1.msra.mxu0 0.0
      %3119 = vmatprep.subr.mxu0 0.0
      %3120 = vmatpush1.msra.mxu0 0.0
      %3121 = vmatprep.subr.mxu0 0.0
      %3122 = vmatpush1.msra.mxu0 0.0
      %3123 = vmatprep.subr.mxu0 0.0
      %3124 = vmatpush1.msra.mxu0 0.0
      %3125 = vmatprep.subr.mxu0 0.0
      %3126 = vmatpush1.msra.mxu0 0.0
      %3127 = vmatprep.subr.mxu0 0.0
      %3128 = vmatpush1.msra.mxu0 0.0
      %3129 = vmatprep.subr.mxu0 0.0
      %3130 = vmatpush1.msra.mxu0 0.0
      %3131 = vmatprep.subr.mxu0 0.0
      %3132 = vmatpush1.msra.mxu0 0.0
      %3133 = vmatprep.subr.mxu0 0.0
      %3134 = vmatpush1.msra.mxu0 0.0
      %3135 = vmatprep.subr.mxu0 0.0
      %3136 = vmatpush1.msra.mxu0 0.0
      %3137 = vmatprep.mubr.f32.mxu0 0.0
      %3138 = vmatmul.mubr.f32.gmra.mrb[0].mxu0 %v3068
      %v3139 = vpop.f32.mrb[0].mxu0
      %v3140 = vadd.f32 0.0, %v3139
      %v3141 = vpop.f32.mrb[0].mxu0
      %3142 = vmatprep.mubr.f32.mxu0 0.0
      %3143 = vmatmul.mubr.f32.gmra.mrb[0].mxu0 %v3071
      %v3144 = vpop.f32.mrb[0].mxu0
      %v3145 = vadd.f32 0.0, %v3144
      %v3146 = vpop.f32.mrb[0].mxu0
      %3147 = vdwg.mxu0
      %3150 = vrot.lane.b32.xlu0 %v3140, 4
      %v3151 = vpop.permute.xlu0 %3150
      %3152 = vrot.lane.b32.xlu0 %v3145, 4
      %v3153 = vpop.permute.xlu0 %3152
      %v3156 = vsel %vm623, %v2945, %v3151
      %v3157 = vsel %vm623, %v2950, %v3153
      %v3158 = vld [vmem:[%s2 + $0x1a8] sm:$0xff]
      %v3159 = vld [vmem:[%s2 + $0x1b0] sm:$0x1]
      %v3160 = vlaneseq
      %v3161 = vshrl.u32 %v3160, 7
      %v3162 = vsub.s32 0, %v3161
      %v3163 = vrot.slane %v3159, %v3162
      %v3165 = vsel %vm546, %v3156, 0
      %v3168 = vsel %vm546, %v3157, 0
      %3170 = vmatprep.subr.mxu0 0.0
      %3171 = vmatpush1.msra.mxu0 %v3158
      %3172 = vmatprep.subr.mxu0 0.0
      %3173 = vmatpush1.msra.mxu0 0.0
      %3174 = vmatprep.subr.mxu0 0.0
      %3175 = vmatpush1.msra.mxu0 0.0
      %3176 = vmatprep.subr.mxu0 0.0
      %3177 = vmatpush1.msra.mxu0 0.0
      %3178 = vmatprep.subr.mxu0 0.0
      %3179 = vmatpush1.msra.mxu0 0.0
      %3180 = vmatprep.subr.mxu0 0.0
      %3181 = vmatpush1.msra.mxu0 0.0
      %3182 = vmatprep.subr.mxu0 0.0
      %3183 = vmatpush1.msra.mxu0 0.0
      %3184 = vmatprep.subr.mxu0 0.0
      %3185 = vmatpush1.msra.mxu0 0.0
      %3186 = vmatprep.subr.mxu0 0.0
      %3187 = vmatpush1.msra.mxu0 0.0
      %3188 = vmatprep.subr.mxu0 0.0
      %3189 = vmatpush1.msra.mxu0 0.0
      %3190 = vmatprep.subr.mxu0 0.0
      %3191 = vmatpush1.msra.mxu0 0.0
      %3192 = vmatprep.subr.mxu0 0.0
      %3193 = vmatpush1.msra.mxu0 0.0
      %3194 = vmatprep.subr.mxu0 0.0
      %3195 = vmatpush1.msra.mxu0 0.0
      %3196 = vmatprep.subr.mxu0 0.0
      %3197 = vmatpush1.msra.mxu0 0.0
      %3198 = vmatprep.subr.mxu0 0.0
      %3199 = vmatpush1.msra.mxu0 0.0
      %3200 = vmatprep.subr.mxu0 0.0
      %3201 = vmatpush1.msra.mxu0 0.0
      %3202 = vmatprep.subr.mxu0 0.0
      %3203 = vmatpush1.msra.mxu0 0.0
      %3204 = vmatprep.subr.mxu0 0.0
      %3205 = vmatpush1.msra.mxu0 0.0
      %3206 = vmatprep.subr.mxu0 0.0
      %3207 = vmatpush1.msra.mxu0 0.0
      %3208 = vmatprep.subr.mxu0 0.0
      %3209 = vmatpush1.msra.mxu0 0.0
      %3210 = vmatprep.subr.mxu0 0.0
      %3211 = vmatpush1.msra.mxu0 0.0
      %3212 = vmatprep.subr.mxu0 0.0
      %3213 = vmatpush1.msra.mxu0 0.0
      %3214 = vmatprep.subr.mxu0 0.0
      %3215 = vmatpush1.msra.mxu0 0.0
      %3216 = vmatprep.subr.mxu0 0.0
      %3217 = vmatpush1.msra.mxu0 0.0
      %3218 = vmatprep.subr.mxu0 0.0
      %3219 = vmatpush1.msra.mxu0 0.0
      %3220 = vmatprep.subr.mxu0 0.0
      %3221 = vmatpush1.msra.mxu0 0.0
      %3222 = vmatprep.subr.mxu0 0.0
      %3223 = vmatpush1.msra.mxu0 0.0
      %3224 = vmatprep.subr.mxu0 0.0
      %3225 = vmatpush1.msra.mxu0 0.0
      %3226 = vmatprep.subr.mxu0 0.0
      %3227 = vmatpush1.msra.mxu0 0.0
      %3228 = vmatprep.subr.mxu0 0.0
      %3229 = vmatpush1.msra.mxu0 0.0
      %3230 = vmatprep.subr.mxu0 0.0
      %3231 = vmatpush1.msra.mxu0 0.0
      %3232 = vmatprep.subr.mxu0 0.0
      %3233 = vmatpush1.msra.mxu0 0.0
      %3234 = vmatprep.mubr.f32.mxu0 0.0
      %3235 = vmatmul.mubr.f32.gmra.mrb[0].mxu0 %v3165
      %v3236 = vpop.f32.mrb[0].mxu0
      %v3237 = vadd.f32 %v3163, %v3236
      %v3238 = vpop.f32.mrb[0].mxu0
      %3239 = vmatprep.mubr.f32.mxu0 0.0
      %3240 = vmatmul.mubr.f32.gmra.mrb[0].mxu0 %v3168
      %v3241 = vpop.f32.mrb[0].mxu0
      %v3242 = vadd.f32 %v3163, %v3241
      %v3243 = vpop.f32.mrb[0].mxu0
      %3244 = vdwg.mxu0
      %v3245 = vadd.f32 %v2593, %v3237
      %v3246 = vadd.f32 %v2594, %v3242
      %v3247 = vsel %vm546, %v3245, 0.0
      %3248 = vadd.xlane.f32.xlu0 %v3247
      %v3249 = vpop.xlane.xlu0 %3248
      %v3250 = vsel %vm546, %v3246, 0.0
      %3251 = vadd.xlane.f32.xlu0 %v3250
      %v3252 = vpop.xlane.xlu0 %3251
      %v3253 = vmul.f32 %v3249, %v1044
      %v3254 = vmul.f32 %v3252, %v1044
      %v3255 = vsub.f32 %v3245, %v3253
      %v3256 = vsub.f32 %v3246, %v3254
      %v3257 = vmul.f32 %v3255, %v3255
      %v3258 = vmul.f32 %v3256, %v3256
      %v3259 = vsel %vm546, %v3257, 0.0
      %3260 = vadd.xlane.f32.xlu0 %v3259
      %v3261 = vpop.xlane.xlu0 %3260
      %v3262 = vsel %vm546, %v3258, 0.0
      %3263 = vadd.xlane.f32.xlu0 %v3262
      %v3264 = vpop.xlane.xlu0 %3263
      %v3265 = vmul.f32 %v3261, %v1044
      %v3266 = vmul.f32 %v3264, %v1044
      %v3267 = vadd.f32 %v3265, 1e-05
      %v3268 = vadd.f32 %v3266, 1e-05
      %v3269 = vrsqrt.pop %v3267
      %v3270 = vrsqrt.pop %v3268
      %v3271 = vmul.f32 %v3255, %v3269
      %v3272 = vmul.f32 %v3256, %v3270
      %v3273 = vld [vmem:[%s2 + $0x1b8] sm:$0x1]
      %v3274 = vlaneseq
      %v3275 = vshrl.u32 %v3274, 7
      %v3276 = vsub.s32 0, %v3275
      %v3277 = vrot.slane %v3273, %v3276
      %v3278 = vmul.f32 %v3271, %v3277
      %v3279 = vmul.f32 %v3272, %v3277
      %v3280 = vld [vmem:[%s2 + $0x1c0] sm:$0x1]
      %v3281 = vlaneseq
      %v3282 = vshrl.u32 %v3281, 7
      %v3283 = vsub.s32 0, %v3282
      %v3284 = vrot.slane %v3280, %v3283
      %v3285 = vadd.f32 %v3278, %v3284
      %v3286 = vadd.f32 %v3279, %v3284
      %v3287 = vld [vmem:[%s2 + $0x1c8] sm:$0xff]
      %v3288 = vld [vmem:[%s2 + $0x1d0] sm:$0x1]
      %v3289 = vlaneseq
      %v3290 = vshrl.u32 %v3289, 7
      %v3291 = vsub.s32 0, %v3290
      %v3292 = vrot.slane %v3288, %v3291
      %v3294 = vsel %vm546, %v3285, 0
      %v3297 = vsel %vm546, %v3286, 0
      %3299 = vmatprep.subr.mxu0 0.0
      %3300 = vmatpush1.msra.mxu0 %v3287
      %3301 = vmatprep.subr.mxu0 0.0
      %3302 = vmatpush1.msra.mxu0 0.0
      %3303 = vmatprep.subr.mxu0 0.0
      %3304 = vmatpush1.msra.mxu0 0.0
      %3305 = vmatprep.subr.mxu0 0.0
      %3306 = vmatpush1.msra.mxu0 0.0
      %3307 = vmatprep.subr.mxu0 0.0
      %3308 = vmatpush1.msra.mxu0 0.0
      %3309 = vmatprep.subr.mxu0 0.0
      %3310 = vmatpush1.msra.mxu0 0.0
      %3311 = vmatprep.subr.mxu0 0.0
      %3312 = vmatpush1.msra.mxu0 0.0
      %3313 = vmatprep.subr.mxu0 0.0
      %3314 = vmatpush1.msra.mxu0 0.0
      %3315 = vmatprep.subr.mxu0 0.0
      %3316 = vmatpush1.msra.mxu0 0.0
      %3317 = vmatprep.subr.mxu0 0.0
      %3318 = vmatpush1.msra.mxu0 0.0
      %3319 = vmatprep.subr.mxu0 0.0
      %3320 = vmatpush1.msra.mxu0 0.0
      %3321 = vmatprep.subr.mxu0 0.0
      %3322 = vmatpush1.msra.mxu0 0.0
      %3323 = vmatprep.subr.mxu0 0.0
      %3324 = vmatpush1.msra.mxu0 0.0
      %3325 = vmatprep.subr.mxu0 0.0
      %3326 = vmatpush1.msra.mxu0 0.0
      %3327 = vmatprep.subr.mxu0 0.0
      %3328 = vmatpush1.msra.mxu0 0.0
      %3329 = vmatprep.subr.mxu0 0.0
      %3330 = vmatpush1.msra.mxu0 0.0
      %3331 = vmatprep.subr.mxu0 0.0
      %3332 = vmatpush1.msra.mxu0 0.0
      %3333 = vmatprep.subr.mxu0 0.0
      %3334 = vmatpush1.msra.mxu0 0.0
      %3335 = vmatprep.subr.mxu0 0.0
      %3336 = vmatpush1.msra.mxu0 0.0
      %3337 = vmatprep.subr.mxu0 0.0
      %3338 = vmatpush1.msra.mxu0 0.0
      %3339 = vmatprep.subr.mxu0 0.0
      %3340 = vmatpush1.msra.mxu0 0.0
      %3341 = vmatprep.subr.mxu0 0.0
      %3342 = vmatpush1.msra.mxu0 0.0
      %3343 = vmatprep.subr.mxu0 0.0
      %3344 = vmatpush1.msra.mxu0 0.0
      %3345 = vmatprep.subr.mxu0 0.0
      %3346 = vmatpush1.msra.mxu0 0.0
      %3347 = vmatprep.subr.mxu0 0.0
      %3348 = vmatpush1.msra.mxu0 0.0
      %3349 = vmatprep.subr.mxu0 0.0
      %3350 = vmatpush1.msra.mxu0 0.0
      %3351 = vmatprep.subr.mxu0 0.0
      %3352 = vmatpush1.msra.mxu0 0.0
      %3353 = vmatprep.subr.mxu0 0.0
      %3354 = vmatpush1.msra.mxu0 0.0
      %3355 = vmatprep.subr.mxu0 0.0
      %3356 = vmatpush1.msra.mxu0 0.0
      %3357 = vmatprep.subr.mxu0 0.0
      %3358 = vmatpush1.msra.mxu0 0.0
      %3359 = vmatprep.subr.mxu0 0.0
      %3360 = vmatpush1.msra.mxu0 0.0
      %3361 = vmatprep.subr.mxu0 0.0
      %3362 = vmatpush1.msra.mxu0 0.0
      %3363 = vmatprep.mubr.f32.mxu0 0.0
      %3364 = vmatmul.mubr.f32.gmra.mrb[0].mxu0 %v3294
      %v3365 = vpop.f32.mrb[0].mxu0
      %v3366 = vadd.f32 %v3292, %v3365
      %v3367 = vpop.f32.mrb[0].mxu0
      %3368 = vmatprep.mubr.f32.mxu0 0.0
      %3369 = vmatmul.mubr.f32.gmra.mrb[0].mxu0 %v3297
      %v3370 = vpop.f32.mrb[0].mxu0
      %v3371 = vadd.f32 %v3292, %v3370
      %v3372 = vpop.f32.mrb[0].mxu0
      %3373 = vdwg.mxu0
      %v3374 = vmax.f32 %v3366, 0.0
      %v3375 = vmax.f32 %v3371, 0.0
      %v3376 = vld [vmem:[%s2 + $0x1d8] sm:$0xff]
      %v3377 = vld [vmem:[%s2 + $0x1e0] sm:$0xff]
      %v3378 = vld [vmem:[%s2 + $0x1e8] sm:$0x1]
      %v3379 = vlaneseq
      %v3380 = vshrl.u32 %v3379, 7
      %v3381 = vsub.s32 0, %v3380
      %v3382 = vrot.slane %v3378, %v3381
      %v3384 = vsel %vm283, %v3374, 0
      %v3387 = vsel %vm283, %v3375, 0
      %3389 = vmatprep.subr.mxu0 0.0
      %3390 = vmatpush1.msra.mxu0 %v3376
      %3391 = vmatprep.subr.mxu0 0.0
      %3392 = vmatpush1.msra.mxu0 %v3377
      %3393 = vmatprep.subr.mxu0 0.0
      %3394 = vmatpush1.msra.mxu0 0.0
      %3395 = vmatprep.subr.mxu0 0.0
      %3396 = vmatpush1.msra.mxu0 0.0
      %3397 = vmatprep.subr.mxu0 0.0
      %3398 = vmatpush1.msra.mxu0 0.0
      %3399 = vmatprep.subr.mxu0 0.0
      %3400 = vmatpush1.msra.mxu0 0.0
      %3401 = vmatprep.subr.mxu0 0.0
      %3402 = vmatpush1.msra.mxu0 0.0
      %3403 = vmatprep.subr.mxu0 0.0
      %3404 = vmatpush1.msra.mxu0 0.0
      %3405 = vmatprep.subr.mxu0 0.0
      %3406 = vmatpush1.msra.mxu0 0.0
      %3407 = vmatprep.subr.mxu0 0.0
      %3408 = vmatpush1.msra.mxu0 0.0
      %3409 = vmatprep.subr.mxu0 0.0
      %3410 = vmatpush1.msra.mxu0 0.0
      %3411 = vmatprep.subr.mxu0 0.0
      %3412 = vmatpush1.msra.mxu0 0.0
      %3413 = vmatprep.subr.mxu0 0.0
      %3414 = vmatpush1.msra.mxu0 0.0
      %3415 = vmatprep.subr.mxu0 0.0
      %3416 = vmatpush1.msra.mxu0 0.0
      %3417 = vmatprep.subr.mxu0 0.0
      %3418 = vmatpush1.msra.mxu0 0.0
      %3419 = vmatprep.subr.mxu0 0.0
      %3420 = vmatpush1.msra.mxu0 0.0
      %3421 = vmatprep.subr.mxu0 0.0
      %3422 = vmatpush1.msra.mxu0 0.0
      %3423 = vmatprep.subr.mxu0 0.0
      %3424 = vmatpush1.msra.mxu0 0.0
      %3425 = vmatprep.subr.mxu0 0.0
      %3426 = vmatpush1.msra.mxu0 0.0
      %3427 = vmatprep.subr.mxu0 0.0
      %3428 = vmatpush1.msra.mxu0 0.0
      %3429 = vmatprep.subr.mxu0 0.0
      %3430 = vmatpush1.msra.mxu0 0.0
      %3431 = vmatprep.subr.mxu0 0.0
      %3432 = vmatpush1.msra.mxu0 0.0
      %3433 = vmatprep.subr.mxu0 0.0
      %3434 = vmatpush1.msra.mxu0 0.0
      %3435 = vmatprep.subr.mxu0 0.0
      %3436 = vmatpush1.msra.mxu0 0.0
      %3437 = vmatprep.subr.mxu0 0.0
      %3438 = vmatpush1.msra.mxu0 0.0
      %3439 = vmatprep.subr.mxu0 0.0
      %3440 = vmatpush1.msra.mxu0 0.0
      %3441 = vmatprep.subr.mxu0 0.0
      %3442 = vmatpush1.msra.mxu0 0.0
      %3443 = vmatprep.subr.mxu0 0.0
      %3444 = vmatpush1.msra.mxu0 0.0
      %3445 = vmatprep.subr.mxu0 0.0
      %3446 = vmatpush1.msra.mxu0 0.0
      %3447 = vmatprep.subr.mxu0 0.0
      %3448 = vmatpush1.msra.mxu0 0.0
      %3449 = vmatprep.subr.mxu0 0.0
      %3450 = vmatpush1.msra.mxu0 0.0
      %3451 = vmatprep.subr.mxu0 0.0
      %3452 = vmatpush1.msra.mxu0 0.0
      %3453 = vmatprep.mubr.f32.mxu0 0.0
      %3454 = vmatmul.mubr.f32.gmra.mrb[0].mxu0 %v3384
      %v3455 = vpop.f32.mrb[0].mxu0
      %v3456 = vadd.f32 %v3382, %v3455
      %v3457 = vpop.f32.mrb[0].mxu0
      %3458 = vmatprep.mubr.f32.mxu0 0.0
      %3459 = vmatmul.mubr.f32.gmra.mrb[0].mxu0 %v3387
      %v3460 = vpop.f32.mrb[0].mxu0
      %v3461 = vadd.f32 %v3382, %v3460
      %v3462 = vpop.f32.mrb[0].mxu0
      %3463 = vdwg.mxu0
      %v3464 = vadd.f32 %v3285, %v3456
      %v3465 = vadd.f32 %v3286, %v3461
      %v3466 = vsel %vm546, %v3464, 0.0
      %3467 = vadd.xlane.f32.xlu0 %v3466
      %v3468 = vpop.xlane.xlu0 %3467
      %v3469 = vsel %vm546, %v3465, 0.0
      %3470 = vadd.xlane.f32.xlu0 %v3469
      %v3471 = vpop.xlane.xlu0 %3470
      %v3472 = vmul.f32 %v3468, %v1044
      %v3473 = vmul.f32 %v3471, %v1044
      %v3474 = vsub.f32 %v3464, %v3472
      %v3475 = vsub.f32 %v3465, %v3473
      %v3476 = vmul.f32 %v3474, %v3474
      %v3477 = vmul.f32 %v3475, %v3475
      %v3478 = vsel %vm546, %v3476, 0.0
      %3479 = vadd.xlane.f32.xlu0 %v3478
      %v3480 = vpop.xlane.xlu0 %3479
      %v3481 = vsel %vm546, %v3477, 0.0
      %3482 = vadd.xlane.f32.xlu0 %v3481
      %v3483 = vpop.xlane.xlu0 %3482
      %v3484 = vmul.f32 %v3480, %v1044
      %v3485 = vmul.f32 %v3483, %v1044
      %v3486 = vadd.f32 %v3484, 1e-05
      %v3487 = vadd.f32 %v3485, 1e-05
      %v3488 = vrsqrt.pop %v3486
      %v3489 = vrsqrt.pop %v3487
      %v3490 = vmul.f32 %v3474, %v3488
      %v3491 = vmul.f32 %v3475, %v3489
      %v3492 = vld [vmem:[%s2 + $0x1f0] sm:$0x1]
      %v3493 = vlaneseq
      %v3494 = vshrl.u32 %v3493, 7
      %v3495 = vsub.s32 0, %v3494
      %v3496 = vrot.slane %v3492, %v3495
      %v3497 = vmul.f32 %v3490, %v3496
      %v3498 = vmul.f32 %v3491, %v3496
      %v3499 = vld [vmem:[%s2 + $0x1f8] sm:$0x1]
      %v3500 = vlaneseq
      %v3501 = vshrl.u32 %v3500, 7
      %v3502 = vsub.s32 0, %v3501
      %v3503 = vrot.slane %v3499, %v3502
      %v3504 = vadd.f32 %v3497, %v3503
      %v3505 = vadd.f32 %v3498, %v3503
      %v3506 = vld [vmem:[%s2 + $0x200] sm:$0xff]
      %v3507 = vld [vmem:[%s2 + $0x208] sm:$0x1]
      %v3508 = vlaneseq
      %v3509 = vshrl.u32 %v3508, 7
      %v3510 = vsub.s32 0, %v3509
      %v3511 = vrot.slane %v3507, %v3510
      %v3513 = vsel %vm546, %v3504, 0
      %v3516 = vsel %vm546, %v3505, 0
      %3518 = vmatprep.subr.mxu0 0.0
      %3519 = vmatpush1.msra.mxu0 %v3506
      %3520 = vmatprep.subr.mxu0 0.0
      %3521 = vmatpush1.msra.mxu0 0.0
      %3522 = vmatprep.subr.mxu0 0.0
      %3523 = vmatpush1.msra.mxu0 0.0
      %3524 = vmatprep.subr.mxu0 0.0
      %3525 = vmatpush1.msra.mxu0 0.0
      %3526 = vmatprep.subr.mxu0 0.0
      %3527 = vmatpush1.msra.mxu0 0.0
      %3528 = vmatprep.subr.mxu0 0.0
      %3529 = vmatpush1.msra.mxu0 0.0
      %3530 = vmatprep.subr.mxu0 0.0
      %3531 = vmatpush1.msra.mxu0 0.0
      %3532 = vmatprep.subr.mxu0 0.0
      %3533 = vmatpush1.msra.mxu0 0.0
      %3534 = vmatprep.subr.mxu0 0.0
      %3535 = vmatpush1.msra.mxu0 0.0
      %3536 = vmatprep.subr.mxu0 0.0
      %3537 = vmatpush1.msra.mxu0 0.0
      %3538 = vmatprep.subr.mxu0 0.0
      %3539 = vmatpush1.msra.mxu0 0.0
      %3540 = vmatprep.subr.mxu0 0.0
      %3541 = vmatpush1.msra.mxu0 0.0
      %3542 = vmatprep.subr.mxu0 0.0
      %3543 = vmatpush1.msra.mxu0 0.0
      %3544 = vmatprep.subr.mxu0 0.0
      %3545 = vmatpush1.msra.mxu0 0.0
      %3546 = vmatprep.subr.mxu0 0.0
      %3547 = vmatpush1.msra.mxu0 0.0
      %3548 = vmatprep.subr.mxu0 0.0
      %3549 = vmatpush1.msra.mxu0 0.0
      %3550 = vmatprep.subr.mxu0 0.0
      %3551 = vmatpush1.msra.mxu0 0.0
      %3552 = vmatprep.subr.mxu0 0.0
      %3553 = vmatpush1.msra.mxu0 0.0
      %3554 = vmatprep.subr.mxu0 0.0
      %3555 = vmatpush1.msra.mxu0 0.0
      %3556 = vmatprep.subr.mxu0 0.0
      %3557 = vmatpush1.msra.mxu0 0.0
      %3558 = vmatprep.subr.mxu0 0.0
      %3559 = vmatpush1.msra.mxu0 0.0
      %3560 = vmatprep.subr.mxu0 0.0
      %3561 = vmatpush1.msra.mxu0 0.0
      %3562 = vmatprep.subr.mxu0 0.0
      %3563 = vmatpush1.msra.mxu0 0.0
      %3564 = vmatprep.subr.mxu0 0.0
      %3565 = vmatpush1.msra.mxu0 0.0
      %3566 = vmatprep.subr.mxu0 0.0
      %3567 = vmatpush1.msra.mxu0 0.0
      %3568 = vmatprep.subr.mxu0 0.0
      %3569 = vmatpush1.msra.mxu0 0.0
      %3570 = vmatprep.subr.mxu0 0.0
      %3571 = vmatpush1.msra.mxu0 0.0
      %3572 = vmatprep.subr.mxu0 0.0
      %3573 = vmatpush1.msra.mxu0 0.0
      %3574 = vmatprep.subr.mxu0 0.0
      %3575 = vmatpush1.msra.mxu0 0.0
      %3576 = vmatprep.subr.mxu0 0.0
      %3577 = vmatpush1.msra.mxu0 0.0
      %3578 = vmatprep.subr.mxu0 0.0
      %3579 = vmatpush1.msra.mxu0 0.0
      %3580 = vmatprep.subr.mxu0 0.0
      %3581 = vmatpush1.msra.mxu0 0.0
      %3582 = vmatprep.mubr.f32.mxu0 0.0
      %3583 = vmatmul.mubr.f32.gmra.mrb[0].mxu0 %v3513
      %v3584 = vpop.f32.mrb[0].mxu0
      %v3585 = vadd.f32 %v3511, %v3584
      %v3586 = vpop.f32.mrb[0].mxu0
      %3587 = vmatprep.mubr.f32.mxu0 0.0
      %3588 = vmatmul.mubr.f32.gmra.mrb[0].mxu0 %v3516
      %v3589 = vpop.f32.mrb[0].mxu0
      %v3590 = vadd.f32 %v3511, %v3589
      %v3591 = vpop.f32.mrb[0].mxu0
      %3592 = vdwg.mxu0
      %3595 = vrot.lane.b32.xlu0 %v3585, 120
      %v3596 = vpop.permute.xlu0 %3595
      %3597 = vrot.lane.b32.xlu0 %v3590, 120
      %v3598 = vpop.permute.xlu0 %3597
      %v3599 = vsel %vm623, %v3585, 0
      %v3601 = vsel %vm623, %v3590, 0
      %v3603 = vsel %vm623, %v3596, 0
      %v3605 = vsel %vm623, %v3598, 0
      %3607 = vmatprep.subr.mxu0 0.0
      %3608 = vmatpush1.xpose.msra.mxu0 %v3603
      %3609 = vmatprep.subr.mxu0 0.0
      %3610 = vmatpush1.xpose.msra.mxu0 %v3605
      %3611 = vmatprep.subr.mxu0 0.0
      %3612 = vmatpush1.xpose.msra.mxu0 0.0
      %3613 = vmatprep.subr.mxu0 0.0
      %3614 = vmatpush1.xpose.msra.mxu0 0.0
      %3615 = vmatprep.subr.mxu0 0.0
      %3616 = vmatpush1.xpose.msra.mxu0 0.0
      %3617 = vmatprep.subr.mxu0 0.0
      %3618 = vmatpush1.xpose.msra.mxu0 0.0
      %3619 = vmatprep.subr.mxu0 0.0
      %3620 = vmatpush1.xpose.msra.mxu0 0.0
      %3621 = vmatprep.subr.mxu0 0.0
      %3622 = vmatpush1.xpose.msra.mxu0 0.0
      %3623 = vmatprep.subr.mxu0 0.0
      %3624 = vmatpush1.xpose.msra.mxu0 0.0
      %3625 = vmatprep.subr.mxu0 0.0
      %3626 = vmatpush1.xpose.msra.mxu0 0.0
      %3627 = vmatprep.subr.mxu0 0.0
      %3628 = vmatpush1.xpose.msra.mxu0 0.0
      %3629 = vmatprep.subr.mxu0 0.0
      %3630 = vmatpush1.xpose.msra.mxu0 0.0
      %3631 = vmatprep.subr.mxu0 0.0
      %3632 = vmatpush1.xpose.msra.mxu0 0.0
      %3633 = vmatprep.subr.mxu0 0.0
      %3634 = vmatpush1.xpose.msra.mxu0 0.0
      %3635 = vmatprep.subr.mxu0 0.0
      %3636 = vmatpush1.xpose.msra.mxu0 0.0
      %3637 = vmatprep.subr.mxu0 0.0
      %3638 = vmatpush1.xpose.msra.mxu0 0.0
      %3639 = vmatprep.subr.mxu0 0.0
      %3640 = vmatpush1.xpose.msra.mxu0 0.0
      %3641 = vmatprep.subr.mxu0 0.0
      %3642 = vmatpush1.xpose.msra.mxu0 0.0
      %3643 = vmatprep.subr.mxu0 0.0
      %3644 = vmatpush1.xpose.msra.mxu0 0.0
      %3645 = vmatprep.subr.mxu0 0.0
      %3646 = vmatpush1.xpose.msra.mxu0 0.0
      %3647 = vmatprep.subr.mxu0 0.0
      %3648 = vmatpush1.xpose.msra.mxu0 0.0
      %3649 = vmatprep.subr.mxu0 0.0
      %3650 = vmatpush1.xpose.msra.mxu0 0.0
      %3651 = vmatprep.subr.mxu0 0.0
      %3652 = vmatpush1.xpose.msra.mxu0 0.0
      %3653 = vmatprep.subr.mxu0 0.0
      %3654 = vmatpush1.xpose.msra.mxu0 0.0
      %3655 = vmatprep.subr.mxu0 0.0
      %3656 = vmatpush1.xpose.msra.mxu0 0.0
      %3657 = vmatprep.subr.mxu0 0.0
      %3658 = vmatpush1.xpose.msra.mxu0 0.0
      %3659 = vmatprep.subr.mxu0 0.0
      %3660 = vmatpush1.xpose.msra.mxu0 0.0
      %3661 = vmatprep.subr.mxu0 0.0
      %3662 = vmatpush1.xpose.msra.mxu0 0.0
      %3663 = vmatprep.subr.mxu0 0.0
      %3664 = vmatpush1.xpose.msra.mxu0 0.0
      %3665 = vmatprep.subr.mxu0 0.0
      %3666 = vmatpush1.xpose.msra.mxu0 0.0
      %3667 = vmatprep.subr.mxu0 0.0
      %3668 = vmatpush1.xpose.msra.mxu0 0.0
      %3669 = vmatprep.subr.mxu0 0.0
      %3670 = vmatpush1.xpose.msra.mxu0 0.0
      %3671 = vmatprep.mubr.f32.mxu0 0.0
      %3672 = vmatmul.mubr.f32.gmra.mrb[0].mxu0 %v3599
      %v3673 = vpop.f32.mrb[0].mxu0
      %v3674 = vadd.f32 0.0, %v3673
      %v3675 = vpop.f32.mrb[0].mxu0
      %3676 = vmatprep.mubr.f32.mxu0 0.0
      %3677 = vmatmul.mubr.f32.gmra.mrb[0].mxu0 %v3601
      %v3678 = vpop.f32.mrb[0].mxu0
      %v3679 = vadd.f32 0.0, %v3678
      %v3680 = vpop.f32.mrb[0].mxu0
      %3681 = vdwg.mxu0
      %v3682 = vmul.f32 %v3674, 0.5
      %v3683 = vmul.f32 %v3679, 0.5
      %v3684 = vld [vmem:[%s2 + $0x220] sm:$0xff]
      %v3685 = vld [vmem:[%s2 + $0x228] sm:$0xff]
      %v3686 = vadd.f32 %v3682, %v3684
      %v3687 = vadd.f32 %v3683, %v3685
      %v3688 = vsel %vm283, %v3686, -inf
      %3689 = vmax.xlane.f32.xlu0 %v3688
      %v3690 = vpop.xlane.xlu0 %3689
      %v3691 = vsel %vm283, %v3687, -inf
      %3692 = vmax.xlane.f32.xlu0 %v3691
      %v3693 = vpop.xlane.xlu0 %3692
      %v3694 = vsub.f32 %v3686, %v3690
      %v3695 = vsub.f32 %v3687, %v3693
      %v3696 = vmul.f32 %v3694, 1.442695
      %v3697 = vpow.pop %v3696
      %v3698 = vmul.f32 %v3695, 1.442695
      %v3699 = vpow.pop %v3698
      %v3700 = vsel %vm283, %v3697, 0.0
      %3701 = vadd.xlane.f32.xlu0 %v3700
      %v3702 = vpop.xlane.xlu0 %3701
      %v3703 = vsel %vm283, %v3699, 0.0
      %3704 = vadd.xlane.f32.xlu0 %v3703
      %v3705 = vpop.xlane.xlu0 %3704
      %v3706 = vrcp.pop %v3702
      %v3707 = vrcp.pop %v3705
      %v3708 = vmul.f32 %v3697, %v3706
      %v3709 = vmul.f32 %v3699, %v3707
      %3710 = vrot.lane.b32.xlu0 %v3585, 112
      %v3711 = vpop.permute.xlu0 %3710
      %3712 = vrot.lane.b32.xlu0 %v3590, 112
      %v3713 = vpop.permute.xlu0 %3712
      %v3717 = vsel %vm283, %v3708, 0
      %v3720 = vsel %vm283, %v3709, 0
      %3722 = vmatprep.subr.mxu0 0.0
      %3723 = vmatpush1.msra.mxu0 %v3711
      %3724 = vmatprep.subr.mxu0 0.0
      %3725 = vmatpush1.msra.mxu0 %v3713
      %3726 = vmatprep.subr.mxu0 0.0
      %3727 = vmatpush1.msra.mxu0 0.0
      %3728 = vmatprep.subr.mxu0 0.0
      %3729 = vmatpush1.msra.mxu0 0.0
      %3730 = vmatprep.subr.mxu0 0.0
      %3731 = vmatpush1.msra.mxu0 0.0
      %3732 = vmatprep.subr.mxu0 0.0
      %3733 = vmatpush1.msra.mxu0 0.0
      %3734 = vmatprep.subr.mxu0 0.0
      %3735 = vmatpush1.msra.mxu0 0.0
      %3736 = vmatprep.subr.mxu0 0.0
      %3737 = vmatpush1.msra.mxu0 0.0
      %3738 = vmatprep.subr.mxu0 0.0
      %3739 = vmatpush1.msra.mxu0 0.0
      %3740 = vmatprep.subr.mxu0 0.0
      %3741 = vmatpush1.msra.mxu0 0.0
      %3742 = vmatprep.subr.mxu0 0.0
      %3743 = vmatpush1.msra.mxu0 0.0
      %3744 = vmatprep.subr.mxu0 0.0
      %3745 = vmatpush1.msra.mxu0 0.0
      %3746 = vmatprep.subr.mxu0 0.0
      %3747 = vmatpush1.msra.mxu0 0.0
      %3748 = vmatprep.subr.mxu0 0.0
      %3749 = vmatpush1.msra.mxu0 0.0
      %3750 = vmatprep.subr.mxu0 0.0
      %3751 = vmatpush1.msra.mxu0 0.0
      %3752 = vmatprep.subr.mxu0 0.0
      %3753 = vmatpush1.msra.mxu0 0.0
      %3754 = vmatprep.subr.mxu0 0.0
      %3755 = vmatpush1.msra.mxu0 0.0
      %3756 = vmatprep.subr.mxu0 0.0
      %3757 = vmatpush1.msra.mxu0 0.0
      %3758 = vmatprep.subr.mxu0 0.0
      %3759 = vmatpush1.msra.mxu0 0.0
      %3760 = vmatprep.subr.mxu0 0.0
      %3761 = vmatpush1.msra.mxu0 0.0
      %3762 = vmatprep.subr.mxu0 0.0
      %3763 = vmatpush1.msra.mxu0 0.0
      %3764 = vmatprep.subr.mxu0 0.0
      %3765 = vmatpush1.msra.mxu0 0.0
      %3766 = vmatprep.subr.mxu0 0.0
      %3767 = vmatpush1.msra.mxu0 0.0
      %3768 = vmatprep.subr.mxu0 0.0
      %3769 = vmatpush1.msra.mxu0 0.0
      %3770 = vmatprep.subr.mxu0 0.0
      %3771 = vmatpush1.msra.mxu0 0.0
      %3772 = vmatprep.subr.mxu0 0.0
      %3773 = vmatpush1.msra.mxu0 0.0
      %3774 = vmatprep.subr.mxu0 0.0
      %3775 = vmatpush1.msra.mxu0 0.0
      %3776 = vmatprep.subr.mxu0 0.0
      %3777 = vmatpush1.msra.mxu0 0.0
      %3778 = vmatprep.subr.mxu0 0.0
      %3779 = vmatpush1.msra.mxu0 0.0
      %3780 = vmatprep.subr.mxu0 0.0
      %3781 = vmatpush1.msra.mxu0 0.0
      %3782 = vmatprep.subr.mxu0 0.0
      %3783 = vmatpush1.msra.mxu0 0.0
      %3784 = vmatprep.subr.mxu0 0.0
      %3785 = vmatpush1.msra.mxu0 0.0
      %3786 = vmatprep.mubr.f32.mxu0 0.0
      %3787 = vmatmul.mubr.f32.gmra.mrb[0].mxu0 %v3717
      %v3788 = vpop.f32.mrb[0].mxu0
      %v3789 = vadd.f32 0.0, %v3788
      %v3790 = vpop.f32.mrb[0].mxu0
      %3791 = vmatprep.mubr.f32.mxu0 0.0
      %3792 = vmatmul.mubr.f32.gmra.mrb[0].mxu0 %v3720
      %v3793 = vpop.f32.mrb[0].mxu0
      %v3794 = vadd.f32 0.0, %v3793
      %v3795 = vpop.f32.mrb[0].mxu0
      %3796 = vdwg.mxu0
      %3797 = vrot.lane.b32.xlu0 %v3585, 124
      %v3798 = vpop.permute.xlu0 %3797
      %3799 = vrot.lane.b32.xlu0 %v3590, 124
      %v3800 = vpop.permute.xlu0 %3799
      %3801 = vrot.lane.b32.xlu0 %v3585, 116
      %v3802 = vpop.permute.xlu0 %3801
      %3803 = vrot.lane.b32.xlu0 %v3590, 116
      %v3804 = vpop.permute.xlu0 %3803
      %v3805 = vsel %vm623, %v3798, 0
      %v3807 = vsel %vm623, %v3800, 0
      %v3809 = vsel %vm623, %v3802, 0
      %v3811 = vsel %vm623, %v3804, 0
      %3813 = vmatprep.subr.mxu0 0.0
      %3814 = vmatpush1.xpose.msra.mxu0 %v3809
      %3815 = vmatprep.subr.mxu0 0.0
      %3816 = vmatpush1.xpose.msra.mxu0 %v3811
      %3817 = vmatprep.subr.mxu0 0.0
      %3818 = vmatpush1.xpose.msra.mxu0 0.0
      %3819 = vmatprep.subr.mxu0 0.0
      %3820 = vmatpush1.xpose.msra.mxu0 0.0
      %3821 = vmatprep.subr.mxu0 0.0
      %3822 = vmatpush1.xpose.msra.mxu0 0.0
      %3823 = vmatprep.subr.mxu0 0.0
      %3824 = vmatpush1.xpose.msra.mxu0 0.0
      %3825 = vmatprep.subr.mxu0 0.0
      %3826 = vmatpush1.xpose.msra.mxu0 0.0
      %3827 = vmatprep.subr.mxu0 0.0
      %3828 = vmatpush1.xpose.msra.mxu0 0.0
      %3829 = vmatprep.subr.mxu0 0.0
      %3830 = vmatpush1.xpose.msra.mxu0 0.0
      %3831 = vmatprep.subr.mxu0 0.0
      %3832 = vmatpush1.xpose.msra.mxu0 0.0
      %3833 = vmatprep.subr.mxu0 0.0
      %3834 = vmatpush1.xpose.msra.mxu0 0.0
      %3835 = vmatprep.subr.mxu0 0.0
      %3836 = vmatpush1.xpose.msra.mxu0 0.0
      %3837 = vmatprep.subr.mxu0 0.0
      %3838 = vmatpush1.xpose.msra.mxu0 0.0
      %3839 = vmatprep.subr.mxu0 0.0
      %3840 = vmatpush1.xpose.msra.mxu0 0.0
      %3841 = vmatprep.subr.mxu0 0.0
      %3842 = vmatpush1.xpose.msra.mxu0 0.0
      %3843 = vmatprep.subr.mxu0 0.0
      %3844 = vmatpush1.xpose.msra.mxu0 0.0
      %3845 = vmatprep.subr.mxu0 0.0
      %3846 = vmatpush1.xpose.msra.mxu0 0.0
      %3847 = vmatprep.subr.mxu0 0.0
      %3848 = vmatpush1.xpose.msra.mxu0 0.0
      %3849 = vmatprep.subr.mxu0 0.0
      %3850 = vmatpush1.xpose.msra.mxu0 0.0
      %3851 = vmatprep.subr.mxu0 0.0
      %3852 = vmatpush1.xpose.msra.mxu0 0.0
      %3853 = vmatprep.subr.mxu0 0.0
      %3854 = vmatpush1.xpose.msra.mxu0 0.0
      %3855 = vmatprep.subr.mxu0 0.0
      %3856 = vmatpush1.xpose.msra.mxu0 0.0
      %3857 = vmatprep.subr.mxu0 0.0
      %3858 = vmatpush1.xpose.msra.mxu0 0.0
      %3859 = vmatprep.subr.mxu0 0.0
      %3860 = vmatpush1.xpose.msra.mxu0 0.0
      %3861 = vmatprep.subr.mxu0 0.0
      %3862 = vmatpush1.xpose.msra.mxu0 0.0
      %3863 = vmatprep.subr.mxu0 0.0
      %3864 = vmatpush1.xpose.msra.mxu0 0.0
      %3865 = vmatprep.subr.mxu0 0.0
      %3866 = vmatpush1.xpose.msra.mxu0 0.0
      %3867 = vmatprep.subr.mxu0 0.0
      %3868 = vmatpush1.xpose.msra.mxu0 0.0
      %3869 = vmatprep.subr.mxu0 0.0
      %3870 = vmatpush1.xpose.msra.mxu0 0.0
      %3871 = vmatprep.subr.mxu0 0.0
      %3872 = vmatpush1.xpose.msra.mxu0 0.0
      %3873 = vmatprep.subr.mxu0 0.0
      %3874 = vmatpush1.xpose.msra.mxu0 0.0
      %3875 = vmatprep.subr.mxu0 0.0
      %3876 = vmatpush1.xpose.msra.mxu0 0.0
      %3877 = vmatprep.mubr.f32.mxu0 0.0
      %3878 = vmatmul.mubr.f32.gmra.mrb[0].mxu0 %v3805
      %v3879 = vpop.f32.mrb[0].mxu0
      %v3880 = vadd.f32 0.0, %v3879
      %v3881 = vpop.f32.mrb[0].mxu0
      %3882 = vmatprep.mubr.f32.mxu0 0.0
      %3883 = vmatmul.mubr.f32.gmra.mrb[0].mxu0 %v3807
      %v3884 = vpop.f32.mrb[0].mxu0
      %v3885 = vadd.f32 0.0, %v3884
      %v3886 = vpop.f32.mrb[0].mxu0
      %3887 = vdwg.mxu0
      %v3888 = vmul.f32 %v3880, 0.5
      %v3889 = vmul.f32 %v3885, 0.5
      %v3890 = vld [vmem:[%s2 + $0x230] sm:$0xff]
      %v3891 = vld [vmem:[%s2 + $0x238] sm:$0xff]
      %v3892 = vadd.f32 %v3888, %v3890
      %v3893 = vadd.f32 %v3889, %v3891
      %v3894 = vsel %vm283, %v3892, -inf
      %3895 = vmax.xlane.f32.xlu0 %v3894
      %v3896 = vpop.xlane.xlu0 %3895
      %v3897 = vsel %vm283, %v3893, -inf
      %3898 = vmax.xlane.f32.xlu0 %v3897
      %v3899 = vpop.xlane.xlu0 %3898
      %v3900 = vsub.f32 %v3892, %v3896
      %v3901 = vsub.f32 %v3893, %v3899
      %v3902 = vmul.f32 %v3900, 1.442695
      %v3903 = vpow.pop %v3902
      %v3904 = vmul.f32 %v3901, 1.442695
      %v3905 = vpow.pop %v3904
      %v3906 = vsel %vm283, %v3903, 0.0
      %3907 = vadd.xlane.f32.xlu0 %v3906
      %v3908 = vpop.xlane.xlu0 %3907
      %v3909 = vsel %vm283, %v3905, 0.0
      %3910 = vadd.xlane.f32.xlu0 %v3909
      %v3911 = vpop.xlane.xlu0 %3910
      %v3912 = vrcp.pop %v3908
      %v3913 = vrcp.pop %v3911
      %v3914 = vmul.f32 %v3903, %v3912
      %v3915 = vmul.f32 %v3905, %v3913
      %3916 = vrot.lane.b32.xlu0 %v3585, 108
      %v3917 = vpop.permute.xlu0 %3916
      %3918 = vrot.lane.b32.xlu0 %v3590, 108
      %v3919 = vpop.permute.xlu0 %3918
      %v3923 = vsel %vm283, %v3914, 0
      %v3926 = vsel %vm283, %v3915, 0
      %3928 = vmatprep.subr.mxu0 0.0
      %3929 = vmatpush1.msra.mxu0 %v3917
      %3930 = vmatprep.subr.mxu0 0.0
      %3931 = vmatpush1.msra.mxu0 %v3919
      %3932 = vmatprep.subr.mxu0 0.0
      %3933 = vmatpush1.msra.mxu0 0.0
      %3934 = vmatprep.subr.mxu0 0.0
      %3935 = vmatpush1.msra.mxu0 0.0
      %3936 = vmatprep.subr.mxu0 0.0
      %3937 = vmatpush1.msra.mxu0 0.0
      %3938 = vmatprep.subr.mxu0 0.0
      %3939 = vmatpush1.msra.mxu0 0.0
      %3940 = vmatprep.subr.mxu0 0.0
      %3941 = vmatpush1.msra.mxu0 0.0
      %3942 = vmatprep.subr.mxu0 0.0
      %3943 = vmatpush1.msra.mxu0 0.0
      %3944 = vmatprep.subr.mxu0 0.0
      %3945 = vmatpush1.msra.mxu0 0.0
      %3946 = vmatprep.subr.mxu0 0.0
      %3947 = vmatpush1.msra.mxu0 0.0
      %3948 = vmatprep.subr.mxu0 0.0
      %3949 = vmatpush1.msra.mxu0 0.0
      %3950 = vmatprep.subr.mxu0 0.0
      %3951 = vmatpush1.msra.mxu0 0.0
      %3952 = vmatprep.subr.mxu0 0.0
      %3953 = vmatpush1.msra.mxu0 0.0
      %3954 = vmatprep.subr.mxu0 0.0
      %3955 = vmatpush1.msra.mxu0 0.0
      %3956 = vmatprep.subr.mxu0 0.0
      %3957 = vmatpush1.msra.mxu0 0.0
      %3958 = vmatprep.subr.mxu0 0.0
      %3959 = vmatpush1.msra.mxu0 0.0
      %3960 = vmatprep.subr.mxu0 0.0
      %3961 = vmatpush1.msra.mxu0 0.0
      %3962 = vmatprep.subr.mxu0 0.0
      %3963 = vmatpush1.msra.mxu0 0.0
      %3964 = vmatprep.subr.mxu0 0.0
      %3965 = vmatpush1.msra.mxu0 0.0
      %3966 = vmatprep.subr.mxu0 0.0
      %3967 = vmatpush1.msra.mxu0 0.0
      %3968 = vmatprep.subr.mxu0 0.0
      %3969 = vmatpush1.msra.mxu0 0.0
      %3970 = vmatprep.subr.mxu0 0.0
      %3971 = vmatpush1.msra.mxu0 0.0
      %3972 = vmatprep.subr.mxu0 0.0
      %3973 = vmatpush1.msra.mxu0 0.0
      %3974 = vmatprep.subr.mxu0 0.0
      %3975 = vmatpush1.msra.mxu0 0.0
      %3976 = vmatprep.subr.mxu0 0.0
      %3977 = vmatpush1.msra.mxu0 0.0
      %3978 = vmatprep.subr.mxu0 0.0
      %3979 = vmatpush1.msra.mxu0 0.0
      %3980 = vmatprep.subr.mxu0 0.0
      %3981 = vmatpush1.msra.mxu0 0.0
      %3982 = vmatprep.subr.mxu0 0.0
      %3983 = vmatpush1.msra.mxu0 0.0
      %3984 = vmatprep.subr.mxu0 0.0
      %3985 = vmatpush1.msra.mxu0 0.0
      %3986 = vmatprep.subr.mxu0 0.0
      %3987 = vmatpush1.msra.mxu0 0.0
      %3988 = vmatprep.subr.mxu0 0.0
      %3989 = vmatpush1.msra.mxu0 0.0
      %3990 = vmatprep.subr.mxu0 0.0
      %3991 = vmatpush1.msra.mxu0 0.0
      %3992 = vmatprep.mubr.f32.mxu0 0.0
      %3993 = vmatmul.mubr.f32.gmra.mrb[0].mxu0 %v3923
      %v3994 = vpop.f32.mrb[0].mxu0
      %v3995 = vadd.f32 0.0, %v3994
      %v3996 = vpop.f32.mrb[0].mxu0
      %3997 = vmatprep.mubr.f32.mxu0 0.0
      %3998 = vmatmul.mubr.f32.gmra.mrb[0].mxu0 %v3926
      %v3999 = vpop.f32.mrb[0].mxu0
      %v4000 = vadd.f32 0.0, %v3999
      %v4001 = vpop.f32.mrb[0].mxu0
      %4002 = vdwg.mxu0
      %4005 = vrot.lane.b32.xlu0 %v3995, 4
      %v4006 = vpop.permute.xlu0 %4005
      %4007 = vrot.lane.b32.xlu0 %v4000, 4
      %v4008 = vpop.permute.xlu0 %4007
      %v4011 = vsel %vm623, %v3789, %v4006
      %v4012 = vsel %vm623, %v3794, %v4008
      %v4013 = vld [vmem:[%s2 + $0x210] sm:$0xff]
      %v4014 = vld [vmem:[%s2 + $0x218] sm:$0x1]
      %v4015 = vlaneseq
      %v4016 = vshrl.u32 %v4015, 7
      %v4017 = vsub.s32 0, %v4016
      %v4018 = vrot.slane %v4014, %v4017
      %v4020 = vsel %vm546, %v4011, 0
      %v4023 = vsel %vm546, %v4012, 0
      %4025 = vmatprep.subr.mxu0 0.0
      %4026 = vmatpush1.msra.mxu0 %v4013
      %4027 = vmatprep.subr.mxu0 0.0
      %4028 = vmatpush1.msra.mxu0 0.0
      %4029 = vmatprep.subr.mxu0 0.0
      %4030 = vmatpush1.msra.mxu0 0.0
      %4031 = vmatprep.subr.mxu0 0.0
      %4032 = vmatpush1.msra.mxu0 0.0
      %4033 = vmatprep.subr.mxu0 0.0
      %4034 = vmatpush1.msra.mxu0 0.0
      %4035 = vmatprep.subr.mxu0 0.0
      %4036 = vmatpush1.msra.mxu0 0.0
      %4037 = vmatprep.subr.mxu0 0.0
      %4038 = vmatpush1.msra.mxu0 0.0
      %4039 = vmatprep.subr.mxu0 0.0
      %4040 = vmatpush1.msra.mxu0 0.0
      %4041 = vmatprep.subr.mxu0 0.0
      %4042 = vmatpush1.msra.mxu0 0.0
      %4043 = vmatprep.subr.mxu0 0.0
      %4044 = vmatpush1.msra.mxu0 0.0
      %4045 = vmatprep.subr.mxu0 0.0
      %4046 = vmatpush1.msra.mxu0 0.0
      %4047 = vmatprep.subr.mxu0 0.0
      %4048 = vmatpush1.msra.mxu0 0.0
      %4049 = vmatprep.subr.mxu0 0.0
      %4050 = vmatpush1.msra.mxu0 0.0
      %4051 = vmatprep.subr.mxu0 0.0
      %4052 = vmatpush1.msra.mxu0 0.0
      %4053 = vmatprep.subr.mxu0 0.0
      %4054 = vmatpush1.msra.mxu0 0.0
      %4055 = vmatprep.subr.mxu0 0.0
      %4056 = vmatpush1.msra.mxu0 0.0
      %4057 = vmatprep.subr.mxu0 0.0
      %4058 = vmatpush1.msra.mxu0 0.0
      %4059 = vmatprep.subr.mxu0 0.0
      %4060 = vmatpush1.msra.mxu0 0.0
      %4061 = vmatprep.subr.mxu0 0.0
      %4062 = vmatpush1.msra.mxu0 0.0
      %4063 = vmatprep.subr.mxu0 0.0
      %4064 = vmatpush1.msra.mxu0 0.0
      %4065 = vmatprep.subr.mxu0 0.0
      %4066 = vmatpush1.msra.mxu0 0.0
      %4067 = vmatprep.subr.mxu0 0.0
      %4068 = vmatpush1.msra.mxu0 0.0
      %4069 = vmatprep.subr.mxu0 0.0
      %4070 = vmatpush1.msra.mxu0 0.0
      %4071 = vmatprep.subr.mxu0 0.0
      %4072 = vmatpush1.msra.mxu0 0.0
      %4073 = vmatprep.subr.mxu0 0.0
      %4074 = vmatpush1.msra.mxu0 0.0
      %4075 = vmatprep.subr.mxu0 0.0
      %4076 = vmatpush1.msra.mxu0 0.0
      %4077 = vmatprep.subr.mxu0 0.0
      %4078 = vmatpush1.msra.mxu0 0.0
      %4079 = vmatprep.subr.mxu0 0.0
      %4080 = vmatpush1.msra.mxu0 0.0
      %4081 = vmatprep.subr.mxu0 0.0
      %4082 = vmatpush1.msra.mxu0 0.0
      %4083 = vmatprep.subr.mxu0 0.0
      %4084 = vmatpush1.msra.mxu0 0.0
      %4085 = vmatprep.subr.mxu0 0.0
      %4086 = vmatpush1.msra.mxu0 0.0
      %4087 = vmatprep.subr.mxu0 0.0
      %4088 = vmatpush1.msra.mxu0 0.0
      %4089 = vmatprep.mubr.f32.mxu0 0.0
      %4090 = vmatmul.mubr.f32.gmra.mrb[0].mxu0 %v4020
      %v4091 = vpop.f32.mrb[0].mxu0
      %v4092 = vadd.f32 %v4018, %v4091
      %v4093 = vpop.f32.mrb[0].mxu0
      %4094 = vmatprep.mubr.f32.mxu0 0.0
      %4095 = vmatmul.mubr.f32.gmra.mrb[0].mxu0 %v4023
      %v4096 = vpop.f32.mrb[0].mxu0
      %v4097 = vadd.f32 %v4018, %v4096
      %v4098 = vpop.f32.mrb[0].mxu0
      %4099 = vdwg.mxu0
      %v4100 = vadd.f32 %v3504, %v4092
      %v4101 = vadd.f32 %v3505, %v4097
      %v4102 = vsel %vm546, %v4100, 0.0
      %4103 = vadd.xlane.f32.xlu0 %v4102
      %v4104 = vpop.xlane.xlu0 %4103
      %v4105 = vsel %vm546, %v4101, 0.0
      %4106 = vadd.xlane.f32.xlu0 %v4105
      %v4107 = vpop.xlane.xlu0 %4106
      %v4108 = vmul.f32 %v4104, %v1044
      %v4109 = vmul.f32 %v4107, %v1044
      %v4110 = vsub.f32 %v4100, %v4108
      %v4111 = vsub.f32 %v4101, %v4109
      %v4112 = vmul.f32 %v4110, %v4110
      %v4113 = vmul.f32 %v4111, %v4111
      %v4114 = vsel %vm546, %v4112, 0.0
      %4115 = vadd.xlane.f32.xlu0 %v4114
      %v4116 = vpop.xlane.xlu0 %4115
      %v4117 = vsel %vm546, %v4113, 0.0
      %4118 = vadd.xlane.f32.xlu0 %v4117
      %v4119 = vpop.xlane.xlu0 %4118
      %v4120 = vmul.f32 %v4116, %v1044
      %v4121 = vmul.f32 %v4119, %v1044
      %v4122 = vadd.f32 %v4120, 1e-05
      %v4123 = vadd.f32 %v4121, 1e-05
      %v4124 = vrsqrt.pop %v4122
      %v4125 = vrsqrt.pop %v4123
      %v4126 = vmul.f32 %v4110, %v4124
      %v4127 = vmul.f32 %v4111, %v4125
      %v4128 = vld [vmem:[%s2 + $0x240] sm:$0x1]
      %v4129 = vlaneseq
      %v4130 = vshrl.u32 %v4129, 7
      %v4131 = vsub.s32 0, %v4130
      %v4132 = vrot.slane %v4128, %v4131
      %v4133 = vmul.f32 %v4126, %v4132
      %v4134 = vmul.f32 %v4127, %v4132
      %v4135 = vld [vmem:[%s2 + $0x248] sm:$0x1]
      %v4136 = vlaneseq
      %v4137 = vshrl.u32 %v4136, 7
      %v4138 = vsub.s32 0, %v4137
      %v4139 = vrot.slane %v4135, %v4138
      %v4140 = vadd.f32 %v4133, %v4139
      %v4141 = vadd.f32 %v4134, %v4139
      %v4142 = vld [vmem:[%s2 + $0x250] sm:$0xff]
      %v4143 = vld [vmem:[%s2 + $0x258] sm:$0x1]
      %v4144 = vlaneseq
      %v4145 = vshrl.u32 %v4144, 7
      %v4146 = vsub.s32 0, %v4145
      %v4147 = vrot.slane %v4143, %v4146
      %v4149 = vsel %vm546, %v4140, 0
      %v4152 = vsel %vm546, %v4141, 0
      %4154 = vmatprep.subr.mxu0 0.0
      %4155 = vmatpush1.msra.mxu0 %v4142
      %4156 = vmatprep.subr.mxu0 0.0
      %4157 = vmatpush1.msra.mxu0 0.0
      %4158 = vmatprep.subr.mxu0 0.0
      %4159 = vmatpush1.msra.mxu0 0.0
      %4160 = vmatprep.subr.mxu0 0.0
      %4161 = vmatpush1.msra.mxu0 0.0
      %4162 = vmatprep.subr.mxu0 0.0
      %4163 = vmatpush1.msra.mxu0 0.0
      %4164 = vmatprep.subr.mxu0 0.0
      %4165 = vmatpush1.msra.mxu0 0.0
      %4166 = vmatprep.subr.mxu0 0.0
      %4167 = vmatpush1.msra.mxu0 0.0
      %4168 = vmatprep.subr.mxu0 0.0
      %4169 = vmatpush1.msra.mxu0 0.0
      %4170 = vmatprep.subr.mxu0 0.0
      %4171 = vmatpush1.msra.mxu0 0.0
      %4172 = vmatprep.subr.mxu0 0.0
      %4173 = vmatpush1.msra.mxu0 0.0
      %4174 = vmatprep.subr.mxu0 0.0
      %4175 = vmatpush1.msra.mxu0 0.0
      %4176 = vmatprep.subr.mxu0 0.0
      %4177 = vmatpush1.msra.mxu0 0.0
      %4178 = vmatprep.subr.mxu0 0.0
      %4179 = vmatpush1.msra.mxu0 0.0
      %4180 = vmatprep.subr.mxu0 0.0
      %4181 = vmatpush1.msra.mxu0 0.0
      %4182 = vmatprep.subr.mxu0 0.0
      %4183 = vmatpush1.msra.mxu0 0.0
      %4184 = vmatprep.subr.mxu0 0.0
      %4185 = vmatpush1.msra.mxu0 0.0
      %4186 = vmatprep.subr.mxu0 0.0
      %4187 = vmatpush1.msra.mxu0 0.0
      %4188 = vmatprep.subr.mxu0 0.0
      %4189 = vmatpush1.msra.mxu0 0.0
      %4190 = vmatprep.subr.mxu0 0.0
      %4191 = vmatpush1.msra.mxu0 0.0
      %4192 = vmatprep.subr.mxu0 0.0
      %4193 = vmatpush1.msra.mxu0 0.0
      %4194 = vmatprep.subr.mxu0 0.0
      %4195 = vmatpush1.msra.mxu0 0.0
      %4196 = vmatprep.subr.mxu0 0.0
      %4197 = vmatpush1.msra.mxu0 0.0
      %4198 = vmatprep.subr.mxu0 0.0
      %4199 = vmatpush1.msra.mxu0 0.0
      %4200 = vmatprep.subr.mxu0 0.0
      %4201 = vmatpush1.msra.mxu0 0.0
      %4202 = vmatprep.subr.mxu0 0.0
      %4203 = vmatpush1.msra.mxu0 0.0
      %4204 = vmatprep.subr.mxu0 0.0
      %4205 = vmatpush1.msra.mxu0 0.0
      %4206 = vmatprep.subr.mxu0 0.0
      %4207 = vmatpush1.msra.mxu0 0.0
      %4208 = vmatprep.subr.mxu0 0.0
      %4209 = vmatpush1.msra.mxu0 0.0
      %4210 = vmatprep.subr.mxu0 0.0
      %4211 = vmatpush1.msra.mxu0 0.0
      %4212 = vmatprep.subr.mxu0 0.0
      %4213 = vmatpush1.msra.mxu0 0.0
      %4214 = vmatprep.subr.mxu0 0.0
      %4215 = vmatpush1.msra.mxu0 0.0
      %4216 = vmatprep.subr.mxu0 0.0
      %4217 = vmatpush1.msra.mxu0 0.0
      %4218 = vmatprep.mubr.f32.mxu0 0.0
      %4219 = vmatmul.mubr.f32.gmra.mrb[0].mxu0 %v4149
      %v4220 = vpop.f32.mrb[0].mxu0
      %v4221 = vadd.f32 %v4147, %v4220
      %v4222 = vpop.f32.mrb[0].mxu0
      %4223 = vmatprep.mubr.f32.mxu0 0.0
      %4224 = vmatmul.mubr.f32.gmra.mrb[0].mxu0 %v4152
      %v4225 = vpop.f32.mrb[0].mxu0
      %v4226 = vadd.f32 %v4147, %v4225
      %v4227 = vpop.f32.mrb[0].mxu0
      %4228 = vdwg.mxu0
      %v4229 = vld [vmem:[%s2 + $0x260] sm:$0xff]
      %v4230 = vld [vmem:[%s2 + $0x268] sm:$0x1]
      %v4231 = vlaneseq
      %v4232 = vshrl.u32 %v4231, 7
      %v4233 = vsub.s32 0, %v4232
      %v4234 = vrot.slane %v4230, %v4233
      %4235 = vmatprep.subr.mxu0 0.0
      %4236 = vmatpush1.msra.mxu0 %v4229
      %4237 = vmatprep.subr.mxu0 0.0
      %4238 = vmatpush1.msra.mxu0 0.0
      %4239 = vmatprep.subr.mxu0 0.0
      %4240 = vmatpush1.msra.mxu0 0.0
      %4241 = vmatprep.subr.mxu0 0.0
      %4242 = vmatpush1.msra.mxu0 0.0
      %4243 = vmatprep.subr.mxu0 0.0
      %4244 = vmatpush1.msra.mxu0 0.0
      %4245 = vmatprep.subr.mxu0 0.0
      %4246 = vmatpush1.msra.mxu0 0.0
      %4247 = vmatprep.subr.mxu0 0.0
      %4248 = vmatpush1.msra.mxu0 0.0
      %4249 = vmatprep.subr.mxu0 0.0
      %4250 = vmatpush1.msra.mxu0 0.0
      %4251 = vmatprep.subr.mxu0 0.0
      %4252 = vmatpush1.msra.mxu0 0.0
      %4253 = vmatprep.subr.mxu0 0.0
      %4254 = vmatpush1.msra.mxu0 0.0
      %4255 = vmatprep.subr.mxu0 0.0
      %4256 = vmatpush1.msra.mxu0 0.0
      %4257 = vmatprep.subr.mxu0 0.0
      %4258 = vmatpush1.msra.mxu0 0.0
      %4259 = vmatprep.subr.mxu0 0.0
      %4260 = vmatpush1.msra.mxu0 0.0
      %4261 = vmatprep.subr.mxu0 0.0
      %4262 = vmatpush1.msra.mxu0 0.0
      %4263 = vmatprep.subr.mxu0 0.0
      %4264 = vmatpush1.msra.mxu0 0.0
      %4265 = vmatprep.subr.mxu0 0.0
      %4266 = vmatpush1.msra.mxu0 0.0
      %4267 = vmatprep.subr.mxu0 0.0
      %4268 = vmatpush1.msra.mxu0 0.0
      %4269 = vmatprep.subr.mxu0 0.0
      %4270 = vmatpush1.msra.mxu0 0.0
      %4271 = vmatprep.subr.mxu0 0.0
      %4272 = vmatpush1.msra.mxu0 0.0
      %4273 = vmatprep.subr.mxu0 0.0
      %4274 = vmatpush1.msra.mxu0 0.0
      %4275 = vmatprep.subr.mxu0 0.0
      %4276 = vmatpush1.msra.mxu0 0.0
      %4277 = vmatprep.subr.mxu0 0.0
      %4278 = vmatpush1.msra.mxu0 0.0
      %4279 = vmatprep.subr.mxu0 0.0
      %4280 = vmatpush1.msra.mxu0 0.0
      %4281 = vmatprep.subr.mxu0 0.0
      %4282 = vmatpush1.msra.mxu0 0.0
      %4283 = vmatprep.subr.mxu0 0.0
      %4284 = vmatpush1.msra.mxu0 0.0
      %4285 = vmatprep.subr.mxu0 0.0
      %4286 = vmatpush1.msra.mxu0 0.0
      %4287 = vmatprep.subr.mxu0 0.0
      %4288 = vmatpush1.msra.mxu0 0.0
      %4289 = vmatprep.subr.mxu0 0.0
      %4290 = vmatpush1.msra.mxu0 0.0
      %4291 = vmatprep.subr.mxu0 0.0
      %4292 = vmatpush1.msra.mxu0 0.0
      %4293 = vmatprep.subr.mxu0 0.0
      %4294 = vmatpush1.msra.mxu0 0.0
      %4295 = vmatprep.subr.mxu0 0.0
      %4296 = vmatpush1.msra.mxu0 0.0
      %4297 = vmatprep.subr.mxu0 0.0
      %4298 = vmatpush1.msra.mxu0 0.0
      %4299 = vmatprep.mubr.f32.mxu0 0.0
      %4300 = vmatmul.mubr.f32.gmra.mrb[0].mxu0 %v2689
      %v4301 = vpop.f32.mrb[0].mxu0
      %v4302 = vadd.f32 %v4234, %v4301
      %v4303 = vpop.f32.mrb[0].mxu0
      %4304 = vdwg.mxu0
      %v4306 = vsel %vm623, %v4221, 0
      %v4309 = vsel %vm623, %v4226, 0
      %v4312 = vsel %vm623, %v4302, 0
      %4314 = vmatprep.subr.mxu0 0.0
      %4315 = vmatpush1.xpose.msra.mxu0 %v4312
      %4316 = vmatprep.subr.mxu0 0.0
      %4317 = vmatpush1.xpose.msra.mxu0 0.0
      %4318 = vmatprep.subr.mxu0 0.0
      %4319 = vmatpush1.xpose.msra.mxu0 0.0
      %4320 = vmatprep.subr.mxu0 0.0
      %4321 = vmatpush1.xpose.msra.mxu0 0.0
      %4322 = vmatprep.subr.mxu0 0.0
      %4323 = vmatpush1.xpose.msra.mxu0 0.0
      %4324 = vmatprep.subr.mxu0 0.0
      %4325 = vmatpush1.xpose.msra.mxu0 0.0
      %4326 = vmatprep.subr.mxu0 0.0
      %4327 = vmatpush1.xpose.msra.mxu0 0.0
      %4328 = vmatprep.subr.mxu0 0.0
      %4329 = vmatpush1.xpose.msra.mxu0 0.0
      %4330 = vmatprep.subr.mxu0 0.0
      %4331 = vmatpush1.xpose.msra.mxu0 0.0
      %4332 = vmatprep.subr.mxu0 0.0
      %4333 = vmatpush1.xpose.msra.mxu0 0.0
      %4334 = vmatprep.subr.mxu0 0.0
      %4335 = vmatpush1.xpose.msra.mxu0 0.0
      %4336 = vmatprep.subr.mxu0 0.0
      %4337 = vmatpush1.xpose.msra.mxu0 0.0
      %4338 = vmatprep.subr.mxu0 0.0
      %4339 = vmatpush1.xpose.msra.mxu0 0.0
      %4340 = vmatprep.subr.mxu0 0.0
      %4341 = vmatpush1.xpose.msra.mxu0 0.0
      %4342 = vmatprep.subr.mxu0 0.0
      %4343 = vmatpush1.xpose.msra.mxu0 0.0
      %4344 = vmatprep.subr.mxu0 0.0
      %4345 = vmatpush1.xpose.msra.mxu0 0.0
      %4346 = vmatprep.subr.mxu0 0.0
      %4347 = vmatpush1.xpose.msra.mxu0 0.0
      %4348 = vmatprep.subr.mxu0 0.0
      %4349 = vmatpush1.xpose.msra.mxu0 0.0
      %4350 = vmatprep.subr.mxu0 0.0
      %4351 = vmatpush1.xpose.msra.mxu0 0.0
      %4352 = vmatprep.subr.mxu0 0.0
      %4353 = vmatpush1.xpose.msra.mxu0 0.0
      %4354 = vmatprep.subr.mxu0 0.0
      %4355 = vmatpush1.xpose.msra.mxu0 0.0
      %4356 = vmatprep.subr.mxu0 0.0
      %4357 = vmatpush1.xpose.msra.mxu0 0.0
      %4358 = vmatprep.subr.mxu0 0.0
      %4359 = vmatpush1.xpose.msra.mxu0 0.0
      %4360 = vmatprep.subr.mxu0 0.0
      %4361 = vmatpush1.xpose.msra.mxu0 0.0
      %4362 = vmatprep.subr.mxu0 0.0
      %4363 = vmatpush1.xpose.msra.mxu0 0.0
      %4364 = vmatprep.subr.mxu0 0.0
      %4365 = vmatpush1.xpose.msra.mxu0 0.0
      %4366 = vmatprep.subr.mxu0 0.0
      %4367 = vmatpush1.xpose.msra.mxu0 0.0
      %4368 = vmatprep.subr.mxu0 0.0
      %4369 = vmatpush1.xpose.msra.mxu0 0.0
      %4370 = vmatprep.subr.mxu0 0.0
      %4371 = vmatpush1.xpose.msra.mxu0 0.0
      %4372 = vmatprep.subr.mxu0 0.0
      %4373 = vmatpush1.xpose.msra.mxu0 0.0
      %4374 = vmatprep.subr.mxu0 0.0
      %4375 = vmatpush1.xpose.msra.mxu0 0.0
      %4376 = vmatprep.subr.mxu0 0.0
      %4377 = vmatpush1.xpose.msra.mxu0 0.0
      %4378 = vmatprep.mubr.f32.mxu0 0.0
      %4379 = vmatmul.mubr.f32.gmra.mrb[0].mxu0 %v4306
      %v4380 = vpop.f32.mrb[0].mxu0
      %v4381 = vadd.f32 0.0, %v4380
      %v4382 = vpop.f32.mrb[0].mxu0
      %4383 = vmatprep.mubr.f32.mxu0 0.0
      %4384 = vmatmul.mubr.f32.gmra.mrb[0].mxu0 %v4309
      %v4385 = vpop.f32.mrb[0].mxu0
      %v4386 = vadd.f32 0.0, %v4385
      %v4387 = vpop.f32.mrb[0].mxu0
      %4388 = vdwg.mxu0
      %v4389 = vmul.f32 %v4381, 0.5
      %v4390 = vmul.f32 %v4386, 0.5
      %v4391 = vsel %vm546, %v4389, -inf
      %4392 = vmax.xlane.f32.xlu0 %v4391
      %v4393 = vpop.xlane.xlu0 %4392
      %v4394 = vsel %vm546, %v4390, -inf
      %4395 = vmax.xlane.f32.xlu0 %v4394
      %v4396 = vpop.xlane.xlu0 %4395
      %v4397 = vsub.f32 %v4389, %v4393
      %v4398 = vsub.f32 %v4390, %v4396
      %v4399 = vmul.f32 %v4397, 1.442695
      %v4400 = vpow.pop %v4399
      %v4401 = vmul.f32 %v4398, 1.442695
      %v4402 = vpow.pop %v4401
      %v4403 = vsel %vm546, %v4400, 0.0
      %4404 = vadd.xlane.f32.xlu0 %v4403
      %v4405 = vpop.xlane.xlu0 %4404
      %v4406 = vsel %vm546, %v4402, 0.0
      %4407 = vadd.xlane.f32.xlu0 %v4406
      %v4408 = vpop.xlane.xlu0 %4407
      %v4409 = vrcp.pop %v4405
      %v4410 = vrcp.pop %v4408
      %v4411 = vmul.f32 %v4400, %v4409
      %v4412 = vmul.f32 %v4402, %v4410
      %4413 = vrot.lane.b32.xlu0 %v4302, 120
      %v4414 = vpop.permute.xlu0 %4413
      %v4417 = vsel %vm546, %v4411, 0
      %v4420 = vsel %vm546, %v4412, 0
      %4422 = vmatprep.subr.mxu0 0.0
      %4423 = vmatpush1.msra.mxu0 %v4414
      %4424 = vmatprep.subr.mxu0 0.0
      %4425 = vmatpush1.msra.mxu0 0.0
      %4426 = vmatprep.subr.mxu0 0.0
      %4427 = vmatpush1.msra.mxu0 0.0
      %4428 = vmatprep.subr.mxu0 0.0
      %4429 = vmatpush1.msra.mxu0 0.0
      %4430 = vmatprep.subr.mxu0 0.0
      %4431 = vmatpush1.msra.mxu0 0.0
      %4432 = vmatprep.subr.mxu0 0.0
      %4433 = vmatpush1.msra.mxu0 0.0
      %4434 = vmatprep.subr.mxu0 0.0
      %4435 = vmatpush1.msra.mxu0 0.0
      %4436 = vmatprep.subr.mxu0 0.0
      %4437 = vmatpush1.msra.mxu0 0.0
      %4438 = vmatprep.subr.mxu0 0.0
      %4439 = vmatpush1.msra.mxu0 0.0
      %4440 = vmatprep.subr.mxu0 0.0
      %4441 = vmatpush1.msra.mxu0 0.0
      %4442 = vmatprep.subr.mxu0 0.0
      %4443 = vmatpush1.msra.mxu0 0.0
      %4444 = vmatprep.subr.mxu0 0.0
      %4445 = vmatpush1.msra.mxu0 0.0
      %4446 = vmatprep.subr.mxu0 0.0
      %4447 = vmatpush1.msra.mxu0 0.0
      %4448 = vmatprep.subr.mxu0 0.0
      %4449 = vmatpush1.msra.mxu0 0.0
      %4450 = vmatprep.subr.mxu0 0.0
      %4451 = vmatpush1.msra.mxu0 0.0
      %4452 = vmatprep.subr.mxu0 0.0
      %4453 = vmatpush1.msra.mxu0 0.0
      %4454 = vmatprep.subr.mxu0 0.0
      %4455 = vmatpush1.msra.mxu0 0.0
      %4456 = vmatprep.subr.mxu0 0.0
      %4457 = vmatpush1.msra.mxu0 0.0
      %4458 = vmatprep.subr.mxu0 0.0
      %4459 = vmatpush1.msra.mxu0 0.0
      %4460 = vmatprep.subr.mxu0 0.0
      %4461 = vmatpush1.msra.mxu0 0.0
      %4462 = vmatprep.subr.mxu0 0.0
      %4463 = vmatpush1.msra.mxu0 0.0
      %4464 = vmatprep.subr.mxu0 0.0
      %4465 = vmatpush1.msra.mxu0 0.0
      %4466 = vmatprep.subr.mxu0 0.0
      %4467 = vmatpush1.msra.mxu0 0.0
      %4468 = vmatprep.subr.mxu0 0.0
      %4469 = vmatpush1.msra.mxu0 0.0
      %4470 = vmatprep.subr.mxu0 0.0
      %4471 = vmatpush1.msra.mxu0 0.0
      %4472 = vmatprep.subr.mxu0 0.0
      %4473 = vmatpush1.msra.mxu0 0.0
      %4474 = vmatprep.subr.mxu0 0.0
      %4475 = vmatpush1.msra.mxu0 0.0
      %4476 = vmatprep.subr.mxu0 0.0
      %4477 = vmatpush1.msra.mxu0 0.0
      %4478 = vmatprep.subr.mxu0 0.0
      %4479 = vmatpush1.msra.mxu0 0.0
      %4480 = vmatprep.subr.mxu0 0.0
      %4481 = vmatpush1.msra.mxu0 0.0
      %4482 = vmatprep.subr.mxu0 0.0
      %4483 = vmatpush1.msra.mxu0 0.0
      %4484 = vmatprep.subr.mxu0 0.0
      %4485 = vmatpush1.msra.mxu0 0.0
      %4486 = vmatprep.mubr.f32.mxu0 0.0
      %4487 = vmatmul.mubr.f32.gmra.mrb[0].mxu0 %v4417
      %v4488 = vpop.f32.mrb[0].mxu0
      %v4489 = vadd.f32 0.0, %v4488
      %v4490 = vpop.f32.mrb[0].mxu0
      %4491 = vmatprep.mubr.f32.mxu0 0.0
      %4492 = vmatmul.mubr.f32.gmra.mrb[0].mxu0 %v4420
      %v4493 = vpop.f32.mrb[0].mxu0
      %v4494 = vadd.f32 0.0, %v4493
      %v4495 = vpop.f32.mrb[0].mxu0
      %4496 = vdwg.mxu0
      %4497 = vrot.lane.b32.xlu0 %v4221, 124
      %v4498 = vpop.permute.xlu0 %4497
      %4499 = vrot.lane.b32.xlu0 %v4226, 124
      %v4500 = vpop.permute.xlu0 %4499
      %4501 = vrot.lane.b32.xlu0 %v4302, 124
      %v4502 = vpop.permute.xlu0 %4501
      %v4503 = vsel %vm623, %v4498, 0
      %v4505 = vsel %vm623, %v4500, 0
      %v4507 = vsel %vm623, %v4502, 0
      %4509 = vmatprep.subr.mxu0 0.0
      %4510 = vmatpush1.xpose.msra.mxu0 %v4507
      %4511 = vmatprep.subr.mxu0 0.0
      %4512 = vmatpush1.xpose.msra.mxu0 0.0
      %4513 = vmatprep.subr.mxu0 0.0
      %4514 = vmatpush1.xpose.msra.mxu0 0.0
      %4515 = vmatprep.subr.mxu0 0.0
      %4516 = vmatpush1.xpose.msra.mxu0 0.0
      %4517 = vmatprep.subr.mxu0 0.0
      %4518 = vmatpush1.xpose.msra.mxu0 0.0
      %4519 = vmatprep.subr.mxu0 0.0
      %4520 = vmatpush1.xpose.msra.mxu0 0.0
      %4521 = vmatprep.subr.mxu0 0.0
      %4522 = vmatpush1.xpose.msra.mxu0 0.0
      %4523 = vmatprep.subr.mxu0 0.0
      %4524 = vmatpush1.xpose.msra.mxu0 0.0
      %4525 = vmatprep.subr.mxu0 0.0
      %4526 = vmatpush1.xpose.msra.mxu0 0.0
      %4527 = vmatprep.subr.mxu0 0.0
      %4528 = vmatpush1.xpose.msra.mxu0 0.0
      %4529 = vmatprep.subr.mxu0 0.0
      %4530 = vmatpush1.xpose.msra.mxu0 0.0
      %4531 = vmatprep.subr.mxu0 0.0
      %4532 = vmatpush1.xpose.msra.mxu0 0.0
      %4533 = vmatprep.subr.mxu0 0.0
      %4534 = vmatpush1.xpose.msra.mxu0 0.0
      %4535 = vmatprep.subr.mxu0 0.0
      %4536 = vmatpush1.xpose.msra.mxu0 0.0
      %4537 = vmatprep.subr.mxu0 0.0
      %4538 = vmatpush1.xpose.msra.mxu0 0.0
      %4539 = vmatprep.subr.mxu0 0.0
      %4540 = vmatpush1.xpose.msra.mxu0 0.0
      %4541 = vmatprep.subr.mxu0 0.0
      %4542 = vmatpush1.xpose.msra.mxu0 0.0
      %4543 = vmatprep.subr.mxu0 0.0
      %4544 = vmatpush1.xpose.msra.mxu0 0.0
      %4545 = vmatprep.subr.mxu0 0.0
      %4546 = vmatpush1.xpose.msra.mxu0 0.0
      %4547 = vmatprep.subr.mxu0 0.0
      %4548 = vmatpush1.xpose.msra.mxu0 0.0
      %4549 = vmatprep.subr.mxu0 0.0
      %4550 = vmatpush1.xpose.msra.mxu0 0.0
      %4551 = vmatprep.subr.mxu0 0.0
      %4552 = vmatpush1.xpose.msra.mxu0 0.0
      %4553 = vmatprep.subr.mxu0 0.0
      %4554 = vmatpush1.xpose.msra.mxu0 0.0
      %4555 = vmatprep.subr.mxu0 0.0
      %4556 = vmatpush1.xpose.msra.mxu0 0.0
      %4557 = vmatprep.subr.mxu0 0.0
      %4558 = vmatpush1.xpose.msra.mxu0 0.0
      %4559 = vmatprep.subr.mxu0 0.0
      %4560 = vmatpush1.xpose.msra.mxu0 0.0
      %4561 = vmatprep.subr.mxu0 0.0
      %4562 = vmatpush1.xpose.msra.mxu0 0.0
      %4563 = vmatprep.subr.mxu0 0.0
      %4564 = vmatpush1.xpose.msra.mxu0 0.0
      %4565 = vmatprep.subr.mxu0 0.0
      %4566 = vmatpush1.xpose.msra.mxu0 0.0
      %4567 = vmatprep.subr.mxu0 0.0
      %4568 = vmatpush1.xpose.msra.mxu0 0.0
      %4569 = vmatprep.subr.mxu0 0.0
      %4570 = vmatpush1.xpose.msra.mxu0 0.0
      %4571 = vmatprep.subr.mxu0 0.0
      %4572 = vmatpush1.xpose.msra.mxu0 0.0
      %4573 = vmatprep.mubr.f32.mxu0 0.0
      %4574 = vmatmul.mubr.f32.gmra.mrb[0].mxu0 %v4503
      %v4575 = vpop.f32.mrb[0].mxu0
      %v4576 = vadd.f32 0.0, %v4575
      %v4577 = vpop.f32.mrb[0].mxu0
      %4578 = vmatprep.mubr.f32.mxu0 0.0
      %4579 = vmatmul.mubr.f32.gmra.mrb[0].mxu0 %v4505
      %v4580 = vpop.f32.mrb[0].mxu0
      %v4581 = vadd.f32 0.0, %v4580
      %v4582 = vpop.f32.mrb[0].mxu0
      %4583 = vdwg.mxu0
      %v4584 = vmul.f32 %v4576, 0.5
      %v4585 = vmul.f32 %v4581, 0.5
      %v4586 = vsel %vm546, %v4584, -inf
      %4587 = vmax.xlane.f32.xlu0 %v4586
      %v4588 = vpop.xlane.xlu0 %4587
      %v4589 = vsel %vm546, %v4585, -inf
      %4590 = vmax.xlane.f32.xlu0 %v4589
      %v4591 = vpop.xlane.xlu0 %4590
      %v4592 = vsub.f32 %v4584, %v4588
      %v4593 = vsub.f32 %v4585, %v4591
      %v4594 = vmul.f32 %v4592, 1.442695
      %v4595 = vpow.pop %v4594
      %v4596 = vmul.f32 %v4593, 1.442695
      %v4597 = vpow.pop %v4596
      %v4598 = vsel %vm546, %v4595, 0.0
      %4599 = vadd.xlane.f32.xlu0 %v4598
      %v4600 = vpop.xlane.xlu0 %4599
      %v4601 = vsel %vm546, %v4597, 0.0
      %4602 = vadd.xlane.f32.xlu0 %v4601
      %v4603 = vpop.xlane.xlu0 %4602
      %v4604 = vrcp.pop %v4600
      %v4605 = vrcp.pop %v4603
      %v4606 = vmul.f32 %v4595, %v4604
      %v4607 = vmul.f32 %v4597, %v4605
      %4608 = vrot.lane.b32.xlu0 %v4302, 116
      %v4609 = vpop.permute.xlu0 %4608
      %v4612 = vsel %vm546, %v4606, 0
      %v4615 = vsel %vm546, %v4607, 0
      %4617 = vmatprep.subr.mxu0 0.0
      %4618 = vmatpush1.msra.mxu0 %v4609
      %4619 = vmatprep.subr.mxu0 0.0
      %4620 = vmatpush1.msra.mxu0 0.0
      %4621 = vmatprep.subr.mxu0 0.0
      %4622 = vmatpush1.msra.mxu0 0.0
      %4623 = vmatprep.subr.mxu0 0.0
      %4624 = vmatpush1.msra.mxu0 0.0
      %4625 = vmatprep.subr.mxu0 0.0
      %4626 = vmatpush1.msra.mxu0 0.0
      %4627 = vmatprep.subr.mxu0 0.0
      %4628 = vmatpush1.msra.mxu0 0.0
      %4629 = vmatprep.subr.mxu0 0.0
      %4630 = vmatpush1.msra.mxu0 0.0
      %4631 = vmatprep.subr.mxu0 0.0
      %4632 = vmatpush1.msra.mxu0 0.0
      %4633 = vmatprep.subr.mxu0 0.0
      %4634 = vmatpush1.msra.mxu0 0.0
      %4635 = vmatprep.subr.mxu0 0.0
      %4636 = vmatpush1.msra.mxu0 0.0
      %4637 = vmatprep.subr.mxu0 0.0
      %4638 = vmatpush1.msra.mxu0 0.0
      %4639 = vmatprep.subr.mxu0 0.0
      %4640 = vmatpush1.msra.mxu0 0.0
      %4641 = vmatprep.subr.mxu0 0.0
      %4642 = vmatpush1.msra.mxu0 0.0
      %4643 = vmatprep.subr.mxu0 0.0
      %4644 = vmatpush1.msra.mxu0 0.0
      %4645 = vmatprep.subr.mxu0 0.0
      %4646 = vmatpush1.msra.mxu0 0.0
      %4647 = vmatprep.subr.mxu0 0.0
      %4648 = vmatpush1.msra.mxu0 0.0
      %4649 = vmatprep.subr.mxu0 0.0
      %4650 = vmatpush1.msra.mxu0 0.0
      %4651 = vmatprep.subr.mxu0 0.0
      %4652 = vmatpush1.msra.mxu0 0.0
      %4653 = vmatprep.subr.mxu0 0.0
      %4654 = vmatpush1.msra.mxu0 0.0
      %4655 = vmatprep.subr.mxu0 0.0
      %4656 = vmatpush1.msra.mxu0 0.0
      %4657 = vmatprep.subr.mxu0 0.0
      %4658 = vmatpush1.msra.mxu0 0.0
      %4659 = vmatprep.subr.mxu0 0.0
      %4660 = vmatpush1.msra.mxu0 0.0
      %4661 = vmatprep.subr.mxu0 0.0
      %4662 = vmatpush1.msra.mxu0 0.0
      %4663 = vmatprep.subr.mxu0 0.0
      %4664 = vmatpush1.msra.mxu0 0.0
      %4665 = vmatprep.subr.mxu0 0.0
      %4666 = vmatpush1.msra.mxu0 0.0
      %4667 = vmatprep.subr.mxu0 0.0
      %4668 = vmatpush1.msra.mxu0 0.0
      %4669 = vmatprep.subr.mxu0 0.0
      %4670 = vmatpush1.msra.mxu0 0.0
      %4671 = vmatprep.subr.mxu0 0.0
      %4672 = vmatpush1.msra.mxu0 0.0
      %4673 = vmatprep.subr.mxu0 0.0
      %4674 = vmatpush1.msra.mxu0 0.0
      %4675 = vmatprep.subr.mxu0 0.0
      %4676 = vmatpush1.msra.mxu0 0.0
      %4677 = vmatprep.subr.mxu0 0.0
      %4678 = vmatpush1.msra.mxu0 0.0
      %4679 = vmatprep.subr.mxu0 0.0
      %4680 = vmatpush1.msra.mxu0 0.0
      %4681 = vmatprep.mubr.f32.mxu0 0.0
      %4682 = vmatmul.mubr.f32.gmra.mrb[0].mxu0 %v4612
      %v4683 = vpop.f32.mrb[0].mxu0
      %v4684 = vadd.f32 0.0, %v4683
      %v4685 = vpop.f32.mrb[0].mxu0
      %4686 = vmatprep.mubr.f32.mxu0 0.0
      %4687 = vmatmul.mubr.f32.gmra.mrb[0].mxu0 %v4615
      %v4688 = vpop.f32.mrb[0].mxu0
      %v4689 = vadd.f32 0.0, %v4688
      %v4690 = vpop.f32.mrb[0].mxu0
      %4691 = vdwg.mxu0
      %4694 = vrot.lane.b32.xlu0 %v4684, 4
      %v4695 = vpop.permute.xlu0 %4694
      %4696 = vrot.lane.b32.xlu0 %v4689, 4
      %v4697 = vpop.permute.xlu0 %4696
      %v4700 = vsel %vm623, %v4489, %v4695
      %v4701 = vsel %vm623, %v4494, %v4697
      %v4702 = vld [vmem:[%s2 + $0x270] sm:$0xff]
      %v4703 = vld [vmem:[%s2 + $0x278] sm:$0x1]
      %v4704 = vlaneseq
      %v4705 = vshrl.u32 %v4704, 7
      %v4706 = vsub.s32 0, %v4705
      %v4707 = vrot.slane %v4703, %v4706
      %v4709 = vsel %vm546, %v4700, 0
      %v4712 = vsel %vm546, %v4701, 0
      %4714 = vmatprep.subr.mxu0 0.0
      %4715 = vmatpush1.msra.mxu0 %v4702
      %4716 = vmatprep.subr.mxu0 0.0
      %4717 = vmatpush1.msra.mxu0 0.0
      %4718 = vmatprep.subr.mxu0 0.0
      %4719 = vmatpush1.msra.mxu0 0.0
      %4720 = vmatprep.subr.mxu0 0.0
      %4721 = vmatpush1.msra.mxu0 0.0
      %4722 = vmatprep.subr.mxu0 0.0
      %4723 = vmatpush1.msra.mxu0 0.0
      %4724 = vmatprep.subr.mxu0 0.0
      %4725 = vmatpush1.msra.mxu0 0.0
      %4726 = vmatprep.subr.mxu0 0.0
      %4727 = vmatpush1.msra.mxu0 0.0
      %4728 = vmatprep.subr.mxu0 0.0
      %4729 = vmatpush1.msra.mxu0 0.0
      %4730 = vmatprep.subr.mxu0 0.0
      %4731 = vmatpush1.msra.mxu0 0.0
      %4732 = vmatprep.subr.mxu0 0.0
      %4733 = vmatpush1.msra.mxu0 0.0
      %4734 = vmatprep.subr.mxu0 0.0
      %4735 = vmatpush1.msra.mxu0 0.0
      %4736 = vmatprep.subr.mxu0 0.0
      %4737 = vmatpush1.msra.mxu0 0.0
      %4738 = vmatprep.subr.mxu0 0.0
      %4739 = vmatpush1.msra.mxu0 0.0
      %4740 = vmatprep.subr.mxu0 0.0
      %4741 = vmatpush1.msra.mxu0 0.0
      %4742 = vmatprep.subr.mxu0 0.0
      %4743 = vmatpush1.msra.mxu0 0.0
      %4744 = vmatprep.subr.mxu0 0.0
      %4745 = vmatpush1.msra.mxu0 0.0
      %4746 = vmatprep.subr.mxu0 0.0
      %4747 = vmatpush1.msra.mxu0 0.0
      %4748 = vmatprep.subr.mxu0 0.0
      %4749 = vmatpush1.msra.mxu0 0.0
      %4750 = vmatprep.subr.mxu0 0.0
      %4751 = vmatpush1.msra.mxu0 0.0
      %4752 = vmatprep.subr.mxu0 0.0
      %4753 = vmatpush1.msra.mxu0 0.0
      %4754 = vmatprep.subr.mxu0 0.0
      %4755 = vmatpush1.msra.mxu0 0.0
      %4756 = vmatprep.subr.mxu0 0.0
      %4757 = vmatpush1.msra.mxu0 0.0
      %4758 = vmatprep.subr.mxu0 0.0
      %4759 = vmatpush1.msra.mxu0 0.0
      %4760 = vmatprep.subr.mxu0 0.0
      %4761 = vmatpush1.msra.mxu0 0.0
      %4762 = vmatprep.subr.mxu0 0.0
      %4763 = vmatpush1.msra.mxu0 0.0
      %4764 = vmatprep.subr.mxu0 0.0
      %4765 = vmatpush1.msra.mxu0 0.0
      %4766 = vmatprep.subr.mxu0 0.0
      %4767 = vmatpush1.msra.mxu0 0.0
      %4768 = vmatprep.subr.mxu0 0.0
      %4769 = vmatpush1.msra.mxu0 0.0
      %4770 = vmatprep.subr.mxu0 0.0
      %4771 = vmatpush1.msra.mxu0 0.0
      %4772 = vmatprep.subr.mxu0 0.0
      %4773 = vmatpush1.msra.mxu0 0.0
      %4774 = vmatprep.subr.mxu0 0.0
      %4775 = vmatpush1.msra.mxu0 0.0
      %4776 = vmatprep.subr.mxu0 0.0
      %4777 = vmatpush1.msra.mxu0 0.0
      %4778 = vmatprep.mubr.f32.mxu0 0.0
      %4779 = vmatmul.mubr.f32.gmra.mrb[0].mxu0 %v4709
      %v4780 = vpop.f32.mrb[0].mxu0
      %v4781 = vadd.f32 %v4707, %v4780
      %v4782 = vpop.f32.mrb[0].mxu0
      %4783 = vmatprep.mubr.f32.mxu0 0.0
      %4784 = vmatmul.mubr.f32.gmra.mrb[0].mxu0 %v4712
      %v4785 = vpop.f32.mrb[0].mxu0
      %v4786 = vadd.f32 %v4707, %v4785
      %v4787 = vpop.f32.mrb[0].mxu0
      %4788 = vdwg.mxu0
      %v4789 = vadd.f32 %v4140, %v4781
      %v4790 = vadd.f32 %v4141, %v4786
      %v4791 = vsel %vm546, %v4789, 0.0
      %4792 = vadd.xlane.f32.xlu0 %v4791
      %v4793 = vpop.xlane.xlu0 %4792
      %v4794 = vsel %vm546, %v4790, 0.0
      %4795 = vadd.xlane.f32.xlu0 %v4794
      %v4796 = vpop.xlane.xlu0 %4795
      %v4797 = vmul.f32 %v4793, %v1044
      %v4798 = vmul.f32 %v4796, %v1044
      %v4799 = vsub.f32 %v4789, %v4797
      %v4800 = vsub.f32 %v4790, %v4798
      %v4801 = vmul.f32 %v4799, %v4799
      %v4802 = vmul.f32 %v4800, %v4800
      %v4803 = vsel %vm546, %v4801, 0.0
      %4804 = vadd.xlane.f32.xlu0 %v4803
      %v4805 = vpop.xlane.xlu0 %4804
      %v4806 = vsel %vm546, %v4802, 0.0
      %4807 = vadd.xlane.f32.xlu0 %v4806
      %v4808 = vpop.xlane.xlu0 %4807
      %v4809 = vmul.f32 %v4805, %v1044
      %v4810 = vmul.f32 %v4808, %v1044
      %v4811 = vadd.f32 %v4809, 1e-05
      %v4812 = vadd.f32 %v4810, 1e-05
      %v4813 = vrsqrt.pop %v4811
      %v4814 = vrsqrt.pop %v4812
      %v4815 = vmul.f32 %v4799, %v4813
      %v4816 = vmul.f32 %v4800, %v4814
      %v4817 = vld [vmem:[%s2 + $0x280] sm:$0x1]
      %v4818 = vlaneseq
      %v4819 = vshrl.u32 %v4818, 7
      %v4820 = vsub.s32 0, %v4819
      %v4821 = vrot.slane %v4817, %v4820
      %v4822 = vmul.f32 %v4815, %v4821
      %v4823 = vmul.f32 %v4816, %v4821
      %v4824 = vld [vmem:[%s2 + $0x288] sm:$0x1]
      %v4825 = vlaneseq
      %v4826 = vshrl.u32 %v4825, 7
      %v4827 = vsub.s32 0, %v4826
      %v4828 = vrot.slane %v4824, %v4827
      %v4829 = vadd.f32 %v4822, %v4828
      %v4830 = vadd.f32 %v4823, %v4828
      %v4831 = vld [vmem:[%s2 + $0x290] sm:$0xff]
      %v4832 = vld [vmem:[%s2 + $0x298] sm:$0x1]
      %v4833 = vlaneseq
      %v4834 = vshrl.u32 %v4833, 7
      %v4835 = vsub.s32 0, %v4834
      %v4836 = vrot.slane %v4832, %v4835
      %v4838 = vsel %vm546, %v4829, 0
      %v4841 = vsel %vm546, %v4830, 0
      %4843 = vmatprep.subr.mxu0 0.0
      %4844 = vmatpush1.msra.mxu0 %v4831
      %4845 = vmatprep.subr.mxu0 0.0
      %4846 = vmatpush1.msra.mxu0 0.0
      %4847 = vmatprep.subr.mxu0 0.0
      %4848 = vmatpush1.msra.mxu0 0.0
      %4849 = vmatprep.subr.mxu0 0.0
      %4850 = vmatpush1.msra.mxu0 0.0
      %4851 = vmatprep.subr.mxu0 0.0
      %4852 = vmatpush1.msra.mxu0 0.0
      %4853 = vmatprep.subr.mxu0 0.0
      %4854 = vmatpush1.msra.mxu0 0.0
      %4855 = vmatprep.subr.mxu0 0.0
      %4856 = vmatpush1.msra.mxu0 0.0
      %4857 = vmatprep.subr.mxu0 0.0
      %4858 = vmatpush1.msra.mxu0 0.0
      %4859 = vmatprep.subr.mxu0 0.0
      %4860 = vmatpush1.msra.mxu0 0.0
      %4861 = vmatprep.subr.mxu0 0.0
      %4862 = vmatpush1.msra.mxu0 0.0
      %4863 = vmatprep.subr.mxu0 0.0
      %4864 = vmatpush1.msra.mxu0 0.0
      %4865 = vmatprep.subr.mxu0 0.0
      %4866 = vmatpush1.msra.mxu0 0.0
      %4867 = vmatprep.subr.mxu0 0.0
      %4868 = vmatpush1.msra.mxu0 0.0
      %4869 = vmatprep.subr.mxu0 0.0
      %4870 = vmatpush1.msra.mxu0 0.0
      %4871 = vmatprep.subr.mxu0 0.0
      %4872 = vmatpush1.msra.mxu0 0.0
      %4873 = vmatprep.subr.mxu0 0.0
      %4874 = vmatpush1.msra.mxu0 0.0
      %4875 = vmatprep.subr.mxu0 0.0
      %4876 = vmatpush1.msra.mxu0 0.0
      %4877 = vmatprep.subr.mxu0 0.0
      %4878 = vmatpush1.msra.mxu0 0.0
      %4879 = vmatprep.subr.mxu0 0.0
      %4880 = vmatpush1.msra.mxu0 0.0
      %4881 = vmatprep.subr.mxu0 0.0
      %4882 = vmatpush1.msra.mxu0 0.0
      %4883 = vmatprep.subr.mxu0 0.0
      %4884 = vmatpush1.msra.mxu0 0.0
      %4885 = vmatprep.subr.mxu0 0.0
      %4886 = vmatpush1.msra.mxu0 0.0
      %4887 = vmatprep.subr.mxu0 0.0
      %4888 = vmatpush1.msra.mxu0 0.0
      %4889 = vmatprep.subr.mxu0 0.0
      %4890 = vmatpush1.msra.mxu0 0.0
      %4891 = vmatprep.subr.mxu0 0.0
      %4892 = vmatpush1.msra.mxu0 0.0
      %4893 = vmatprep.subr.mxu0 0.0
      %4894 = vmatpush1.msra.mxu0 0.0
      %4895 = vmatprep.subr.mxu0 0.0
      %4896 = vmatpush1.msra.mxu0 0.0
      %4897 = vmatprep.subr.mxu0 0.0
      %4898 = vmatpush1.msra.mxu0 0.0
      %4899 = vmatprep.subr.mxu0 0.0
      %4900 = vmatpush1.msra.mxu0 0.0
      %4901 = vmatprep.subr.mxu0 0.0
      %4902 = vmatpush1.msra.mxu0 0.0
      %4903 = vmatprep.subr.mxu0 0.0
      %4904 = vmatpush1.msra.mxu0 0.0
      %4905 = vmatprep.subr.mxu0 0.0
      %4906 = vmatpush1.msra.mxu0 0.0
      %4907 = vmatprep.mubr.f32.mxu0 0.0
      %4908 = vmatmul.mubr.f32.gmra.mrb[0].mxu0 %v4838
      %v4909 = vpop.f32.mrb[0].mxu0
      %v4910 = vadd.f32 %v4836, %v4909
      %v4911 = vpop.f32.mrb[0].mxu0
      %4912 = vmatprep.mubr.f32.mxu0 0.0
      %4913 = vmatmul.mubr.f32.gmra.mrb[0].mxu0 %v4841
      %v4914 = vpop.f32.mrb[0].mxu0
      %v4915 = vadd.f32 %v4836, %v4914
      %v4916 = vpop.f32.mrb[0].mxu0
      %4917 = vdwg.mxu0
      %v4918 = vmax.f32 %v4910, 0.0
      %v4919 = vmax.f32 %v4915, 0.0
      %v4920 = vld [vmem:[%s2 + $0x2a0] sm:$0xff]
      %v4921 = vld [vmem:[%s2 + $0x2a8] sm:$0xff]
      %v4922 = vld [vmem:[%s2 + $0x2b0] sm:$0x1]
      %v4923 = vlaneseq
      %v4924 = vshrl.u32 %v4923, 7
      %v4925 = vsub.s32 0, %v4924
      %v4926 = vrot.slane %v4922, %v4925
      %v4928 = vsel %vm283, %v4918, 0
      %v4931 = vsel %vm283, %v4919, 0
      %4933 = vmatprep.subr.mxu0 0.0
      %4934 = vmatpush1.msra.mxu0 %v4920
      %4935 = vmatprep.subr.mxu0 0.0
      %4936 = vmatpush1.msra.mxu0 %v4921
      %4937 = vmatprep.subr.mxu0 0.0
      %4938 = vmatpush1.msra.mxu0 0.0
      %4939 = vmatprep.subr.mxu0 0.0
      %4940 = vmatpush1.msra.mxu0 0.0
      %4941 = vmatprep.subr.mxu0 0.0
      %4942 = vmatpush1.msra.mxu0 0.0
      %4943 = vmatprep.subr.mxu0 0.0
      %4944 = vmatpush1.msra.mxu0 0.0
      %4945 = vmatprep.subr.mxu0 0.0
      %4946 = vmatpush1.msra.mxu0 0.0
      %4947 = vmatprep.subr.mxu0 0.0
      %4948 = vmatpush1.msra.mxu0 0.0
      %4949 = vmatprep.subr.mxu0 0.0
      %4950 = vmatpush1.msra.mxu0 0.0
      %4951 = vmatprep.subr.mxu0 0.0
      %4952 = vmatpush1.msra.mxu0 0.0
      %4953 = vmatprep.subr.mxu0 0.0
      %4954 = vmatpush1.msra.mxu0 0.0
      %4955 = vmatprep.subr.mxu0 0.0
      %4956 = vmatpush1.msra.mxu0 0.0
      %4957 = vmatprep.subr.mxu0 0.0
      %4958 = vmatpush1.msra.mxu0 0.0
      %4959 = vmatprep.subr.mxu0 0.0
      %4960 = vmatpush1.msra.mxu0 0.0
      %4961 = vmatprep.subr.mxu0 0.0
      %4962 = vmatpush1.msra.mxu0 0.0
      %4963 = vmatprep.subr.mxu0 0.0
      %4964 = vmatpush1.msra.mxu0 0.0
      %4965 = vmatprep.subr.mxu0 0.0
      %4966 = vmatpush1.msra.mxu0 0.0
      %4967 = vmatprep.subr.mxu0 0.0
      %4968 = vmatpush1.msra.mxu0 0.0
      %4969 = vmatprep.subr.mxu0 0.0
      %4970 = vmatpush1.msra.mxu0 0.0
      %4971 = vmatprep.subr.mxu0 0.0
      %4972 = vmatpush1.msra.mxu0 0.0
      %4973 = vmatprep.subr.mxu0 0.0
      %4974 = vmatpush1.msra.mxu0 0.0
      %4975 = vmatprep.subr.mxu0 0.0
      %4976 = vmatpush1.msra.mxu0 0.0
      %4977 = vmatprep.subr.mxu0 0.0
      %4978 = vmatpush1.msra.mxu0 0.0
      %4979 = vmatprep.subr.mxu0 0.0
      %4980 = vmatpush1.msra.mxu0 0.0
      %4981 = vmatprep.subr.mxu0 0.0
      %4982 = vmatpush1.msra.mxu0 0.0
      %4983 = vmatprep.subr.mxu0 0.0
      %4984 = vmatpush1.msra.mxu0 0.0
      %4985 = vmatprep.subr.mxu0 0.0
      %4986 = vmatpush1.msra.mxu0 0.0
      %4987 = vmatprep.subr.mxu0 0.0
      %4988 = vmatpush1.msra.mxu0 0.0
      %4989 = vmatprep.subr.mxu0 0.0
      %4990 = vmatpush1.msra.mxu0 0.0
      %4991 = vmatprep.subr.mxu0 0.0
      %4992 = vmatpush1.msra.mxu0 0.0
      %4993 = vmatprep.subr.mxu0 0.0
      %4994 = vmatpush1.msra.mxu0 0.0
      %4995 = vmatprep.subr.mxu0 0.0
      %4996 = vmatpush1.msra.mxu0 0.0
      %4997 = vmatprep.mubr.f32.mxu0 0.0
      %4998 = vmatmul.mubr.f32.gmra.mrb[0].mxu0 %v4928
      %v4999 = vpop.f32.mrb[0].mxu0
      %v5000 = vadd.f32 %v4926, %v4999
      %v5001 = vpop.f32.mrb[0].mxu0
      %5002 = vmatprep.mubr.f32.mxu0 0.0
      %5003 = vmatmul.mubr.f32.gmra.mrb[0].mxu0 %v4931
      %v5004 = vpop.f32.mrb[0].mxu0
      %v5005 = vadd.f32 %v4926, %v5004
      %v5006 = vpop.f32.mrb[0].mxu0
      %5007 = vdwg.mxu0
      %v5008 = vadd.f32 %v4829, %v5000
      %v5009 = vadd.f32 %v4830, %v5005
      %v5010 = vsel %vm546, %v5008, 0.0
      %5011 = vadd.xlane.f32.xlu0 %v5010
      %v5012 = vpop.xlane.xlu0 %5011
      %v5013 = vsel %vm546, %v5009, 0.0
      %5014 = vadd.xlane.f32.xlu0 %v5013
      %v5015 = vpop.xlane.xlu0 %5014
      %v5016 = vmul.f32 %v5012, %v1044
      %v5017 = vmul.f32 %v5015, %v1044
      %v5018 = vsub.f32 %v5008, %v5016
      %v5019 = vsub.f32 %v5009, %v5017
      %v5020 = vmul.f32 %v5018, %v5018
      %v5021 = vmul.f32 %v5019, %v5019
      %v5022 = vsel %vm546, %v5020, 0.0
      %5023 = vadd.xlane.f32.xlu0 %v5022
      %v5024 = vpop.xlane.xlu0 %5023
      %v5025 = vsel %vm546, %v5021, 0.0
      %5026 = vadd.xlane.f32.xlu0 %v5025
      %v5027 = vpop.xlane.xlu0 %5026
      %v5028 = vmul.f32 %v5024, %v1044
      %v5029 = vmul.f32 %v5027, %v1044
      %v5030 = vadd.f32 %v5028, 1e-05
      %v5031 = vadd.f32 %v5029, 1e-05
      %v5032 = vrsqrt.pop %v5030
      %v5033 = vrsqrt.pop %v5031
      %v5034 = vmul.f32 %v5018, %v5032
      %v5035 = vmul.f32 %v5019, %v5033
      %v5036 = vld [vmem:[%s2 + $0x2b8] sm:$0x1]
      %v5037 = vlaneseq
      %v5038 = vshrl.u32 %v5037, 7
      %v5039 = vsub.s32 0, %v5038
      %v5040 = vrot.slane %v5036, %v5039
      %v5041 = vmul.f32 %v5034, %v5040
      %v5042 = vmul.f32 %v5035, %v5040
      %v5043 = vld [vmem:[%s2 + $0x2c0] sm:$0x1]
      %v5044 = vlaneseq
      %v5045 = vshrl.u32 %v5044, 7
      %v5046 = vsub.s32 0, %v5045
      %v5047 = vrot.slane %v5043, %v5046
      %v5048 = vadd.f32 %v5041, %v5047
      %v5049 = vadd.f32 %v5042, %v5047
      %v5050 = vld [vmem:[%s2 + $0x2c8] sm:$0xff]
      %v5051 = vld [vmem:[%s2 + $0x2d0] sm:$0x1]
      %v5052 = vlaneseq
      %v5053 = vshrl.u32 %v5052, 7
      %v5054 = vsub.s32 0, %v5053
      %v5055 = vrot.slane %v5051, %v5054
      %v5057 = vsel %vm546, %v5048, 0
      %v5060 = vsel %vm546, %v5049, 0
      %5062 = vmatprep.subr.mxu0 0.0
      %5063 = vmatpush1.msra.mxu0 %v5050
      %5064 = vmatprep.subr.mxu0 0.0
      %5065 = vmatpush1.msra.mxu0 0.0
      %5066 = vmatprep.subr.mxu0 0.0
      %5067 = vmatpush1.msra.mxu0 0.0
      %5068 = vmatprep.subr.mxu0 0.0
      %5069 = vmatpush1.msra.mxu0 0.0
      %5070 = vmatprep.subr.mxu0 0.0
      %5071 = vmatpush1.msra.mxu0 0.0
      %5072 = vmatprep.subr.mxu0 0.0
      %5073 = vmatpush1.msra.mxu0 0.0
      %5074 = vmatprep.subr.mxu0 0.0
      %5075 = vmatpush1.msra.mxu0 0.0
      %5076 = vmatprep.subr.mxu0 0.0
      %5077 = vmatpush1.msra.mxu0 0.0
      %5078 = vmatprep.subr.mxu0 0.0
      %5079 = vmatpush1.msra.mxu0 0.0
      %5080 = vmatprep.subr.mxu0 0.0
      %5081 = vmatpush1.msra.mxu0 0.0
      %5082 = vmatprep.subr.mxu0 0.0
      %5083 = vmatpush1.msra.mxu0 0.0
      %5084 = vmatprep.subr.mxu0 0.0
      %5085 = vmatpush1.msra.mxu0 0.0
      %5086 = vmatprep.subr.mxu0 0.0
      %5087 = vmatpush1.msra.mxu0 0.0
      %5088 = vmatprep.subr.mxu0 0.0
      %5089 = vmatpush1.msra.mxu0 0.0
      %5090 = vmatprep.subr.mxu0 0.0
      %5091 = vmatpush1.msra.mxu0 0.0
      %5092 = vmatprep.subr.mxu0 0.0
      %5093 = vmatpush1.msra.mxu0 0.0
      %5094 = vmatprep.subr.mxu0 0.0
      %5095 = vmatpush1.msra.mxu0 0.0
      %5096 = vmatprep.subr.mxu0 0.0
      %5097 = vmatpush1.msra.mxu0 0.0
      %5098 = vmatprep.subr.mxu0 0.0
      %5099 = vmatpush1.msra.mxu0 0.0
      %5100 = vmatprep.subr.mxu0 0.0
      %5101 = vmatpush1.msra.mxu0 0.0
      %5102 = vmatprep.subr.mxu0 0.0
      %5103 = vmatpush1.msra.mxu0 0.0
      %5104 = vmatprep.subr.mxu0 0.0
      %5105 = vmatpush1.msra.mxu0 0.0
      %5106 = vmatprep.subr.mxu0 0.0
      %5107 = vmatpush1.msra.mxu0 0.0
      %5108 = vmatprep.subr.mxu0 0.0
      %5109 = vmatpush1.msra.mxu0 0.0
      %5110 = vmatprep.subr.mxu0 0.0
      %5111 = vmatpush1.msra.mxu0 0.0
      %5112 = vmatprep.subr.mxu0 0.0
      %5113 = vmatpush1.msra.mxu0 0.0
      %5114 = vmatprep.subr.mxu0 0.0
      %5115 = vmatpush1.msra.mxu0 0.0
      %5116 = vmatprep.subr.mxu0 0.0
      %5117 = vmatpush1.msra.mxu0 0.0
      %5118 = vmatprep.subr.mxu0 0.0
      %5119 = vmatpush1.msra.mxu0 0.0
      %5120 = vmatprep.subr.mxu0 0.0
      %5121 = vmatpush1.msra.mxu0 0.0
      %5122 = vmatprep.subr.mxu0 0.0
      %5123 = vmatpush1.msra.mxu0 0.0
      %5124 = vmatprep.subr.mxu0 0.0
      %5125 = vmatpush1.msra.mxu0 0.0
      %5126 = vmatprep.mubr.f32.mxu0 0.0
      %5127 = vmatmul.mubr.f32.gmra.mrb[0].mxu0 %v5057
      %v5128 = vpop.f32.mrb[0].mxu0
      %v5129 = vadd.f32 %v5055, %v5128
      %v5130 = vpop.f32.mrb[0].mxu0
      %5131 = vmatprep.mubr.f32.mxu0 0.0
      %5132 = vmatmul.mubr.f32.gmra.mrb[0].mxu0 %v5060
      %v5133 = vpop.f32.mrb[0].mxu0
      %v5134 = vadd.f32 %v5055, %v5133
      %v5135 = vpop.f32.mrb[0].mxu0
      %5136 = vdwg.mxu0
      %v5137 = vmax.f32 %v5129, 0.0
      %v5138 = vmax.f32 %v5134, 0.0
      %v5139 = vld [vmem:[%s2 + $0x2d8] sm:$0xff]
      %v5140 = vld [vmem:[%s2 + $0x2e0] sm:$0xff]
      %v5141 = vld [vmem:[%s2 + $0x2e8] sm:$0xff]
      %v5142 = vld [vmem:[%s2 + $0x2f0] sm:$0xff]
      %v5143 = vld [vmem:[%s2 + $0x2f8] sm:$0xff]
      %v5144 = vld [vmem:[%s2 + $0x300] sm:$0xff]
      %v5145 = vld [vmem:[%s2 + $0x308] sm:$0xff]
      %v5146 = vld [vmem:[%s2 + $0x310] sm:$0xff]
      %v5147 = vld [vmem:[%s2 + $0x318] sm:$0xff]
      %v5148 = vld [vmem:[%s2 + $0x320] sm:$0xff]
      %v5149 = vld [vmem:[%s2 + $0x328] sm:$0x1]
      %v5150 = vlaneseq
      %v5151 = vshrl.u32 %v5150, 7
      %v5152 = vsub.s32 0, %v5151
      %v5153 = vrot.slane %v5149, %v5152
      %vm5154 = vcmask 654336
      %v5156 = vsel %vm5154, %v5137, 0
      %v5159 = vsel %vm5154, %v5138, 0
      %5161 = vmatprep.subr.mxu0 0.0
      %5162 = vmatpush1.msra.mxu0 %v5139
      %5163 = vmatprep.subr.mxu0 0.0
      %5164 = vmatpush1.msra.mxu0 %v5140
      %5165 = vmatprep.subr.mxu0 0.0
      %5166 = vmatpush1.msra.mxu0 %v5141
      %5167 = vmatprep.subr.mxu0 0.0
      %5168 = vmatpush1.msra.mxu0 %v5142
      %5169 = vmatprep.subr.mxu0 0.0
      %5170 = vmatpush1.msra.mxu0 %v5143
      %5171 = vmatprep.subr.mxu0 0.0
      %5172 = vmatpush1.msra.mxu0 %v5144
      %5173 = vmatprep.subr.mxu0 0.0
      %5174 = vmatpush1.msra.mxu0 %v5145
      %5175 = vmatprep.subr.mxu0 0.0
      %5176 = vmatpush1.msra.mxu0 %v5146
      %5177 = vmatprep.subr.mxu0 0.0
      %5178 = vmatpush1.msra.mxu0 %v5147
      %5179 = vmatprep.subr.mxu0 0.0
      %5180 = vmatpush1.msra.mxu0 %v5148
      %5181 = vmatprep.subr.mxu0 0.0
      %5182 = vmatpush1.msra.mxu0 0.0
      %5183 = vmatprep.subr.mxu0 0.0
      %5184 = vmatpush1.msra.mxu0 0.0
      %5185 = vmatprep.subr.mxu0 0.0
      %5186 = vmatpush1.msra.mxu0 0.0
      %5187 = vmatprep.subr.mxu0 0.0
      %5188 = vmatpush1.msra.mxu0 0.0
      %5189 = vmatprep.subr.mxu0 0.0
      %5190 = vmatpush1.msra.mxu0 0.0
      %5191 = vmatprep.subr.mxu0 0.0
      %5192 = vmatpush1.msra.mxu0 0.0
      %5193 = vmatprep.subr.mxu0 0.0
      %5194 = vmatpush1.msra.mxu0 0.0
      %5195 = vmatprep.subr.mxu0 0.0
      %5196 = vmatpush1.msra.mxu0 0.0
      %5197 = vmatprep.subr.mxu0 0.0
      %5198 = vmatpush1.msra.mxu0 0.0
      %5199 = vmatprep.subr.mxu0 0.0
      %5200 = vmatpush1.msra.mxu0 0.0
      %5201 = vmatprep.subr.mxu0 0.0
      %5202 = vmatpush1.msra.mxu0 0.0
      %5203 = vmatprep.subr.mxu0 0.0
      %5204 = vmatpush1.msra.mxu0 0.0
      %5205 = vmatprep.subr.mxu0 0.0
      %5206 = vmatpush1.msra.mxu0 0.0
      %5207 = vmatprep.subr.mxu0 0.0
      %5208 = vmatpush1.msra.mxu0 0.0
      %5209 = vmatprep.subr.mxu0 0.0
      %5210 = vmatpush1.msra.mxu0 0.0
      %5211 = vmatprep.subr.mxu0 0.0
      %5212 = vmatpush1.msra.mxu0 0.0
      %5213 = vmatprep.subr.mxu0 0.0
      %5214 = vmatpush1.msra.mxu0 0.0
      %5215 = vmatprep.subr.mxu0 0.0
      %5216 = vmatpush1.msra.mxu0 0.0
      %5217 = vmatprep.subr.mxu0 0.0
      %5218 = vmatpush1.msra.mxu0 0.0
      %5219 = vmatprep.subr.mxu0 0.0
      %5220 = vmatpush1.msra.mxu0 0.0
      %5221 = vmatprep.subr.mxu0 0.0
      %5222 = vmatpush1.msra.mxu0 0.0
      %5223 = vmatprep.subr.mxu0 0.0
      %5224 = vmatpush1.msra.mxu0 0.0
      %5225 = vmatprep.mubr.f32.mxu0 0.0
      %5226 = vmatmul.mubr.f32.gmra.mrb[0].mxu0 %v5156
      %v5227 = vpop.f32.mrb[0].mxu0
      %v5228 = vadd.f32 %v5153, %v5227
      %v5229 = vpop.f32.mrb[0].mxu0
      %5230 = vmatprep.mubr.f32.mxu0 0.0
      %5231 = vmatmul.mubr.f32.gmra.mrb[0].mxu0 %v5159
      %v5232 = vpop.f32.mrb[0].mxu0
      %v5233 = vadd.f32 %v5153, %v5232
      %v5234 = vpop.f32.mrb[0].mxu0
      %5235 = vdwg.mxu0
      %v5236 = vmax.f32 %v5228, 0.0
      %v5237 = vmax.f32 %v5233, 0.0
      %v5238 = vld [vmem:[%s2 + $0x330] sm:$0xff]
      %v5239 = vld [vmem:[%s2 + $0x338] sm:$0xff]
      %v5240 = vld [vmem:[%s2 + $0x340] sm:$0xff]
      %v5241 = vld [vmem:[%s2 + $0x348] sm:$0xff]
      %v5242 = vld [vmem:[%s2 + $0x350] sm:$0xff]
      %v5243 = vld [vmem:[%s2 + $0x358] sm:$0xff]
      %v5244 = vld [vmem:[%s2 + $0x360] sm:$0x1]
      %v5245 = vlaneseq
      %v5246 = vshrl.u32 %v5245, 7
      %v5247 = vsub.s32 0, %v5246
      %v5248 = vrot.slane %v5244, %v5247
      %vm5249 = vcmask 392192
      %v5251 = vsel %vm5249, %v5236, 0
      %v5254 = vsel %vm5249, %v5237, 0
      %5256 = vmatprep.subr.mxu0 0.0
      %5257 = vmatpush1.msra.mxu0 %v5238
      %5258 = vmatprep.subr.mxu0 0.0
      %5259 = vmatpush1.msra.mxu0 %v5239
      %5260 = vmatprep.subr.mxu0 0.0
      %5261 = vmatpush1.msra.mxu0 %v5240
      %5262 = vmatprep.subr.mxu0 0.0
      %5263 = vmatpush1.msra.mxu0 %v5241
      %5264 = vmatprep.subr.mxu0 0.0
      %5265 = vmatpush1.msra.mxu0 %v5242
      %5266 = vmatprep.subr.mxu0 0.0
      %5267 = vmatpush1.msra.mxu0 %v5243
      %5268 = vmatprep.subr.mxu0 0.0
      %5269 = vmatpush1.msra.mxu0 0.0
      %5270 = vmatprep.subr.mxu0 0.0
      %5271 = vmatpush1.msra.mxu0 0.0
      %5272 = vmatprep.subr.mxu0 0.0
      %5273 = vmatpush1.msra.mxu0 0.0
      %5274 = vmatprep.subr.mxu0 0.0
      %5275 = vmatpush1.msra.mxu0 0.0
      %5276 = vmatprep.subr.mxu0 0.0
      %5277 = vmatpush1.msra.mxu0 0.0
      %5278 = vmatprep.subr.mxu0 0.0
      %5279 = vmatpush1.msra.mxu0 0.0
      %5280 = vmatprep.subr.mxu0 0.0
      %5281 = vmatpush1.msra.mxu0 0.0
      %5282 = vmatprep.subr.mxu0 0.0
      %5283 = vmatpush1.msra.mxu0 0.0
      %5284 = vmatprep.subr.mxu0 0.0
      %5285 = vmatpush1.msra.mxu0 0.0
      %5286 = vmatprep.subr.mxu0 0.0
      %5287 = vmatpush1.msra.mxu0 0.0
      %5288 = vmatprep.subr.mxu0 0.0
      %5289 = vmatpush1.msra.mxu0 0.0
      %5290 = vmatprep.subr.mxu0 0.0
      %5291 = vmatpush1.msra.mxu0 0.0
      %5292 = vmatprep.subr.mxu0 0.0
      %5293 = vmatpush1.msra.mxu0 0.0
      %5294 = vmatprep.subr.mxu0 0.0
      %5295 = vmatpush1.msra.mxu0 0.0
      %5296 = vmatprep.subr.mxu0 0.0
      %5297 = vmatpush1.msra.mxu0 0.0
      %5298 = vmatprep.subr.mxu0 0.0
      %5299 = vmatpush1.msra.mxu0 0.0
      %5300 = vmatprep.subr.mxu0 0.0
      %5301 = vmatpush1.msra.mxu0 0.0
      %5302 = vmatprep.subr.mxu0 0.0
      %5303 = vmatpush1.msra.mxu0 0.0
      %5304 = vmatprep.subr.mxu0 0.0
      %5305 = vmatpush1.msra.mxu0 0.0
      %5306 = vmatprep.subr.mxu0 0.0
      %5307 = vmatpush1.msra.mxu0 0.0
      %5308 = vmatprep.subr.mxu0 0.0
      %5309 = vmatpush1.msra.mxu0 0.0
      %5310 = vmatprep.subr.mxu0 0.0
      %5311 = vmatpush1.msra.mxu0 0.0
      %5312 = vmatprep.subr.mxu0 0.0
      %5313 = vmatpush1.msra.mxu0 0.0
      %5314 = vmatprep.subr.mxu0 0.0
      %5315 = vmatpush1.msra.mxu0 0.0
      %5316 = vmatprep.subr.mxu0 0.0
      %5317 = vmatpush1.msra.mxu0 0.0
      %5318 = vmatprep.subr.mxu0 0.0
      %5319 = vmatpush1.msra.mxu0 0.0
      %5320 = vmatprep.mubr.f32.mxu0 0.0
      %5321 = vmatmul.mubr.f32.gmra.mrb[0].mxu0 %v5251
      %v5322 = vpop.f32.mrb[0].mxu0
      %v5323 = vadd.f32 %v5248, %v5322
      %v5324 = vpop.f32.mrb[0].mxu0
      %5325 = vmatprep.mubr.f32.mxu0 0.0
      %5326 = vmatmul.mubr.f32.gmra.mrb[0].mxu0 %v5254
      %v5327 = vpop.f32.mrb[0].mxu0
      %v5328 = vadd.f32 %v5248, %v5327
      %v5329 = vpop.f32.mrb[0].mxu0
      %5330 = vdwg.mxu0
      %v5331 = vmax.f32 %v5323, 0.0
      %v5332 = vmax.f32 %v5328, 0.0
      %v5333 = vld [vmem:[%s2 + $0x368] sm:$0xff]
      %v5334 = vld [vmem:[%s2 + $0x370] sm:$0xff]
      %v5335 = vld [vmem:[%s2 + $0x378] sm:$0xff]
      %v5336 = vld [vmem:[%s2 + $0x380] sm:$0xff]
      %v5337 = vld [vmem:[%s2 + $0x388] sm:$0x1]
      %v5338 = vlaneseq
      %v5339 = vshrl.u32 %v5338, 7
      %v5340 = vsub.s32 0, %v5339
      %v5341 = vrot.slane %v5337, %v5340
      %vm5342 = vcmask 261120
      %v5344 = vsel %vm5342, %v5331, 0
      %v5347 = vsel %vm5342, %v5332, 0
      %5349 = vmatprep.subr.mxu0 0.0
      %5350 = vmatpush1.msra.mxu0 %v5333
      %5351 = vmatprep.subr.mxu0 0.0
      %5352 = vmatpush1.msra.mxu0 %v5334
      %5353 = vmatprep.subr.mxu0 0.0
      %5354 = vmatpush1.msra.mxu0 %v5335
      %5355 = vmatprep.subr.mxu0 0.0
      %5356 = vmatpush1.msra.mxu0 %v5336
      %5357 = vmatprep.subr.mxu0 0.0
      %5358 = vmatpush1.msra.mxu0 0.0
      %5359 = vmatprep.subr.mxu0 0.0
      %5360 = vmatpush1.msra.mxu0 0.0
      %5361 = vmatprep.subr.mxu0 0.0
      %5362 = vmatpush1.msra.mxu0 0.0
      %5363 = vmatprep.subr.mxu0 0.0
      %5364 = vmatpush1.msra.mxu0 0.0
      %5365 = vmatprep.subr.mxu0 0.0
      %5366 = vmatpush1.msra.mxu0 0.0
      %5367 = vmatprep.subr.mxu0 0.0
      %5368 = vmatpush1.msra.mxu0 0.0
      %5369 = vmatprep.subr.mxu0 0.0
      %5370 = vmatpush1.msra.mxu0 0.0
      %5371 = vmatprep.subr.mxu0 0.0
      %5372 = vmatpush1.msra.mxu0 0.0
      %5373 = vmatprep.subr.mxu0 0.0
      %5374 = vmatpush1.msra.mxu0 0.0
      %5375 = vmatprep.subr.mxu0 0.0
      %5376 = vmatpush1.msra.mxu0 0.0
      %5377 = vmatprep.subr.mxu0 0.0
      %5378 = vmatpush1.msra.mxu0 0.0
      %5379 = vmatprep.subr.mxu0 0.0
      %5380 = vmatpush1.msra.mxu0 0.0
      %5381 = vmatprep.subr.mxu0 0.0
      %5382 = vmatpush1.msra.mxu0 0.0
      %5383 = vmatprep.subr.mxu0 0.0
      %5384 = vmatpush1.msra.mxu0 0.0
      %5385 = vmatprep.subr.mxu0 0.0
      %5386 = vmatpush1.msra.mxu0 0.0
      %5387 = vmatprep.subr.mxu0 0.0
      %5388 = vmatpush1.msra.mxu0 0.0
      %5389 = vmatprep.subr.mxu0 0.0
      %5390 = vmatpush1.msra.mxu0 0.0
      %5391 = vmatprep.subr.mxu0 0.0
      %5392 = vmatpush1.msra.mxu0 0.0
      %5393 = vmatprep.subr.mxu0 0.0
      %5394 = vmatpush1.msra.mxu0 0.0
      %5395 = vmatprep.subr.mxu0 0.0
      %5396 = vmatpush1.msra.mxu0 0.0
      %5397 = vmatprep.subr.mxu0 0.0
      %5398 = vmatpush1.msra.mxu0 0.0
      %5399 = vmatprep.subr.mxu0 0.0
      %5400 = vmatpush1.msra.mxu0 0.0
      %5401 = vmatprep.subr.mxu0 0.0
      %5402 = vmatpush1.msra.mxu0 0.0
      %5403 = vmatprep.subr.mxu0 0.0
      %5404 = vmatpush1.msra.mxu0 0.0
      %5405 = vmatprep.subr.mxu0 0.0
      %5406 = vmatpush1.msra.mxu0 0.0
      %5407 = vmatprep.subr.mxu0 0.0
      %5408 = vmatpush1.msra.mxu0 0.0
      %5409 = vmatprep.subr.mxu0 0.0
      %5410 = vmatpush1.msra.mxu0 0.0
      %5411 = vmatprep.subr.mxu0 0.0
      %5412 = vmatpush1.msra.mxu0 0.0
      %5413 = vmatprep.mubr.f32.mxu0 0.0
      %5414 = vmatmul.mubr.f32.gmra.mrb[0].mxu0 %v5344
      %v5415 = vpop.f32.mrb[0].mxu0
      %v5416 = vadd.f32 %v5341, %v5415
      %v5417 = vpop.f32.mrb[0].mxu0
      %5418 = vmatprep.mubr.f32.mxu0 0.0
      %5419 = vmatmul.mubr.f32.gmra.mrb[0].mxu0 %v5347
      %v5420 = vpop.f32.mrb[0].mxu0
      %v5421 = vadd.f32 %v5341, %v5420
      %v5422 = vpop.f32.mrb[0].mxu0
      %5423 = vdwg.mxu0
      %vm5424 = vcmask 80896
      %5425 = vst.msk [vmem:[%s187] sm:$0xff] %vm5424, %v5416
      %5426 = vst.msk [vmem:[%s187 + $0x8] sm:$0xff] %vm5424, %v5421
      %p5427 = scmp.lt.s32.totalorder %s14, 1
      %s5428 = scalar_select %p5427, %s14, 1
      %s5429 = smul.addr %s5428, 2
      %s5430 = smul.addr %s5429, 8
      %s5431 = scalar_lea.vmem %s3, %s5430
      // Predicated region
      $region33: #{_lambda_.1} parent=31 // pred_check
        %p5432 = pneg %p105
      $region34: #{_lambda_.1} parent=31 // pred_check_branch
        %5434 = sbr.rel (%p5432) target = $region36
      $region35: #{_lambda_.1} parent=31 // pred_region
        _
      $region36: #{_lambda_.1} parent=31 // pred_fallthru
        _
    $region32: #{_lambda_.1} parent=5 // pred_fallthru
      _
    %p5435 = scmp.le.s32.totalorder 2, %s9
    // Predicated region
    $region37: #{_lambda_.1} parent=5 // pred_check
      %p5436 = pneg %p5435
    $region38: #{_lambda_.1} parent=5 // pred_check_branch
      %5438 = sbr.rel (%p5436) target = $region40
    $region39: #{_lambda_.1} parent=5 // pred_region
      %s5439 = ssub.s32 %s9, 2
      // Predicated region
      $region41: #{_lambda_.1} parent=39 // pred_check
        %p5440 = pneg %p111
      $region42: #{_lambda_.1} parent=39 // pred_check_branch
        %5442 = sbr.rel (%p5440) target = $region44
      $region43: #{_lambda_.1} parent=39 // pred_region
        %p5443 = scmp.lt.s32.totalorder %s15, 1
        %s5444 = scalar_select %p5443, %s15, 1
        %s5445 = smul.addr %s5444, 2
        %s5446 = smul.addr %s5445, 8
        %s5447 = scalar_lea.vmem %s3, %s5446
      $region44: #{_lambda_.1} parent=39 // pred_fallthru
        _
    $region40: #{_lambda_.1} parent=5 // pred_fallthru
      _
  $region6: #{_lambda_.1} parent=0 // loop_footer
    %s13 = sadd.s32 1, %s9
  $region7: #{_lambda_.1} parent=0 // loop_footer_branch
    %8 = sbr.rel target = $region3
  $region8: #{_lambda_.1} parent=0 // loop_exit
    _

</llo_original>
